<compile_context>
chip_gen: v6e
topology: v6e:2x2x1
jax: 0.10.0
libtpu: 0.0.40
codegen_flags: <defaults>
</compile_context>

<pallas_src>
import jax
import jax.numpy as jnp
from jax import lax
from jax.experimental import pallas as pl
from jax.experimental.pallas import tpu as pltpu


# --------------------------------------------------------------------------
# in-kernel bidirectional LSTM core (one layer, both directions, length-masked)
# --------------------------------------------------------------------------
def _bilstm_core(x_ref, lc_ref,
                 wih_f_ref, whh_f_ref, b_f_ref,
                 wih_b_ref, whh_b_ref, b_b_ref,
                 xw_f, xw_b, hs_f, hs_b, hf, cf, hb, cb):
    """Runs fwd+bwd LSTM over a time-major tile x_ref (T, bn, Din).

    Returns h_all (T, bn, 2H) = concat(fwd, bwd); positions t >= len are zero
    (pad_packed_sequence pads with 0).
    """
    T, bn, din = x_ref.shape
    H = whh_f_ref.shape[0]
    G = 4 * H

    # Hoisted input projection for every timestep & both directions:
    # two big MXU matmuls instead of 4*T tiny ones.
    x_all = x_ref[...].reshape(T * bn, din)
    xw_f[...] = (jnp.dot(x_all, wih_f_ref[...], preferred_element_type=jnp.float32)
                 + b_f_ref[...]).reshape(T, bn, G)
    xw_b[...] = (jnp.dot(x_all, wih_b_ref[...], preferred_element_type=jnp.float32)
                 + b_b_ref[...]).reshape(T, bn, G)

    hf[...] = jnp.zeros_like(hf)
    cf[...] = jnp.zeros_like(cf)
    hb[...] = jnp.zeros_like(hb)
    cb[...] = jnp.zeros_like(cb)
    lens = lc_ref[...]                                   # (bn, 1) int32

    def cell(pre, c):
        # fused gate pre-activations (bn, 4H); PyTorch gate order i, f, g, o
        i_g = jax.nn.sigmoid(pre[:, 0:H])
        f_g = jax.nn.sigmoid(pre[:, H:2 * H])
        g_g = jnp.tanh(pre[:, 2 * H:3 * H])
        o_g = jax.nn.sigmoid(pre[:, 3 * H:4 * H])
        c_new = f_g * c + i_g * g_g
        h_new = o_g * jnp.tanh(c_new)
        return h_new, c_new

    def step(s, carry):
        # ---- forward direction, position t = s ----
        t = s
        h, c = hf[...], cf[...]
        pre = xw_f[t] + jnp.dot(h, whh_f_ref[...],
                                preferred_element_type=jnp.float32)
        h_new, c_new = cell(pre, c)
        valid = t < lens                                  # (bn, 1)
        hf[...] = jnp.where(valid, h_new, h)              # freeze state past len
        cf[...] = jnp.where(valid, c_new, c)
        hs_f[t] = jnp.where(valid, h_new, jnp.zeros_like(h_new))

        # ---- backward direction, position t = T-1-s ----
        # Right-padded sequences: freezing the (still zero) state on trailing
        # invalid positions makes the recurrence start exactly at len-1,
        # matching packed-sequence reverse processing (no gather needed).
        t = T - 1 - s
        h, c = hb[...], cb[...]
        pre = xw_b[t] + jnp.dot(h, whh_b_ref[...],
                                preferred_element_type=jnp.float32)
        h_new, c_new = cell(pre, c)
        valid = t < lens
        hb[...] = jnp.where(valid, h_new, h)
        cb[...] = jnp.where(valid, c_new, c)
        hs_b[t] = jnp.where(valid, h_new, jnp.zeros_like(h_new))
        return carry

    # Short fixed trip count -> fully unrolled for LLO scheduling visibility.
    lax.fori_loop(0, T, step, 0, unroll=True)
    return jnp.concatenate([hs_f[...], hs_b[...]], axis=-1)   # (T, bn, 2H)


def _attn_scores(h_all, w_att_ref, b_att_ref, u_ref):
    """tanh(h W + b) . u  -> (T, bn) scores; context dot as VPU mul + reduce."""
    T, bn, d2 = h_all.shape
    a = jnp.tanh(jnp.dot(h_all.reshape(T * bn, d2), w_att_ref[...],
                         preferred_element_type=jnp.float32) + b_att_ref[...])
    return jnp.sum(a * u_ref[...], axis=-1, keepdims=True).reshape(T, bn)


def _masked_time_softmax(s, lr_ref):
    """Softmax over valid time steps per sequence. s: (T, bn); lr_ref: (1, bn)."""
    T, bn = s.shape
    tidx = lax.broadcasted_iota(jnp.int32, (T, bn), 0)
    mask = tidx < lr_ref[...]
    s = jnp.where(mask, s, -1e30)
    # Per-sequence masked max == reference's global max over packed entries
    # (softmax is shift invariant); finite fill avoids NaNs for empty rows.
    m = jnp.max(s, axis=0, keepdims=True)
    e = jnp.where(mask, jnp.exp(s - m), 0.0)
    denom = jnp.maximum(jnp.sum(e, axis=0, keepdims=True), 1e-30)
    return e / denom


# --------------------------------------------------------------------------
# kernels
# --------------------------------------------------------------------------
def _bilstm_layer_kernel(x_ref, lc_ref,
                         wih_f, whh_f, b_f, wih_b, whh_b, b_b,
                         out_ref,
                         xw_f, xw_b, hs_f, hs_b, hf, cf, hb, cb):
    # Used only for intermediate LSTM layers (num_layers > 1).
    out_ref[...] = _bilstm_core(x_ref, lc_ref, wih_f, whh_f, b_f,
                                wih_b, whh_b, b_b,
                                xw_f, xw_b, hs_f, hs_b, hf, cf, hb, cb)


def _word_fused_kernel(x_ref, lc_ref, lr_ref,
                       wih_f, whh_f, b_f, wih_b, whh_b, b_b,
                       w_att, b_att, u,
                       out_ref,
                       xw_f, xw_b, hs_f, hs_b, hf, cf, hb, cb):
    h_all = _bilstm_core(x_ref, lc_ref, wih_f, whh_f, b_f,
                         wih_b, whh_b, b_b,
                         xw_f, xw_b, hs_f, hs_b, hf, cf, hb, cb)
    s = _attn_scores(h_all, w_att, b_att, u)
    alphas = _masked_time_softmax(s, lr_ref)                # (T, bn)
    # attention-weighted pooling over words -> sentence embeddings (bn, 2H)
    out_ref[...] = jnp.sum(h_all * alphas[:, :, None], axis=0)


def _sent_fused_kernel(x_ref, lc_ref, lr_ref,
                       wih_f, whh_f, b_f, wih_b, whh_b, b_b,
                       w_att, b_att, u, w_fc, b_fc,
                       out_ref,
                       xw_f, xw_b, hs_f, hs_b, hf, cf, hb, cb):
    T, bn, _ = x_ref.shape
    d2 = 2 * whh_f.shape[0]
    C = w_fc.shape[1]
    h_all = _bilstm_core(x_ref, lc_ref, wih_f, whh_f, b_f,
                         wih_b, whh_b, b_b,
                         xw_f, xw_b, hs_f, hs_b, hf, cf, hb, cb)
    s = _attn_scores(h_all, w_att, b_att, u)
    alphas = _masked_time_softmax(s, lr_ref)
    # NOTE: the reference weights sentences but does NOT sum over them.
    weighted = (h_all * alphas[:, :, None]).reshape(T * bn, d2)
    logits = jnp.dot(weighted, w_fc[...],
                     preferred_element_type=jnp.float32) + b_fc[...]
    out_ref[...] = jax.nn.sigmoid(logits).reshape(T, bn, C)


# --------------------------------------------------------------------------
# pallas_call wrappers
# --------------------------------------------------------------------------
def _batch_block(n):
    # Block the packed-batch axis. Must divide n; when tiling (n large) it must
    # be a multiple of 128 so the (1, bn) length blocks satisfy TPU tiling rules.
    if n <= 512:
        return n
    for b in range(512, 127, -128):
        if n % b == 0:
            return b
    return n


def _rep_spec(shape):
    # Weight replicated across the batch grid.
    return pl.BlockSpec(shape, lambda i: (0,) * len(shape))


def _lstm_scratch(T, bn, H):
    return [
        pltpu.VMEM((T, bn, 4 * H), jnp.float32),   # hoisted x@Wih fwd
        pltpu.VMEM((T, bn, 4 * H), jnp.float32),   # hoisted x@Wih bwd
        pltpu.VMEM((T, bn, H), jnp.float32),       # hidden states fwd
        pltpu.VMEM((T, bn, H), jnp.float32),       # hidden states bwd
        pltpu.VMEM((bn, H), jnp.float32),          # h fwd
        pltpu.VMEM((bn, H), jnp.float32),          # c fwd
        pltpu.VMEM((bn, H), jnp.float32),          # h bwd
        pltpu.VMEM((bn, H), jnp.float32),          # c bwd
    ]


def _lstm_weight_specs(din, H):
    G = 4 * H
    one_dir = [_rep_spec((din, G)), _rep_spec((H, G)), _rep_spec((1, G))]
    return one_dir + [_rep_spec((din, G)), _rep_spec((H, G)), _rep_spec((1, G))]


def _lstm_weight_args(layer):
    f, b = layer["fwd"], layer["bwd"]
    return (f["wih"], f["whh"], f["b"], b["wih"], b["whh"], b["b"])


def _bilstm_layer(x_tm, len_col, layer):
    T, N, din = x_tm.shape
    H = layer["fwd"]["whh"].shape[0]
    bn = _batch_block(N)
    return pl.pallas_call(
        _bilstm_layer_kernel,
        out_shape=jax.ShapeDtypeStruct((T, N, 2 * H), jnp.float32),
        grid=(N // bn,),
        in_specs=[pl.BlockSpec((T, bn, din), lambda i: (0, i, 0)),
                  pl.BlockSpec((bn, 1), lambda i: (i, 0))]
                 + _lstm_weight_specs(din, H),
        out_specs=pl.BlockSpec((T, bn, 2 * H), lambda i: (0, i, 0)),
        scratch_shapes=_lstm_scratch(T, bn, H),
        compiler_params=pltpu.CompilerParams(
            dimension_semantics=("parallel",)),
    )(x_tm, len_col, *_lstm_weight_args(layer))


def _word_stage(x_tm, lens, layers, w_att, b_att, u):
    """Word biLSTM stack + word attention pooling. x_tm: (WP, N, E) time-major."""
    T, N, _ = x_tm.shape
    len_col = lens.reshape(N, 1).astype(jnp.int32)
    len_row = lens.reshape(1, N).astype(jnp.int32)
    h = x_tm
    for layer in layers[:-1]:                      # extra LSTM layers (if any)
        h = _bilstm_layer(h, len_col, layer)
    layer = layers[-1]
    din = h.shape[-1]
    H = layer["fwd"]["whh"].shape[0]
    A = w_att.shape[1]
    bn = _batch_block(N)
    return pl.pallas_call(
        _word_fused_kernel,
        out_shape=jax.ShapeDtypeStruct((N, 2 * H), jnp.float32),
        grid=(N // bn,),
        in_specs=[pl.BlockSpec((T, bn, din), lambda i: (0, i, 0)),
                  pl.BlockSpec((bn, 1), lambda i: (i, 0)),
                  pl.BlockSpec((1, bn), lambda i: (0, i))]
                 + _lstm_weight_specs(din, H)
                 + [_rep_spec((2 * H, A)), _rep_spec((1, A)), _rep_spec((1, A))],
        out_specs=pl.BlockSpec((bn, 2 * H), lambda i: (i, 0)),
        scratch_shapes=_lstm_scratch(T, bn, H),
        compiler_params=pltpu.CompilerParams(
            dimension_semantics=("parallel",)),
    )(h, len_col, len_row, *_lstm_weight_args(layer), w_att, b_att, u)


def _sent_stage(x_tm, lens, layers, w_att, b_att, u, w_fc, b_fc):
    """Sentence biLSTM stack + sentence attention + fc + sigmoid.
    x_tm: (SP, Dn, 2*Hw) time-major; returns (SP, Dn, C)."""
    T, N, _ = x_tm.shape
    len_col = lens.reshape(N, 1).astype(jnp.int32)
    len_row = lens.reshape(1, N).astype(jnp.int32)
    h = x_tm
    for layer in layers[:-1]:
        h = _bilstm_layer(h, len_col, layer)
    layer = layers[-1]
    din = h.shape[-1]
    H = layer["fwd"]["whh"].shape[0]
    A = w_att.shape[1]
    C = w_fc.shape[1]
    bn = _batch_block(N)
    return pl.pallas_call(
        _sent_fused_kernel,
        out_shape=jax.ShapeDtypeStruct((T, N, C), jnp.float32),
        grid=(N // bn,),
        in_specs=[pl.BlockSpec((T, bn, din), lambda i: (0, i, 0)),
                  pl.BlockSpec((bn, 1), lambda i: (i, 0)),
                  pl.BlockSpec((1, bn), lambda i: (0, i))]
                 + _lstm_weight_specs(din, H)
                 + [_rep_spec((2 * H, A)), _rep_spec((1, A)), _rep_spec((1, A)),
                    _rep_spec((2 * H, C)), _rep_spec((1, C))],
        out_specs=pl.BlockSpec((T, bn, C), lambda i: (0, i, 0)),
        scratch_shapes=_lstm_scratch(T, bn, H),
        compiler_params=pltpu.CompilerParams(
            dimension_semantics=("parallel",)),
    )(h, len_col, len_row, *_lstm_weight_args(layer), w_att, b_att, u, w_fc, b_fc)


# --------------------------------------------------------------------------
# parameters
# --------------------------------------------------------------------------
def _uniform(key, shape, scale):
    return jax.random.uniform(key, shape, jnp.float32, minval=-scale, maxval=scale)


def _init_lstm_dir(key, din, h):
    k1, k2, k3 = jax.random.split(key, 3)
    sc = 1.0 / float(h) ** 0.5
    return {
        "wih": _uniform(k1, (din, 4 * h), sc),   # fused gates i|f|g|o on lane axis
        "whh": _uniform(k2, (h, 4 * h), sc),
        "b": _uniform(k3, (1, 4 * h), sc),       # b_ih + b_hh folded together
    }


def init_params(key, n_classes, vocab_size, emb_size, word_rnn_size,
                sentence_rnn_size, word_rnn_layers, sentence_rnn_layers,
                word_att_size, sentence_att_size):
    keys = jax.random.split(key, 12)
    params = {"emb": _uniform(keys[0], (vocab_size, emb_size), 1.0)}

    wl = []
    kk = jax.random.split(keys[1], word_rnn_layers * 2)
    for l in range(word_rnn_layers):
        din = emb_size if l == 0 else 2 * word_rnn_size
        wl.append({"fwd": _init_lstm_dir(kk[2 * l], din, word_rnn_size),
                   "bwd": _init_lstm_dir(kk[2 * l + 1], din, word_rnn_size)})
    params["word_lstm"] = wl
    sw = 1.0 / float(2 * word_rnn_size) ** 0.5
    params["w_word_att"] = _uniform(keys[2], (2 * word_rnn_size, word_att_size), sw)
    params["b_word_att"] = _uniform(keys[3], (1, word_att_size), sw)
    params["u_word"] = _uniform(keys[4], (1, word_att_size),
                                1.0 / float(word_att_size) ** 0.5)

    sl = []
    kk = jax.random.split(keys[5], sentence_rnn_layers * 2)
    for l in range(sentence_rnn_layers):
        din = 2 * word_rnn_size if l == 0 else 2 * sentence_rnn_size
        sl.append({"fwd": _init_lstm_dir(kk[2 * l], din, sentence_rnn_size),
                   "bwd": _init_lstm_dir(kk[2 * l + 1], din, sentence_rnn_size)})
    params["sent_lstm"] = sl
    ss = 1.0 / float(2 * sentence_rnn_size) ** 0.5
    # NOTE: the reference module uses sentence_rnn_size (not sentence_att_size)
    # as the sentence attention width -- reproduced here.
    params["w_sent_att"] = _uniform(keys[6], (2 * sentence_rnn_size, sentence_rnn_size), ss)
    params["b_sent_att"] = _uniform(keys[7], (1, sentence_rnn_size), ss)
    params["u_sent"] = _uniform(keys[8], (1, sentence_rnn_size),
                                1.0 / float(sentence_rnn_size) ** 0.5)
    params["w_fc"] = _uniform(keys[9], (2 * sentence_rnn_size, n_classes), ss)
    params["b_fc"] = _uniform(keys[10], (1, n_classes), ss)
    return params


# --------------------------------------------------------------------------
# forward pass
# --------------------------------------------------------------------------
def han_forward(params, documents, sentences_per_document, words_per_sentence):
    Dn, SP, WP = documents.shape
    N = Dn * SP

    # Embedding gather directly in time-major layout: transpose the small int32
    # index tensor, not the (much larger) float activations.
    docs_tm = jnp.transpose(documents, (2, 0, 1)).reshape(WP, N)
    x = params["emb"][docs_tm]                                   # (WP, N, E)

    # Sentences beyond a document's length never enter the packed batch in the
    # reference; give them word-length 0 so they are fully masked (their zero
    # sentence embedding is masked again by the sentence-level lengths).
    sent_valid = (jnp.arange(SP, dtype=jnp.int32)[None, :]
                  < sentences_per_document[:, None])
    eff_wlen = jnp.where(sent_valid, words_per_sentence, 0).reshape(N).astype(jnp.int32)

    # Word-level biLSTM + word attention pooling (single fused kernel).
    sent_emb = _word_stage(x, eff_wlen, params["word_lstm"],
                           params["w_word_att"], params["b_word_att"],
                           params["u_word"])                     # (N, 2*Hw)

    # Sentence-level biLSTM + sentence attention + fc + sigmoid (fused kernel).
    sent_emb_tm = jnp.transpose(sent_emb.reshape(Dn, SP, -1), (1, 0, 2))  # (SP, Dn, 2*Hw)
    doc_lens = sentences_per_document.astype(jnp.int32)
    scores_tm = _sent_stage(sent_emb_tm, doc_lens, params["sent_lstm"],
                            params["w_sent_att"], params["b_sent_att"],
                            params["u_sent"], params["w_fc"], params["b_fc"])
    return jnp.transpose(scores_tm, (1, 0, 2))                   # (Dn, SP, C)


if __name__ == "__main__":
    key = jax.random.PRNGKey(0)

    n_classes = 4
    vocab_size = 50
    emb_size = 16
    word_rnn_size = 16
    sentence_rnn_size = 16
    word_rnn_layers = 1
    sentence_rnn_layers = 1
    word_att_size = 16
    sentence_att_size = 16

    n_docs, sent_pad, word_pad = 2, 4, 8

    kp, kd = jax.random.split(key)
    params = init_params(kp, n_classes, vocab_size, emb_size, word_rnn_size,
                         sentence_rnn_size, word_rnn_layers, sentence_rnn_layers,
                         word_att_size, sentence_att_size)

    documents = jax.random.randint(kd, (n_docs, sent_pad, word_pad),
                                   0, vocab_size, dtype=jnp.int32)
    sentences_per_document = jnp.array([3, 2], dtype=jnp.int32)
    words_per_sentence = jnp.array([[8, 5, 3, 1],
                                    [6, 2, 1, 1]], dtype=jnp.int32)

    scores_full = jax.jit(han_forward)(params, documents,
                                       sentences_per_document,
                                       words_per_sentence)
    # pad_packed_sequence pads only up to max(sentences_per_document).
    s_out = int(jnp.max(sentences_per_document))
    scores = scores_full[:, :s_out, :]
    scores = jax.block_until_ready(scores)

    assert scores.shape == (n_docs, s_out, n_classes)
    assert bool(jnp.all(jnp.isfinite(scores)))
    assert bool(jnp.all((scores >= 0.0) & (scores <= 1.0)))
    print("KERNEL_OK")
</pallas_src>

<mosaic_0001>
module attributes {stable_mosaic.version = 11 : i64} {
  func.func @_word_fused_kernel(%arg0: i32, %arg1: memref<8x8x16xf32, #tpu.memory_space<vmem>>, %arg2: memref<8x1xi32, #tpu.memory_space<vmem>>, %arg3: memref<1x8xi32, #tpu.memory_space<vmem>>, %arg4: memref<16x64xf32, #tpu.memory_space<vmem>>, %arg5: memref<16x64xf32, #tpu.memory_space<vmem>>, %arg6: memref<1x64xf32, #tpu.memory_space<vmem>>, %arg7: memref<16x64xf32, #tpu.memory_space<vmem>>, %arg8: memref<16x64xf32, #tpu.memory_space<vmem>>, %arg9: memref<1x64xf32, #tpu.memory_space<vmem>>, %arg10: memref<32x16xf32, #tpu.memory_space<vmem>>, %arg11: memref<1x16xf32, #tpu.memory_space<vmem>>, %arg12: memref<1x16xf32, #tpu.memory_space<vmem>>, %arg13: memref<8x32xf32, #tpu.memory_space<vmem>>, %arg14: memref<8x8x64xf32, #tpu.memory_space<vmem>>, %arg15: memref<8x8x64xf32, #tpu.memory_space<vmem>>, %arg16: memref<8x8x16xf32, #tpu.memory_space<vmem>>, %arg17: memref<8x8x16xf32, #tpu.memory_space<vmem>>, %arg18: memref<8x16xf32, #tpu.memory_space<vmem>>, %arg19: memref<8x16xf32, #tpu.memory_space<vmem>>, %arg20: memref<8x16xf32, #tpu.memory_space<vmem>>, %arg21: memref<8x16xf32, #tpu.memory_space<vmem>>) attributes {dimension_semantics = [#tpu.dimension_semantics<parallel>], iteration_bounds = array<i64: 1>, scalar_prefetch = 0 : i64, scratch_operands = 8 : i64, tpu.core_type = #tpu.core_type<tc>, window_params = [{transform_indices = @transform_0, window_bounds = array<i64: 8, 8, 16>}, {transform_indices = @transform_1, window_bounds = array<i64: 8, 1>}, {transform_indices = @transform_2, window_bounds = array<i64: 1, 8>}, {pipeline_mode = #tpu.pipeline_mode<synchronous>, transform_indices = @transform_3, window_bounds = array<i64: 16, 64>}, {pipeline_mode = #tpu.pipeline_mode<synchronous>, transform_indices = @transform_4, window_bounds = array<i64: 16, 64>}, {pipeline_mode = #tpu.pipeline_mode<synchronous>, transform_indices = @transform_5, window_bounds = array<i64: 1, 64>}, {pipeline_mode = #tpu.pipeline_mode<synchronous>, transform_indices = @transform_6, window_bounds = array<i64: 16, 64>}, {pipeline_mode = #tpu.pipeline_mode<synchronous>, transform_indices = @transform_7, window_bounds = array<i64: 16, 64>}, {pipeline_mode = #tpu.pipeline_mode<synchronous>, transform_indices = @transform_8, window_bounds = array<i64: 1, 64>}, {pipeline_mode = #tpu.pipeline_mode<synchronous>, transform_indices = @transform_9, window_bounds = array<i64: 32, 16>}, {pipeline_mode = #tpu.pipeline_mode<synchronous>, transform_indices = @transform_10, window_bounds = array<i64: 1, 16>}, {pipeline_mode = #tpu.pipeline_mode<synchronous>, transform_indices = @transform_11, window_bounds = array<i64: 1, 16>}, {transform_indices = @transform_12, window_bounds = array<i64: 8, 32>}]} {
    %c0 = arith.constant 0 : index
    %c0_0 = arith.constant 0 : index
    %c0_1 = arith.constant 0 : index
    %0 = vector.load %arg1[%c0, %c0_0, %c0_1] : memref<8x8x16xf32, #tpu.memory_space<vmem>>, vector<8x8x16xf32>
    %1 = vector.shape_cast %0 : vector<8x8x16xf32> to vector<64x16xf32>
    %c0_2 = arith.constant 0 : index
    %c0_3 = arith.constant 0 : index
    %2 = vector.load %arg4[%c0_2, %c0_3] : memref<16x64xf32, #tpu.memory_space<vmem>>, vector<16x64xf32>
    %cst = arith.constant dense<0.000000e+00> : vector<64x64xf32>
    %3 = tpu.matmul %1, %2, %cst {dimension_numbers = #tpu.dot_dimension_numbers<[1], [0], [0], [1], [0, 0, 1, 1], [], []>} : vector<64x16xf32>, vector<16x64xf32>, vector<64x64xf32> -> vector<64x64xf32>
    %c0_4 = arith.constant 0 : index
    %c0_5 = arith.constant 0 : index
    %4 = vector.load %arg6[%c0_4, %c0_5] : memref<1x64xf32, #tpu.memory_space<vmem>>, vector<1x64xf32>
    %5 = vector.broadcast %4 : vector<1x64xf32> to vector<64x64xf32>
    %6 = arith.addf %3, %5 : vector<64x64xf32>
    %7 = vector.shape_cast %6 : vector<64x64xf32> to vector<8x8x64xf32>
    %c0_6 = arith.constant 0 : index
    %c0_7 = arith.constant 0 : index
    %c0_8 = arith.constant 0 : index
    %8 = vector.load %arg14[%c0_6, %c0_7, %c0_8] : memref<8x8x64xf32, #tpu.memory_space<vmem>>, vector<8x8x64xf32>
    tpu.vector_store %arg14[%c0_6, %c0_7, %c0_8], %7 {strides = array<i32>} : memref<8x8x64xf32, #tpu.memory_space<vmem>>, vector<8x8x64xf32>,
    %c0_9 = arith.constant 0 : index
    %c0_10 = arith.constant 0 : index
    %9 = vector.load %arg7[%c0_9, %c0_10] : memref<16x64xf32, #tpu.memory_space<vmem>>, vector<16x64xf32>
    %cst_11 = arith.constant dense<0.000000e+00> : vector<64x64xf32>
    %10 = tpu.matmul %1, %9, %cst_11 {dimension_numbers = #tpu.dot_dimension_numbers<[1], [0], [0], [1], [0, 0, 1, 1], [], []>} : vector<64x16xf32>, vector<16x64xf32>, vector<64x64xf32> -> vector<64x64xf32>
    %c0_12 = arith.constant 0 : index
    %c0_13 = arith.constant 0 : index
    %11 = vector.load %arg9[%c0_12, %c0_13] : memref<1x64xf32, #tpu.memory_space<vmem>>, vector<1x64xf32>
    %12 = vector.broadcast %11 : vector<1x64xf32> to vector<64x64xf32>
    %13 = arith.addf %10, %12 : vector<64x64xf32>
    %14 = vector.shape_cast %13 : vector<64x64xf32> to vector<8x8x64xf32>
    %c0_14 = arith.constant 0 : index
    %c0_15 = arith.constant 0 : index
    %c0_16 = arith.constant 0 : index
    %15 = vector.load %arg15[%c0_14, %c0_15, %c0_16] : memref<8x8x64xf32, #tpu.memory_space<vmem>>, vector<8x8x64xf32>
    tpu.vector_store %arg15[%c0_14, %c0_15, %c0_16], %14 {strides = array<i32>} : memref<8x8x64xf32, #tpu.memory_space<vmem>>, vector<8x8x64xf32>,
    %cst_17 = arith.constant 0.000000e+00 : f32
    %16 = vector.broadcast %cst_17 : f32 to vector<8x16xf32>
    %c0_18 = arith.constant 0 : index
    %c0_19 = arith.constant 0 : index
    %17 = vector.load %arg18[%c0_18, %c0_19] : memref<8x16xf32, #tpu.memory_space<vmem>>, vector<8x16xf32>
    tpu.vector_store %arg18[%c0_18, %c0_19], %16 {strides = array<i32>} : memref<8x16xf32, #tpu.memory_space<vmem>>, vector<8x16xf32>,
    %cst_20 = arith.constant 0.000000e+00 : f32
    %18 = vector.broadcast %cst_20 : f32 to vector<8x16xf32>
    %c0_21 = arith.constant 0 : index
    %c0_22 = arith.constant 0 : index
    %19 = vector.load %arg19[%c0_21, %c0_22] : memref<8x16xf32, #tpu.memory_space<vmem>>, vector<8x16xf32>
    tpu.vector_store %arg19[%c0_21, %c0_22], %18 {strides = array<i32>} : memref<8x16xf32, #tpu.memory_space<vmem>>, vector<8x16xf32>,
    %cst_23 = arith.constant 0.000000e+00 : f32
    %20 = vector.broadcast %cst_23 : f32 to vector<8x16xf32>
    %c0_24 = arith.constant 0 : index
    %c0_25 = arith.constant 0 : index
    %21 = vector.load %arg20[%c0_24, %c0_25] : memref<8x16xf32, #tpu.memory_space<vmem>>, vector<8x16xf32>
    tpu.vector_store %arg20[%c0_24, %c0_25], %20 {strides = array<i32>} : memref<8x16xf32, #tpu.memory_space<vmem>>, vector<8x16xf32>,
    %cst_26 = arith.constant 0.000000e+00 : f32
    %22 = vector.broadcast %cst_26 : f32 to vector<8x16xf32>
    %c0_27 = arith.constant 0 : index
    %c0_28 = arith.constant 0 : index
    %23 = vector.load %arg21[%c0_27, %c0_28] : memref<8x16xf32, #tpu.memory_space<vmem>>, vector<8x16xf32>
    tpu.vector_store %arg21[%c0_27, %c0_28], %22 {strides = array<i32>} : memref<8x16xf32, #tpu.memory_space<vmem>>, vector<8x16xf32>,
    %c0_29 = arith.constant 0 : index
    %c0_30 = arith.constant 0 : index
    %24 = vector.load %arg2[%c0_29, %c0_30] : memref<8x1xi32, #tpu.memory_space<vmem>>, vector<8x1xi32>
    %c0_i32 = arith.constant 0 : i32
    %c0_31 = arith.constant 0 : index
    %c0_32 = arith.constant 0 : index
    %25 = vector.load %arg18[%c0_31, %c0_32] : memref<8x16xf32, #tpu.memory_space<vmem>>, vector<8x16xf32>
    %c0_33 = arith.constant 0 : index
    %c0_34 = arith.constant 0 : index
    %26 = vector.load %arg19[%c0_33, %c0_34] : memref<8x16xf32, #tpu.memory_space<vmem>>, vector<8x16xf32>
    %27 = arith.index_cast %c0_i32 : i32 to index
    %c0_35 = arith.constant 0 : index
    %c0_36 = arith.constant 0 : index
    %28 = vector.load %arg14[%27, %c0_35, %c0_36] : memref<8x8x64xf32, #tpu.memory_space<vmem>>, vector<1x8x64xf32>
    %29 = vector.shape_cast %28 : vector<1x8x64xf32> to vector<8x64xf32>
    %c0_37 = arith.constant 0 : index
    %c0_38 = arith.constant 0 : index
    %30 = vector.load %arg5[%c0_37, %c0_38] : memref<16x64xf32, #tpu.memory_space<vmem>>, vector<16x64xf32>
    %cst_39 = arith.constant dense<0.000000e+00> : vector<8x64xf32>
    %31 = tpu.matmul %25, %30, %cst_39 {dimension_numbers = #tpu.dot_dimension_numbers<[1], [0], [0], [1], [0, 0, 1, 1], [], []>} : vector<8x16xf32>, vector<16x64xf32>, vector<8x64xf32> -> vector<8x64xf32>
    %32 = arith.addf %29, %31 : vector<8x64xf32>
    %33 = vector.extract_strided_slice %32 {offsets = [0, 0], sizes = [8, 16], strides = [1, 1]} : vector<8x64xf32> to vector<8x16xf32>
    %34 = arith.negf %33 : vector<8x16xf32>
    %35 = math.exp %34 : vector<8x16xf32>
    %cst_40 = arith.constant 1.000000e+00 : f32
    %36 = vector.broadcast %cst_40 : f32 to vector<8x16xf32>
    %37 = arith.addf %36, %35 : vector<8x16xf32>
    %38 = arith.divf %36, %37 : vector<8x16xf32>
    %39 = vector.extract_strided_slice %32 {offsets = [0, 16], sizes = [8, 16], strides = [1, 1]} : vector<8x64xf32> to vector<8x16xf32>
    %40 = arith.negf %39 : vector<8x16xf32>
    %41 = math.exp %40 : vector<8x16xf32>
    %cst_41 = arith.constant 1.000000e+00 : f32
    %42 = vector.broadcast %cst_41 : f32 to vector<8x16xf32>
    %43 = arith.addf %42, %41 : vector<8x16xf32>
    %44 = arith.divf %42, %43 : vector<8x16xf32>
    %45 = vector.extract_strided_slice %32 {offsets = [0, 32], sizes = [8, 16], strides = [1, 1]} : vector<8x64xf32> to vector<8x16xf32>
    %46 = math.tanh %45 : vector<8x16xf32>
    %47 = vector.extract_strided_slice %32 {offsets = [0, 48], sizes = [8, 16], strides = [1, 1]} : vector<8x64xf32> to vector<8x16xf32>
    %48 = arith.negf %47 : vector<8x16xf32>
    %49 = math.exp %48 : vector<8x16xf32>
    %cst_42 = arith.constant 1.000000e+00 : f32
    %50 = vector.broadcast %cst_42 : f32 to vector<8x16xf32>
    %51 = arith.addf %50, %49 : vector<8x16xf32>
    %52 = arith.divf %50, %51 : vector<8x16xf32>
    %53 = arith.mulf %44, %26 : vector<8x16xf32>
    %54 = arith.mulf %38, %46 : vector<8x16xf32>
    %55 = arith.addf %53, %54 : vector<8x16xf32>
    %56 = math.tanh %55 : vector<8x16xf32>
    %57 = arith.mulf %52, %56 : vector<8x16xf32>
    %58 = vector.broadcast %c0_i32 : i32 to vector<8x1xi32>
    %59 = arith.cmpi slt, %58, %24 : vector<8x1xi32>
    %60 = vector.shape_cast %59 : vector<8x1xi1> to vector<8x1xi1>
    %61 = vector.broadcast %60 : vector<8x1xi1> to vector<8x16xi1>
    %62 = arith.select %61, %57, %25 : vector<8x16xi1>, vector<8x16xf32>
    %c0_43 = arith.constant 0 : index
    %c0_44 = arith.constant 0 : index
    %63 = vector.load %arg18[%c0_43, %c0_44] : memref<8x16xf32, #tpu.memory_space<vmem>>, vector<8x16xf32>
    tpu.vector_store %arg18[%c0_43, %c0_44], %62 {strides = array<i32>} : memref<8x16xf32, #tpu.memory_space<vmem>>, vector<8x16xf32>,
    %64 = vector.shape_cast %59 : vector<8x1xi1> to vector<8x1xi1>
    %65 = vector.broadcast %64 : vector<8x1xi1> to vector<8x16xi1>
    %66 = arith.select %65, %55, %26 : vector<8x16xi1>, vector<8x16xf32>
    %c0_45 = arith.constant 0 : index
    %c0_46 = arith.constant 0 : index
    %67 = vector.load %arg19[%c0_45, %c0_46] : memref<8x16xf32, #tpu.memory_space<vmem>>, vector<8x16xf32>
    tpu.vector_store %arg19[%c0_45, %c0_46], %66 {strides = array<i32>} : memref<8x16xf32, #tpu.memory_space<vmem>>, vector<8x16xf32>,
    %cst_47 = arith.constant 0.000000e+00 : f32
    %68 = vector.broadcast %cst_47 : f32 to vector<8x16xf32>
    %69 = vector.shape_cast %59 : vector<8x1xi1> to vector<8x1xi1>
    %70 = vector.broadcast %69 : vector<8x1xi1> to vector<8x16xi1>
    %71 = arith.select %70, %57, %68 : vector<8x16xi1>, vector<8x16xf32>
    %72 = arith.index_cast %c0_i32 : i32 to index
    %c0_48 = arith.constant 0 : index
    %c0_49 = arith.constant 0 : index
    %73 = vector.load %arg16[%72, %c0_48, %c0_49] : memref<8x8x16xf32, #tpu.memory_space<vmem>>, vector<1x8x16xf32>
    %74 = vector.shape_cast %73 : vector<1x8x16xf32> to vector<8x16xf32>
    %75 = vector.shape_cast %71 : vector<8x16xf32> to vector<1x8x16xf32>
    tpu.vector_store %arg16[%72, %c0_48, %c0_49], %75 {strides = array<i32>} : memref<8x8x16xf32, #tpu.memory_space<vmem>>, vector<1x8x16xf32>,
    %c7_i32 = arith.constant 7 : i32
    %76 = arith.subi %c7_i32, %c0_i32 : i32
    %c0_50 = arith.constant 0 : index
    %c0_51 = arith.constant 0 : index
    %77 = vector.load %arg20[%c0_50, %c0_51] : memref<8x16xf32, #tpu.memory_space<vmem>>, vector<8x16xf32>
    %c0_52 = arith.constant 0 : index
    %c0_53 = arith.constant 0 : index
    %78 = vector.load %arg21[%c0_52, %c0_53] : memref<8x16xf32, #tpu.memory_space<vmem>>, vector<8x16xf32>
    %79 = arith.index_cast %76 : i32 to index
    %c0_54 = arith.constant 0 : index
    %c0_55 = arith.constant 0 : index
    %80 = vector.load %arg15[%79, %c0_54, %c0_55] : memref<8x8x64xf32, #tpu.memory_space<vmem>>, vector<1x8x64xf32>
    %81 = vector.shape_cast %80 : vector<1x8x64xf32> to vector<8x64xf32>
    %c0_56 = arith.constant 0 : index
    %c0_57 = arith.constant 0 : index
    %82 = vector.load %arg8[%c0_56, %c0_57] : memref<16x64xf32, #tpu.memory_space<vmem>>, vector<16x64xf32>
    %cst_58 = arith.constant dense<0.000000e+00> : vector<8x64xf32>
    %83 = tpu.matmul %77, %82, %cst_58 {dimension_numbers = #tpu.dot_dimension_numbers<[1], [0], [0], [1], [0, 0, 1, 1], [], []>} : vector<8x16xf32>, vector<16x64xf32>, vector<8x64xf32> -> vector<8x64xf32>
    %84 = arith.addf %81, %83 : vector<8x64xf32>
    %85 = vector.extract_strided_slice %84 {offsets = [0, 0], sizes = [8, 16], strides = [1, 1]} : vector<8x64xf32> to vector<8x16xf32>
    %86 = arith.negf %85 : vector<8x16xf32>
    %87 = math.exp %86 : vector<8x16xf32>
    %cst_59 = arith.constant 1.000000e+00 : f32
    %88 = vector.broadcast %cst_59 : f32 to vector<8x16xf32>
    %89 = arith.addf %88, %87 : vector<8x16xf32>
    %90 = arith.divf %88, %89 : vector<8x16xf32>
    %91 = vector.extract_strided_slice %84 {offsets = [0, 16], sizes = [8, 16], strides = [1, 1]} : vector<8x64xf32> to vector<8x16xf32>
    %92 = arith.negf %91 : vector<8x16xf32>
    %93 = math.exp %92 : vector<8x16xf32>
    %cst_60 = arith.constant 1.000000e+00 : f32
    %94 = vector.broadcast %cst_60 : f32 to vector<8x16xf32>
    %95 = arith.addf %94, %93 : vector<8x16xf32>
    %96 = arith.divf %94, %95 : vector<8x16xf32>
    %97 = vector.extract_strided_slice %84 {offsets = [0, 32], sizes = [8, 16], strides = [1, 1]} : vector<8x64xf32> to vector<8x16xf32>
    %98 = math.tanh %97 : vector<8x16xf32>
    %99 = vector.extract_strided_slice %84 {offsets = [0, 48], sizes = [8, 16], strides = [1, 1]} : vector<8x64xf32> to vector<8x16xf32>
    %100 = arith.negf %99 : vector<8x16xf32>
    %101 = math.exp %100 : vector<8x16xf32>
    %cst_61 = arith.constant 1.000000e+00 : f32
    %102 = vector.broadcast %cst_61 : f32 to vector<8x16xf32>
    %103 = arith.addf %102, %101 : vector<8x16xf32>
    %104 = arith.divf %102, %103 : vector<8x16xf32>
    %105 = arith.mulf %96, %78 : vector<8x16xf32>
    %106 = arith.mulf %90, %98 : vector<8x16xf32>
    %107 = arith.addf %105, %106 : vector<8x16xf32>
    %108 = math.tanh %107 : vector<8x16xf32>
    %109 = arith.mulf %104, %108 : vector<8x16xf32>
    %110 = vector.broadcast %76 : i32 to vector<8x1xi32>
    %111 = arith.cmpi slt, %110, %24 : vector<8x1xi32>
    %112 = vector.shape_cast %111 : vector<8x1xi1> to vector<8x1xi1>
    %113 = vector.broadcast %112 : vector<8x1xi1> to vector<8x16xi1>
    %114 = arith.select %113, %109, %77 : vector<8x16xi1>, vector<8x16xf32>
    %c0_62 = arith.constant 0 : index
    %c0_63 = arith.constant 0 : index
    %115 = vector.load %arg20[%c0_62, %c0_63] : memref<8x16xf32, #tpu.memory_space<vmem>>, vector<8x16xf32>
    tpu.vector_store %arg20[%c0_62, %c0_63], %114 {strides = array<i32>} : memref<8x16xf32, #tpu.memory_space<vmem>>, vector<8x16xf32>,
    %116 = vector.shape_cast %111 : vector<8x1xi1> to vector<8x1xi1>
    %117 = vector.broadcast %116 : vector<8x1xi1> to vector<8x16xi1>
    %118 = arith.select %117, %107, %78 : vector<8x16xi1>, vector<8x16xf32>
    %c0_64 = arith.constant 0 : index
    %c0_65 = arith.constant 0 : index
    %119 = vector.load %arg21[%c0_64, %c0_65] : memref<8x16xf32, #tpu.memory_space<vmem>>, vector<8x16xf32>
    tpu.vector_store %arg21[%c0_64, %c0_65], %118 {strides = array<i32>} : memref<8x16xf32, #tpu.memory_space<vmem>>, vector<8x16xf32>,
    %cst_66 = arith.constant 0.000000e+00 : f32
    %120 = vector.broadcast %cst_66 : f32 to vector<8x16xf32>
    %121 = vector.shape_cast %111 : vector<8x1xi1> to vector<8x1xi1>
    %122 = vector.broadcast %121 : vector<8x1xi1> to vector<8x16xi1>
    %123 = arith.select %122, %109, %120 : vector<8x16xi1>, vector<8x16xf32>
    %124 = arith.index_cast %76 : i32 to index
    %c0_67 = arith.constant 0 : index
    %c0_68 = arith.constant 0 : index
    %125 = vector.load %arg17[%124, %c0_67, %c0_68] : memref<8x8x16xf32, #tpu.memory_space<vmem>>, vector<1x8x16xf32>
    %126 = vector.shape_cast %125 : vector<1x8x16xf32> to vector<8x16xf32>
    %127 = vector.shape_cast %123 : vector<8x16xf32> to vector<1x8x16xf32>
    tpu.vector_store %arg17[%124, %c0_67, %c0_68], %127 {strides = array<i32>} : memref<8x8x16xf32, #tpu.memory_space<vmem>>, vector<1x8x16xf32>,
    %c1_i32 = arith.constant 1 : i32
    %c0_69 = arith.constant 0 : index
    %c0_70 = arith.constant 0 : index
    %128 = vector.load %arg18[%c0_69, %c0_70] : memref<8x16xf32, #tpu.memory_space<vmem>>, vector<8x16xf32>
    %c0_71 = arith.constant 0 : index
    %c0_72 = arith.constant 0 : index
    %129 = vector.load %arg19[%c0_71, %c0_72] : memref<8x16xf32, #tpu.memory_space<vmem>>, vector<8x16xf32>
    %130 = arith.index_cast %c1_i32 : i32 to index
    %c0_73 = arith.constant 0 : index
    %c0_74 = arith.constant 0 : index
    %131 = vector.load %arg14[%130, %c0_73, %c0_74] : memref<8x8x64xf32, #tpu.memory_space<vmem>>, vector<1x8x64xf32>
    %132 = vector.shape_cast %131 : vector<1x8x64xf32> to vector<8x64xf32>
    %c0_75 = arith.constant 0 : index
    %c0_76 = arith.constant 0 : index
    %133 = vector.load %arg5[%c0_75, %c0_76] : memref<16x64xf32, #tpu.memory_space<vmem>>, vector<16x64xf32>
    %cst_77 = arith.constant dense<0.000000e+00> : vector<8x64xf32>
    %134 = tpu.matmul %128, %133, %cst_77 {dimension_numbers = #tpu.dot_dimension_numbers<[1], [0], [0], [1], [0, 0, 1, 1], [], []>} : vector<8x16xf32>, vector<16x64xf32>, vector<8x64xf32> -> vector<8x64xf32>
    %135 = arith.addf %132, %134 : vector<8x64xf32>
    %136 = vector.extract_strided_slice %135 {offsets = [0, 0], sizes = [8, 16], strides = [1, 1]} : vector<8x64xf32> to vector<8x16xf32>
    %137 = arith.negf %136 : vector<8x16xf32>
    %138 = math.exp %137 : vector<8x16xf32>
    %cst_78 = arith.constant 1.000000e+00 : f32
    %139 = vector.broadcast %cst_78 : f32 to vector<8x16xf32>
    %140 = arith.addf %139, %138 : vector<8x16xf32>
    %141 = arith.divf %139, %140 : vector<8x16xf32>
    %142 = vector.extract_strided_slice %135 {offsets = [0, 16], sizes = [8, 16], strides = [1, 1]} : vector<8x64xf32> to vector<8x16xf32>
    %143 = arith.negf %142 : vector<8x16xf32>
    %144 = math.exp %143 : vector<8x16xf32>
    %cst_79 = arith.constant 1.000000e+00 : f32
    %145 = vector.broadcast %cst_79 : f32 to vector<8x16xf32>
    %146 = arith.addf %145, %144 : vector<8x16xf32>
    %147 = arith.divf %145, %146 : vector<8x16xf32>
    %148 = vector.extract_strided_slice %135 {offsets = [0, 32], sizes = [8, 16], strides = [1, 1]} : vector<8x64xf32> to vector<8x16xf32>
    %149 = math.tanh %148 : vector<8x16xf32>
    %150 = vector.extract_strided_slice %135 {offsets = [0, 48], sizes = [8, 16], strides = [1, 1]} : vector<8x64xf32> to vector<8x16xf32>
    %151 = arith.negf %150 : vector<8x16xf32>
    %152 = math.exp %151 : vector<8x16xf32>
    %cst_80 = arith.constant 1.000000e+00 : f32
    %153 = vector.broadcast %cst_80 : f32 to vector<8x16xf32>
    %154 = arith.addf %153, %152 : vector<8x16xf32>
    %155 = arith.divf %153, %154 : vector<8x16xf32>
    %156 = arith.mulf %147, %129 : vector<8x16xf32>
    %157 = arith.mulf %141, %149 : vector<8x16xf32>
    %158 = arith.addf %156, %157 : vector<8x16xf32>
    %159 = math.tanh %158 : vector<8x16xf32>
    %160 = arith.mulf %155, %159 : vector<8x16xf32>
    %161 = vector.broadcast %c1_i32 : i32 to vector<8x1xi32>
    %162 = arith.cmpi slt, %161, %24 : vector<8x1xi32>
    %163 = vector.shape_cast %162 : vector<8x1xi1> to vector<8x1xi1>
    %164 = vector.broadcast %163 : vector<8x1xi1> to vector<8x16xi1>
    %165 = arith.select %164, %160, %128 : vector<8x16xi1>, vector<8x16xf32>
    %c0_81 = arith.constant 0 : index
    %c0_82 = arith.constant 0 : index
    %166 = vector.load %arg18[%c0_81, %c0_82] : memref<8x16xf32, #tpu.memory_space<vmem>>, vector<8x16xf32>
    tpu.vector_store %arg18[%c0_81, %c0_82], %165 {strides = array<i32>} : memref<8x16xf32, #tpu.memory_space<vmem>>, vector<8x16xf32>,
    %167 = vector.shape_cast %162 : vector<8x1xi1> to vector<8x1xi1>
    %168 = vector.broadcast %167 : vector<8x1xi1> to vector<8x16xi1>
    %169 = arith.select %168, %158, %129 : vector<8x16xi1>, vector<8x16xf32>
    %c0_83 = arith.constant 0 : index
    %c0_84 = arith.constant 0 : index
    %170 = vector.load %arg19[%c0_83, %c0_84] : memref<8x16xf32, #tpu.memory_space<vmem>>, vector<8x16xf32>
    tpu.vector_store %arg19[%c0_83, %c0_84], %169 {strides = array<i32>} : memref<8x16xf32, #tpu.memory_space<vmem>>, vector<8x16xf32>,
    %cst_85 = arith.constant 0.000000e+00 : f32
    %171 = vector.broadcast %cst_85 : f32 to vector<8x16xf32>
    %172 = vector.shape_cast %162 : vector<8x1xi1> to vector<8x1xi1>
    %173 = vector.broadcast %172 : vector<8x1xi1> to vector<8x16xi1>
    %174 = arith.select %173, %160, %171 : vector<8x16xi1>, vector<8x16xf32>
    %175 = arith.index_cast %c1_i32 : i32 to index
    %c0_86 = arith.constant 0 : index
    %c0_87 = arith.constant 0 : index
    %176 = vector.load %arg16[%175, %c0_86, %c0_87] : memref<8x8x16xf32, #tpu.memory_space<vmem>>, vector<1x8x16xf32>
    %177 = vector.shape_cast %176 : vector<1x8x16xf32> to vector<8x16xf32>
    %178 = vector.shape_cast %174 : vector<8x16xf32> to vector<1x8x16xf32>
    tpu.vector_store %arg16[%175, %c0_86, %c0_87], %178 {strides = array<i32>} : memref<8x8x16xf32, #tpu.memory_space<vmem>>, vector<1x8x16xf32>,
    %c7_i32_88 = arith.constant 7 : i32
    %179 = arith.subi %c7_i32_88, %c1_i32 : i32
    %c0_89 = arith.constant 0 : index
    %c0_90 = arith.constant 0 : index
    %180 = vector.load %arg20[%c0_89, %c0_90] : memref<8x16xf32, #tpu.memory_space<vmem>>, vector<8x16xf32>
    %c0_91 = arith.constant 0 : index
    %c0_92 = arith.constant 0 : index
    %181 = vector.load %arg21[%c0_91, %c0_92] : memref<8x16xf32, #tpu.memory_space<vmem>>, vector<8x16xf32>
    %182 = arith.index_cast %179 : i32 to index
    %c0_93 = arith.constant 0 : index
    %c0_94 = arith.constant 0 : index
    %183 = vector.load %arg15[%182, %c0_93, %c0_94] : memref<8x8x64xf32, #tpu.memory_space<vmem>>, vector<1x8x64xf32>
    %184 = vector.shape_cast %183 : vector<1x8x64xf32> to vector<8x64xf32>
    %c0_95 = arith.constant 0 : index
    %c0_96 = arith.constant 0 : index
    %185 = vector.load %arg8[%c0_95, %c0_96] : memref<16x64xf32, #tpu.memory_space<vmem>>, vector<16x64xf32>
    %cst_97 = arith.constant dense<0.000000e+00> : vector<8x64xf32>
    %186 = tpu.matmul %180, %185, %cst_97 {dimension_numbers = #tpu.dot_dimension_numbers<[1], [0], [0], [1], [0, 0, 1, 1], [], []>} : vector<8x16xf32>, vector<16x64xf32>, vector<8x64xf32> -> vector<8x64xf32>
    %187 = arith.addf %184, %186 : vector<8x64xf32>
    %188 = vector.extract_strided_slice %187 {offsets = [0, 0], sizes = [8, 16], strides = [1, 1]} : vector<8x64xf32> to vector<8x16xf32>
    %189 = arith.negf %188 : vector<8x16xf32>
    %190 = math.exp %189 : vector<8x16xf32>
    %cst_98 = arith.constant 1.000000e+00 : f32
    %191 = vector.broadcast %cst_98 : f32 to vector<8x16xf32>
    %192 = arith.addf %191, %190 : vector<8x16xf32>
    %193 = arith.divf %191, %192 : vector<8x16xf32>
    %194 = vector.extract_strided_slice %187 {offsets = [0, 16], sizes = [8, 16], strides = [1, 1]} : vector<8x64xf32> to vector<8x16xf32>
    %195 = arith.negf %194 : vector<8x16xf32>
    %196 = math.exp %195 : vector<8x16xf32>
    %cst_99 = arith.constant 1.000000e+00 : f32
    %197 = vector.broadcast %cst_99 : f32 to vector<8x16xf32>
    %198 = arith.addf %197, %196 : vector<8x16xf32>
    %199 = arith.divf %197, %198 : vector<8x16xf32>
    %200 = vector.extract_strided_slice %187 {offsets = [0, 32], sizes = [8, 16], strides = [1, 1]} : vector<8x64xf32> to vector<8x16xf32>
    %201 = math.tanh %200 : vector<8x16xf32>
    %202 = vector.extract_strided_slice %187 {offsets = [0, 48], sizes = [8, 16], strides = [1, 1]} : vector<8x64xf32> to vector<8x16xf32>
    %203 = arith.negf %202 : vector<8x16xf32>
    %204 = math.exp %203 : vector<8x16xf32>
    %cst_100 = arith.constant 1.000000e+00 : f32
    %205 = vector.broadcast %cst_100 : f32 to vector<8x16xf32>
    %206 = arith.addf %205, %204 : vector<8x16xf32>
    %207 = arith.divf %205, %206 : vector<8x16xf32>
    %208 = arith.mulf %199, %181 : vector<8x16xf32>
    %209 = arith.mulf %193, %201 : vector<8x16xf32>
    %210 = arith.addf %208, %209 : vector<8x16xf32>
    %211 = math.tanh %210 : vector<8x16xf32>
    %212 = arith.mulf %207, %211 : vector<8x16xf32>
    %213 = vector.broadcast %179 : i32 to vector<8x1xi32>
    %214 = arith.cmpi slt, %213, %24 : vector<8x1xi32>
    %215 = vector.shape_cast %214 : vector<8x1xi1> to vector<8x1xi1>
    %216 = vector.broadcast %215 : vector<8x1xi1> to vector<8x16xi1>
    %217 = arith.select %216, %212, %180 : vector<8x16xi1>, vector<8x16xf32>
    %c0_101 = arith.constant 0 : index
    %c0_102 = arith.constant 0 : index
    %218 = vector.load %arg20[%c0_101, %c0_102] : memref<8x16xf32, #tpu.memory_space<vmem>>, vector<8x16xf32>
    tpu.vector_store %arg20[%c0_101, %c0_102], %217 {strides = array<i32>} : memref<8x16xf32, #tpu.memory_space<vmem>>, vector<8x16xf32>,
    %219 = vector.shape_cast %214 : vector<8x1xi1> to vector<8x1xi1>
    %220 = vector.broadcast %219 : vector<8x1xi1> to vector<8x16xi1>
    %221 = arith.select %220, %210, %181 : vector<8x16xi1>, vector<8x16xf32>
    %c0_103 = arith.constant 0 : index
    %c0_104 = arith.constant 0 : index
    %222 = vector.load %arg21[%c0_103, %c0_104] : memref<8x16xf32, #tpu.memory_space<vmem>>, vector<8x16xf32>
    tpu.vector_store %arg21[%c0_103, %c0_104], %221 {strides = array<i32>} : memref<8x16xf32, #tpu.memory_space<vmem>>, vector<8x16xf32>,
    %cst_105 = arith.constant 0.000000e+00 : f32
    %223 = vector.broadcast %cst_105 : f32 to vector<8x16xf32>
    %224 = vector.shape_cast %214 : vector<8x1xi1> to vector<8x1xi1>
    %225 = vector.broadcast %224 : vector<8x1xi1> to vector<8x16xi1>
    %226 = arith.select %225, %212, %223 : vector<8x16xi1>, vector<8x16xf32>
    %227 = arith.index_cast %179 : i32 to index
    %c0_106 = arith.constant 0 : index
    %c0_107 = arith.constant 0 : index
    %228 = vector.load %arg17[%227, %c0_106, %c0_107] : memref<8x8x16xf32, #tpu.memory_space<vmem>>, vector<1x8x16xf32>
    %229 = vector.shape_cast %228 : vector<1x8x16xf32> to vector<8x16xf32>
    %230 = vector.shape_cast %226 : vector<8x16xf32> to vector<1x8x16xf32>
    tpu.vector_store %arg17[%227, %c0_106, %c0_107], %230 {strides = array<i32>} : memref<8x8x16xf32, #tpu.memory_space<vmem>>, vector<1x8x16xf32>,
    %c2_i32 = arith.constant 2 : i32
    %c0_108 = arith.constant 0 : index
    %c0_109 = arith.constant 0 : index
    %231 = vector.load %arg18[%c0_108, %c0_109] : memref<8x16xf32, #tpu.memory_space<vmem>>, vector<8x16xf32>
    %c0_110 = arith.constant 0 : index
    %c0_111 = arith.constant 0 : index
    %232 = vector.load %arg19[%c0_110, %c0_111] : memref<8x16xf32, #tpu.memory_space<vmem>>, vector<8x16xf32>
    %233 = arith.index_cast %c2_i32 : i32 to index
    %c0_112 = arith.constant 0 : index
    %c0_113 = arith.constant 0 : index
    %234 = vector.load %arg14[%233, %c0_112, %c0_113] : memref<8x8x64xf32, #tpu.memory_space<vmem>>, vector<1x8x64xf32>
    %235 = vector.shape_cast %234 : vector<1x8x64xf32> to vector<8x64xf32>
    %c0_114 = arith.constant 0 : index
    %c0_115 = arith.constant 0 : index
    %236 = vector.load %arg5[%c0_114, %c0_115] : memref<16x64xf32, #tpu.memory_space<vmem>>, vector<16x64xf32>
    %cst_116 = arith.constant dense<0.000000e+00> : vector<8x64xf32>
    %237 = tpu.matmul %231, %236, %cst_116 {dimension_numbers = #tpu.dot_dimension_numbers<[1], [0], [0], [1], [0, 0, 1, 1], [], []>} : vector<8x16xf32>, vector<16x64xf32>, vector<8x64xf32> -> vector<8x64xf32>
    %238 = arith.addf %235, %237 : vector<8x64xf32>
    %239 = vector.extract_strided_slice %238 {offsets = [0, 0], sizes = [8, 16], strides = [1, 1]} : vector<8x64xf32> to vector<8x16xf32>
    %240 = arith.negf %239 : vector<8x16xf32>
    %241 = math.exp %240 : vector<8x16xf32>
    %cst_117 = arith.constant 1.000000e+00 : f32
    %242 = vector.broadcast %cst_117 : f32 to vector<8x16xf32>
    %243 = arith.addf %242, %241 : vector<8x16xf32>
    %244 = arith.divf %242, %243 : vector<8x16xf32>
    %245 = vector.extract_strided_slice %238 {offsets = [0, 16], sizes = [8, 16], strides = [1, 1]} : vector<8x64xf32> to vector<8x16xf32>
    %246 = arith.negf %245 : vector<8x16xf32>
    %247 = math.exp %246 : vector<8x16xf32>
    %cst_118 = arith.constant 1.000000e+00 : f32
    %248 = vector.broadcast %cst_118 : f32 to vector<8x16xf32>
    %249 = arith.addf %248, %247 : vector<8x16xf32>
    %250 = arith.divf %248, %249 : vector<8x16xf32>
    %251 = vector.extract_strided_slice %238 {offsets = [0, 32], sizes = [8, 16], strides = [1, 1]} : vector<8x64xf32> to vector<8x16xf32>
    %252 = math.tanh %251 : vector<8x16xf32>
    %253 = vector.extract_strided_slice %238 {offsets = [0, 48], sizes = [8, 16], strides = [1, 1]} : vector<8x64xf32> to vector<8x16xf32>
    %254 = arith.negf %253 : vector<8x16xf32>
    %255 = math.exp %254 : vector<8x16xf32>
    %cst_119 = arith.constant 1.000000e+00 : f32
    %256 = vector.broadcast %cst_119 : f32 to vector<8x16xf32>
    %257 = arith.addf %256, %255 : vector<8x16xf32>
    %258 = arith.divf %256, %257 : vector<8x16xf32>
    %259 = arith.mulf %250, %232 : vector<8x16xf32>
    %260 = arith.mulf %244, %252 : vector<8x16xf32>
    %261 = arith.addf %259, %260 : vector<8x16xf32>
    %262 = math.tanh %261 : vector<8x16xf32>
    %263 = arith.mulf %258, %262 : vector<8x16xf32>
    %264 = vector.broadcast %c2_i32 : i32 to vector<8x1xi32>
    %265 = arith.cmpi slt, %264, %24 : vector<8x1xi32>
    %266 = vector.shape_cast %265 : vector<8x1xi1> to vector<8x1xi1>
    %267 = vector.broadcast %266 : vector<8x1xi1> to vector<8x16xi1>
    %268 = arith.select %267, %263, %231 : vector<8x16xi1>, vector<8x16xf32>
    %c0_120 = arith.constant 0 : index
    %c0_121 = arith.constant 0 : index
    %269 = vector.load %arg18[%c0_120, %c0_121] : memref<8x16xf32, #tpu.memory_space<vmem>>, vector<8x16xf32>
    tpu.vector_store %arg18[%c0_120, %c0_121], %268 {strides = array<i32>} : memref<8x16xf32, #tpu.memory_space<vmem>>, vector<8x16xf32>,
    %270 = vector.shape_cast %265 : vector<8x1xi1> to vector<8x1xi1>
    %271 = vector.broadcast %270 : vector<8x1xi1> to vector<8x16xi1>
    %272 = arith.select %271, %261, %232 : vector<8x16xi1>, vector<8x16xf32>
    %c0_122 = arith.constant 0 : index
    %c0_123 = arith.constant 0 : index
    %273 = vector.load %arg19[%c0_122, %c0_123] : memref<8x16xf32, #tpu.memory_space<vmem>>, vector<8x16xf32>
    tpu.vector_store %arg19[%c0_122, %c0_123], %272 {strides = array<i32>} : memref<8x16xf32, #tpu.memory_space<vmem>>, vector<8x16xf32>,
    %cst_124 = arith.constant 0.000000e+00 : f32
    %274 = vector.broadcast %cst_124 : f32 to vector<8x16xf32>
    %275 = vector.shape_cast %265 : vector<8x1xi1> to vector<8x1xi1>
    %276 = vector.broadcast %275 : vector<8x1xi1> to vector<8x16xi1>
    %277 = arith.select %276, %263, %274 : vector<8x16xi1>, vector<8x16xf32>
    %278 = arith.index_cast %c2_i32 : i32 to index
    %c0_125 = arith.constant 0 : index
    %c0_126 = arith.constant 0 : index
    %279 = vector.load %arg16[%278, %c0_125, %c0_126] : memref<8x8x16xf32, #tpu.memory_space<vmem>>, vector<1x8x16xf32>
    %280 = vector.shape_cast %279 : vector<1x8x16xf32> to vector<8x16xf32>
    %281 = vector.shape_cast %277 : vector<8x16xf32> to vector<1x8x16xf32>
    tpu.vector_store %arg16[%278, %c0_125, %c0_126], %281 {strides = array<i32>} : memref<8x8x16xf32, #tpu.memory_space<vmem>>, vector<1x8x16xf32>,
    %c7_i32_127 = arith.constant 7 : i32
    %282 = arith.subi %c7_i32_127, %c2_i32 : i32
    %c0_128 = arith.constant 0 : index
    %c0_129 = arith.constant 0 : index
    %283 = vector.load %arg20[%c0_128, %c0_129] : memref<8x16xf32, #tpu.memory_space<vmem>>, vector<8x16xf32>
    %c0_130 = arith.constant 0 : index
    %c0_131 = arith.constant 0 : index
    %284 = vector.load %arg21[%c0_130, %c0_131] : memref<8x16xf32, #tpu.memory_space<vmem>>, vector<8x16xf32>
    %285 = arith.index_cast %282 : i32 to index
    %c0_132 = arith.constant 0 : index
    %c0_133 = arith.constant 0 : index
    %286 = vector.load %arg15[%285, %c0_132, %c0_133] : memref<8x8x64xf32, #tpu.memory_space<vmem>>, vector<1x8x64xf32>
    %287 = vector.shape_cast %286 : vector<1x8x64xf32> to vector<8x64xf32>
    %c0_134 = arith.constant 0 : index
    %c0_135 = arith.constant 0 : index
    %288 = vector.load %arg8[%c0_134, %c0_135] : memref<16x64xf32, #tpu.memory_space<vmem>>, vector<16x64xf32>
    %cst_136 = arith.constant dense<0.000000e+00> : vector<8x64xf32>
    %289 = tpu.matmul %283, %288, %cst_136 {dimension_numbers = #tpu.dot_dimension_numbers<[1], [0], [0], [1], [0, 0, 1, 1], [], []>} : vector<8x16xf32>, vector<16x64xf32>, vector<8x64xf32> -> vector<8x64xf32>
    %290 = arith.addf %287, %289 : vector<8x64xf32>
    %291 = vector.extract_strided_slice %290 {offsets = [0, 0], sizes = [8, 16], strides = [1, 1]} : vector<8x64xf32> to vector<8x16xf32>
    %292 = arith.negf %291 : vector<8x16xf32>
    %293 = math.exp %292 : vector<8x16xf32>
    %cst_137 = arith.constant 1.000000e+00 : f32
    %294 = vector.broadcast %cst_137 : f32 to vector<8x16xf32>
    %295 = arith.addf %294, %293 : vector<8x16xf32>
    %296 = arith.divf %294, %295 : vector<8x16xf32>
    %297 = vector.extract_strided_slice %290 {offsets = [0, 16], sizes = [8, 16], strides = [1, 1]} : vector<8x64xf32> to vector<8x16xf32>
    %298 = arith.negf %297 : vector<8x16xf32>
    %299 = math.exp %298 : vector<8x16xf32>
    %cst_138 = arith.constant 1.000000e+00 : f32
    %300 = vector.broadcast %cst_138 : f32 to vector<8x16xf32>
    %301 = arith.addf %300, %299 : vector<8x16xf32>
    %302 = arith.divf %300, %301 : vector<8x16xf32>
    %303 = vector.extract_strided_slice %290 {offsets = [0, 32], sizes = [8, 16], strides = [1, 1]} : vector<8x64xf32> to vector<8x16xf32>
    %304 = math.tanh %303 : vector<8x16xf32>
    %305 = vector.extract_strided_slice %290 {offsets = [0, 48], sizes = [8, 16], strides = [1, 1]} : vector<8x64xf32> to vector<8x16xf32>
    %306 = arith.negf %305 : vector<8x16xf32>
    %307 = math.exp %306 : vector<8x16xf32>
    %cst_139 = arith.constant 1.000000e+00 : f32
    %308 = vector.broadcast %cst_139 : f32 to vector<8x16xf32>
    %309 = arith.addf %308, %307 : vector<8x16xf32>
    %310 = arith.divf %308, %309 : vector<8x16xf32>
    %311 = arith.mulf %302, %284 : vector<8x16xf32>
    %312 = arith.mulf %296, %304 : vector<8x16xf32>
    %313 = arith.addf %311, %312 : vector<8x16xf32>
    %314 = math.tanh %313 : vector<8x16xf32>
    %315 = arith.mulf %310, %314 : vector<8x16xf32>
    %316 = vector.broadcast %282 : i32 to vector<8x1xi32>
    %317 = arith.cmpi slt, %316, %24 : vector<8x1xi32>
    %318 = vector.shape_cast %317 : vector<8x1xi1> to vector<8x1xi1>
    %319 = vector.broadcast %318 : vector<8x1xi1> to vector<8x16xi1>
    %320 = arith.select %319, %315, %283 : vector<8x16xi1>, vector<8x16xf32>
    %c0_140 = arith.constant 0 : index
    %c0_141 = arith.constant 0 : index
    %321 = vector.load %arg20[%c0_140, %c0_141] : memref<8x16xf32, #tpu.memory_space<vmem>>, vector<8x16xf32>
    tpu.vector_store %arg20[%c0_140, %c0_141], %320 {strides = array<i32>} : memref<8x16xf32, #tpu.memory_space<vmem>>, vector<8x16xf32>,
    %322 = vector.shape_cast %317 : vector<8x1xi1> to vector<8x1xi1>
    %323 = vector.broadcast %322 : vector<8x1xi1> to vector<8x16xi1>
    %324 = arith.select %323, %313, %284 : vector<8x16xi1>, vector<8x16xf32>
    %c0_142 = arith.constant 0 : index
    %c0_143 = arith.constant 0 : index
    %325 = vector.load %arg21[%c0_142, %c0_143] : memref<8x16xf32, #tpu.memory_space<vmem>>, vector<8x16xf32>
    tpu.vector_store %arg21[%c0_142, %c0_143], %324 {strides = array<i32>} : memref<8x16xf32, #tpu.memory_space<vmem>>, vector<8x16xf32>,
    %cst_144 = arith.constant 0.000000e+00 : f32
    %326 = vector.broadcast %cst_144 : f32 to vector<8x16xf32>
    %327 = vector.shape_cast %317 : vector<8x1xi1> to vector<8x1xi1>
    %328 = vector.broadcast %327 : vector<8x1xi1> to vector<8x16xi1>
    %329 = arith.select %328, %315, %326 : vector<8x16xi1>, vector<8x16xf32>
    %330 = arith.index_cast %282 : i32 to index
    %c0_145 = arith.constant 0 : index
    %c0_146 = arith.constant 0 : index
    %331 = vector.load %arg17[%330, %c0_145, %c0_146] : memref<8x8x16xf32, #tpu.memory_space<vmem>>, vector<1x8x16xf32>
    %332 = vector.shape_cast %331 : vector<1x8x16xf32> to vector<8x16xf32>
    %333 = vector.shape_cast %329 : vector<8x16xf32> to vector<1x8x16xf32>
    tpu.vector_store %arg17[%330, %c0_145, %c0_146], %333 {strides = array<i32>} : memref<8x8x16xf32, #tpu.memory_space<vmem>>, vector<1x8x16xf32>,
    %c3_i32 = arith.constant 3 : i32
    %c0_147 = arith.constant 0 : index
    %c0_148 = arith.constant 0 : index
    %334 = vector.load %arg18[%c0_147, %c0_148] : memref<8x16xf32, #tpu.memory_space<vmem>>, vector<8x16xf32>
    %c0_149 = arith.constant 0 : index
    %c0_150 = arith.constant 0 : index
    %335 = vector.load %arg19[%c0_149, %c0_150] : memref<8x16xf32, #tpu.memory_space<vmem>>, vector<8x16xf32>
    %336 = arith.index_cast %c3_i32 : i32 to index
    %c0_151 = arith.constant 0 : index
    %c0_152 = arith.constant 0 : index
    %337 = vector.load %arg14[%336, %c0_151, %c0_152] : memref<8x8x64xf32, #tpu.memory_space<vmem>>, vector<1x8x64xf32>
    %338 = vector.shape_cast %337 : vector<1x8x64xf32> to vector<8x64xf32>
    %c0_153 = arith.constant 0 : index
    %c0_154 = arith.constant 0 : index
    %339 = vector.load %arg5[%c0_153, %c0_154] : memref<16x64xf32, #tpu.memory_space<vmem>>, vector<16x64xf32>
    %cst_155 = arith.constant dense<0.000000e+00> : vector<8x64xf32>
    %340 = tpu.matmul %334, %339, %cst_155 {dimension_numbers = #tpu.dot_dimension_numbers<[1], [0], [0], [1], [0, 0, 1, 1], [], []>} : vector<8x16xf32>, vector<16x64xf32>, vector<8x64xf32> -> vector<8x64xf32>
    %341 = arith.addf %338, %340 : vector<8x64xf32>
    %342 = vector.extract_strided_slice %341 {offsets = [0, 0], sizes = [8, 16], strides = [1, 1]} : vector<8x64xf32> to vector<8x16xf32>
    %343 = arith.negf %342 : vector<8x16xf32>
    %344 = math.exp %343 : vector<8x16xf32>
    %cst_156 = arith.constant 1.000000e+00 : f32
    %345 = vector.broadcast %cst_156 : f32 to vector<8x16xf32>
    %346 = arith.addf %345, %344 : vector<8x16xf32>
    %347 = arith.divf %345, %346 : vector<8x16xf32>
    %348 = vector.extract_strided_slice %341 {offsets = [0, 16], sizes = [8, 16], strides = [1, 1]} : vector<8x64xf32> to vector<8x16xf32>
    %349 = arith.negf %348 : vector<8x16xf32>
    %350 = math.exp %349 : vector<8x16xf32>
    %cst_157 = arith.constant 1.000000e+00 : f32
    %351 = vector.broadcast %cst_157 : f32 to vector<8x16xf32>
    %352 = arith.addf %351, %350 : vector<8x16xf32>
    %353 = arith.divf %351, %352 : vector<8x16xf32>
    %354 = vector.extract_strided_slice %341 {offsets = [0, 32], sizes = [8, 16], strides = [1, 1]} : vector<8x64xf32> to vector<8x16xf32>
    %355 = math.tanh %354 : vector<8x16xf32>
    %356 = vector.extract_strided_slice %341 {offsets = [0, 48], sizes = [8, 16], strides = [1, 1]} : vector<8x64xf32> to vector<8x16xf32>
    %357 = arith.negf %356 : vector<8x16xf32>
    %358 = math.exp %357 : vector<8x16xf32>
    %cst_158 = arith.constant 1.000000e+00 : f32
    %359 = vector.broadcast %cst_158 : f32 to vector<8x16xf32>
    %360 = arith.addf %359, %358 : vector<8x16xf32>
    %361 = arith.divf %359, %360 : vector<8x16xf32>
    %362 = arith.mulf %353, %335 : vector<8x16xf32>
    %363 = arith.mulf %347, %355 : vector<8x16xf32>
    %364 = arith.addf %362, %363 : vector<8x16xf32>
    %365 = math.tanh %364 : vector<8x16xf32>
    %366 = arith.mulf %361, %365 : vector<8x16xf32>
    %367 = vector.broadcast %c3_i32 : i32 to vector<8x1xi32>
    %368 = arith.cmpi slt, %367, %24 : vector<8x1xi32>
    %369 = vector.shape_cast %368 : vector<8x1xi1> to vector<8x1xi1>
    %370 = vector.broadcast %369 : vector<8x1xi1> to vector<8x16xi1>
    %371 = arith.select %370, %366, %334 : vector<8x16xi1>, vector<8x16xf32>
    %c0_159 = arith.constant 0 : index
    %c0_160 = arith.constant 0 : index
    %372 = vector.load %arg18[%c0_159, %c0_160] : memref<8x16xf32, #tpu.memory_space<vmem>>, vector<8x16xf32>
    tpu.vector_store %arg18[%c0_159, %c0_160], %371 {strides = array<i32>} : memref<8x16xf32, #tpu.memory_space<vmem>>, vector<8x16xf32>,
    %373 = vector.shape_cast %368 : vector<8x1xi1> to vector<8x1xi1>
    %374 = vector.broadcast %373 : vector<8x1xi1> to vector<8x16xi1>
    %375 = arith.select %374, %364, %335 : vector<8x16xi1>, vector<8x16xf32>
    %c0_161 = arith.constant 0 : index
    %c0_162 = arith.constant 0 : index
    %376 = vector.load %arg19[%c0_161, %c0_162] : memref<8x16xf32, #tpu.memory_space<vmem>>, vector<8x16xf32>
    tpu.vector_store %arg19[%c0_161, %c0_162], %375 {strides = array<i32>} : memref<8x16xf32, #tpu.memory_space<vmem>>, vector<8x16xf32>,
    %cst_163 = arith.constant 0.000000e+00 : f32
    %377 = vector.broadcast %cst_163 : f32 to vector<8x16xf32>
    %378 = vector.shape_cast %368 : vector<8x1xi1> to vector<8x1xi1>
    %379 = vector.broadcast %378 : vector<8x1xi1> to vector<8x16xi1>
    %380 = arith.select %379, %366, %377 : vector<8x16xi1>, vector<8x16xf32>
    %381 = arith.index_cast %c3_i32 : i32 to index
    %c0_164 = arith.constant 0 : index
    %c0_165 = arith.constant 0 : index
    %382 = vector.load %arg16[%381, %c0_164, %c0_165] : memref<8x8x16xf32, #tpu.memory_space<vmem>>, vector<1x8x16xf32>
    %383 = vector.shape_cast %382 : vector<1x8x16xf32> to vector<8x16xf32>
    %384 = vector.shape_cast %380 : vector<8x16xf32> to vector<1x8x16xf32>
    tpu.vector_store %arg16[%381, %c0_164, %c0_165], %384 {strides = array<i32>} : memref<8x8x16xf32, #tpu.memory_space<vmem>>, vector<1x8x16xf32>,
    %c7_i32_166 = arith.constant 7 : i32
    %385 = arith.subi %c7_i32_166, %c3_i32 : i32
    %c0_167 = arith.constant 0 : index
    %c0_168 = arith.constant 0 : index
    %386 = vector.load %arg20[%c0_167, %c0_168] : memref<8x16xf32, #tpu.memory_space<vmem>>, vector<8x16xf32>
    %c0_169 = arith.constant 0 : index
    %c0_170 = arith.constant 0 : index
    %387 = vector.load %arg21[%c0_169, %c0_170] : memref<8x16xf32, #tpu.memory_space<vmem>>, vector<8x16xf32>
    %388 = arith.index_cast %385 : i32 to index
    %c0_171 = arith.constant 0 : index
    %c0_172 = arith.constant 0 : index
    %389 = vector.load %arg15[%388, %c0_171, %c0_172] : memref<8x8x64xf32, #tpu.memory_space<vmem>>, vector<1x8x64xf32>
    %390 = vector.shape_cast %389 : vector<1x8x64xf32> to vector<8x64xf32>
    %c0_173 = arith.constant 0 : index
    %c0_174 = arith.constant 0 : index
    %391 = vector.load %arg8[%c0_173, %c0_174] : memref<16x64xf32, #tpu.memory_space<vmem>>, vector<16x64xf32>
    %cst_175 = arith.constant dense<0.000000e+00> : vector<8x64xf32>
    %392 = tpu.matmul %386, %391, %cst_175 {dimension_numbers = #tpu.dot_dimension_numbers<[1], [0], [0], [1], [0, 0, 1, 1], [], []>} : vector<8x16xf32>, vector<16x64xf32>, vector<8x64xf32> -> vector<8x64xf32>
    %393 = arith.addf %390, %392 : vector<8x64xf32>
    %394 = vector.extract_strided_slice %393 {offsets = [0, 0], sizes = [8, 16], strides = [1, 1]} : vector<8x64xf32> to vector<8x16xf32>
    %395 = arith.negf %394 : vector<8x16xf32>
    %396 = math.exp %395 : vector<8x16xf32>
    %cst_176 = arith.constant 1.000000e+00 : f32
    %397 = vector.broadcast %cst_176 : f32 to vector<8x16xf32>
    %398 = arith.addf %397, %396 : vector<8x16xf32>
    %399 = arith.divf %397, %398 : vector<8x16xf32>
    %400 = vector.extract_strided_slice %393 {offsets = [0, 16], sizes = [8, 16], strides = [1, 1]} : vector<8x64xf32> to vector<8x16xf32>
    %401 = arith.negf %400 : vector<8x16xf32>
    %402 = math.exp %401 : vector<8x16xf32>
    %cst_177 = arith.constant 1.000000e+00 : f32
    %403 = vector.broadcast %cst_177 : f32 to vector<8x16xf32>
    %404 = arith.addf %403, %402 : vector<8x16xf32>
    %405 = arith.divf %403, %404 : vector<8x16xf32>
    %406 = vector.extract_strided_slice %393 {offsets = [0, 32], sizes = [8, 16], strides = [1, 1]} : vector<8x64xf32> to vector<8x16xf32>
    %407 = math.tanh %406 : vector<8x16xf32>
    %408 = vector.extract_strided_slice %393 {offsets = [0, 48], sizes = [8, 16], strides = [1, 1]} : vector<8x64xf32> to vector<8x16xf32>
    %409 = arith.negf %408 : vector<8x16xf32>
    %410 = math.exp %409 : vector<8x16xf32>
    %cst_178 = arith.constant 1.000000e+00 : f32
    %411 = vector.broadcast %cst_178 : f32 to vector<8x16xf32>
    %412 = arith.addf %411, %410 : vector<8x16xf32>
    %413 = arith.divf %411, %412 : vector<8x16xf32>
    %414 = arith.mulf %405, %387 : vector<8x16xf32>
    %415 = arith.mulf %399, %407 : vector<8x16xf32>
    %416 = arith.addf %414, %415 : vector<8x16xf32>
    %417 = math.tanh %416 : vector<8x16xf32>
    %418 = arith.mulf %413, %417 : vector<8x16xf32>
    %419 = vector.broadcast %385 : i32 to vector<8x1xi32>
    %420 = arith.cmpi slt, %419, %24 : vector<8x1xi32>
    %421 = vector.shape_cast %420 : vector<8x1xi1> to vector<8x1xi1>
    %422 = vector.broadcast %421 : vector<8x1xi1> to vector<8x16xi1>
    %423 = arith.select %422, %418, %386 : vector<8x16xi1>, vector<8x16xf32>
    %c0_179 = arith.constant 0 : index
    %c0_180 = arith.constant 0 : index
    %424 = vector.load %arg20[%c0_179, %c0_180] : memref<8x16xf32, #tpu.memory_space<vmem>>, vector<8x16xf32>
    tpu.vector_store %arg20[%c0_179, %c0_180], %423 {strides = array<i32>} : memref<8x16xf32, #tpu.memory_space<vmem>>, vector<8x16xf32>,
    %425 = vector.shape_cast %420 : vector<8x1xi1> to vector<8x1xi1>
    %426 = vector.broadcast %425 : vector<8x1xi1> to vector<8x16xi1>
    %427 = arith.select %426, %416, %387 : vector<8x16xi1>, vector<8x16xf32>
    %c0_181 = arith.constant 0 : index
    %c0_182 = arith.constant 0 : index
    %428 = vector.load %arg21[%c0_181, %c0_182] : memref<8x16xf32, #tpu.memory_space<vmem>>, vector<8x16xf32>
    tpu.vector_store %arg21[%c0_181, %c0_182], %427 {strides = array<i32>} : memref<8x16xf32, #tpu.memory_space<vmem>>, vector<8x16xf32>,
    %cst_183 = arith.constant 0.000000e+00 : f32
    %429 = vector.broadcast %cst_183 : f32 to vector<8x16xf32>
    %430 = vector.shape_cast %420 : vector<8x1xi1> to vector<8x1xi1>
    %431 = vector.broadcast %430 : vector<8x1xi1> to vector<8x16xi1>
    %432 = arith.select %431, %418, %429 : vector<8x16xi1>, vector<8x16xf32>
    %433 = arith.index_cast %385 : i32 to index
    %c0_184 = arith.constant 0 : index
    %c0_185 = arith.constant 0 : index
    %434 = vector.load %arg17[%433, %c0_184, %c0_185] : memref<8x8x16xf32, #tpu.memory_space<vmem>>, vector<1x8x16xf32>
    %435 = vector.shape_cast %434 : vector<1x8x16xf32> to vector<8x16xf32>
    %436 = vector.shape_cast %432 : vector<8x16xf32> to vector<1x8x16xf32>
    tpu.vector_store %arg17[%433, %c0_184, %c0_185], %436 {strides = array<i32>} : memref<8x8x16xf32, #tpu.memory_space<vmem>>, vector<1x8x16xf32>,
    %c4_i32 = arith.constant 4 : i32
    %c0_186 = arith.constant 0 : index
    %c0_187 = arith.constant 0 : index
    %437 = vector.load %arg18[%c0_186, %c0_187] : memref<8x16xf32, #tpu.memory_space<vmem>>, vector<8x16xf32>
    %c0_188 = arith.constant 0 : index
    %c0_189 = arith.constant 0 : index
    %438 = vector.load %arg19[%c0_188, %c0_189] : memref<8x16xf32, #tpu.memory_space<vmem>>, vector<8x16xf32>
    %439 = arith.index_cast %c4_i32 : i32 to index
    %c0_190 = arith.constant 0 : index
    %c0_191 = arith.constant 0 : index
    %440 = vector.load %arg14[%439, %c0_190, %c0_191] : memref<8x8x64xf32, #tpu.memory_space<vmem>>, vector<1x8x64xf32>
    %441 = vector.shape_cast %440 : vector<1x8x64xf32> to vector<8x64xf32>
    %c0_192 = arith.constant 0 : index
    %c0_193 = arith.constant 0 : index
    %442 = vector.load %arg5[%c0_192, %c0_193] : memref<16x64xf32, #tpu.memory_space<vmem>>, vector<16x64xf32>
    %cst_194 = arith.constant dense<0.000000e+00> : vector<8x64xf32>
    %443 = tpu.matmul %437, %442, %cst_194 {dimension_numbers = #tpu.dot_dimension_numbers<[1], [0], [0], [1], [0, 0, 1, 1], [], []>} : vector<8x16xf32>, vector<16x64xf32>, vector<8x64xf32> -> vector<8x64xf32>
    %444 = arith.addf %441, %443 : vector<8x64xf32>
    %445 = vector.extract_strided_slice %444 {offsets = [0, 0], sizes = [8, 16], strides = [1, 1]} : vector<8x64xf32> to vector<8x16xf32>
    %446 = arith.negf %445 : vector<8x16xf32>
    %447 = math.exp %446 : vector<8x16xf32>
    %cst_195 = arith.constant 1.000000e+00 : f32
    %448 = vector.broadcast %cst_195 : f32 to vector<8x16xf32>
    %449 = arith.addf %448, %447 : vector<8x16xf32>
    %450 = arith.divf %448, %449 : vector<8x16xf32>
    %451 = vector.extract_strided_slice %444 {offsets = [0, 16], sizes = [8, 16], strides = [1, 1]} : vector<8x64xf32> to vector<8x16xf32>
    %452 = arith.negf %451 : vector<8x16xf32>
    %453 = math.exp %452 : vector<8x16xf32>
    %cst_196 = arith.constant 1.000000e+00 : f32
    %454 = vector.broadcast %cst_196 : f32 to vector<8x16xf32>
    %455 = arith.addf %454, %453 : vector<8x16xf32>
    %456 = arith.divf %454, %455 : vector<8x16xf32>
    %457 = vector.extract_strided_slice %444 {offsets = [0, 32], sizes = [8, 16], strides = [1, 1]} : vector<8x64xf32> to vector<8x16xf32>
    %458 = math.tanh %457 : vector<8x16xf32>
    %459 = vector.extract_strided_slice %444 {offsets = [0, 48], sizes = [8, 16], strides = [1, 1]} : vector<8x64xf32> to vector<8x16xf32>
    %460 = arith.negf %459 : vector<8x16xf32>
    %461 = math.exp %460 : vector<8x16xf32>
    %cst_197 = arith.constant 1.000000e+00 : f32
    %462 = vector.broadcast %cst_197 : f32 to vector<8x16xf32>
    %463 = arith.addf %462, %461 : vector<8x16xf32>
    %464 = arith.divf %462, %463 : vector<8x16xf32>
    %465 = arith.mulf %456, %438 : vector<8x16xf32>
    %466 = arith.mulf %450, %458 : vector<8x16xf32>
    %467 = arith.addf %465, %466 : vector<8x16xf32>
    %468 = math.tanh %467 : vector<8x16xf32>
    %469 = arith.mulf %464, %468 : vector<8x16xf32>
    %470 = vector.broadcast %c4_i32 : i32 to vector<8x1xi32>
    %471 = arith.cmpi slt, %470, %24 : vector<8x1xi32>
    %472 = vector.shape_cast %471 : vector<8x1xi1> to vector<8x1xi1>
    %473 = vector.broadcast %472 : vector<8x1xi1> to vector<8x16xi1>
    %474 = arith.select %473, %469, %437 : vector<8x16xi1>, vector<8x16xf32>
    %c0_198 = arith.constant 0 : index
    %c0_199 = arith.constant 0 : index
    %475 = vector.load %arg18[%c0_198, %c0_199] : memref<8x16xf32, #tpu.memory_space<vmem>>, vector<8x16xf32>
    tpu.vector_store %arg18[%c0_198, %c0_199], %474 {strides = array<i32>} : memref<8x16xf32, #tpu.memory_space<vmem>>, vector<8x16xf32>,
    %476 = vector.shape_cast %471 : vector<8x1xi1> to vector<8x1xi1>
    %477 = vector.broadcast %476 : vector<8x1xi1> to vector<8x16xi1>
    %478 = arith.select %477, %467, %438 : vector<8x16xi1>, vector<8x16xf32>
    %c0_200 = arith.constant 0 : index
    %c0_201 = arith.constant 0 : index
    %479 = vector.load %arg19[%c0_200, %c0_201] : memref<8x16xf32, #tpu.memory_space<vmem>>, vector<8x16xf32>
    tpu.vector_store %arg19[%c0_200, %c0_201], %478 {strides = array<i32>} : memref<8x16xf32, #tpu.memory_space<vmem>>, vector<8x16xf32>,
    %cst_202 = arith.constant 0.000000e+00 : f32
    %480 = vector.broadcast %cst_202 : f32 to vector<8x16xf32>
    %481 = vector.shape_cast %471 : vector<8x1xi1> to vector<8x1xi1>
    %482 = vector.broadcast %481 : vector<8x1xi1> to vector<8x16xi1>
    %483 = arith.select %482, %469, %480 : vector<8x16xi1>, vector<8x16xf32>
    %484 = arith.index_cast %c4_i32 : i32 to index
    %c0_203 = arith.constant 0 : index
    %c0_204 = arith.constant 0 : index
    %485 = vector.load %arg16[%484, %c0_203, %c0_204] : memref<8x8x16xf32, #tpu.memory_space<vmem>>, vector<1x8x16xf32>
    %486 = vector.shape_cast %485 : vector<1x8x16xf32> to vector<8x16xf32>
    %487 = vector.shape_cast %483 : vector<8x16xf32> to vector<1x8x16xf32>
    tpu.vector_store %arg16[%484, %c0_203, %c0_204], %487 {strides = array<i32>} : memref<8x8x16xf32, #tpu.memory_space<vmem>>, vector<1x8x16xf32>,
    %c7_i32_205 = arith.constant 7 : i32
    %488 = arith.subi %c7_i32_205, %c4_i32 : i32
    %c0_206 = arith.constant 0 : index
    %c0_207 = arith.constant 0 : index
    %489 = vector.load %arg20[%c0_206, %c0_207] : memref<8x16xf32, #tpu.memory_space<vmem>>, vector<8x16xf32>
    %c0_208 = arith.constant 0 : index
    %c0_209 = arith.constant 0 : index
    %490 = vector.load %arg21[%c0_208, %c0_209] : memref<8x16xf32, #tpu.memory_space<vmem>>, vector<8x16xf32>
    %491 = arith.index_cast %488 : i32 to index
    %c0_210 = arith.constant 0 : index
    %c0_211 = arith.constant 0 : index
    %492 = vector.load %arg15[%491, %c0_210, %c0_211] : memref<8x8x64xf32, #tpu.memory_space<vmem>>, vector<1x8x64xf32>
    %493 = vector.shape_cast %492 : vector<1x8x64xf32> to vector<8x64xf32>
    %c0_212 = arith.constant 0 : index
    %c0_213 = arith.constant 0 : index
    %494 = vector.load %arg8[%c0_212, %c0_213] : memref<16x64xf32, #tpu.memory_space<vmem>>, vector<16x64xf32>
    %cst_214 = arith.constant dense<0.000000e+00> : vector<8x64xf32>
    %495 = tpu.matmul %489, %494, %cst_214 {dimension_numbers = #tpu.dot_dimension_numbers<[1], [0], [0], [1], [0, 0, 1, 1], [], []>} : vector<8x16xf32>, vector<16x64xf32>, vector<8x64xf32> -> vector<8x64xf32>
    %496 = arith.addf %493, %495 : vector<8x64xf32>
    %497 = vector.extract_strided_slice %496 {offsets = [0, 0], sizes = [8, 16], strides = [1, 1]} : vector<8x64xf32> to vector<8x16xf32>
    %498 = arith.negf %497 : vector<8x16xf32>
    %499 = math.exp %498 : vector<8x16xf32>
    %cst_215 = arith.constant 1.000000e+00 : f32
    %500 = vector.broadcast %cst_215 : f32 to vector<8x16xf32>
    %501 = arith.addf %500, %499 : vector<8x16xf32>
    %502 = arith.divf %500, %501 : vector<8x16xf32>
    %503 = vector.extract_strided_slice %496 {offsets = [0, 16], sizes = [8, 16], strides = [1, 1]} : vector<8x64xf32> to vector<8x16xf32>
    %504 = arith.negf %503 : vector<8x16xf32>
    %505 = math.exp %504 : vector<8x16xf32>
    %cst_216 = arith.constant 1.000000e+00 : f32
    %506 = vector.broadcast %cst_216 : f32 to vector<8x16xf32>
    %507 = arith.addf %506, %505 : vector<8x16xf32>
    %508 = arith.divf %506, %507 : vector<8x16xf32>
    %509 = vector.extract_strided_slice %496 {offsets = [0, 32], sizes = [8, 16], strides = [1, 1]} : vector<8x64xf32> to vector<8x16xf32>
    %510 = math.tanh %509 : vector<8x16xf32>
    %511 = vector.extract_strided_slice %496 {offsets = [0, 48], sizes = [8, 16], strides = [1, 1]} : vector<8x64xf32> to vector<8x16xf32>
    %512 = arith.negf %511 : vector<8x16xf32>
    %513 = math.exp %512 : vector<8x16xf32>
    %cst_217 = arith.constant 1.000000e+00 : f32
    %514 = vector.broadcast %cst_217 : f32 to vector<8x16xf32>
    %515 = arith.addf %514, %513 : vector<8x16xf32>
    %516 = arith.divf %514, %515 : vector<8x16xf32>
    %517 = arith.mulf %508, %490 : vector<8x16xf32>
    %518 = arith.mulf %502, %510 : vector<8x16xf32>
    %519 = arith.addf %517, %518 : vector<8x16xf32>
    %520 = math.tanh %519 : vector<8x16xf32>
    %521 = arith.mulf %516, %520 : vector<8x16xf32>
    %522 = vector.broadcast %488 : i32 to vector<8x1xi32>
    %523 = arith.cmpi slt, %522, %24 : vector<8x1xi32>
    %524 = vector.shape_cast %523 : vector<8x1xi1> to vector<8x1xi1>
    %525 = vector.broadcast %524 : vector<8x1xi1> to vector<8x16xi1>
    %526 = arith.select %525, %521, %489 : vector<8x16xi1>, vector<8x16xf32>
    %c0_218 = arith.constant 0 : index
    %c0_219 = arith.constant 0 : index
    %527 = vector.load %arg20[%c0_218, %c0_219] : memref<8x16xf32, #tpu.memory_space<vmem>>, vector<8x16xf32>
    tpu.vector_store %arg20[%c0_218, %c0_219], %526 {strides = array<i32>} : memref<8x16xf32, #tpu.memory_space<vmem>>, vector<8x16xf32>,
    %528 = vector.shape_cast %523 : vector<8x1xi1> to vector<8x1xi1>
    %529 = vector.broadcast %528 : vector<8x1xi1> to vector<8x16xi1>
    %530 = arith.select %529, %519, %490 : vector<8x16xi1>, vector<8x16xf32>
    %c0_220 = arith.constant 0 : index
    %c0_221 = arith.constant 0 : index
    %531 = vector.load %arg21[%c0_220, %c0_221] : memref<8x16xf32, #tpu.memory_space<vmem>>, vector<8x16xf32>
    tpu.vector_store %arg21[%c0_220, %c0_221], %530 {strides = array<i32>} : memref<8x16xf32, #tpu.memory_space<vmem>>, vector<8x16xf32>,
    %cst_222 = arith.constant 0.000000e+00 : f32
    %532 = vector.broadcast %cst_222 : f32 to vector<8x16xf32>
    %533 = vector.shape_cast %523 : vector<8x1xi1> to vector<8x1xi1>
    %534 = vector.broadcast %533 : vector<8x1xi1> to vector<8x16xi1>
    %535 = arith.select %534, %521, %532 : vector<8x16xi1>, vector<8x16xf32>
    %536 = arith.index_cast %488 : i32 to index
    %c0_223 = arith.constant 0 : index
    %c0_224 = arith.constant 0 : index
    %537 = vector.load %arg17[%536, %c0_223, %c0_224] : memref<8x8x16xf32, #tpu.memory_space<vmem>>, vector<1x8x16xf32>
    %538 = vector.shape_cast %537 : vector<1x8x16xf32> to vector<8x16xf32>
    %539 = vector.shape_cast %535 : vector<8x16xf32> to vector<1x8x16xf32>
    tpu.vector_store %arg17[%536, %c0_223, %c0_224], %539 {strides = array<i32>} : memref<8x8x16xf32, #tpu.memory_space<vmem>>, vector<1x8x16xf32>,
    %c5_i32 = arith.constant 5 : i32
    %c0_225 = arith.constant 0 : index
    %c0_226 = arith.constant 0 : index
    %540 = vector.load %arg18[%c0_225, %c0_226] : memref<8x16xf32, #tpu.memory_space<vmem>>, vector<8x16xf32>
    %c0_227 = arith.constant 0 : index
    %c0_228 = arith.constant 0 : index
    %541 = vector.load %arg19[%c0_227, %c0_228] : memref<8x16xf32, #tpu.memory_space<vmem>>, vector<8x16xf32>
    %542 = arith.index_cast %c5_i32 : i32 to index
    %c0_229 = arith.constant 0 : index
    %c0_230 = arith.constant 0 : index
    %543 = vector.load %arg14[%542, %c0_229, %c0_230] : memref<8x8x64xf32, #tpu.memory_space<vmem>>, vector<1x8x64xf32>
    %544 = vector.shape_cast %543 : vector<1x8x64xf32> to vector<8x64xf32>
    %c0_231 = arith.constant 0 : index
    %c0_232 = arith.constant 0 : index
    %545 = vector.load %arg5[%c0_231, %c0_232] : memref<16x64xf32, #tpu.memory_space<vmem>>, vector<16x64xf32>
    %cst_233 = arith.constant dense<0.000000e+00> : vector<8x64xf32>
    %546 = tpu.matmul %540, %545, %cst_233 {dimension_numbers = #tpu.dot_dimension_numbers<[1], [0], [0], [1], [0, 0, 1, 1], [], []>} : vector<8x16xf32>, vector<16x64xf32>, vector<8x64xf32> -> vector<8x64xf32>
    %547 = arith.addf %544, %546 : vector<8x64xf32>
    %548 = vector.extract_strided_slice %547 {offsets = [0, 0], sizes = [8, 16], strides = [1, 1]} : vector<8x64xf32> to vector<8x16xf32>
    %549 = arith.negf %548 : vector<8x16xf32>
    %550 = math.exp %549 : vector<8x16xf32>
    %cst_234 = arith.constant 1.000000e+00 : f32
    %551 = vector.broadcast %cst_234 : f32 to vector<8x16xf32>
    %552 = arith.addf %551, %550 : vector<8x16xf32>
    %553 = arith.divf %551, %552 : vector<8x16xf32>
    %554 = vector.extract_strided_slice %547 {offsets = [0, 16], sizes = [8, 16], strides = [1, 1]} : vector<8x64xf32> to vector<8x16xf32>
    %555 = arith.negf %554 : vector<8x16xf32>
    %556 = math.exp %555 : vector<8x16xf32>
    %cst_235 = arith.constant 1.000000e+00 : f32
    %557 = vector.broadcast %cst_235 : f32 to vector<8x16xf32>
    %558 = arith.addf %557, %556 : vector<8x16xf32>
    %559 = arith.divf %557, %558 : vector<8x16xf32>
    %560 = vector.extract_strided_slice %547 {offsets = [0, 32], sizes = [8, 16], strides = [1, 1]} : vector<8x64xf32> to vector<8x16xf32>
    %561 = math.tanh %560 : vector<8x16xf32>
    %562 = vector.extract_strided_slice %547 {offsets = [0, 48], sizes = [8, 16], strides = [1, 1]} : vector<8x64xf32> to vector<8x16xf32>
    %563 = arith.negf %562 : vector<8x16xf32>
    %564 = math.exp %563 : vector<8x16xf32>
    %cst_236 = arith.constant 1.000000e+00 : f32
    %565 = vector.broadcast %cst_236 : f32 to vector<8x16xf32>
    %566 = arith.addf %565, %564 : vector<8x16xf32>
    %567 = arith.divf %565, %566 : vector<8x16xf32>
    %568 = arith.mulf %559, %541 : vector<8x16xf32>
    %569 = arith.mulf %553, %561 : vector<8x16xf32>
    %570 = arith.addf %568, %569 : vector<8x16xf32>
    %571 = math.tanh %570 : vector<8x16xf32>
    %572 = arith.mulf %567, %571 : vector<8x16xf32>
    %573 = vector.broadcast %c5_i32 : i32 to vector<8x1xi32>
    %574 = arith.cmpi slt, %573, %24 : vector<8x1xi32>
    %575 = vector.shape_cast %574 : vector<8x1xi1> to vector<8x1xi1>
    %576 = vector.broadcast %575 : vector<8x1xi1> to vector<8x16xi1>
    %577 = arith.select %576, %572, %540 : vector<8x16xi1>, vector<8x16xf32>
    %c0_237 = arith.constant 0 : index
    %c0_238 = arith.constant 0 : index
    %578 = vector.load %arg18[%c0_237, %c0_238] : memref<8x16xf32, #tpu.memory_space<vmem>>, vector<8x16xf32>
    tpu.vector_store %arg18[%c0_237, %c0_238], %577 {strides = array<i32>} : memref<8x16xf32, #tpu.memory_space<vmem>>, vector<8x16xf32>,
    %579 = vector.shape_cast %574 : vector<8x1xi1> to vector<8x1xi1>
    %580 = vector.broadcast %579 : vector<8x1xi1> to vector<8x16xi1>
    %581 = arith.select %580, %570, %541 : vector<8x16xi1>, vector<8x16xf32>
    %c0_239 = arith.constant 0 : index
    %c0_240 = arith.constant 0 : index
    %582 = vector.load %arg19[%c0_239, %c0_240] : memref<8x16xf32, #tpu.memory_space<vmem>>, vector<8x16xf32>
    tpu.vector_store %arg19[%c0_239, %c0_240], %581 {strides = array<i32>} : memref<8x16xf32, #tpu.memory_space<vmem>>, vector<8x16xf32>,
    %cst_241 = arith.constant 0.000000e+00 : f32
    %583 = vector.broadcast %cst_241 : f32 to vector<8x16xf32>
    %584 = vector.shape_cast %574 : vector<8x1xi1> to vector<8x1xi1>
    %585 = vector.broadcast %584 : vector<8x1xi1> to vector<8x16xi1>
    %586 = arith.select %585, %572, %583 : vector<8x16xi1>, vector<8x16xf32>
    %587 = arith.index_cast %c5_i32 : i32 to index
    %c0_242 = arith.constant 0 : index
    %c0_243 = arith.constant 0 : index
    %588 = vector.load %arg16[%587, %c0_242, %c0_243] : memref<8x8x16xf32, #tpu.memory_space<vmem>>, vector<1x8x16xf32>
    %589 = vector.shape_cast %588 : vector<1x8x16xf32> to vector<8x16xf32>
    %590 = vector.shape_cast %586 : vector<8x16xf32> to vector<1x8x16xf32>
    tpu.vector_store %arg16[%587, %c0_242, %c0_243], %590 {strides = array<i32>} : memref<8x8x16xf32, #tpu.memory_space<vmem>>, vector<1x8x16xf32>,
    %c7_i32_244 = arith.constant 7 : i32
    %591 = arith.subi %c7_i32_244, %c5_i32 : i32
    %c0_245 = arith.constant 0 : index
    %c0_246 = arith.constant 0 : index
    %592 = vector.load %arg20[%c0_245, %c0_246] : memref<8x16xf32, #tpu.memory_space<vmem>>, vector<8x16xf32>
    %c0_247 = arith.constant 0 : index
    %c0_248 = arith.constant 0 : index
    %593 = vector.load %arg21[%c0_247, %c0_248] : memref<8x16xf32, #tpu.memory_space<vmem>>, vector<8x16xf32>
    %594 = arith.index_cast %591 : i32 to index
    %c0_249 = arith.constant 0 : index
    %c0_250 = arith.constant 0 : index
    %595 = vector.load %arg15[%594, %c0_249, %c0_250] : memref<8x8x64xf32, #tpu.memory_space<vmem>>, vector<1x8x64xf32>
    %596 = vector.shape_cast %595 : vector<1x8x64xf32> to vector<8x64xf32>
    %c0_251 = arith.constant 0 : index
    %c0_252 = arith.constant 0 : index
    %597 = vector.load %arg8[%c0_251, %c0_252] : memref<16x64xf32, #tpu.memory_space<vmem>>, vector<16x64xf32>
    %cst_253 = arith.constant dense<0.000000e+00> : vector<8x64xf32>
    %598 = tpu.matmul %592, %597, %cst_253 {dimension_numbers = #tpu.dot_dimension_numbers<[1], [0], [0], [1], [0, 0, 1, 1], [], []>} : vector<8x16xf32>, vector<16x64xf32>, vector<8x64xf32> -> vector<8x64xf32>
    %599 = arith.addf %596, %598 : vector<8x64xf32>
    %600 = vector.extract_strided_slice %599 {offsets = [0, 0], sizes = [8, 16], strides = [1, 1]} : vector<8x64xf32> to vector<8x16xf32>
    %601 = arith.negf %600 : vector<8x16xf32>
    %602 = math.exp %601 : vector<8x16xf32>
    %cst_254 = arith.constant 1.000000e+00 : f32
    %603 = vector.broadcast %cst_254 : f32 to vector<8x16xf32>
    %604 = arith.addf %603, %602 : vector<8x16xf32>
    %605 = arith.divf %603, %604 : vector<8x16xf32>
    %606 = vector.extract_strided_slice %599 {offsets = [0, 16], sizes = [8, 16], strides = [1, 1]} : vector<8x64xf32> to vector<8x16xf32>
    %607 = arith.negf %606 : vector<8x16xf32>
    %608 = math.exp %607 : vector<8x16xf32>
    %cst_255 = arith.constant 1.000000e+00 : f32
    %609 = vector.broadcast %cst_255 : f32 to vector<8x16xf32>
    %610 = arith.addf %609, %608 : vector<8x16xf32>
    %611 = arith.divf %609, %610 : vector<8x16xf32>
    %612 = vector.extract_strided_slice %599 {offsets = [0, 32], sizes = [8, 16], strides = [1, 1]} : vector<8x64xf32> to vector<8x16xf32>
    %613 = math.tanh %612 : vector<8x16xf32>
    %614 = vector.extract_strided_slice %599 {offsets = [0, 48], sizes = [8, 16], strides = [1, 1]} : vector<8x64xf32> to vector<8x16xf32>
    %615 = arith.negf %614 : vector<8x16xf32>
    %616 = math.exp %615 : vector<8x16xf32>
    %cst_256 = arith.constant 1.000000e+00 : f32
    %617 = vector.broadcast %cst_256 : f32 to vector<8x16xf32>
    %618 = arith.addf %617, %616 : vector<8x16xf32>
    %619 = arith.divf %617, %618 : vector<8x16xf32>
    %620 = arith.mulf %611, %593 : vector<8x16xf32>
    %621 = arith.mulf %605, %613 : vector<8x16xf32>
    %622 = arith.addf %620, %621 : vector<8x16xf32>
    %623 = math.tanh %622 : vector<8x16xf32>
    %624 = arith.mulf %619, %623 : vector<8x16xf32>
    %625 = vector.broadcast %591 : i32 to vector<8x1xi32>
    %626 = arith.cmpi slt, %625, %24 : vector<8x1xi32>
    %627 = vector.shape_cast %626 : vector<8x1xi1> to vector<8x1xi1>
    %628 = vector.broadcast %627 : vector<8x1xi1> to vector<8x16xi1>
    %629 = arith.select %628, %624, %592 : vector<8x16xi1>, vector<8x16xf32>
    %c0_257 = arith.constant 0 : index
    %c0_258 = arith.constant 0 : index
    %630 = vector.load %arg20[%c0_257, %c0_258] : memref<8x16xf32, #tpu.memory_space<vmem>>, vector<8x16xf32>
    tpu.vector_store %arg20[%c0_257, %c0_258], %629 {strides = array<i32>} : memref<8x16xf32, #tpu.memory_space<vmem>>, vector<8x16xf32>,
    %631 = vector.shape_cast %626 : vector<8x1xi1> to vector<8x1xi1>
    %632 = vector.broadcast %631 : vector<8x1xi1> to vector<8x16xi1>
    %633 = arith.select %632, %622, %593 : vector<8x16xi1>, vector<8x16xf32>
    %c0_259 = arith.constant 0 : index
    %c0_260 = arith.constant 0 : index
    %634 = vector.load %arg21[%c0_259, %c0_260] : memref<8x16xf32, #tpu.memory_space<vmem>>, vector<8x16xf32>
    tpu.vector_store %arg21[%c0_259, %c0_260], %633 {strides = array<i32>} : memref<8x16xf32, #tpu.memory_space<vmem>>, vector<8x16xf32>,
    %cst_261 = arith.constant 0.000000e+00 : f32
    %635 = vector.broadcast %cst_261 : f32 to vector<8x16xf32>
    %636 = vector.shape_cast %626 : vector<8x1xi1> to vector<8x1xi1>
    %637 = vector.broadcast %636 : vector<8x1xi1> to vector<8x16xi1>
    %638 = arith.select %637, %624, %635 : vector<8x16xi1>, vector<8x16xf32>
    %639 = arith.index_cast %591 : i32 to index
    %c0_262 = arith.constant 0 : index
    %c0_263 = arith.constant 0 : index
    %640 = vector.load %arg17[%639, %c0_262, %c0_263] : memref<8x8x16xf32, #tpu.memory_space<vmem>>, vector<1x8x16xf32>
    %641 = vector.shape_cast %640 : vector<1x8x16xf32> to vector<8x16xf32>
    %642 = vector.shape_cast %638 : vector<8x16xf32> to vector<1x8x16xf32>
    tpu.vector_store %arg17[%639, %c0_262, %c0_263], %642 {strides = array<i32>} : memref<8x8x16xf32, #tpu.memory_space<vmem>>, vector<1x8x16xf32>,
    %c6_i32 = arith.constant 6 : i32
    %c0_264 = arith.constant 0 : index
    %c0_265 = arith.constant 0 : index
    %643 = vector.load %arg18[%c0_264, %c0_265] : memref<8x16xf32, #tpu.memory_space<vmem>>, vector<8x16xf32>
    %c0_266 = arith.constant 0 : index
    %c0_267 = arith.constant 0 : index
    %644 = vector.load %arg19[%c0_266, %c0_267] : memref<8x16xf32, #tpu.memory_space<vmem>>, vector<8x16xf32>
    %645 = arith.index_cast %c6_i32 : i32 to index
    %c0_268 = arith.constant 0 : index
    %c0_269 = arith.constant 0 : index
    %646 = vector.load %arg14[%645, %c0_268, %c0_269] : memref<8x8x64xf32, #tpu.memory_space<vmem>>, vector<1x8x64xf32>
    %647 = vector.shape_cast %646 : vector<1x8x64xf32> to vector<8x64xf32>
    %c0_270 = arith.constant 0 : index
    %c0_271 = arith.constant 0 : index
    %648 = vector.load %arg5[%c0_270, %c0_271] : memref<16x64xf32, #tpu.memory_space<vmem>>, vector<16x64xf32>
    %cst_272 = arith.constant dense<0.000000e+00> : vector<8x64xf32>
    %649 = tpu.matmul %643, %648, %cst_272 {dimension_numbers = #tpu.dot_dimension_numbers<[1], [0], [0], [1], [0, 0, 1, 1], [], []>} : vector<8x16xf32>, vector<16x64xf32>, vector<8x64xf32> -> vector<8x64xf32>
    %650 = arith.addf %647, %649 : vector<8x64xf32>
    %651 = vector.extract_strided_slice %650 {offsets = [0, 0], sizes = [8, 16], strides = [1, 1]} : vector<8x64xf32> to vector<8x16xf32>
    %652 = arith.negf %651 : vector<8x16xf32>
    %653 = math.exp %652 : vector<8x16xf32>
    %cst_273 = arith.constant 1.000000e+00 : f32
    %654 = vector.broadcast %cst_273 : f32 to vector<8x16xf32>
    %655 = arith.addf %654, %653 : vector<8x16xf32>
    %656 = arith.divf %654, %655 : vector<8x16xf32>
    %657 = vector.extract_strided_slice %650 {offsets = [0, 16], sizes = [8, 16], strides = [1, 1]} : vector<8x64xf32> to vector<8x16xf32>
    %658 = arith.negf %657 : vector<8x16xf32>
    %659 = math.exp %658 : vector<8x16xf32>
    %cst_274 = arith.constant 1.000000e+00 : f32
    %660 = vector.broadcast %cst_274 : f32 to vector<8x16xf32>
    %661 = arith.addf %660, %659 : vector<8x16xf32>
    %662 = arith.divf %660, %661 : vector<8x16xf32>
    %663 = vector.extract_strided_slice %650 {offsets = [0, 32], sizes = [8, 16], strides = [1, 1]} : vector<8x64xf32> to vector<8x16xf32>
    %664 = math.tanh %663 : vector<8x16xf32>
    %665 = vector.extract_strided_slice %650 {offsets = [0, 48], sizes = [8, 16], strides = [1, 1]} : vector<8x64xf32> to vector<8x16xf32>
    %666 = arith.negf %665 : vector<8x16xf32>
    %667 = math.exp %666 : vector<8x16xf32>
    %cst_275 = arith.constant 1.000000e+00 : f32
    %668 = vector.broadcast %cst_275 : f32 to vector<8x16xf32>
    %669 = arith.addf %668, %667 : vector<8x16xf32>
    %670 = arith.divf %668, %669 : vector<8x16xf32>
    %671 = arith.mulf %662, %644 : vector<8x16xf32>
    %672 = arith.mulf %656, %664 : vector<8x16xf32>
    %673 = arith.addf %671, %672 : vector<8x16xf32>
    %674 = math.tanh %673 : vector<8x16xf32>
    %675 = arith.mulf %670, %674 : vector<8x16xf32>
    %676 = vector.broadcast %c6_i32 : i32 to vector<8x1xi32>
    %677 = arith.cmpi slt, %676, %24 : vector<8x1xi32>
    %678 = vector.shape_cast %677 : vector<8x1xi1> to vector<8x1xi1>
    %679 = vector.broadcast %678 : vector<8x1xi1> to vector<8x16xi1>
    %680 = arith.select %679, %675, %643 : vector<8x16xi1>, vector<8x16xf32>
    %c0_276 = arith.constant 0 : index
    %c0_277 = arith.constant 0 : index
    %681 = vector.load %arg18[%c0_276, %c0_277] : memref<8x16xf32, #tpu.memory_space<vmem>>, vector<8x16xf32>
    tpu.vector_store %arg18[%c0_276, %c0_277], %680 {strides = array<i32>} : memref<8x16xf32, #tpu.memory_space<vmem>>, vector<8x16xf32>,
    %682 = vector.shape_cast %677 : vector<8x1xi1> to vector<8x1xi1>
    %683 = vector.broadcast %682 : vector<8x1xi1> to vector<8x16xi1>
    %684 = arith.select %683, %673, %644 : vector<8x16xi1>, vector<8x16xf32>
    %c0_278 = arith.constant 0 : index
    %c0_279 = arith.constant 0 : index
    %685 = vector.load %arg19[%c0_278, %c0_279] : memref<8x16xf32, #tpu.memory_space<vmem>>, vector<8x16xf32>
    tpu.vector_store %arg19[%c0_278, %c0_279], %684 {strides = array<i32>} : memref<8x16xf32, #tpu.memory_space<vmem>>, vector<8x16xf32>,
    %cst_280 = arith.constant 0.000000e+00 : f32
    %686 = vector.broadcast %cst_280 : f32 to vector<8x16xf32>
    %687 = vector.shape_cast %677 : vector<8x1xi1> to vector<8x1xi1>
    %688 = vector.broadcast %687 : vector<8x1xi1> to vector<8x16xi1>
    %689 = arith.select %688, %675, %686 : vector<8x16xi1>, vector<8x16xf32>
    %690 = arith.index_cast %c6_i32 : i32 to index
    %c0_281 = arith.constant 0 : index
    %c0_282 = arith.constant 0 : index
    %691 = vector.load %arg16[%690, %c0_281, %c0_282] : memref<8x8x16xf32, #tpu.memory_space<vmem>>, vector<1x8x16xf32>
    %692 = vector.shape_cast %691 : vector<1x8x16xf32> to vector<8x16xf32>
    %693 = vector.shape_cast %689 : vector<8x16xf32> to vector<1x8x16xf32>
    tpu.vector_store %arg16[%690, %c0_281, %c0_282], %693 {strides = array<i32>} : memref<8x8x16xf32, #tpu.memory_space<vmem>>, vector<1x8x16xf32>,
    %c7_i32_283 = arith.constant 7 : i32
    %694 = arith.subi %c7_i32_283, %c6_i32 : i32
    %c0_284 = arith.constant 0 : index
    %c0_285 = arith.constant 0 : index
    %695 = vector.load %arg20[%c0_284, %c0_285] : memref<8x16xf32, #tpu.memory_space<vmem>>, vector<8x16xf32>
    %c0_286 = arith.constant 0 : index
    %c0_287 = arith.constant 0 : index
    %696 = vector.load %arg21[%c0_286, %c0_287] : memref<8x16xf32, #tpu.memory_space<vmem>>, vector<8x16xf32>
    %697 = arith.index_cast %694 : i32 to index
    %c0_288 = arith.constant 0 : index
    %c0_289 = arith.constant 0 : index
    %698 = vector.load %arg15[%697, %c0_288, %c0_289] : memref<8x8x64xf32, #tpu.memory_space<vmem>>, vector<1x8x64xf32>
    %699 = vector.shape_cast %698 : vector<1x8x64xf32> to vector<8x64xf32>
    %c0_290 = arith.constant 0 : index
    %c0_291 = arith.constant 0 : index
    %700 = vector.load %arg8[%c0_290, %c0_291] : memref<16x64xf32, #tpu.memory_space<vmem>>, vector<16x64xf32>
    %cst_292 = arith.constant dense<0.000000e+00> : vector<8x64xf32>
    %701 = tpu.matmul %695, %700, %cst_292 {dimension_numbers = #tpu.dot_dimension_numbers<[1], [0], [0], [1], [0, 0, 1, 1], [], []>} : vector<8x16xf32>, vector<16x64xf32>, vector<8x64xf32> -> vector<8x64xf32>
    %702 = arith.addf %699, %701 : vector<8x64xf32>
    %703 = vector.extract_strided_slice %702 {offsets = [0, 0], sizes = [8, 16], strides = [1, 1]} : vector<8x64xf32> to vector<8x16xf32>
    %704 = arith.negf %703 : vector<8x16xf32>
    %705 = math.exp %704 : vector<8x16xf32>
    %cst_293 = arith.constant 1.000000e+00 : f32
    %706 = vector.broadcast %cst_293 : f32 to vector<8x16xf32>
    %707 = arith.addf %706, %705 : vector<8x16xf32>
    %708 = arith.divf %706, %707 : vector<8x16xf32>
    %709 = vector.extract_strided_slice %702 {offsets = [0, 16], sizes = [8, 16], strides = [1, 1]} : vector<8x64xf32> to vector<8x16xf32>
    %710 = arith.negf %709 : vector<8x16xf32>
    %711 = math.exp %710 : vector<8x16xf32>
    %cst_294 = arith.constant 1.000000e+00 : f32
    %712 = vector.broadcast %cst_294 : f32 to vector<8x16xf32>
    %713 = arith.addf %712, %711 : vector<8x16xf32>
    %714 = arith.divf %712, %713 : vector<8x16xf32>
    %715 = vector.extract_strided_slice %702 {offsets = [0, 32], sizes = [8, 16], strides = [1, 1]} : vector<8x64xf32> to vector<8x16xf32>
    %716 = math.tanh %715 : vector<8x16xf32>
    %717 = vector.extract_strided_slice %702 {offsets = [0, 48], sizes = [8, 16], strides = [1, 1]} : vector<8x64xf32> to vector<8x16xf32>
    %718 = arith.negf %717 : vector<8x16xf32>
    %719 = math.exp %718 : vector<8x16xf32>
    %cst_295 = arith.constant 1.000000e+00 : f32
    %720 = vector.broadcast %cst_295 : f32 to vector<8x16xf32>
    %721 = arith.addf %720, %719 : vector<8x16xf32>
    %722 = arith.divf %720, %721 : vector<8x16xf32>
    %723 = arith.mulf %714, %696 : vector<8x16xf32>
    %724 = arith.mulf %708, %716 : vector<8x16xf32>
    %725 = arith.addf %723, %724 : vector<8x16xf32>
    %726 = math.tanh %725 : vector<8x16xf32>
    %727 = arith.mulf %722, %726 : vector<8x16xf32>
    %728 = vector.broadcast %694 : i32 to vector<8x1xi32>
    %729 = arith.cmpi slt, %728, %24 : vector<8x1xi32>
    %730 = vector.shape_cast %729 : vector<8x1xi1> to vector<8x1xi1>
    %731 = vector.broadcast %730 : vector<8x1xi1> to vector<8x16xi1>
    %732 = arith.select %731, %727, %695 : vector<8x16xi1>, vector<8x16xf32>
    %c0_296 = arith.constant 0 : index
    %c0_297 = arith.constant 0 : index
    %733 = vector.load %arg20[%c0_296, %c0_297] : memref<8x16xf32, #tpu.memory_space<vmem>>, vector<8x16xf32>
    tpu.vector_store %arg20[%c0_296, %c0_297], %732 {strides = array<i32>} : memref<8x16xf32, #tpu.memory_space<vmem>>, vector<8x16xf32>,
    %734 = vector.shape_cast %729 : vector<8x1xi1> to vector<8x1xi1>
    %735 = vector.broadcast %734 : vector<8x1xi1> to vector<8x16xi1>
    %736 = arith.select %735, %725, %696 : vector<8x16xi1>, vector<8x16xf32>
    %c0_298 = arith.constant 0 : index
    %c0_299 = arith.constant 0 : index
    %737 = vector.load %arg21[%c0_298, %c0_299] : memref<8x16xf32, #tpu.memory_space<vmem>>, vector<8x16xf32>
    tpu.vector_store %arg21[%c0_298, %c0_299], %736 {strides = array<i32>} : memref<8x16xf32, #tpu.memory_space<vmem>>, vector<8x16xf32>,
    %cst_300 = arith.constant 0.000000e+00 : f32
    %738 = vector.broadcast %cst_300 : f32 to vector<8x16xf32>
    %739 = vector.shape_cast %729 : vector<8x1xi1> to vector<8x1xi1>
    %740 = vector.broadcast %739 : vector<8x1xi1> to vector<8x16xi1>
    %741 = arith.select %740, %727, %738 : vector<8x16xi1>, vector<8x16xf32>
    %742 = arith.index_cast %694 : i32 to index
    %c0_301 = arith.constant 0 : index
    %c0_302 = arith.constant 0 : index
    %743 = vector.load %arg17[%742, %c0_301, %c0_302] : memref<8x8x16xf32, #tpu.memory_space<vmem>>, vector<1x8x16xf32>
    %744 = vector.shape_cast %743 : vector<1x8x16xf32> to vector<8x16xf32>
    %745 = vector.shape_cast %741 : vector<8x16xf32> to vector<1x8x16xf32>
    tpu.vector_store %arg17[%742, %c0_301, %c0_302], %745 {strides = array<i32>} : memref<8x8x16xf32, #tpu.memory_space<vmem>>, vector<1x8x16xf32>,
    %c7_i32_303 = arith.constant 7 : i32
    %c0_304 = arith.constant 0 : index
    %c0_305 = arith.constant 0 : index
    %746 = vector.load %arg18[%c0_304, %c0_305] : memref<8x16xf32, #tpu.memory_space<vmem>>, vector<8x16xf32>
    %c0_306 = arith.constant 0 : index
    %c0_307 = arith.constant 0 : index
    %747 = vector.load %arg19[%c0_306, %c0_307] : memref<8x16xf32, #tpu.memory_space<vmem>>, vector<8x16xf32>
    %748 = arith.index_cast %c7_i32_303 : i32 to index
    %c0_308 = arith.constant 0 : index
    %c0_309 = arith.constant 0 : index
    %749 = vector.load %arg14[%748, %c0_308, %c0_309] : memref<8x8x64xf32, #tpu.memory_space<vmem>>, vector<1x8x64xf32>
    %750 = vector.shape_cast %749 : vector<1x8x64xf32> to vector<8x64xf32>
    %c0_310 = arith.constant 0 : index
    %c0_311 = arith.constant 0 : index
    %751 = vector.load %arg5[%c0_310, %c0_311] : memref<16x64xf32, #tpu.memory_space<vmem>>, vector<16x64xf32>
    %cst_312 = arith.constant dense<0.000000e+00> : vector<8x64xf32>
    %752 = tpu.matmul %746, %751, %cst_312 {dimension_numbers = #tpu.dot_dimension_numbers<[1], [0], [0], [1], [0, 0, 1, 1], [], []>} : vector<8x16xf32>, vector<16x64xf32>, vector<8x64xf32> -> vector<8x64xf32>
    %753 = arith.addf %750, %752 : vector<8x64xf32>
    %754 = vector.extract_strided_slice %753 {offsets = [0, 0], sizes = [8, 16], strides = [1, 1]} : vector<8x64xf32> to vector<8x16xf32>
    %755 = arith.negf %754 : vector<8x16xf32>
    %756 = math.exp %755 : vector<8x16xf32>
    %cst_313 = arith.constant 1.000000e+00 : f32
    %757 = vector.broadcast %cst_313 : f32 to vector<8x16xf32>
    %758 = arith.addf %757, %756 : vector<8x16xf32>
    %759 = arith.divf %757, %758 : vector<8x16xf32>
    %760 = vector.extract_strided_slice %753 {offsets = [0, 16], sizes = [8, 16], strides = [1, 1]} : vector<8x64xf32> to vector<8x16xf32>
    %761 = arith.negf %760 : vector<8x16xf32>
    %762 = math.exp %761 : vector<8x16xf32>
    %cst_314 = arith.constant 1.000000e+00 : f32
    %763 = vector.broadcast %cst_314 : f32 to vector<8x16xf32>
    %764 = arith.addf %763, %762 : vector<8x16xf32>
    %765 = arith.divf %763, %764 : vector<8x16xf32>
    %766 = vector.extract_strided_slice %753 {offsets = [0, 32], sizes = [8, 16], strides = [1, 1]} : vector<8x64xf32> to vector<8x16xf32>
    %767 = math.tanh %766 : vector<8x16xf32>
    %768 = vector.extract_strided_slice %753 {offsets = [0, 48], sizes = [8, 16], strides = [1, 1]} : vector<8x64xf32> to vector<8x16xf32>
    %769 = arith.negf %768 : vector<8x16xf32>
    %770 = math.exp %769 : vector<8x16xf32>
    %cst_315 = arith.constant 1.000000e+00 : f32
    %771 = vector.broadcast %cst_315 : f32 to vector<8x16xf32>
    %772 = arith.addf %771, %770 : vector<8x16xf32>
    %773 = arith.divf %771, %772 : vector<8x16xf32>
    %774 = arith.mulf %765, %747 : vector<8x16xf32>
    %775 = arith.mulf %759, %767 : vector<8x16xf32>
    %776 = arith.addf %774, %775 : vector<8x16xf32>
    %777 = math.tanh %776 : vector<8x16xf32>
    %778 = arith.mulf %773, %777 : vector<8x16xf32>
    %779 = vector.broadcast %c7_i32_303 : i32 to vector<8x1xi32>
    %780 = arith.cmpi slt, %779, %24 : vector<8x1xi32>
    %781 = vector.shape_cast %780 : vector<8x1xi1> to vector<8x1xi1>
    %782 = vector.broadcast %781 : vector<8x1xi1> to vector<8x16xi1>
    %783 = arith.select %782, %778, %746 : vector<8x16xi1>, vector<8x16xf32>
    %c0_316 = arith.constant 0 : index
    %c0_317 = arith.constant 0 : index
    %784 = vector.load %arg18[%c0_316, %c0_317] : memref<8x16xf32, #tpu.memory_space<vmem>>, vector<8x16xf32>
    tpu.vector_store %arg18[%c0_316, %c0_317], %783 {strides = array<i32>} : memref<8x16xf32, #tpu.memory_space<vmem>>, vector<8x16xf32>,
    %785 = vector.shape_cast %780 : vector<8x1xi1> to vector<8x1xi1>
    %786 = vector.broadcast %785 : vector<8x1xi1> to vector<8x16xi1>
    %787 = arith.select %786, %776, %747 : vector<8x16xi1>, vector<8x16xf32>
    %c0_318 = arith.constant 0 : index
    %c0_319 = arith.constant 0 : index
    %788 = vector.load %arg19[%c0_318, %c0_319] : memref<8x16xf32, #tpu.memory_space<vmem>>, vector<8x16xf32>
    tpu.vector_store %arg19[%c0_318, %c0_319], %787 {strides = array<i32>} : memref<8x16xf32, #tpu.memory_space<vmem>>, vector<8x16xf32>,
    %cst_320 = arith.constant 0.000000e+00 : f32
    %789 = vector.broadcast %cst_320 : f32 to vector<8x16xf32>
    %790 = vector.shape_cast %780 : vector<8x1xi1> to vector<8x1xi1>
    %791 = vector.broadcast %790 : vector<8x1xi1> to vector<8x16xi1>
    %792 = arith.select %791, %778, %789 : vector<8x16xi1>, vector<8x16xf32>
    %793 = arith.index_cast %c7_i32_303 : i32 to index
    %c0_321 = arith.constant 0 : index
    %c0_322 = arith.constant 0 : index
    %794 = vector.load %arg16[%793, %c0_321, %c0_322] : memref<8x8x16xf32, #tpu.memory_space<vmem>>, vector<1x8x16xf32>
    %795 = vector.shape_cast %794 : vector<1x8x16xf32> to vector<8x16xf32>
    %796 = vector.shape_cast %792 : vector<8x16xf32> to vector<1x8x16xf32>
    tpu.vector_store %arg16[%793, %c0_321, %c0_322], %796 {strides = array<i32>} : memref<8x8x16xf32, #tpu.memory_space<vmem>>, vector<1x8x16xf32>,
    %c7_i32_323 = arith.constant 7 : i32
    %797 = arith.subi %c7_i32_323, %c7_i32_303 : i32
    %c0_324 = arith.constant 0 : index
    %c0_325 = arith.constant 0 : index
    %798 = vector.load %arg20[%c0_324, %c0_325] : memref<8x16xf32, #tpu.memory_space<vmem>>, vector<8x16xf32>
    %c0_326 = arith.constant 0 : index
    %c0_327 = arith.constant 0 : index
    %799 = vector.load %arg21[%c0_326, %c0_327] : memref<8x16xf32, #tpu.memory_space<vmem>>, vector<8x16xf32>
    %800 = arith.index_cast %797 : i32 to index
    %c0_328 = arith.constant 0 : index
    %c0_329 = arith.constant 0 : index
    %801 = vector.load %arg15[%800, %c0_328, %c0_329] : memref<8x8x64xf32, #tpu.memory_space<vmem>>, vector<1x8x64xf32>
    %802 = vector.shape_cast %801 : vector<1x8x64xf32> to vector<8x64xf32>
    %c0_330 = arith.constant 0 : index
    %c0_331 = arith.constant 0 : index
    %803 = vector.load %arg8[%c0_330, %c0_331] : memref<16x64xf32, #tpu.memory_space<vmem>>, vector<16x64xf32>
    %cst_332 = arith.constant dense<0.000000e+00> : vector<8x64xf32>
    %804 = tpu.matmul %798, %803, %cst_332 {dimension_numbers = #tpu.dot_dimension_numbers<[1], [0], [0], [1], [0, 0, 1, 1], [], []>} : vector<8x16xf32>, vector<16x64xf32>, vector<8x64xf32> -> vector<8x64xf32>
    %805 = arith.addf %802, %804 : vector<8x64xf32>
    %806 = vector.extract_strided_slice %805 {offsets = [0, 0], sizes = [8, 16], strides = [1, 1]} : vector<8x64xf32> to vector<8x16xf32>
    %807 = arith.negf %806 : vector<8x16xf32>
    %808 = math.exp %807 : vector<8x16xf32>
    %cst_333 = arith.constant 1.000000e+00 : f32
    %809 = vector.broadcast %cst_333 : f32 to vector<8x16xf32>
    %810 = arith.addf %809, %808 : vector<8x16xf32>
    %811 = arith.divf %809, %810 : vector<8x16xf32>
    %812 = vector.extract_strided_slice %805 {offsets = [0, 16], sizes = [8, 16], strides = [1, 1]} : vector<8x64xf32> to vector<8x16xf32>
    %813 = arith.negf %812 : vector<8x16xf32>
    %814 = math.exp %813 : vector<8x16xf32>
    %cst_334 = arith.constant 1.000000e+00 : f32
    %815 = vector.broadcast %cst_334 : f32 to vector<8x16xf32>
    %816 = arith.addf %815, %814 : vector<8x16xf32>
    %817 = arith.divf %815, %816 : vector<8x16xf32>
    %818 = vector.extract_strided_slice %805 {offsets = [0, 32], sizes = [8, 16], strides = [1, 1]} : vector<8x64xf32> to vector<8x16xf32>
    %819 = math.tanh %818 : vector<8x16xf32>
    %820 = vector.extract_strided_slice %805 {offsets = [0, 48], sizes = [8, 16], strides = [1, 1]} : vector<8x64xf32> to vector<8x16xf32>
    %821 = arith.negf %820 : vector<8x16xf32>
    %822 = math.exp %821 : vector<8x16xf32>
    %cst_335 = arith.constant 1.000000e+00 : f32
    %823 = vector.broadcast %cst_335 : f32 to vector<8x16xf32>
    %824 = arith.addf %823, %822 : vector<8x16xf32>
    %825 = arith.divf %823, %824 : vector<8x16xf32>
    %826 = arith.mulf %817, %799 : vector<8x16xf32>
    %827 = arith.mulf %811, %819 : vector<8x16xf32>
    %828 = arith.addf %826, %827 : vector<8x16xf32>
    %829 = math.tanh %828 : vector<8x16xf32>
    %830 = arith.mulf %825, %829 : vector<8x16xf32>
    %831 = vector.broadcast %797 : i32 to vector<8x1xi32>
    %832 = arith.cmpi slt, %831, %24 : vector<8x1xi32>
    %833 = vector.shape_cast %832 : vector<8x1xi1> to vector<8x1xi1>
    %834 = vector.broadcast %833 : vector<8x1xi1> to vector<8x16xi1>
    %835 = arith.select %834, %830, %798 : vector<8x16xi1>, vector<8x16xf32>
    %c0_336 = arith.constant 0 : index
    %c0_337 = arith.constant 0 : index
    %836 = vector.load %arg20[%c0_336, %c0_337] : memref<8x16xf32, #tpu.memory_space<vmem>>, vector<8x16xf32>
    tpu.vector_store %arg20[%c0_336, %c0_337], %835 {strides = array<i32>} : memref<8x16xf32, #tpu.memory_space<vmem>>, vector<8x16xf32>,
    %837 = vector.shape_cast %832 : vector<8x1xi1> to vector<8x1xi1>
    %838 = vector.broadcast %837 : vector<8x1xi1> to vector<8x16xi1>
    %839 = arith.select %838, %828, %799 : vector<8x16xi1>, vector<8x16xf32>
    %c0_338 = arith.constant 0 : index
    %c0_339 = arith.constant 0 : index
    %840 = vector.load %arg21[%c0_338, %c0_339] : memref<8x16xf32, #tpu.memory_space<vmem>>, vector<8x16xf32>
    tpu.vector_store %arg21[%c0_338, %c0_339], %839 {strides = array<i32>} : memref<8x16xf32, #tpu.memory_space<vmem>>, vector<8x16xf32>,
    %cst_340 = arith.constant 0.000000e+00 : f32
    %841 = vector.broadcast %cst_340 : f32 to vector<8x16xf32>
    %842 = vector.shape_cast %832 : vector<8x1xi1> to vector<8x1xi1>
    %843 = vector.broadcast %842 : vector<8x1xi1> to vector<8x16xi1>
    %844 = arith.select %843, %830, %841 : vector<8x16xi1>, vector<8x16xf32>
    %845 = arith.index_cast %797 : i32 to index
    %c0_341 = arith.constant 0 : index
    %c0_342 = arith.constant 0 : index
    %846 = vector.load %arg17[%845, %c0_341, %c0_342] : memref<8x8x16xf32, #tpu.memory_space<vmem>>, vector<1x8x16xf32>
    %847 = vector.shape_cast %846 : vector<1x8x16xf32> to vector<8x16xf32>
    %848 = vector.shape_cast %844 : vector<8x16xf32> to vector<1x8x16xf32>
    tpu.vector_store %arg17[%845, %c0_341, %c0_342], %848 {strides = array<i32>} : memref<8x8x16xf32, #tpu.memory_space<vmem>>, vector<1x8x16xf32>,
    %c8_i32 = arith.constant 8 : i32
    %c0_343 = arith.constant 0 : index
    %c0_344 = arith.constant 0 : index
    %c0_345 = arith.constant 0 : index
    %849 = vector.load %arg16[%c0_343, %c0_344, %c0_345] : memref<8x8x16xf32, #tpu.memory_space<vmem>>, vector<8x8x16xf32>
    %c0_346 = arith.constant 0 : index
    %c0_347 = arith.constant 0 : index
    %c0_348 = arith.constant 0 : index
    %850 = vector.load %arg17[%c0_346, %c0_347, %c0_348] : memref<8x8x16xf32, #tpu.memory_space<vmem>>, vector<8x8x16xf32>
    %851 = tpu.concatenate %849, %850 in 2 : vector<8x8x16xf32>, vector<8x8x16xf32> -> vector<8x8x32xf32>
    %852 = vector.shape_cast %851 : vector<8x8x32xf32> to vector<64x32xf32>
    %c0_349 = arith.constant 0 : index
    %c0_350 = arith.constant 0 : index
    %853 = vector.load %arg10[%c0_349, %c0_350] : memref<32x16xf32, #tpu.memory_space<vmem>>, vector<32x16xf32>
    %cst_351 = arith.constant dense<0.000000e+00> : vector<64x16xf32>
    %854 = tpu.matmul %852, %853, %cst_351 {dimension_numbers = #tpu.dot_dimension_numbers<[1], [0], [0], [1], [0, 0, 1, 1], [], []>} : vector<64x32xf32>, vector<32x16xf32>, vector<64x16xf32> -> vector<64x16xf32>
    %c0_352 = arith.constant 0 : index
    %c0_353 = arith.constant 0 : index
    %855 = vector.load %arg11[%c0_352, %c0_353] : memref<1x16xf32, #tpu.memory_space<vmem>>, vector<1x16xf32>
    %856 = vector.broadcast %855 : vector<1x16xf32> to vector<64x16xf32>
    %857 = arith.addf %854, %856 : vector<64x16xf32>
    %858 = math.tanh %857 : vector<64x16xf32>
    %c0_354 = arith.constant 0 : index
    %c0_355 = arith.constant 0 : index
    %859 = vector.load %arg12[%c0_354, %c0_355] : memref<1x16xf32, #tpu.memory_space<vmem>>, vector<1x16xf32>
    %860 = vector.broadcast %859 : vector<1x16xf32> to vector<64x16xf32>
    %861 = arith.mulf %858, %860 : vector<64x16xf32>
    %cst_356 = arith.constant dense<0.000000e+00> : vector<64xf32>
    %862 = vector.multi_reduction <add>, %861, %cst_356 [1] : vector<64x16xf32> to vector<64xf32>
    %863 = vector.shape_cast %862 : vector<64xf32> to vector<64x1xf32>
    %864 = vector.shape_cast %863 : vector<64x1xf32> to vector<8x8xf32>
    %865 = tpu.iota {dimensions = array<i32: 0>} : vector<8x8xi32>
    %c0_357 = arith.constant 0 : index
    %c0_358 = arith.constant 0 : index
    %866 = vector.load %arg3[%c0_357, %c0_358] : memref<1x8xi32, #tpu.memory_space<vmem>>, vector<1x8xi32>
    %867 = vector.broadcast %866 : vector<1x8xi32> to vector<8x8xi32>
    %868 = arith.cmpi slt, %865, %867 : vector<8x8xi32>
    %cst_359 = arith.constant -1.000000e+30 : f32
    %869 = vector.broadcast %cst_359 : f32 to vector<8x8xf32>
    %870 = arith.select %868, %864, %869 : vector<8x8xi1>, vector<8x8xf32>
    %cst_360 = arith.constant dense<0xFF800000> : vector<8xf32>
    %871 = vector.multi_reduction <maximumf>, %870, %cst_360 [0] : vector<8x8xf32> to vector<8xf32>
    %872 = vector.shape_cast %871 : vector<8xf32> to vector<1x8xf32>
    %873 = vector.broadcast %872 : vector<1x8xf32> to vector<8x8xf32>
    %874 = arith.subf %870, %873 : vector<8x8xf32>
    %875 = math.exp %874 : vector<8x8xf32>
    %cst_361 = arith.constant 0.000000e+00 : f32
    %876 = vector.broadcast %cst_361 : f32 to vector<8x8xf32>
    %877 = arith.select %868, %875, %876 : vector<8x8xi1>, vector<8x8xf32>
    %cst_362 = arith.constant dense<0.000000e+00> : vector<8xf32>
    %878 = vector.multi_reduction <add>, %877, %cst_362 [0] : vector<8x8xf32> to vector<8xf32>
    %879 = vector.shape_cast %878 : vector<8xf32> to vector<1x8xf32>
    %cst_363 = arith.constant 1.000000e-30 : f32
    %880 = vector.broadcast %cst_363 : f32 to vector<1x8xf32>
    %881 = arith.maximumf %879, %880 : vector<1x8xf32>
    %882 = vector.broadcast %881 : vector<1x8xf32> to vector<8x8xf32>
    %883 = arith.divf %877, %882 : vector<8x8xf32>
    %884 = vector.shape_cast %883 : vector<8x8xf32> to vector<8x8x1xf32>
    %885 = vector.broadcast %884 : vector<8x8x1xf32> to vector<8x8x32xf32>
    %886 = arith.mulf %851, %885 : vector<8x8x32xf32>
    %cst_364 = arith.constant dense<0.000000e+00> : vector<8x32xf32>
    %887 = vector.multi_reduction <add>, %886, %cst_364 [0] : vector<8x8x32xf32> to vector<8x32xf32>
    %c0_365 = arith.constant 0 : index
    %c0_366 = arith.constant 0 : index
    %888 = vector.load %arg13[%c0_365, %c0_366] : memref<8x32xf32, #tpu.memory_space<vmem>>, vector<8x32xf32>
    tpu.vector_store %arg13[%c0_365, %c0_366], %887 {strides = array<i32>} : memref<8x32xf32, #tpu.memory_space<vmem>>, vector<8x32xf32>,
    return
  }
  func.func @transform_0(%arg0: i32) -> (i32, i32, i32) {
    %c0_i32 = arith.constant 0 : i32
    %c0_i32_0 = arith.constant 0 : i32
    %c0_i32_1 = arith.constant 0 : i32
    return %c0_i32, %arg0, %c0_i32_0 : i32, i32, i32
  }
  func.func @transform_1(%arg0: i32) -> (i32, i32) {
    %c0_i32 = arith.constant 0 : i32
    %c0_i32_0 = arith.constant 0 : i32
    return %arg0, %c0_i32 : i32, i32
  }
  func.func @transform_2(%arg0: i32) -> (i32, i32) {
    %c0_i32 = arith.constant 0 : i32
    %c0_i32_0 = arith.constant 0 : i32
    return %c0_i32, %arg0 : i32, i32
  }
  func.func @transform_3(%arg0: i32) -> (i32, i32) {
    %c0_i32 = arith.constant 0 : i32
    %c0_i32_0 = arith.constant 0 : i32
    %c0_i32_1 = arith.constant 0 : i32
    return %c0_i32, %c0_i32_0 : i32, i32
  }
  func.func @transform_4(%arg0: i32) -> (i32, i32) {
    %c0_i32 = arith.constant 0 : i32
    %c0_i32_0 = arith.constant 0 : i32
    %c0_i32_1 = arith.constant 0 : i32
    return %c0_i32, %c0_i32_0 : i32, i32
  }
  func.func @transform_5(%arg0: i32) -> (i32, i32) {
    %c0_i32 = arith.constant 0 : i32
    %c0_i32_0 = arith.constant 0 : i32
    %c0_i32_1 = arith.constant 0 : i32
    return %c0_i32, %c0_i32_0 : i32, i32
  }
  func.func @transform_6(%arg0: i32) -> (i32, i32) {
    %c0_i32 = arith.constant 0 : i32
    %c0_i32_0 = arith.constant 0 : i32
    %c0_i32_1 = arith.constant 0 : i32
    return %c0_i32, %c0_i32_0 : i32, i32
  }
  func.func @transform_7(%arg0: i32) -> (i32, i32) {
    %c0_i32 = arith.constant 0 : i32
    %c0_i32_0 = arith.constant 0 : i32
    %c0_i32_1 = arith.constant 0 : i32
    return %c0_i32, %c0_i32_0 : i32, i32
  }
  func.func @transform_8(%arg0: i32) -> (i32, i32) {
    %c0_i32 = arith.constant 0 : i32
    %c0_i32_0 = arith.constant 0 : i32
    %c0_i32_1 = arith.constant 0 : i32
    return %c0_i32, %c0_i32_0 : i32, i32
  }
  func.func @transform_9(%arg0: i32) -> (i32, i32) {
    %c0_i32 = arith.constant 0 : i32
    %c0_i32_0 = arith.constant 0 : i32
    %c0_i32_1 = arith.constant 0 : i32
    return %c0_i32, %c0_i32_0 : i32, i32
  }
  func.func @transform_10(%arg0: i32) -> (i32, i32) {
    %c0_i32 = arith.constant 0 : i32
    %c0_i32_0 = arith.constant 0 : i32
    %c0_i32_1 = arith.constant 0 : i32
    return %c0_i32, %c0_i32_0 : i32, i32
  }
  func.func @transform_11(%arg0: i32) -> (i32, i32) {
    %c0_i32 = arith.constant 0 : i32
    %c0_i32_0 = arith.constant 0 : i32
    %c0_i32_1 = arith.constant 0 : i32
    return %c0_i32, %c0_i32_0 : i32, i32
  }
  func.func @transform_12(%arg0: i32) -> (i32, i32) {
    %c0_i32 = arith.constant 0 : i32
    %c0_i32_0 = arith.constant 0 : i32
    return %arg0, %c0_i32 : i32, i32
  }
}

module attributes {stable_mosaic.version = 11 : i64} {
  func.func @_sent_fused_kernel(%arg0: i32, %arg1: memref<4x2x32xf32, #tpu.memory_space<vmem>>, %arg2: memref<2x1xi32, #tpu.memory_space<vmem>>, %arg3: memref<1x2xi32, #tpu.memory_space<vmem>>, %arg4: memref<32x64xf32, #tpu.memory_space<vmem>>, %arg5: memref<16x64xf32, #tpu.memory_space<vmem>>, %arg6: memref<1x64xf32, #tpu.memory_space<vmem>>, %arg7: memref<32x64xf32, #tpu.memory_space<vmem>>, %arg8: memref<16x64xf32, #tpu.memory_space<vmem>>, %arg9: memref<1x64xf32, #tpu.memory_space<vmem>>, %arg10: memref<32x16xf32, #tpu.memory_space<vmem>>, %arg11: memref<1x16xf32, #tpu.memory_space<vmem>>, %arg12: memref<1x16xf32, #tpu.memory_space<vmem>>, %arg13: memref<32x4xf32, #tpu.memory_space<vmem>>, %arg14: memref<1x4xf32, #tpu.memory_space<vmem>>, %arg15: memref<4x2x4xf32, #tpu.memory_space<vmem>>, %arg16: memref<4x2x64xf32, #tpu.memory_space<vmem>>, %arg17: memref<4x2x64xf32, #tpu.memory_space<vmem>>, %arg18: memref<4x2x16xf32, #tpu.memory_space<vmem>>, %arg19: memref<4x2x16xf32, #tpu.memory_space<vmem>>, %arg20: memref<2x16xf32, #tpu.memory_space<vmem>>, %arg21: memref<2x16xf32, #tpu.memory_space<vmem>>, %arg22: memref<2x16xf32, #tpu.memory_space<vmem>>, %arg23: memref<2x16xf32, #tpu.memory_space<vmem>>) attributes {dimension_semantics = [#tpu.dimension_semantics<parallel>], iteration_bounds = array<i64: 1>, scalar_prefetch = 0 : i64, scratch_operands = 8 : i64, tpu.core_type = #tpu.core_type<tc>, window_params = [{transform_indices = @transform_0, window_bounds = array<i64: 4, 2, 32>}, {transform_indices = @transform_1, window_bounds = array<i64: 2, 1>}, {transform_indices = @transform_2, window_bounds = array<i64: 1, 2>}, {pipeline_mode = #tpu.pipeline_mode<synchronous>, transform_indices = @transform_3, window_bounds = array<i64: 32, 64>}, {pipeline_mode = #tpu.pipeline_mode<synchronous>, transform_indices = @transform_4, window_bounds = array<i64: 16, 64>}, {pipeline_mode = #tpu.pipeline_mode<synchronous>, transform_indices = @transform_5, window_bounds = array<i64: 1, 64>}, {pipeline_mode = #tpu.pipeline_mode<synchronous>, transform_indices = @transform_6, window_bounds = array<i64: 32, 64>}, {pipeline_mode = #tpu.pipeline_mode<synchronous>, transform_indices = @transform_7, window_bounds = array<i64: 16, 64>}, {pipeline_mode = #tpu.pipeline_mode<synchronous>, transform_indices = @transform_8, window_bounds = array<i64: 1, 64>}, {pipeline_mode = #tpu.pipeline_mode<synchronous>, transform_indices = @transform_9, window_bounds = array<i64: 32, 16>}, {pipeline_mode = #tpu.pipeline_mode<synchronous>, transform_indices = @transform_10, window_bounds = array<i64: 1, 16>}, {pipeline_mode = #tpu.pipeline_mode<synchronous>, transform_indices = @transform_11, window_bounds = array<i64: 1, 16>}, {pipeline_mode = #tpu.pipeline_mode<synchronous>, transform_indices = @transform_12, window_bounds = array<i64: 32, 4>}, {pipeline_mode = #tpu.pipeline_mode<synchronous>, transform_indices = @transform_13, window_bounds = array<i64: 1, 4>}, {transform_indices = @transform_14, window_bounds = array<i64: 4, 2, 4>}]} {
    %c0 = arith.constant 0 : index
    %c0_0 = arith.constant 0 : index
    %c0_1 = arith.constant 0 : index
    %0 = vector.load %arg1[%c0, %c0_0, %c0_1] : memref<4x2x32xf32, #tpu.memory_space<vmem>>, vector<4x2x32xf32>
    %1 = vector.shape_cast %0 : vector<4x2x32xf32> to vector<8x32xf32>
    %c0_2 = arith.constant 0 : index
    %c0_3 = arith.constant 0 : index
    %2 = vector.load %arg4[%c0_2, %c0_3] : memref<32x64xf32, #tpu.memory_space<vmem>>, vector<32x64xf32>
    %cst = arith.constant dense<0.000000e+00> : vector<8x64xf32>
    %3 = tpu.matmul %1, %2, %cst {dimension_numbers = #tpu.dot_dimension_numbers<[1], [0], [0], [1], [0, 0, 1, 1], [], []>} : vector<8x32xf32>, vector<32x64xf32>, vector<8x64xf32> -> vector<8x64xf32>
    %c0_4 = arith.constant 0 : index
    %c0_5 = arith.constant 0 : index
    %4 = vector.load %arg6[%c0_4, %c0_5] : memref<1x64xf32, #tpu.memory_space<vmem>>, vector<1x64xf32>
    %5 = vector.broadcast %4 : vector<1x64xf32> to vector<8x64xf32>
    %6 = arith.addf %3, %5 : vector<8x64xf32>
    %7 = vector.shape_cast %6 : vector<8x64xf32> to vector<4x2x64xf32>
    %c0_6 = arith.constant 0 : index
    %c0_7 = arith.constant 0 : index
    %c0_8 = arith.constant 0 : index
    %8 = vector.load %arg16[%c0_6, %c0_7, %c0_8] : memref<4x2x64xf32, #tpu.memory_space<vmem>>, vector<4x2x64xf32>
    tpu.vector_store %arg16[%c0_6, %c0_7, %c0_8], %7 {strides = array<i32>} : memref<4x2x64xf32, #tpu.memory_space<vmem>>, vector<4x2x64xf32>,
    %c0_9 = arith.constant 0 : index
    %c0_10 = arith.constant 0 : index
    %9 = vector.load %arg7[%c0_9, %c0_10] : memref<32x64xf32, #tpu.memory_space<vmem>>, vector<32x64xf32>
    %cst_11 = arith.constant dense<0.000000e+00> : vector<8x64xf32>
    %10 = tpu.matmul %1, %9, %cst_11 {dimension_numbers = #tpu.dot_dimension_numbers<[1], [0], [0], [1], [0, 0, 1, 1], [], []>} : vector<8x32xf32>, vector<32x64xf32>, vector<8x64xf32> -> vector<8x64xf32>
    %c0_12 = arith.constant 0 : index
    %c0_13 = arith.constant 0 : index
    %11 = vector.load %arg9[%c0_12, %c0_13] : memref<1x64xf32, #tpu.memory_space<vmem>>, vector<1x64xf32>
    %12 = vector.broadcast %11 : vector<1x64xf32> to vector<8x64xf32>
    %13 = arith.addf %10, %12 : vector<8x64xf32>
    %14 = vector.shape_cast %13 : vector<8x64xf32> to vector<4x2x64xf32>
    %c0_14 = arith.constant 0 : index
    %c0_15 = arith.constant 0 : index
    %c0_16 = arith.constant 0 : index
    %15 = vector.load %arg17[%c0_14, %c0_15, %c0_16] : memref<4x2x64xf32, #tpu.memory_space<vmem>>, vector<4x2x64xf32>
    tpu.vector_store %arg17[%c0_14, %c0_15, %c0_16], %14 {strides = array<i32>} : memref<4x2x64xf32, #tpu.memory_space<vmem>>, vector<4x2x64xf32>,
    %cst_17 = arith.constant 0.000000e+00 : f32
    %16 = vector.broadcast %cst_17 : f32 to vector<2x16xf32>
    %c0_18 = arith.constant 0 : index
    %c0_19 = arith.constant 0 : index
    %17 = vector.load %arg20[%c0_18, %c0_19] : memref<2x16xf32, #tpu.memory_space<vmem>>, vector<2x16xf32>
    tpu.vector_store %arg20[%c0_18, %c0_19], %16 {strides = array<i32>} : memref<2x16xf32, #tpu.memory_space<vmem>>, vector<2x16xf32>,
    %cst_20 = arith.constant 0.000000e+00 : f32
    %18 = vector.broadcast %cst_20 : f32 to vector<2x16xf32>
    %c0_21 = arith.constant 0 : index
    %c0_22 = arith.constant 0 : index
    %19 = vector.load %arg21[%c0_21, %c0_22] : memref<2x16xf32, #tpu.memory_space<vmem>>, vector<2x16xf32>
    tpu.vector_store %arg21[%c0_21, %c0_22], %18 {strides = array<i32>} : memref<2x16xf32, #tpu.memory_space<vmem>>, vector<2x16xf32>,
    %cst_23 = arith.constant 0.000000e+00 : f32
    %20 = vector.broadcast %cst_23 : f32 to vector<2x16xf32>
    %c0_24 = arith.constant 0 : index
    %c0_25 = arith.constant 0 : index
    %21 = vector.load %arg22[%c0_24, %c0_25] : memref<2x16xf32, #tpu.memory_space<vmem>>, vector<2x16xf32>
    tpu.vector_store %arg22[%c0_24, %c0_25], %20 {strides = array<i32>} : memref<2x16xf32, #tpu.memory_space<vmem>>, vector<2x16xf32>,
    %cst_26 = arith.constant 0.000000e+00 : f32
    %22 = vector.broadcast %cst_26 : f32 to vector<2x16xf32>
    %c0_27 = arith.constant 0 : index
    %c0_28 = arith.constant 0 : index
    %23 = vector.load %arg23[%c0_27, %c0_28] : memref<2x16xf32, #tpu.memory_space<vmem>>, vector<2x16xf32>
    tpu.vector_store %arg23[%c0_27, %c0_28], %22 {strides = array<i32>} : memref<2x16xf32, #tpu.memory_space<vmem>>, vector<2x16xf32>,
    %c0_29 = arith.constant 0 : index
    %c0_30 = arith.constant 0 : index
    %24 = vector.load %arg2[%c0_29, %c0_30] : memref<2x1xi32, #tpu.memory_space<vmem>>, vector<2x1xi32>
    %c0_i32 = arith.constant 0 : i32
    %c0_31 = arith.constant 0 : index
    %c0_32 = arith.constant 0 : index
    %25 = vector.load %arg20[%c0_31, %c0_32] : memref<2x16xf32, #tpu.memory_space<vmem>>, vector<2x16xf32>
    %c0_33 = arith.constant 0 : index
    %c0_34 = arith.constant 0 : index
    %26 = vector.load %arg21[%c0_33, %c0_34] : memref<2x16xf32, #tpu.memory_space<vmem>>, vector<2x16xf32>
    %27 = arith.index_cast %c0_i32 : i32 to index
    %c0_35 = arith.constant 0 : index
    %c0_36 = arith.constant 0 : index
    %28 = vector.load %arg16[%27, %c0_35, %c0_36] : memref<4x2x64xf32, #tpu.memory_space<vmem>>, vector<1x2x64xf32>
    %29 = vector.shape_cast %28 : vector<1x2x64xf32> to vector<2x64xf32>
    %c0_37 = arith.constant 0 : index
    %c0_38 = arith.constant 0 : index
    %30 = vector.load %arg5[%c0_37, %c0_38] : memref<16x64xf32, #tpu.memory_space<vmem>>, vector<16x64xf32>
    %cst_39 = arith.constant dense<0.000000e+00> : vector<2x64xf32>
    %31 = tpu.matmul %25, %30, %cst_39 {dimension_numbers = #tpu.dot_dimension_numbers<[1], [0], [0], [1], [0, 0, 1, 1], [], []>} : vector<2x16xf32>, vector<16x64xf32>, vector<2x64xf32> -> vector<2x64xf32>
    %32 = arith.addf %29, %31 : vector<2x64xf32>
    %33 = vector.extract_strided_slice %32 {offsets = [0, 0], sizes = [2, 16], strides = [1, 1]} : vector<2x64xf32> to vector<2x16xf32>
    %34 = arith.negf %33 : vector<2x16xf32>
    %35 = math.exp %34 : vector<2x16xf32>
    %cst_40 = arith.constant 1.000000e+00 : f32
    %36 = vector.broadcast %cst_40 : f32 to vector<2x16xf32>
    %37 = arith.addf %36, %35 : vector<2x16xf32>
    %38 = arith.divf %36, %37 : vector<2x16xf32>
    %39 = vector.extract_strided_slice %32 {offsets = [0, 16], sizes = [2, 16], strides = [1, 1]} : vector<2x64xf32> to vector<2x16xf32>
    %40 = arith.negf %39 : vector<2x16xf32>
    %41 = math.exp %40 : vector<2x16xf32>
    %cst_41 = arith.constant 1.000000e+00 : f32
    %42 = vector.broadcast %cst_41 : f32 to vector<2x16xf32>
    %43 = arith.addf %42, %41 : vector<2x16xf32>
    %44 = arith.divf %42, %43 : vector<2x16xf32>
    %45 = vector.extract_strided_slice %32 {offsets = [0, 32], sizes = [2, 16], strides = [1, 1]} : vector<2x64xf32> to vector<2x16xf32>
    %46 = math.tanh %45 : vector<2x16xf32>
    %47 = vector.extract_strided_slice %32 {offsets = [0, 48], sizes = [2, 16], strides = [1, 1]} : vector<2x64xf32> to vector<2x16xf32>
    %48 = arith.negf %47 : vector<2x16xf32>
    %49 = math.exp %48 : vector<2x16xf32>
    %cst_42 = arith.constant 1.000000e+00 : f32
    %50 = vector.broadcast %cst_42 : f32 to vector<2x16xf32>
    %51 = arith.addf %50, %49 : vector<2x16xf32>
    %52 = arith.divf %50, %51 : vector<2x16xf32>
    %53 = arith.mulf %44, %26 : vector<2x16xf32>
    %54 = arith.mulf %38, %46 : vector<2x16xf32>
    %55 = arith.addf %53, %54 : vector<2x16xf32>
    %56 = math.tanh %55 : vector<2x16xf32>
    %57 = arith.mulf %52, %56 : vector<2x16xf32>
    %58 = vector.broadcast %c0_i32 : i32 to vector<2x1xi32>
    %59 = arith.cmpi slt, %58, %24 : vector<2x1xi32>
    %60 = vector.shape_cast %59 : vector<2x1xi1> to vector<2x1xi1>
    %61 = vector.broadcast %60 : vector<2x1xi1> to vector<2x16xi1>
    %62 = arith.select %61, %57, %25 : vector<2x16xi1>, vector<2x16xf32>
    %c0_43 = arith.constant 0 : index
    %c0_44 = arith.constant 0 : index
    %63 = vector.load %arg20[%c0_43, %c0_44] : memref<2x16xf32, #tpu.memory_space<vmem>>, vector<2x16xf32>
    tpu.vector_store %arg20[%c0_43, %c0_44], %62 {strides = array<i32>} : memref<2x16xf32, #tpu.memory_space<vmem>>, vector<2x16xf32>,
    %64 = vector.shape_cast %59 : vector<2x1xi1> to vector<2x1xi1>
    %65 = vector.broadcast %64 : vector<2x1xi1> to vector<2x16xi1>
    %66 = arith.select %65, %55, %26 : vector<2x16xi1>, vector<2x16xf32>
    %c0_45 = arith.constant 0 : index
    %c0_46 = arith.constant 0 : index
    %67 = vector.load %arg21[%c0_45, %c0_46] : memref<2x16xf32, #tpu.memory_space<vmem>>, vector<2x16xf32>
    tpu.vector_store %arg21[%c0_45, %c0_46], %66 {strides = array<i32>} : memref<2x16xf32, #tpu.memory_space<vmem>>, vector<2x16xf32>,
    %cst_47 = arith.constant 0.000000e+00 : f32
    %68 = vector.broadcast %cst_47 : f32 to vector<2x16xf32>
    %69 = vector.shape_cast %59 : vector<2x1xi1> to vector<2x1xi1>
    %70 = vector.broadcast %69 : vector<2x1xi1> to vector<2x16xi1>
    %71 = arith.select %70, %57, %68 : vector<2x16xi1>, vector<2x16xf32>
    %72 = arith.index_cast %c0_i32 : i32 to index
    %c0_48 = arith.constant 0 : index
    %c0_49 = arith.constant 0 : index
    %73 = vector.load %arg18[%72, %c0_48, %c0_49] : memref<4x2x16xf32, #tpu.memory_space<vmem>>, vector<1x2x16xf32>
    %74 = vector.shape_cast %73 : vector<1x2x16xf32> to vector<2x16xf32>
    %75 = vector.shape_cast %71 : vector<2x16xf32> to vector<1x2x16xf32>
    tpu.vector_store %arg18[%72, %c0_48, %c0_49], %75 {strides = array<i32>} : memref<4x2x16xf32, #tpu.memory_space<vmem>>, vector<1x2x16xf32>,
    %c3_i32 = arith.constant 3 : i32
    %76 = arith.subi %c3_i32, %c0_i32 : i32
    %c0_50 = arith.constant 0 : index
    %c0_51 = arith.constant 0 : index
    %77 = vector.load %arg22[%c0_50, %c0_51] : memref<2x16xf32, #tpu.memory_space<vmem>>, vector<2x16xf32>
    %c0_52 = arith.constant 0 : index
    %c0_53 = arith.constant 0 : index
    %78 = vector.load %arg23[%c0_52, %c0_53] : memref<2x16xf32, #tpu.memory_space<vmem>>, vector<2x16xf32>
    %79 = arith.index_cast %76 : i32 to index
    %c0_54 = arith.constant 0 : index
    %c0_55 = arith.constant 0 : index
    %80 = vector.load %arg17[%79, %c0_54, %c0_55] : memref<4x2x64xf32, #tpu.memory_space<vmem>>, vector<1x2x64xf32>
    %81 = vector.shape_cast %80 : vector<1x2x64xf32> to vector<2x64xf32>
    %c0_56 = arith.constant 0 : index
    %c0_57 = arith.constant 0 : index
    %82 = vector.load %arg8[%c0_56, %c0_57] : memref<16x64xf32, #tpu.memory_space<vmem>>, vector<16x64xf32>
    %cst_58 = arith.constant dense<0.000000e+00> : vector<2x64xf32>
    %83 = tpu.matmul %77, %82, %cst_58 {dimension_numbers = #tpu.dot_dimension_numbers<[1], [0], [0], [1], [0, 0, 1, 1], [], []>} : vector<2x16xf32>, vector<16x64xf32>, vector<2x64xf32> -> vector<2x64xf32>
    %84 = arith.addf %81, %83 : vector<2x64xf32>
    %85 = vector.extract_strided_slice %84 {offsets = [0, 0], sizes = [2, 16], strides = [1, 1]} : vector<2x64xf32> to vector<2x16xf32>
    %86 = arith.negf %85 : vector<2x16xf32>
    %87 = math.exp %86 : vector<2x16xf32>
    %cst_59 = arith.constant 1.000000e+00 : f32
    %88 = vector.broadcast %cst_59 : f32 to vector<2x16xf32>
    %89 = arith.addf %88, %87 : vector<2x16xf32>
    %90 = arith.divf %88, %89 : vector<2x16xf32>
    %91 = vector.extract_strided_slice %84 {offsets = [0, 16], sizes = [2, 16], strides = [1, 1]} : vector<2x64xf32> to vector<2x16xf32>
    %92 = arith.negf %91 : vector<2x16xf32>
    %93 = math.exp %92 : vector<2x16xf32>
    %cst_60 = arith.constant 1.000000e+00 : f32
    %94 = vector.broadcast %cst_60 : f32 to vector<2x16xf32>
    %95 = arith.addf %94, %93 : vector<2x16xf32>
    %96 = arith.divf %94, %95 : vector<2x16xf32>
    %97 = vector.extract_strided_slice %84 {offsets = [0, 32], sizes = [2, 16], strides = [1, 1]} : vector<2x64xf32> to vector<2x16xf32>
    %98 = math.tanh %97 : vector<2x16xf32>
    %99 = vector.extract_strided_slice %84 {offsets = [0, 48], sizes = [2, 16], strides = [1, 1]} : vector<2x64xf32> to vector<2x16xf32>
    %100 = arith.negf %99 : vector<2x16xf32>
    %101 = math.exp %100 : vector<2x16xf32>
    %cst_61 = arith.constant 1.000000e+00 : f32
    %102 = vector.broadcast %cst_61 : f32 to vector<2x16xf32>
    %103 = arith.addf %102, %101 : vector<2x16xf32>
    %104 = arith.divf %102, %103 : vector<2x16xf32>
    %105 = arith.mulf %96, %78 : vector<2x16xf32>
    %106 = arith.mulf %90, %98 : vector<2x16xf32>
    %107 = arith.addf %105, %106 : vector<2x16xf32>
    %108 = math.tanh %107 : vector<2x16xf32>
    %109 = arith.mulf %104, %108 : vector<2x16xf32>
    %110 = vector.broadcast %76 : i32 to vector<2x1xi32>
    %111 = arith.cmpi slt, %110, %24 : vector<2x1xi32>
    %112 = vector.shape_cast %111 : vector<2x1xi1> to vector<2x1xi1>
    %113 = vector.broadcast %112 : vector<2x1xi1> to vector<2x16xi1>
    %114 = arith.select %113, %109, %77 : vector<2x16xi1>, vector<2x16xf32>
    %c0_62 = arith.constant 0 : index
    %c0_63 = arith.constant 0 : index
    %115 = vector.load %arg22[%c0_62, %c0_63] : memref<2x16xf32, #tpu.memory_space<vmem>>, vector<2x16xf32>
    tpu.vector_store %arg22[%c0_62, %c0_63], %114 {strides = array<i32>} : memref<2x16xf32, #tpu.memory_space<vmem>>, vector<2x16xf32>,
    %116 = vector.shape_cast %111 : vector<2x1xi1> to vector<2x1xi1>
    %117 = vector.broadcast %116 : vector<2x1xi1> to vector<2x16xi1>
    %118 = arith.select %117, %107, %78 : vector<2x16xi1>, vector<2x16xf32>
    %c0_64 = arith.constant 0 : index
    %c0_65 = arith.constant 0 : index
    %119 = vector.load %arg23[%c0_64, %c0_65] : memref<2x16xf32, #tpu.memory_space<vmem>>, vector<2x16xf32>
    tpu.vector_store %arg23[%c0_64, %c0_65], %118 {strides = array<i32>} : memref<2x16xf32, #tpu.memory_space<vmem>>, vector<2x16xf32>,
    %cst_66 = arith.constant 0.000000e+00 : f32
    %120 = vector.broadcast %cst_66 : f32 to vector<2x16xf32>
    %121 = vector.shape_cast %111 : vector<2x1xi1> to vector<2x1xi1>
    %122 = vector.broadcast %121 : vector<2x1xi1> to vector<2x16xi1>
    %123 = arith.select %122, %109, %120 : vector<2x16xi1>, vector<2x16xf32>
    %124 = arith.index_cast %76 : i32 to index
    %c0_67 = arith.constant 0 : index
    %c0_68 = arith.constant 0 : index
    %125 = vector.load %arg19[%124, %c0_67, %c0_68] : memref<4x2x16xf32, #tpu.memory_space<vmem>>, vector<1x2x16xf32>
    %126 = vector.shape_cast %125 : vector<1x2x16xf32> to vector<2x16xf32>
    %127 = vector.shape_cast %123 : vector<2x16xf32> to vector<1x2x16xf32>
    tpu.vector_store %arg19[%124, %c0_67, %c0_68], %127 {strides = array<i32>} : memref<4x2x16xf32, #tpu.memory_space<vmem>>, vector<1x2x16xf32>,
    %c1_i32 = arith.constant 1 : i32
    %c0_69 = arith.constant 0 : index
    %c0_70 = arith.constant 0 : index
    %128 = vector.load %arg20[%c0_69, %c0_70] : memref<2x16xf32, #tpu.memory_space<vmem>>, vector<2x16xf32>
    %c0_71 = arith.constant 0 : index
    %c0_72 = arith.constant 0 : index
    %129 = vector.load %arg21[%c0_71, %c0_72] : memref<2x16xf32, #tpu.memory_space<vmem>>, vector<2x16xf32>
    %130 = arith.index_cast %c1_i32 : i32 to index
    %c0_73 = arith.constant 0 : index
    %c0_74 = arith.constant 0 : index
    %131 = vector.load %arg16[%130, %c0_73, %c0_74] : memref<4x2x64xf32, #tpu.memory_space<vmem>>, vector<1x2x64xf32>
    %132 = vector.shape_cast %131 : vector<1x2x64xf32> to vector<2x64xf32>
    %c0_75 = arith.constant 0 : index
    %c0_76 = arith.constant 0 : index
    %133 = vector.load %arg5[%c0_75, %c0_76] : memref<16x64xf32, #tpu.memory_space<vmem>>, vector<16x64xf32>
    %cst_77 = arith.constant dense<0.000000e+00> : vector<2x64xf32>
    %134 = tpu.matmul %128, %133, %cst_77 {dimension_numbers = #tpu.dot_dimension_numbers<[1], [0], [0], [1], [0, 0, 1, 1], [], []>} : vector<2x16xf32>, vector<16x64xf32>, vector<2x64xf32> -> vector<2x64xf32>
    %135 = arith.addf %132, %134 : vector<2x64xf32>
    %136 = vector.extract_strided_slice %135 {offsets = [0, 0], sizes = [2, 16], strides = [1, 1]} : vector<2x64xf32> to vector<2x16xf32>
    %137 = arith.negf %136 : vector<2x16xf32>
    %138 = math.exp %137 : vector<2x16xf32>
    %cst_78 = arith.constant 1.000000e+00 : f32
    %139 = vector.broadcast %cst_78 : f32 to vector<2x16xf32>
    %140 = arith.addf %139, %138 : vector<2x16xf32>
    %141 = arith.divf %139, %140 : vector<2x16xf32>
    %142 = vector.extract_strided_slice %135 {offsets = [0, 16], sizes = [2, 16], strides = [1, 1]} : vector<2x64xf32> to vector<2x16xf32>
    %143 = arith.negf %142 : vector<2x16xf32>
    %144 = math.exp %143 : vector<2x16xf32>
    %cst_79 = arith.constant 1.000000e+00 : f32
    %145 = vector.broadcast %cst_79 : f32 to vector<2x16xf32>
    %146 = arith.addf %145, %144 : vector<2x16xf32>
    %147 = arith.divf %145, %146 : vector<2x16xf32>
    %148 = vector.extract_strided_slice %135 {offsets = [0, 32], sizes = [2, 16], strides = [1, 1]} : vector<2x64xf32> to vector<2x16xf32>
    %149 = math.tanh %148 : vector<2x16xf32>
    %150 = vector.extract_strided_slice %135 {offsets = [0, 48], sizes = [2, 16], strides = [1, 1]} : vector<2x64xf32> to vector<2x16xf32>
    %151 = arith.negf %150 : vector<2x16xf32>
    %152 = math.exp %151 : vector<2x16xf32>
    %cst_80 = arith.constant 1.000000e+00 : f32
    %153 = vector.broadcast %cst_80 : f32 to vector<2x16xf32>
    %154 = arith.addf %153, %152 : vector<2x16xf32>
    %155 = arith.divf %153, %154 : vector<2x16xf32>
    %156 = arith.mulf %147, %129 : vector<2x16xf32>
    %157 = arith.mulf %141, %149 : vector<2x16xf32>
    %158 = arith.addf %156, %157 : vector<2x16xf32>
    %159 = math.tanh %158 : vector<2x16xf32>
    %160 = arith.mulf %155, %159 : vector<2x16xf32>
    %161 = vector.broadcast %c1_i32 : i32 to vector<2x1xi32>
    %162 = arith.cmpi slt, %161, %24 : vector<2x1xi32>
    %163 = vector.shape_cast %162 : vector<2x1xi1> to vector<2x1xi1>
    %164 = vector.broadcast %163 : vector<2x1xi1> to vector<2x16xi1>
    %165 = arith.select %164, %160, %128 : vector<2x16xi1>, vector<2x16xf32>
    %c0_81 = arith.constant 0 : index
    %c0_82 = arith.constant 0 : index
    %166 = vector.load %arg20[%c0_81, %c0_82] : memref<2x16xf32, #tpu.memory_space<vmem>>, vector<2x16xf32>
    tpu.vector_store %arg20[%c0_81, %c0_82], %165 {strides = array<i32>} : memref<2x16xf32, #tpu.memory_space<vmem>>, vector<2x16xf32>,
    %167 = vector.shape_cast %162 : vector<2x1xi1> to vector<2x1xi1>
    %168 = vector.broadcast %167 : vector<2x1xi1> to vector<2x16xi1>
    %169 = arith.select %168, %158, %129 : vector<2x16xi1>, vector<2x16xf32>
    %c0_83 = arith.constant 0 : index
    %c0_84 = arith.constant 0 : index
    %170 = vector.load %arg21[%c0_83, %c0_84] : memref<2x16xf32, #tpu.memory_space<vmem>>, vector<2x16xf32>
    tpu.vector_store %arg21[%c0_83, %c0_84], %169 {strides = array<i32>} : memref<2x16xf32, #tpu.memory_space<vmem>>, vector<2x16xf32>,
    %cst_85 = arith.constant 0.000000e+00 : f32
    %171 = vector.broadcast %cst_85 : f32 to vector<2x16xf32>
    %172 = vector.shape_cast %162 : vector<2x1xi1> to vector<2x1xi1>
    %173 = vector.broadcast %172 : vector<2x1xi1> to vector<2x16xi1>
    %174 = arith.select %173, %160, %171 : vector<2x16xi1>, vector<2x16xf32>
    %175 = arith.index_cast %c1_i32 : i32 to index
    %c0_86 = arith.constant 0 : index
    %c0_87 = arith.constant 0 : index
    %176 = vector.load %arg18[%175, %c0_86, %c0_87] : memref<4x2x16xf32, #tpu.memory_space<vmem>>, vector<1x2x16xf32>
    %177 = vector.shape_cast %176 : vector<1x2x16xf32> to vector<2x16xf32>
    %178 = vector.shape_cast %174 : vector<2x16xf32> to vector<1x2x16xf32>
    tpu.vector_store %arg18[%175, %c0_86, %c0_87], %178 {strides = array<i32>} : memref<4x2x16xf32, #tpu.memory_space<vmem>>, vector<1x2x16xf32>,
    %c3_i32_88 = arith.constant 3 : i32
    %179 = arith.subi %c3_i32_88, %c1_i32 : i32
    %c0_89 = arith.constant 0 : index
    %c0_90 = arith.constant 0 : index
    %180 = vector.load %arg22[%c0_89, %c0_90] : memref<2x16xf32, #tpu.memory_space<vmem>>, vector<2x16xf32>
    %c0_91 = arith.constant 0 : index
    %c0_92 = arith.constant 0 : index
    %181 = vector.load %arg23[%c0_91, %c0_92] : memref<2x16xf32, #tpu.memory_space<vmem>>, vector<2x16xf32>
    %182 = arith.index_cast %179 : i32 to index
    %c0_93 = arith.constant 0 : index
    %c0_94 = arith.constant 0 : index
    %183 = vector.load %arg17[%182, %c0_93, %c0_94] : memref<4x2x64xf32, #tpu.memory_space<vmem>>, vector<1x2x64xf32>
    %184 = vector.shape_cast %183 : vector<1x2x64xf32> to vector<2x64xf32>
    %c0_95 = arith.constant 0 : index
    %c0_96 = arith.constant 0 : index
    %185 = vector.load %arg8[%c0_95, %c0_96] : memref<16x64xf32, #tpu.memory_space<vmem>>, vector<16x64xf32>
    %cst_97 = arith.constant dense<0.000000e+00> : vector<2x64xf32>
    %186 = tpu.matmul %180, %185, %cst_97 {dimension_numbers = #tpu.dot_dimension_numbers<[1], [0], [0], [1], [0, 0, 1, 1], [], []>} : vector<2x16xf32>, vector<16x64xf32>, vector<2x64xf32> -> vector<2x64xf32>
    %187 = arith.addf %184, %186 : vector<2x64xf32>
    %188 = vector.extract_strided_slice %187 {offsets = [0, 0], sizes = [2, 16], strides = [1, 1]} : vector<2x64xf32> to vector<2x16xf32>
    %189 = arith.negf %188 : vector<2x16xf32>
    %190 = math.exp %189 : vector<2x16xf32>
    %cst_98 = arith.constant 1.000000e+00 : f32
    %191 = vector.broadcast %cst_98 : f32 to vector<2x16xf32>
    %192 = arith.addf %191, %190 : vector<2x16xf32>
    %193 = arith.divf %191, %192 : vector<2x16xf32>
    %194 = vector.extract_strided_slice %187 {offsets = [0, 16], sizes = [2, 16], strides = [1, 1]} : vector<2x64xf32> to vector<2x16xf32>
    %195 = arith.negf %194 : vector<2x16xf32>
    %196 = math.exp %195 : vector<2x16xf32>
    %cst_99 = arith.constant 1.000000e+00 : f32
    %197 = vector.broadcast %cst_99 : f32 to vector<2x16xf32>
    %198 = arith.addf %197, %196 : vector<2x16xf32>
    %199 = arith.divf %197, %198 : vector<2x16xf32>
    %200 = vector.extract_strided_slice %187 {offsets = [0, 32], sizes = [2, 16], strides = [1, 1]} : vector<2x64xf32> to vector<2x16xf32>
    %201 = math.tanh %200 : vector<2x16xf32>
    %202 = vector.extract_strided_slice %187 {offsets = [0, 48], sizes = [2, 16], strides = [1, 1]} : vector<2x64xf32> to vector<2x16xf32>
    %203 = arith.negf %202 : vector<2x16xf32>
    %204 = math.exp %203 : vector<2x16xf32>
    %cst_100 = arith.constant 1.000000e+00 : f32
    %205 = vector.broadcast %cst_100 : f32 to vector<2x16xf32>
    %206 = arith.addf %205, %204 : vector<2x16xf32>
    %207 = arith.divf %205, %206 : vector<2x16xf32>
    %208 = arith.mulf %199, %181 : vector<2x16xf32>
    %209 = arith.mulf %193, %201 : vector<2x16xf32>
    %210 = arith.addf %208, %209 : vector<2x16xf32>
    %211 = math.tanh %210 : vector<2x16xf32>
    %212 = arith.mulf %207, %211 : vector<2x16xf32>
    %213 = vector.broadcast %179 : i32 to vector<2x1xi32>
    %214 = arith.cmpi slt, %213, %24 : vector<2x1xi32>
    %215 = vector.shape_cast %214 : vector<2x1xi1> to vector<2x1xi1>
    %216 = vector.broadcast %215 : vector<2x1xi1> to vector<2x16xi1>
    %217 = arith.select %216, %212, %180 : vector<2x16xi1>, vector<2x16xf32>
    %c0_101 = arith.constant 0 : index
    %c0_102 = arith.constant 0 : index
    %218 = vector.load %arg22[%c0_101, %c0_102] : memref<2x16xf32, #tpu.memory_space<vmem>>, vector<2x16xf32>
    tpu.vector_store %arg22[%c0_101, %c0_102], %217 {strides = array<i32>} : memref<2x16xf32, #tpu.memory_space<vmem>>, vector<2x16xf32>,
    %219 = vector.shape_cast %214 : vector<2x1xi1> to vector<2x1xi1>
    %220 = vector.broadcast %219 : vector<2x1xi1> to vector<2x16xi1>
    %221 = arith.select %220, %210, %181 : vector<2x16xi1>, vector<2x16xf32>
    %c0_103 = arith.constant 0 : index
    %c0_104 = arith.constant 0 : index
    %222 = vector.load %arg23[%c0_103, %c0_104] : memref<2x16xf32, #tpu.memory_space<vmem>>, vector<2x16xf32>
    tpu.vector_store %arg23[%c0_103, %c0_104], %221 {strides = array<i32>} : memref<2x16xf32, #tpu.memory_space<vmem>>, vector<2x16xf32>,
    %cst_105 = arith.constant 0.000000e+00 : f32
    %223 = vector.broadcast %cst_105 : f32 to vector<2x16xf32>
    %224 = vector.shape_cast %214 : vector<2x1xi1> to vector<2x1xi1>
    %225 = vector.broadcast %224 : vector<2x1xi1> to vector<2x16xi1>
    %226 = arith.select %225, %212, %223 : vector<2x16xi1>, vector<2x16xf32>
    %227 = arith.index_cast %179 : i32 to index
    %c0_106 = arith.constant 0 : index
    %c0_107 = arith.constant 0 : index
    %228 = vector.load %arg19[%227, %c0_106, %c0_107] : memref<4x2x16xf32, #tpu.memory_space<vmem>>, vector<1x2x16xf32>
    %229 = vector.shape_cast %228 : vector<1x2x16xf32> to vector<2x16xf32>
    %230 = vector.shape_cast %226 : vector<2x16xf32> to vector<1x2x16xf32>
    tpu.vector_store %arg19[%227, %c0_106, %c0_107], %230 {strides = array<i32>} : memref<4x2x16xf32, #tpu.memory_space<vmem>>, vector<1x2x16xf32>,
    %c2_i32 = arith.constant 2 : i32
    %c0_108 = arith.constant 0 : index
    %c0_109 = arith.constant 0 : index
    %231 = vector.load %arg20[%c0_108, %c0_109] : memref<2x16xf32, #tpu.memory_space<vmem>>, vector<2x16xf32>
    %c0_110 = arith.constant 0 : index
    %c0_111 = arith.constant 0 : index
    %232 = vector.load %arg21[%c0_110, %c0_111] : memref<2x16xf32, #tpu.memory_space<vmem>>, vector<2x16xf32>
    %233 = arith.index_cast %c2_i32 : i32 to index
    %c0_112 = arith.constant 0 : index
    %c0_113 = arith.constant 0 : index
    %234 = vector.load %arg16[%233, %c0_112, %c0_113] : memref<4x2x64xf32, #tpu.memory_space<vmem>>, vector<1x2x64xf32>
    %235 = vector.shape_cast %234 : vector<1x2x64xf32> to vector<2x64xf32>
    %c0_114 = arith.constant 0 : index
    %c0_115 = arith.constant 0 : index
    %236 = vector.load %arg5[%c0_114, %c0_115] : memref<16x64xf32, #tpu.memory_space<vmem>>, vector<16x64xf32>
    %cst_116 = arith.constant dense<0.000000e+00> : vector<2x64xf32>
    %237 = tpu.matmul %231, %236, %cst_116 {dimension_numbers = #tpu.dot_dimension_numbers<[1], [0], [0], [1], [0, 0, 1, 1], [], []>} : vector<2x16xf32>, vector<16x64xf32>, vector<2x64xf32> -> vector<2x64xf32>
    %238 = arith.addf %235, %237 : vector<2x64xf32>
    %239 = vector.extract_strided_slice %238 {offsets = [0, 0], sizes = [2, 16], strides = [1, 1]} : vector<2x64xf32> to vector<2x16xf32>
    %240 = arith.negf %239 : vector<2x16xf32>
    %241 = math.exp %240 : vector<2x16xf32>
    %cst_117 = arith.constant 1.000000e+00 : f32
    %242 = vector.broadcast %cst_117 : f32 to vector<2x16xf32>
    %243 = arith.addf %242, %241 : vector<2x16xf32>
    %244 = arith.divf %242, %243 : vector<2x16xf32>
    %245 = vector.extract_strided_slice %238 {offsets = [0, 16], sizes = [2, 16], strides = [1, 1]} : vector<2x64xf32> to vector<2x16xf32>
    %246 = arith.negf %245 : vector<2x16xf32>
    %247 = math.exp %246 : vector<2x16xf32>
    %cst_118 = arith.constant 1.000000e+00 : f32
    %248 = vector.broadcast %cst_118 : f32 to vector<2x16xf32>
    %249 = arith.addf %248, %247 : vector<2x16xf32>
    %250 = arith.divf %248, %249 : vector<2x16xf32>
    %251 = vector.extract_strided_slice %238 {offsets = [0, 32], sizes = [2, 16], strides = [1, 1]} : vector<2x64xf32> to vector<2x16xf32>
    %252 = math.tanh %251 : vector<2x16xf32>
    %253 = vector.extract_strided_slice %238 {offsets = [0, 48], sizes = [2, 16], strides = [1, 1]} : vector<2x64xf32> to vector<2x16xf32>
    %254 = arith.negf %253 : vector<2x16xf32>
    %255 = math.exp %254 : vector<2x16xf32>
    %cst_119 = arith.constant 1.000000e+00 : f32
    %256 = vector.broadcast %cst_119 : f32 to vector<2x16xf32>
    %257 = arith.addf %256, %255 : vector<2x16xf32>
    %258 = arith.divf %256, %257 : vector<2x16xf32>
    %259 = arith.mulf %250, %232 : vector<2x16xf32>
    %260 = arith.mulf %244, %252 : vector<2x16xf32>
    %261 = arith.addf %259, %260 : vector<2x16xf32>
    %262 = math.tanh %261 : vector<2x16xf32>
    %263 = arith.mulf %258, %262 : vector<2x16xf32>
    %264 = vector.broadcast %c2_i32 : i32 to vector<2x1xi32>
    %265 = arith.cmpi slt, %264, %24 : vector<2x1xi32>
    %266 = vector.shape_cast %265 : vector<2x1xi1> to vector<2x1xi1>
    %267 = vector.broadcast %266 : vector<2x1xi1> to vector<2x16xi1>
    %268 = arith.select %267, %263, %231 : vector<2x16xi1>, vector<2x16xf32>
    %c0_120 = arith.constant 0 : index
    %c0_121 = arith.constant 0 : index
    %269 = vector.load %arg20[%c0_120, %c0_121] : memref<2x16xf32, #tpu.memory_space<vmem>>, vector<2x16xf32>
    tpu.vector_store %arg20[%c0_120, %c0_121], %268 {strides = array<i32>} : memref<2x16xf32, #tpu.memory_space<vmem>>, vector<2x16xf32>,
    %270 = vector.shape_cast %265 : vector<2x1xi1> to vector<2x1xi1>
    %271 = vector.broadcast %270 : vector<2x1xi1> to vector<2x16xi1>
    %272 = arith.select %271, %261, %232 : vector<2x16xi1>, vector<2x16xf32>
    %c0_122 = arith.constant 0 : index
    %c0_123 = arith.constant 0 : index
    %273 = vector.load %arg21[%c0_122, %c0_123] : memref<2x16xf32, #tpu.memory_space<vmem>>, vector<2x16xf32>
    tpu.vector_store %arg21[%c0_122, %c0_123], %272 {strides = array<i32>} : memref<2x16xf32, #tpu.memory_space<vmem>>, vector<2x16xf32>,
    %cst_124 = arith.constant 0.000000e+00 : f32
    %274 = vector.broadcast %cst_124 : f32 to vector<2x16xf32>
    %275 = vector.shape_cast %265 : vector<2x1xi1> to vector<2x1xi1>
    %276 = vector.broadcast %275 : vector<2x1xi1> to vector<2x16xi1>
    %277 = arith.select %276, %263, %274 : vector<2x16xi1>, vector<2x16xf32>
    %278 = arith.index_cast %c2_i32 : i32 to index
    %c0_125 = arith.constant 0 : index
    %c0_126 = arith.constant 0 : index
    %279 = vector.load %arg18[%278, %c0_125, %c0_126] : memref<4x2x16xf32, #tpu.memory_space<vmem>>, vector<1x2x16xf32>
    %280 = vector.shape_cast %279 : vector<1x2x16xf32> to vector<2x16xf32>
    %281 = vector.shape_cast %277 : vector<2x16xf32> to vector<1x2x16xf32>
    tpu.vector_store %arg18[%278, %c0_125, %c0_126], %281 {strides = array<i32>} : memref<4x2x16xf32, #tpu.memory_space<vmem>>, vector<1x2x16xf32>,
    %c3_i32_127 = arith.constant 3 : i32
    %282 = arith.subi %c3_i32_127, %c2_i32 : i32
    %c0_128 = arith.constant 0 : index
    %c0_129 = arith.constant 0 : index
    %283 = vector.load %arg22[%c0_128, %c0_129] : memref<2x16xf32, #tpu.memory_space<vmem>>, vector<2x16xf32>
    %c0_130 = arith.constant 0 : index
    %c0_131 = arith.constant 0 : index
    %284 = vector.load %arg23[%c0_130, %c0_131] : memref<2x16xf32, #tpu.memory_space<vmem>>, vector<2x16xf32>
    %285 = arith.index_cast %282 : i32 to index
    %c0_132 = arith.constant 0 : index
    %c0_133 = arith.constant 0 : index
    %286 = vector.load %arg17[%285, %c0_132, %c0_133] : memref<4x2x64xf32, #tpu.memory_space<vmem>>, vector<1x2x64xf32>
    %287 = vector.shape_cast %286 : vector<1x2x64xf32> to vector<2x64xf32>
    %c0_134 = arith.constant 0 : index
    %c0_135 = arith.constant 0 : index
    %288 = vector.load %arg8[%c0_134, %c0_135] : memref<16x64xf32, #tpu.memory_space<vmem>>, vector<16x64xf32>
    %cst_136 = arith.constant dense<0.000000e+00> : vector<2x64xf32>
    %289 = tpu.matmul %283, %288, %cst_136 {dimension_numbers = #tpu.dot_dimension_numbers<[1], [0], [0], [1], [0, 0, 1, 1], [], []>} : vector<2x16xf32>, vector<16x64xf32>, vector<2x64xf32> -> vector<2x64xf32>
    %290 = arith.addf %287, %289 : vector<2x64xf32>
    %291 = vector.extract_strided_slice %290 {offsets = [0, 0], sizes = [2, 16], strides = [1, 1]} : vector<2x64xf32> to vector<2x16xf32>
    %292 = arith.negf %291 : vector<2x16xf32>
    %293 = math.exp %292 : vector<2x16xf32>
    %cst_137 = arith.constant 1.000000e+00 : f32
    %294 = vector.broadcast %cst_137 : f32 to vector<2x16xf32>
    %295 = arith.addf %294, %293 : vector<2x16xf32>
    %296 = arith.divf %294, %295 : vector<2x16xf32>
    %297 = vector.extract_strided_slice %290 {offsets = [0, 16], sizes = [2, 16], strides = [1, 1]} : vector<2x64xf32> to vector<2x16xf32>
    %298 = arith.negf %297 : vector<2x16xf32>
    %299 = math.exp %298 : vector<2x16xf32>
    %cst_138 = arith.constant 1.000000e+00 : f32
    %300 = vector.broadcast %cst_138 : f32 to vector<2x16xf32>
    %301 = arith.addf %300, %299 : vector<2x16xf32>
    %302 = arith.divf %300, %301 : vector<2x16xf32>
    %303 = vector.extract_strided_slice %290 {offsets = [0, 32], sizes = [2, 16], strides = [1, 1]} : vector<2x64xf32> to vector<2x16xf32>
    %304 = math.tanh %303 : vector<2x16xf32>
    %305 = vector.extract_strided_slice %290 {offsets = [0, 48], sizes = [2, 16], strides = [1, 1]} : vector<2x64xf32> to vector<2x16xf32>
    %306 = arith.negf %305 : vector<2x16xf32>
    %307 = math.exp %306 : vector<2x16xf32>
    %cst_139 = arith.constant 1.000000e+00 : f32
    %308 = vector.broadcast %cst_139 : f32 to vector<2x16xf32>
    %309 = arith.addf %308, %307 : vector<2x16xf32>
    %310 = arith.divf %308, %309 : vector<2x16xf32>
    %311 = arith.mulf %302, %284 : vector<2x16xf32>
    %312 = arith.mulf %296, %304 : vector<2x16xf32>
    %313 = arith.addf %311, %312 : vector<2x16xf32>
    %314 = math.tanh %313 : vector<2x16xf32>
    %315 = arith.mulf %310, %314 : vector<2x16xf32>
    %316 = vector.broadcast %282 : i32 to vector<2x1xi32>
    %317 = arith.cmpi slt, %316, %24 : vector<2x1xi32>
    %318 = vector.shape_cast %317 : vector<2x1xi1> to vector<2x1xi1>
    %319 = vector.broadcast %318 : vector<2x1xi1> to vector<2x16xi1>
    %320 = arith.select %319, %315, %283 : vector<2x16xi1>, vector<2x16xf32>
    %c0_140 = arith.constant 0 : index
    %c0_141 = arith.constant 0 : index
    %321 = vector.load %arg22[%c0_140, %c0_141] : memref<2x16xf32, #tpu.memory_space<vmem>>, vector<2x16xf32>
    tpu.vector_store %arg22[%c0_140, %c0_141], %320 {strides = array<i32>} : memref<2x16xf32, #tpu.memory_space<vmem>>, vector<2x16xf32>,
    %322 = vector.shape_cast %317 : vector<2x1xi1> to vector<2x1xi1>
    %323 = vector.broadcast %322 : vector<2x1xi1> to vector<2x16xi1>
    %324 = arith.select %323, %313, %284 : vector<2x16xi1>, vector<2x16xf32>
    %c0_142 = arith.constant 0 : index
    %c0_143 = arith.constant 0 : index
    %325 = vector.load %arg23[%c0_142, %c0_143] : memref<2x16xf32, #tpu.memory_space<vmem>>, vector<2x16xf32>
    tpu.vector_store %arg23[%c0_142, %c0_143], %324 {strides = array<i32>} : memref<2x16xf32, #tpu.memory_space<vmem>>, vector<2x16xf32>,
    %cst_144 = arith.constant 0.000000e+00 : f32
    %326 = vector.broadcast %cst_144 : f32 to vector<2x16xf32>
    %327 = vector.shape_cast %317 : vector<2x1xi1> to vector<2x1xi1>
    %328 = vector.broadcast %327 : vector<2x1xi1> to vector<2x16xi1>
    %329 = arith.select %328, %315, %326 : vector<2x16xi1>, vector<2x16xf32>
    %330 = arith.index_cast %282 : i32 to index
    %c0_145 = arith.constant 0 : index
    %c0_146 = arith.constant 0 : index
    %331 = vector.load %arg19[%330, %c0_145, %c0_146] : memref<4x2x16xf32, #tpu.memory_space<vmem>>, vector<1x2x16xf32>
    %332 = vector.shape_cast %331 : vector<1x2x16xf32> to vector<2x16xf32>
    %333 = vector.shape_cast %329 : vector<2x16xf32> to vector<1x2x16xf32>
    tpu.vector_store %arg19[%330, %c0_145, %c0_146], %333 {strides = array<i32>} : memref<4x2x16xf32, #tpu.memory_space<vmem>>, vector<1x2x16xf32>,
    %c3_i32_147 = arith.constant 3 : i32
    %c0_148 = arith.constant 0 : index
    %c0_149 = arith.constant 0 : index
    %334 = vector.load %arg20[%c0_148, %c0_149] : memref<2x16xf32, #tpu.memory_space<vmem>>, vector<2x16xf32>
    %c0_150 = arith.constant 0 : index
    %c0_151 = arith.constant 0 : index
    %335 = vector.load %arg21[%c0_150, %c0_151] : memref<2x16xf32, #tpu.memory_space<vmem>>, vector<2x16xf32>
    %336 = arith.index_cast %c3_i32_147 : i32 to index
    %c0_152 = arith.constant 0 : index
    %c0_153 = arith.constant 0 : index
    %337 = vector.load %arg16[%336, %c0_152, %c0_153] : memref<4x2x64xf32, #tpu.memory_space<vmem>>, vector<1x2x64xf32>
    %338 = vector.shape_cast %337 : vector<1x2x64xf32> to vector<2x64xf32>
    %c0_154 = arith.constant 0 : index
    %c0_155 = arith.constant 0 : index
    %339 = vector.load %arg5[%c0_154, %c0_155] : memref<16x64xf32, #tpu.memory_space<vmem>>, vector<16x64xf32>
    %cst_156 = arith.constant dense<0.000000e+00> : vector<2x64xf32>
    %340 = tpu.matmul %334, %339, %cst_156 {dimension_numbers = #tpu.dot_dimension_numbers<[1], [0], [0], [1], [0, 0, 1, 1], [], []>} : vector<2x16xf32>, vector<16x64xf32>, vector<2x64xf32> -> vector<2x64xf32>
    %341 = arith.addf %338, %340 : vector<2x64xf32>
    %342 = vector.extract_strided_slice %341 {offsets = [0, 0], sizes = [2, 16], strides = [1, 1]} : vector<2x64xf32> to vector<2x16xf32>
    %343 = arith.negf %342 : vector<2x16xf32>
    %344 = math.exp %343 : vector<2x16xf32>
    %cst_157 = arith.constant 1.000000e+00 : f32
    %345 = vector.broadcast %cst_157 : f32 to vector<2x16xf32>
    %346 = arith.addf %345, %344 : vector<2x16xf32>
    %347 = arith.divf %345, %346 : vector<2x16xf32>
    %348 = vector.extract_strided_slice %341 {offsets = [0, 16], sizes = [2, 16], strides = [1, 1]} : vector<2x64xf32> to vector<2x16xf32>
    %349 = arith.negf %348 : vector<2x16xf32>
    %350 = math.exp %349 : vector<2x16xf32>
    %cst_158 = arith.constant 1.000000e+00 : f32
    %351 = vector.broadcast %cst_158 : f32 to vector<2x16xf32>
    %352 = arith.addf %351, %350 : vector<2x16xf32>
    %353 = arith.divf %351, %352 : vector<2x16xf32>
    %354 = vector.extract_strided_slice %341 {offsets = [0, 32], sizes = [2, 16], strides = [1, 1]} : vector<2x64xf32> to vector<2x16xf32>
    %355 = math.tanh %354 : vector<2x16xf32>
    %356 = vector.extract_strided_slice %341 {offsets = [0, 48], sizes = [2, 16], strides = [1, 1]} : vector<2x64xf32> to vector<2x16xf32>
    %357 = arith.negf %356 : vector<2x16xf32>
    %358 = math.exp %357 : vector<2x16xf32>
    %cst_159 = arith.constant 1.000000e+00 : f32
    %359 = vector.broadcast %cst_159 : f32 to vector<2x16xf32>
    %360 = arith.addf %359, %358 : vector<2x16xf32>
    %361 = arith.divf %359, %360 : vector<2x16xf32>
    %362 = arith.mulf %353, %335 : vector<2x16xf32>
    %363 = arith.mulf %347, %355 : vector<2x16xf32>
    %364 = arith.addf %362, %363 : vector<2x16xf32>
    %365 = math.tanh %364 : vector<2x16xf32>
    %366 = arith.mulf %361, %365 : vector<2x16xf32>
    %367 = vector.broadcast %c3_i32_147 : i32 to vector<2x1xi32>
    %368 = arith.cmpi slt, %367, %24 : vector<2x1xi32>
    %369 = vector.shape_cast %368 : vector<2x1xi1> to vector<2x1xi1>
    %370 = vector.broadcast %369 : vector<2x1xi1> to vector<2x16xi1>
    %371 = arith.select %370, %366, %334 : vector<2x16xi1>, vector<2x16xf32>
    %c0_160 = arith.constant 0 : index
    %c0_161 = arith.constant 0 : index
    %372 = vector.load %arg20[%c0_160, %c0_161] : memref<2x16xf32, #tpu.memory_space<vmem>>, vector<2x16xf32>
    tpu.vector_store %arg20[%c0_160, %c0_161], %371 {strides = array<i32>} : memref<2x16xf32, #tpu.memory_space<vmem>>, vector<2x16xf32>,
    %373 = vector.shape_cast %368 : vector<2x1xi1> to vector<2x1xi1>
    %374 = vector.broadcast %373 : vector<2x1xi1> to vector<2x16xi1>
    %375 = arith.select %374, %364, %335 : vector<2x16xi1>, vector<2x16xf32>
    %c0_162 = arith.constant 0 : index
    %c0_163 = arith.constant 0 : index
    %376 = vector.load %arg21[%c0_162, %c0_163] : memref<2x16xf32, #tpu.memory_space<vmem>>, vector<2x16xf32>
    tpu.vector_store %arg21[%c0_162, %c0_163], %375 {strides = array<i32>} : memref<2x16xf32, #tpu.memory_space<vmem>>, vector<2x16xf32>,
    %cst_164 = arith.constant 0.000000e+00 : f32
    %377 = vector.broadcast %cst_164 : f32 to vector<2x16xf32>
    %378 = vector.shape_cast %368 : vector<2x1xi1> to vector<2x1xi1>
    %379 = vector.broadcast %378 : vector<2x1xi1> to vector<2x16xi1>
    %380 = arith.select %379, %366, %377 : vector<2x16xi1>, vector<2x16xf32>
    %381 = arith.index_cast %c3_i32_147 : i32 to index
    %c0_165 = arith.constant 0 : index
    %c0_166 = arith.constant 0 : index
    %382 = vector.load %arg18[%381, %c0_165, %c0_166] : memref<4x2x16xf32, #tpu.memory_space<vmem>>, vector<1x2x16xf32>
    %383 = vector.shape_cast %382 : vector<1x2x16xf32> to vector<2x16xf32>
    %384 = vector.shape_cast %380 : vector<2x16xf32> to vector<1x2x16xf32>
    tpu.vector_store %arg18[%381, %c0_165, %c0_166], %384 {strides = array<i32>} : memref<4x2x16xf32, #tpu.memory_space<vmem>>, vector<1x2x16xf32>,
    %c3_i32_167 = arith.constant 3 : i32
    %385 = arith.subi %c3_i32_167, %c3_i32_147 : i32
    %c0_168 = arith.constant 0 : index
    %c0_169 = arith.constant 0 : index
    %386 = vector.load %arg22[%c0_168, %c0_169] : memref<2x16xf32, #tpu.memory_space<vmem>>, vector<2x16xf32>
    %c0_170 = arith.constant 0 : index
    %c0_171 = arith.constant 0 : index
    %387 = vector.load %arg23[%c0_170, %c0_171] : memref<2x16xf32, #tpu.memory_space<vmem>>, vector<2x16xf32>
    %388 = arith.index_cast %385 : i32 to index
    %c0_172 = arith.constant 0 : index
    %c0_173 = arith.constant 0 : index
    %389 = vector.load %arg17[%388, %c0_172, %c0_173] : memref<4x2x64xf32, #tpu.memory_space<vmem>>, vector<1x2x64xf32>
    %390 = vector.shape_cast %389 : vector<1x2x64xf32> to vector<2x64xf32>
    %c0_174 = arith.constant 0 : index
    %c0_175 = arith.constant 0 : index
    %391 = vector.load %arg8[%c0_174, %c0_175] : memref<16x64xf32, #tpu.memory_space<vmem>>, vector<16x64xf32>
    %cst_176 = arith.constant dense<0.000000e+00> : vector<2x64xf32>
    %392 = tpu.matmul %386, %391, %cst_176 {dimension_numbers = #tpu.dot_dimension_numbers<[1], [0], [0], [1], [0, 0, 1, 1], [], []>} : vector<2x16xf32>, vector<16x64xf32>, vector<2x64xf32> -> vector<2x64xf32>
    %393 = arith.addf %390, %392 : vector<2x64xf32>
    %394 = vector.extract_strided_slice %393 {offsets = [0, 0], sizes = [2, 16], strides = [1, 1]} : vector<2x64xf32> to vector<2x16xf32>
    %395 = arith.negf %394 : vector<2x16xf32>
    %396 = math.exp %395 : vector<2x16xf32>
    %cst_177 = arith.constant 1.000000e+00 : f32
    %397 = vector.broadcast %cst_177 : f32 to vector<2x16xf32>
    %398 = arith.addf %397, %396 : vector<2x16xf32>
    %399 = arith.divf %397, %398 : vector<2x16xf32>
    %400 = vector.extract_strided_slice %393 {offsets = [0, 16], sizes = [2, 16], strides = [1, 1]} : vector<2x64xf32> to vector<2x16xf32>
    %401 = arith.negf %400 : vector<2x16xf32>
    %402 = math.exp %401 : vector<2x16xf32>
    %cst_178 = arith.constant 1.000000e+00 : f32
    %403 = vector.broadcast %cst_178 : f32 to vector<2x16xf32>
    %404 = arith.addf %403, %402 : vector<2x16xf32>
    %405 = arith.divf %403, %404 : vector<2x16xf32>
    %406 = vector.extract_strided_slice %393 {offsets = [0, 32], sizes = [2, 16], strides = [1, 1]} : vector<2x64xf32> to vector<2x16xf32>
    %407 = math.tanh %406 : vector<2x16xf32>
    %408 = vector.extract_strided_slice %393 {offsets = [0, 48], sizes = [2, 16], strides = [1, 1]} : vector<2x64xf32> to vector<2x16xf32>
    %409 = arith.negf %408 : vector<2x16xf32>
    %410 = math.exp %409 : vector<2x16xf32>
    %cst_179 = arith.constant 1.000000e+00 : f32
    %411 = vector.broadcast %cst_179 : f32 to vector<2x16xf32>
    %412 = arith.addf %411, %410 : vector<2x16xf32>
    %413 = arith.divf %411, %412 : vector<2x16xf32>
    %414 = arith.mulf %405, %387 : vector<2x16xf32>
    %415 = arith.mulf %399, %407 : vector<2x16xf32>
    %416 = arith.addf %414, %415 : vector<2x16xf32>
    %417 = math.tanh %416 : vector<2x16xf32>
    %418 = arith.mulf %413, %417 : vector<2x16xf32>
    %419 = vector.broadcast %385 : i32 to vector<2x1xi32>
    %420 = arith.cmpi slt, %419, %24 : vector<2x1xi32>
    %421 = vector.shape_cast %420 : vector<2x1xi1> to vector<2x1xi1>
    %422 = vector.broadcast %421 : vector<2x1xi1> to vector<2x16xi1>
    %423 = arith.select %422, %418, %386 : vector<2x16xi1>, vector<2x16xf32>
    %c0_180 = arith.constant 0 : index
    %c0_181 = arith.constant 0 : index
    %424 = vector.load %arg22[%c0_180, %c0_181] : memref<2x16xf32, #tpu.memory_space<vmem>>, vector<2x16xf32>
    tpu.vector_store %arg22[%c0_180, %c0_181], %423 {strides = array<i32>} : memref<2x16xf32, #tpu.memory_space<vmem>>, vector<2x16xf32>,
    %425 = vector.shape_cast %420 : vector<2x1xi1> to vector<2x1xi1>
    %426 = vector.broadcast %425 : vector<2x1xi1> to vector<2x16xi1>
    %427 = arith.select %426, %416, %387 : vector<2x16xi1>, vector<2x16xf32>
    %c0_182 = arith.constant 0 : index
    %c0_183 = arith.constant 0 : index
    %428 = vector.load %arg23[%c0_182, %c0_183] : memref<2x16xf32, #tpu.memory_space<vmem>>, vector<2x16xf32>
    tpu.vector_store %arg23[%c0_182, %c0_183], %427 {strides = array<i32>} : memref<2x16xf32, #tpu.memory_space<vmem>>, vector<2x16xf32>,
    %cst_184 = arith.constant 0.000000e+00 : f32
    %429 = vector.broadcast %cst_184 : f32 to vector<2x16xf32>
    %430 = vector.shape_cast %420 : vector<2x1xi1> to vector<2x1xi1>
    %431 = vector.broadcast %430 : vector<2x1xi1> to vector<2x16xi1>
    %432 = arith.select %431, %418, %429 : vector<2x16xi1>, vector<2x16xf32>
    %433 = arith.index_cast %385 : i32 to index
    %c0_185 = arith.constant 0 : index
    %c0_186 = arith.constant 0 : index
    %434 = vector.load %arg19[%433, %c0_185, %c0_186] : memref<4x2x16xf32, #tpu.memory_space<vmem>>, vector<1x2x16xf32>
    %435 = vector.shape_cast %434 : vector<1x2x16xf32> to vector<2x16xf32>
    %436 = vector.shape_cast %432 : vector<2x16xf32> to vector<1x2x16xf32>
    tpu.vector_store %arg19[%433, %c0_185, %c0_186], %436 {strides = array<i32>} : memref<4x2x16xf32, #tpu.memory_space<vmem>>, vector<1x2x16xf32>,
    %c4_i32 = arith.constant 4 : i32
    %c0_187 = arith.constant 0 : index
    %c0_188 = arith.constant 0 : index
    %c0_189 = arith.constant 0 : index
    %437 = vector.load %arg18[%c0_187, %c0_188, %c0_189] : memref<4x2x16xf32, #tpu.memory_space<vmem>>, vector<4x2x16xf32>
    %c0_190 = arith.constant 0 : index
    %c0_191 = arith.constant 0 : index
    %c0_192 = arith.constant 0 : index
    %438 = vector.load %arg19[%c0_190, %c0_191, %c0_192] : memref<4x2x16xf32, #tpu.memory_space<vmem>>, vector<4x2x16xf32>
    %439 = tpu.concatenate %437, %438 in 2 : vector<4x2x16xf32>, vector<4x2x16xf32> -> vector<4x2x32xf32>
    %440 = vector.shape_cast %439 : vector<4x2x32xf32> to vector<8x32xf32>
    %c0_193 = arith.constant 0 : index
    %c0_194 = arith.constant 0 : index
    %441 = vector.load %arg10[%c0_193, %c0_194] : memref<32x16xf32, #tpu.memory_space<vmem>>, vector<32x16xf32>
    %cst_195 = arith.constant dense<0.000000e+00> : vector<8x16xf32>
    %442 = tpu.matmul %440, %441, %cst_195 {dimension_numbers = #tpu.dot_dimension_numbers<[1], [0], [0], [1], [0, 0, 1, 1], [], []>} : vector<8x32xf32>, vector<32x16xf32>, vector<8x16xf32> -> vector<8x16xf32>
    %c0_196 = arith.constant 0 : index
    %c0_197 = arith.constant 0 : index
    %443 = vector.load %arg11[%c0_196, %c0_197] : memref<1x16xf32, #tpu.memory_space<vmem>>, vector<1x16xf32>
    %444 = vector.broadcast %443 : vector<1x16xf32> to vector<8x16xf32>
    %445 = arith.addf %442, %444 : vector<8x16xf32>
    %446 = math.tanh %445 : vector<8x16xf32>
    %c0_198 = arith.constant 0 : index
    %c0_199 = arith.constant 0 : index
    %447 = vector.load %arg12[%c0_198, %c0_199] : memref<1x16xf32, #tpu.memory_space<vmem>>, vector<1x16xf32>
    %448 = vector.broadcast %447 : vector<1x16xf32> to vector<8x16xf32>
    %449 = arith.mulf %446, %448 : vector<8x16xf32>
    %cst_200 = arith.constant dense<0.000000e+00> : vector<8xf32>
    %450 = vector.multi_reduction <add>, %449, %cst_200 [1] : vector<8x16xf32> to vector<8xf32>
    %451 = vector.shape_cast %450 : vector<8xf32> to vector<8x1xf32>
    %452 = vector.shape_cast %451 : vector<8x1xf32> to vector<4x2xf32>
    %453 = tpu.iota {dimensions = array<i32: 0>} : vector<4x2xi32>
    %c0_201 = arith.constant 0 : index
    %c0_202 = arith.constant 0 : index
    %454 = vector.load %arg3[%c0_201, %c0_202] : memref<1x2xi32, #tpu.memory_space<vmem>>, vector<1x2xi32>
    %455 = vector.broadcast %454 : vector<1x2xi32> to vector<4x2xi32>
    %456 = arith.cmpi slt, %453, %455 : vector<4x2xi32>
    %cst_203 = arith.constant -1.000000e+30 : f32
    %457 = vector.broadcast %cst_203 : f32 to vector<4x2xf32>
    %458 = arith.select %456, %452, %457 : vector<4x2xi1>, vector<4x2xf32>
    %cst_204 = arith.constant dense<0xFF800000> : vector<2xf32>
    %459 = vector.multi_reduction <maximumf>, %458, %cst_204 [0] : vector<4x2xf32> to vector<2xf32>
    %460 = vector.shape_cast %459 : vector<2xf32> to vector<1x2xf32>
    %461 = vector.broadcast %460 : vector<1x2xf32> to vector<4x2xf32>
    %462 = arith.subf %458, %461 : vector<4x2xf32>
    %463 = math.exp %462 : vector<4x2xf32>
    %cst_205 = arith.constant 0.000000e+00 : f32
    %464 = vector.broadcast %cst_205 : f32 to vector<4x2xf32>
    %465 = arith.select %456, %463, %464 : vector<4x2xi1>, vector<4x2xf32>
    %cst_206 = arith.constant dense<0.000000e+00> : vector<2xf32>
    %466 = vector.multi_reduction <add>, %465, %cst_206 [0] : vector<4x2xf32> to vector<2xf32>
    %467 = vector.shape_cast %466 : vector<2xf32> to vector<1x2xf32>
    %cst_207 = arith.constant 1.000000e-30 : f32
    %468 = vector.broadcast %cst_207 : f32 to vector<1x2xf32>
    %469 = arith.maximumf %467, %468 : vector<1x2xf32>
    %470 = vector.broadcast %469 : vector<1x2xf32> to vector<4x2xf32>
    %471 = arith.divf %465, %470 : vector<4x2xf32>
    %472 = vector.shape_cast %471 : vector<4x2xf32> to vector<4x2x1xf32>
    %473 = vector.broadcast %472 : vector<4x2x1xf32> to vector<4x2x32xf32>
    %474 = arith.mulf %439, %473 : vector<4x2x32xf32>
    %475 = vector.shape_cast %474 : vector<4x2x32xf32> to vector<8x32xf32>
    %c0_208 = arith.constant 0 : index
    %c0_209 = arith.constant 0 : index
    %476 = vector.load %arg13[%c0_208, %c0_209] : memref<32x4xf32, #tpu.memory_space<vmem>>, vector<32x4xf32>
    %cst_210 = arith.constant dense<0.000000e+00> : vector<8x4xf32>
    %477 = tpu.matmul %475, %476, %cst_210 {dimension_numbers = #tpu.dot_dimension_numbers<[1], [0], [0], [1], [0, 0, 1, 1], [], []>} : vector<8x32xf32>, vector<32x4xf32>, vector<8x4xf32> -> vector<8x4xf32>
    %c0_211 = arith.constant 0 : index
    %c0_212 = arith.constant 0 : index
    %478 = vector.load %arg14[%c0_211, %c0_212] : memref<1x4xf32, #tpu.memory_space<vmem>>, vector<1x4xf32>
    %479 = vector.broadcast %478 : vector<1x4xf32> to vector<8x4xf32>
    %480 = arith.addf %477, %479 : vector<8x4xf32>
    %481 = arith.negf %480 : vector<8x4xf32>
    %482 = math.exp %481 : vector<8x4xf32>
    %cst_213 = arith.constant 1.000000e+00 : f32
    %483 = vector.broadcast %cst_213 : f32 to vector<8x4xf32>
    %484 = arith.addf %483, %482 : vector<8x4xf32>
    %485 = arith.divf %483, %484 : vector<8x4xf32>
    %486 = vector.shape_cast %485 : vector<8x4xf32> to vector<4x2x4xf32>
    %c0_214 = arith.constant 0 : index
    %c0_215 = arith.constant 0 : index
    %c0_216 = arith.constant 0 : index
    %487 = vector.load %arg15[%c0_214, %c0_215, %c0_216] : memref<4x2x4xf32, #tpu.memory_space<vmem>>, vector<4x2x4xf32>
    tpu.vector_store %arg15[%c0_214, %c0_215, %c0_216], %486 {strides = array<i32>} : memref<4x2x4xf32, #tpu.memory_space<vmem>>, vector<4x2x4xf32>,
    return
  }
  func.func @transform_0(%arg0: i32) -> (i32, i32, i32) {
    %c0_i32 = arith.constant 0 : i32
    %c0_i32_0 = arith.constant 0 : i32
    %c0_i32_1 = arith.constant 0 : i32
    return %c0_i32, %arg0, %c0_i32_0 : i32, i32, i32
  }
  func.func @transform_1(%arg0: i32) -> (i32, i32) {
    %c0_i32 = arith.constant 0 : i32
    %c0_i32_0 = arith.constant 0 : i32
    return %arg0, %c0_i32 : i32, i32
  }
  func.func @transform_2(%arg0: i32) -> (i32, i32) {
    %c0_i32 = arith.constant 0 : i32
    %c0_i32_0 = arith.constant 0 : i32
    return %c0_i32, %arg0 : i32, i32
  }
  func.func @transform_3(%arg0: i32) -> (i32, i32) {
    %c0_i32 = arith.constant 0 : i32
    %c0_i32_0 = arith.constant 0 : i32
    %c0_i32_1 = arith.constant 0 : i32
    return %c0_i32, %c0_i32_0 : i32, i32
  }
  func.func @transform_4(%arg0: i32) -> (i32, i32) {
    %c0_i32 = arith.constant 0 : i32
    %c0_i32_0 = arith.constant 0 : i32
    %c0_i32_1 = arith.constant 0 : i32
    return %c0_i32, %c0_i32_0 : i32, i32
  }
  func.func @transform_5(%arg0: i32) -> (i32, i32) {
    %c0_i32 = arith.constant 0 : i32
    %c0_i32_0 = arith.constant 0 : i32
    %c0_i32_1 = arith.constant 0 : i32
    return %c0_i32, %c0_i32_0 : i32, i32
  }
  func.func @transform_6(%arg0: i32) -> (i32, i32) {
    %c0_i32 = arith.constant 0 : i32
    %c0_i32_0 = arith.constant 0 : i32
    %c0_i32_1 = arith.constant 0 : i32
    return %c0_i32, %c0_i32_0 : i32, i32
  }
  func.func @transform_7(%arg0: i32) -> (i32, i32) {
    %c0_i32 = arith.constant 0 : i32
    %c0_i32_0 = arith.constant 0 : i32
    %c0_i32_1 = arith.constant 0 : i32
    return %c0_i32, %c0_i32_0 : i32, i32
  }
  func.func @transform_8(%arg0: i32) -> (i32, i32) {
    %c0_i32 = arith.constant 0 : i32
    %c0_i32_0 = arith.constant 0 : i32
    %c0_i32_1 = arith.constant 0 : i32
    return %c0_i32, %c0_i32_0 : i32, i32
  }
  func.func @transform_9(%arg0: i32) -> (i32, i32) {
    %c0_i32 = arith.constant 0 : i32
    %c0_i32_0 = arith.constant 0 : i32
    %c0_i32_1 = arith.constant 0 : i32
    return %c0_i32, %c0_i32_0 : i32, i32
  }
  func.func @transform_10(%arg0: i32) -> (i32, i32) {
    %c0_i32 = arith.constant 0 : i32
    %c0_i32_0 = arith.constant 0 : i32
    %c0_i32_1 = arith.constant 0 : i32
    return %c0_i32, %c0_i32_0 : i32, i32
  }
  func.func @transform_11(%arg0: i32) -> (i32, i32) {
    %c0_i32 = arith.constant 0 : i32
    %c0_i32_0 = arith.constant 0 : i32
    %c0_i32_1 = arith.constant 0 : i32
    return %c0_i32, %c0_i32_0 : i32, i32
  }
  func.func @transform_12(%arg0: i32) -> (i32, i32) {
    %c0_i32 = arith.constant 0 : i32
    %c0_i32_0 = arith.constant 0 : i32
    %c0_i32_1 = arith.constant 0 : i32
    return %c0_i32, %c0_i32_0 : i32, i32
  }
  func.func @transform_13(%arg0: i32) -> (i32, i32) {
    %c0_i32 = arith.constant 0 : i32
    %c0_i32_0 = arith.constant 0 : i32
    %c0_i32_1 = arith.constant 0 : i32
    return %c0_i32, %c0_i32_0 : i32, i32
  }
  func.func @transform_14(%arg0: i32) -> (i32, i32, i32) {
    %c0_i32 = arith.constant 0 : i32
    %c0_i32_0 = arith.constant 0 : i32
    %c0_i32_1 = arith.constant 0 : i32
    return %c0_i32, %arg0, %c0_i32_0 : i32, i32, i32
  }
}

</mosaic_0001>

<llo_original>
// kernel: han_forward.3
$region0: #{han_forward.3}
  #allocation0 [shape = 'u32[]', space=smem, size = 0x4, offset = 0x4, fixed_abs, tag = 'smem constant byte address 0x4 - core index']
  #allocation1 [shape = 'u32[144,128]{1,0:T(1,128)}', space=vmem, size = 0x12000, scoped, tag = 'internal scratch']
  #allocation2 [shape = 'f32[4,2,64]{2,1,0:T(2,128)}', space=vmem, size = 0x1000, scoped, tag = 'scratch operand']
  #allocation3 [shape = 'f32[4,2,64]{2,1,0:T(2,128)}', space=vmem, size = 0x1000, scoped, tag = 'scratch operand']
  #allocation4 [shape = 'f32[4,2,16]{2,1,0:T(2,128)}', space=vmem, size = 0x1000, scoped, tag = 'scratch operand']
  #allocation5 [shape = 'f32[4,2,16]{2,1,0:T(2,128)}', space=vmem, size = 0x1000, scoped, tag = 'scratch operand']
  #allocation6 [shape = 'f32[2,16]{1,0:T(2,128)}', space=vmem, size = 0x400, scoped, tag = 'scratch operand']
  #allocation7 [shape = 'f32[2,16]{1,0:T(2,128)}', space=vmem, size = 0x400, scoped, tag = 'scratch operand']
  #allocation8 [shape = 'f32[2,16]{1,0:T(2,128)}', space=vmem, size = 0x400, scoped, tag = 'scratch operand']
  #allocation9 [shape = 'f32[2,16]{1,0:T(2,128)}', space=vmem, size = 0x400, scoped, tag = 'scratch operand']
  %s0 = inlined_call_operand.vmem [shape: f32[4,2,32], index: 0, kind: input, shape index: {}]
  %s1 = inlined_call_operand.vmem [shape: s32[2,1], index: 1, kind: input, shape index: {}]
  %s2 = inlined_call_operand.vmem [shape: s32[1,2], index: 2, kind: input, shape index: {}]
  %s3 = inlined_call_operand.vmem [shape: f32[32,64], index: 3, kind: input, shape index: {}]
  %s4 = inlined_call_operand.vmem [shape: f32[16,64], index: 4, kind: input, shape index: {}]
  %s5 = inlined_call_operand.vmem [shape: f32[1,64], index: 5, kind: input, shape index: {}]
  %s6 = inlined_call_operand.vmem [shape: f32[32,64], index: 6, kind: input, shape index: {}]
  %s7 = inlined_call_operand.vmem [shape: f32[16,64], index: 7, kind: input, shape index: {}]
  %s8 = inlined_call_operand.vmem [shape: f32[1,64], index: 8, kind: input, shape index: {}]
  %s9 = inlined_call_operand.vmem [shape: f32[32,16], index: 9, kind: input, shape index: {}]
  %s10 = inlined_call_operand.vmem [shape: f32[1,16], index: 10, kind: input, shape index: {}]
  %s11 = inlined_call_operand.vmem [shape: f32[1,16], index: 11, kind: input, shape index: {}]
  %s12 = inlined_call_operand.vmem [shape: f32[32,4], index: 12, kind: input, shape index: {}]
  %s13 = inlined_call_operand.vmem [shape: f32[1,4], index: 13, kind: input, shape index: {}]
  %s14 = inlined_call_operand.vmem [shape: f32[4,2,4], index: 14, kind: output, shape index: {}]
  %s15 = sld [smem:[#allocation0]]
  $region66: #{han_forward.3} parent=0
    _
  %s17 = ssub.s32 1, %s15
  %s18 = scalar_select 0, %s17, %s15
  // Predicated region
  $region2: #{han_forward.3} parent=0 // pred_check
    _
  $region3: #{han_forward.3} parent=0 // pred_check_branch
    %20 = sbr.rel (0) target = $region5
  $region4: #{han_forward.3} parent=0 // pred_region
    _
  $region5: #{han_forward.3} parent=0 // pred_fallthru
    _
  // Predicated region
  $region6: #{han_forward.3} parent=0 // pred_check
    _
  $region7: #{han_forward.3} parent=0 // pred_check_branch
    %22 = sbr.rel (0) target = $region9
  $region8: #{han_forward.3} parent=0 // pred_region
    _
  $region9: #{han_forward.3} parent=0 // pred_fallthru
    _
  // Predicated region
  $region10: #{han_forward.3} parent=0 // pred_check
    _
  $region11: #{han_forward.3} parent=0 // pred_check_branch
    %24 = sbr.rel (0) target = $region13
  $region12: #{han_forward.3} parent=0 // pred_region
    _
  $region13: #{han_forward.3} parent=0 // pred_fallthru
    _
  // Predicated region
  $region14: #{han_forward.3} parent=0 // pred_check
    _
  $region15: #{han_forward.3} parent=0 // pred_check_branch
    %26 = sbr.rel (0) target = $region17
  $region16: #{han_forward.3} parent=0 // pred_region
    _
  $region17: #{han_forward.3} parent=0 // pred_fallthru
    _
  // Predicated region
  $region18: #{han_forward.3} parent=0 // pred_check
    _
  $region19: #{han_forward.3} parent=0 // pred_check_branch
    %28 = sbr.rel (0) target = $region21
  $region20: #{han_forward.3} parent=0 // pred_region
    _
  $region21: #{han_forward.3} parent=0 // pred_fallthru
    _
  // Predicated region
  $region22: #{han_forward.3} parent=0 // pred_check
    _
  $region23: #{han_forward.3} parent=0 // pred_check_branch
    %30 = sbr.rel (0) target = $region25
  $region24: #{han_forward.3} parent=0 // pred_region
    _
  $region25: #{han_forward.3} parent=0 // pred_fallthru
    _
  // Predicated region
  $region26: #{han_forward.3} parent=0 // pred_check
    _
  $region27: #{han_forward.3} parent=0 // pred_check_branch
    %32 = sbr.rel (0) target = $region29
  $region28: #{han_forward.3} parent=0 // pred_region
    _
  $region29: #{han_forward.3} parent=0 // pred_fallthru
    _
  // Predicated region
  $region30: #{han_forward.3} parent=0 // pred_check
    _
  $region31: #{han_forward.3} parent=0 // pred_check_branch
    %34 = sbr.rel (0) target = $region33
  $region32: #{han_forward.3} parent=0 // pred_region
    _
  $region33: #{han_forward.3} parent=0 // pred_fallthru
    _
  // Predicated region
  $region34: #{han_forward.3} parent=0 // pred_check
    _
  $region35: #{han_forward.3} parent=0 // pred_check_branch
    %36 = sbr.rel (0) target = $region37
  $region36: #{han_forward.3} parent=0 // pred_region
    _
  $region37: #{han_forward.3} parent=0 // pred_fallthru
    _
  // Predicated region
  $region38: #{han_forward.3} parent=0 // pred_check
    _
  $region39: #{han_forward.3} parent=0 // pred_check_branch
    %38 = sbr.rel (0) target = $region41
  $region40: #{han_forward.3} parent=0 // pred_region
    _
  $region41: #{han_forward.3} parent=0 // pred_fallthru
    _
  // Predicated region
  $region42: #{han_forward.3} parent=0 // pred_check
    _
  $region43: #{han_forward.3} parent=0 // pred_check_branch
    %40 = sbr.rel (0) target = $region45
  $region44: #{han_forward.3} parent=0 // pred_region
    _
  $region45: #{han_forward.3} parent=0 // pred_fallthru
    _
  // Predicated region
  $region46: #{han_forward.3} parent=0 // pred_check
    _
  $region47: #{han_forward.3} parent=0 // pred_check_branch
    %42 = sbr.rel (0) target = $region49
  $region48: #{han_forward.3} parent=0 // pred_region
    _
  $region49: #{han_forward.3} parent=0 // pred_fallthru
    _
  // Predicated region
  $region50: #{han_forward.3} parent=0 // pred_check
    _
  $region51: #{han_forward.3} parent=0 // pred_check_branch
    %44 = sbr.rel (0) target = $region53
  $region52: #{han_forward.3} parent=0 // pred_region
    _
  $region53: #{han_forward.3} parent=0 // pred_fallthru
    _
  // Predicated region
  $region54: #{han_forward.3} parent=0 // pred_check
    _
  $region55: #{han_forward.3} parent=0 // pred_check_branch
    %46 = sbr.rel (0) target = $region57
  $region56: #{han_forward.3} parent=0 // pred_region
    _
  $region57: #{han_forward.3} parent=0 // pred_fallthru
    _
  %v47 = vld [vmem:[%s0] sm:$0x3]
  %v48 = vld [vmem:[%s0 + $0x2] sm:$0x3]
  %v49 = vld [vmem:[%s0 + $0x4] sm:$0x3]
  %v50 = vld [vmem:[%s0 + $0x6] sm:$0x3]
  %v51 = vld [vmem:[%s3] sm:$0xff]
  %v52 = vld [vmem:[%s3 + $0x8] sm:$0xff]
  %v53 = vld [vmem:[%s3 + $0x10] sm:$0xff]
  %v54 = vld [vmem:[%s3 + $0x18] sm:$0xff]
  %v55 = vld [vmem:[%s5] sm:$0x1]
  %v57 = vlaneseq
  %v58 = vshrl.u32 %v57, 7
  %v59 = vsub.s32 0, %v58
  %v60 = vrot.slane %v55, %v59
  %v66 = vcombine.low %v47, %v48
  %v67 = vcombine.low %v49, %v50
  %v69 = vunpack.c.l.s4 1983009808
  %v70 = vunpack.c.0.s8 %v69
  %v71 = vlaneseq
  %v72 = vshrl.u32 %v71, 7
  %v73 = vsub.s32 %v70, %v72
  %v74 = vrot.slane %v66, %v73
  %v76 = vunpack.c.l.s4 1983009808
  %v77 = vunpack.c.0.s8 %v76
  %v78 = vlaneseq
  %v79 = vshrl.u32 %v78, 7
  %v80 = vsub.s32 %v77, %v79
  %v81 = vrot.slane %v67, %v80
  %v82 = vcombine.low %v74, %v81
  %vm83 = vcmask 261120
  %v84 = vsel %vm83, %v82, 0
  %86 = vmatprep.subr.mxu0 0.0
  %87 = vmatpush1.msra.mxu0 0.0
  %88 = vmatprep.subr.mxu0 0.0
  %89 = vmatpush1.msra.mxu0 0.0
  %90 = vmatprep.subr.mxu0 0.0
  %91 = vmatpush1.msra.mxu0 0.0
  %92 = vmatprep.subr.mxu0 0.0
  %93 = vmatpush1.msra.mxu0 0.0
  %94 = vmatprep.subr.mxu0 0.0
  %95 = vmatpush1.msra.mxu0 0.0
  %96 = vmatprep.subr.mxu0 0.0
  %97 = vmatpush1.msra.mxu0 0.0
  %98 = vmatprep.subr.mxu0 0.0
  %99 = vmatpush1.msra.mxu0 0.0
  %100 = vmatprep.subr.mxu0 0.0
  %101 = vmatpush1.msra.mxu0 0.0
  %102 = vmatprep.subr.mxu0 0.0
  %103 = vmatpush1.msra.mxu0 0.0
  %104 = vmatprep.subr.mxu0 0.0
  %105 = vmatpush1.msra.mxu0 0.0
  %106 = vmatprep.subr.mxu0 0.0
  %107 = vmatpush1.msra.mxu0 0.0
  %108 = vmatprep.subr.mxu0 0.0
  %109 = vmatpush1.msra.mxu0 0.0
  %110 = vmatprep.subr.mxu0 0.0
  %111 = vmatpush1.msra.mxu0 %v54
  %112 = vmatprep.subr.mxu0 0.0
  %113 = vmatpush1.msra.mxu0 %v53
  %114 = vmatprep.subr.mxu0 0.0
  %115 = vmatpush1.msra.mxu0 %v52
  %116 = vmatprep.subr.mxu0 0.0
  %117 = vmatpush1.msra.mxu0 %v51
  %118 = vmatprep.subr.mxu0 0.0
  %119 = vmatpush2.msra.mxu0 0.0
  %120 = vmatprep.subr.mxu0 0.0
  %121 = vmatpush2.msra.mxu0 0.0
  %122 = vmatprep.subr.mxu0 0.0
  %123 = vmatpush2.msra.mxu0 0.0
  %124 = vmatprep.subr.mxu0 0.0
  %125 = vmatpush2.msra.mxu0 0.0
  %126 = vmatprep.subr.mxu0 0.0
  %127 = vmatpush2.msra.mxu0 0.0
  %128 = vmatprep.subr.mxu0 0.0
  %129 = vmatpush2.msra.mxu0 0.0
  %130 = vmatprep.subr.mxu0 0.0
  %131 = vmatpush2.msra.mxu0 0.0
  %132 = vmatprep.subr.mxu0 0.0
  %133 = vmatpush2.msra.mxu0 0.0
  %134 = vmatprep.subr.mxu0 0.0
  %135 = vmatpush2.msra.mxu0 0.0
  %136 = vmatprep.subr.mxu0 0.0
  %137 = vmatpush2.msra.mxu0 0.0
  %138 = vmatprep.subr.mxu0 0.0
  %139 = vmatpush2.msra.mxu0 0.0
  %140 = vmatprep.subr.mxu0 0.0
  %141 = vmatpush2.msra.mxu0 0.0
  %142 = vmatprep.subr.mxu0 0.0
  %143 = vmatpush2.msra.mxu0 0.0
  %144 = vmatprep.subr.mxu0 0.0
  %145 = vmatpush2.msra.mxu0 0.0
  %146 = vmatprep.subr.mxu0 0.0
  %147 = vmatpush2.msra.mxu0 0.0
  %148 = vmatprep.subr.mxu0 0.0
  %149 = vmatpush2.msra.mxu0 0.0
  %150 = vmatprep.mubr.f32.mxu0 0.0
  %151 = vmatmul.mubr.f32.gmra.mxu0 %v84
  %v152 = vpop.f32.mrf.mxu0
  %v153 = vadd.f32 %v60, %v152
  %v154 = vpop.f32.mrf.mxu0
  %155 = vdwg.mxu0
  %v157 = vcombine.high %v153, %v153
  %v159 = vunpack.c.l.s4 1983009808
  %v160 = vunpack.c.0.s8 %v159
  %v161 = vlaneseq
  %v162 = vshrl.u32 %v161, 7
  %v163 = vsub.s32 %v160, %v162
  %v164 = vrot.slane %v153, %v163
  %v166 = vunpack.c.l.s4 1983009808
  %v167 = vunpack.c.0.s8 %v166
  %v168 = vlaneseq
  %v169 = vshrl.u32 %v168, 7
  %v170 = vsub.s32 %v167, %v169
  %v171 = vrot.slane %v157, %v170
  %v172 = vcombine.high %v164, %v164
  %v173 = vcombine.high %v171, %v171
  %vm178 = vcmask 517120
  %179 = vst.msk [vmem:[#allocation2] sm:$0x3] %vm178, %v164
  %180 = vst.msk [vmem:[#allocation2 + $0x2] sm:$0x3] %vm178, %v172
  %181 = vst.msk [vmem:[#allocation2 + $0x4] sm:$0x3] %vm178, %v171
  %182 = vst.msk [vmem:[#allocation2 + $0x6] sm:$0x3] %vm178, %v173
  %v183 = vld [vmem:[%s6] sm:$0xff]
  %v184 = vld [vmem:[%s6 + $0x8] sm:$0xff]
  %v185 = vld [vmem:[%s6 + $0x10] sm:$0xff]
  %v186 = vld [vmem:[%s6 + $0x18] sm:$0xff]
  %v187 = vld [vmem:[%s8] sm:$0x1]
  %v189 = vlaneseq
  %v190 = vshrl.u32 %v189, 7
  %v191 = vsub.s32 0, %v190
  %v192 = vrot.slane %v187, %v191
  %194 = vmatprep.subr.mxu0 0.0
  %195 = vmatpush1.msra.mxu0 0.0
  %196 = vmatprep.subr.mxu0 0.0
  %197 = vmatpush1.msra.mxu0 0.0
  %198 = vmatprep.subr.mxu0 0.0
  %199 = vmatpush1.msra.mxu0 0.0
  %200 = vmatprep.subr.mxu0 0.0
  %201 = vmatpush1.msra.mxu0 0.0
  %202 = vmatprep.subr.mxu0 0.0
  %203 = vmatpush1.msra.mxu0 0.0
  %204 = vmatprep.subr.mxu0 0.0
  %205 = vmatpush1.msra.mxu0 0.0
  %206 = vmatprep.subr.mxu0 0.0
  %207 = vmatpush1.msra.mxu0 0.0
  %208 = vmatprep.subr.mxu0 0.0
  %209 = vmatpush1.msra.mxu0 0.0
  %210 = vmatprep.subr.mxu0 0.0
  %211 = vmatpush1.msra.mxu0 0.0
  %212 = vmatprep.subr.mxu0 0.0
  %213 = vmatpush1.msra.mxu0 0.0
  %214 = vmatprep.subr.mxu0 0.0
  %215 = vmatpush1.msra.mxu0 0.0
  %216 = vmatprep.subr.mxu0 0.0
  %217 = vmatpush1.msra.mxu0 0.0
  %218 = vmatprep.subr.mxu0 0.0
  %219 = vmatpush1.msra.mxu0 %v186
  %220 = vmatprep.subr.mxu0 0.0
  %221 = vmatpush1.msra.mxu0 %v185
  %222 = vmatprep.subr.mxu0 0.0
  %223 = vmatpush1.msra.mxu0 %v184
  %224 = vmatprep.subr.mxu0 0.0
  %225 = vmatpush1.msra.mxu0 %v183
  %226 = vmatprep.subr.mxu0 0.0
  %227 = vmatpush2.msra.mxu0 0.0
  %228 = vmatprep.subr.mxu0 0.0
  %229 = vmatpush2.msra.mxu0 0.0
  %230 = vmatprep.subr.mxu0 0.0
  %231 = vmatpush2.msra.mxu0 0.0
  %232 = vmatprep.subr.mxu0 0.0
  %233 = vmatpush2.msra.mxu0 0.0
  %234 = vmatprep.subr.mxu0 0.0
  %235 = vmatpush2.msra.mxu0 0.0
  %236 = vmatprep.subr.mxu0 0.0
  %237 = vmatpush2.msra.mxu0 0.0
  %238 = vmatprep.subr.mxu0 0.0
  %239 = vmatpush2.msra.mxu0 0.0
  %240 = vmatprep.subr.mxu0 0.0
  %241 = vmatpush2.msra.mxu0 0.0
  %242 = vmatprep.subr.mxu0 0.0
  %243 = vmatpush2.msra.mxu0 0.0
  %244 = vmatprep.subr.mxu0 0.0
  %245 = vmatpush2.msra.mxu0 0.0
  %246 = vmatprep.subr.mxu0 0.0
  %247 = vmatpush2.msra.mxu0 0.0
  %248 = vmatprep.subr.mxu0 0.0
  %249 = vmatpush2.msra.mxu0 0.0
  %250 = vmatprep.subr.mxu0 0.0
  %251 = vmatpush2.msra.mxu0 0.0
  %252 = vmatprep.subr.mxu0 0.0
  %253 = vmatpush2.msra.mxu0 0.0
  %254 = vmatprep.subr.mxu0 0.0
  %255 = vmatpush2.msra.mxu0 0.0
  %256 = vmatprep.subr.mxu0 0.0
  %257 = vmatpush2.msra.mxu0 0.0
  %258 = vmatprep.mubr.f32.mxu0 0.0
  %259 = vmatmul.mubr.f32.gmra.mxu0 %v84
  %v260 = vpop.f32.mrf.mxu0
  %v261 = vadd.f32 %v192, %v260
  %v262 = vpop.f32.mrf.mxu0
  %263 = vdwg.mxu0
  %v265 = vcombine.high %v261, %v261
  %v267 = vunpack.c.l.s4 1983009808
  %v268 = vunpack.c.0.s8 %v267
  %v269 = vlaneseq
  %v270 = vshrl.u32 %v269, 7
  %v271 = vsub.s32 %v268, %v270
  %v272 = vrot.slane %v261, %v271
  %v274 = vunpack.c.l.s4 1983009808
  %v275 = vunpack.c.0.s8 %v274
  %v276 = vlaneseq
  %v277 = vshrl.u32 %v276, 7
  %v278 = vsub.s32 %v275, %v277
  %v279 = vrot.slane %v265, %v278
  %v280 = vcombine.high %v272, %v272
  %v281 = vcombine.high %v279, %v279
  %286 = vst.msk [vmem:[#allocation3] sm:$0x3] %vm178, %v272
  %287 = vst.msk [vmem:[#allocation3 + $0x2] sm:$0x3] %vm178, %v280
  %288 = vst.msk [vmem:[#allocation3 + $0x4] sm:$0x3] %vm178, %v279
  %289 = vst.msk [vmem:[#allocation3 + $0x6] sm:$0x3] %vm178, %v281
  %vm290 = vcmask 123904
  %291 = vst.msk [vmem:[#allocation6] sm:$0x3] %vm290, 0.0
  %292 = vst.msk [vmem:[#allocation7] sm:$0x3] %vm290, 0.0
  %293 = vst.msk [vmem:[#allocation8] sm:$0x3] %vm290, 0.0
  %294 = vst.msk [vmem:[#allocation9] sm:$0x3] %vm290, 0.0
  %v295 = vld [vmem:[%s1] sm:$0x3]
  %v296 = vld [vmem:[#allocation6] sm:$0x3]
  %v297 = vld [vmem:[#allocation7] sm:$0x3]
  %v298 = vld [vmem:[#allocation2] sm:$0x3]
  %v299 = vld [vmem:[%s4] sm:$0xff]
  %v300 = vld [vmem:[%s4 + $0x8] sm:$0xff]
  %vm301 = vcmask 130048
  %v303 = vsel %vm301, %v296, 0
  %305 = vmatprep.subr.mxu0 0.0
  %306 = vmatpush1.msra.mxu0 0.0
  %307 = vmatprep.subr.mxu0 0.0
  %308 = vmatpush1.msra.mxu0 0.0
  %309 = vmatprep.subr.mxu0 0.0
  %310 = vmatpush1.msra.mxu0 0.0
  %311 = vmatprep.subr.mxu0 0.0
  %312 = vmatpush1.msra.mxu0 0.0
  %313 = vmatprep.subr.mxu0 0.0
  %314 = vmatpush1.msra.mxu0 0.0
  %315 = vmatprep.subr.mxu0 0.0
  %316 = vmatpush1.msra.mxu0 0.0
  %317 = vmatprep.subr.mxu0 0.0
  %318 = vmatpush1.msra.mxu0 0.0
  %319 = vmatprep.subr.mxu0 0.0
  %320 = vmatpush1.msra.mxu0 0.0
  %321 = vmatprep.subr.mxu0 0.0
  %322 = vmatpush1.msra.mxu0 0.0
  %323 = vmatprep.subr.mxu0 0.0
  %324 = vmatpush1.msra.mxu0 0.0
  %325 = vmatprep.subr.mxu0 0.0
  %326 = vmatpush1.msra.mxu0 0.0
  %327 = vmatprep.subr.mxu0 0.0
  %328 = vmatpush1.msra.mxu0 0.0
  %329 = vmatprep.subr.mxu0 0.0
  %330 = vmatpush1.msra.mxu0 0.0
  %331 = vmatprep.subr.mxu0 0.0
  %332 = vmatpush1.msra.mxu0 0.0
  %333 = vmatprep.subr.mxu0 0.0
  %334 = vmatpush1.msra.mxu0 %v300
  %335 = vmatprep.subr.mxu0 0.0
  %336 = vmatpush1.msra.mxu0 %v299
  %337 = vmatprep.subr.mxu0 0.0
  %338 = vmatpush2.msra.mxu0 0.0
  %339 = vmatprep.subr.mxu0 0.0
  %340 = vmatpush2.msra.mxu0 0.0
  %341 = vmatprep.subr.mxu0 0.0
  %342 = vmatpush2.msra.mxu0 0.0
  %343 = vmatprep.subr.mxu0 0.0
  %344 = vmatpush2.msra.mxu0 0.0
  %345 = vmatprep.subr.mxu0 0.0
  %346 = vmatpush2.msra.mxu0 0.0
  %347 = vmatprep.subr.mxu0 0.0
  %348 = vmatpush2.msra.mxu0 0.0
  %349 = vmatprep.subr.mxu0 0.0
  %350 = vmatpush2.msra.mxu0 0.0
  %351 = vmatprep.subr.mxu0 0.0
  %352 = vmatpush2.msra.mxu0 0.0
  %353 = vmatprep.subr.mxu0 0.0
  %354 = vmatpush2.msra.mxu0 0.0
  %355 = vmatprep.subr.mxu0 0.0
  %356 = vmatpush2.msra.mxu0 0.0
  %357 = vmatprep.subr.mxu0 0.0
  %358 = vmatpush2.msra.mxu0 0.0
  %359 = vmatprep.subr.mxu0 0.0
  %360 = vmatpush2.msra.mxu0 0.0
  %361 = vmatprep.subr.mxu0 0.0
  %362 = vmatpush2.msra.mxu0 0.0
  %363 = vmatprep.subr.mxu0 0.0
  %364 = vmatpush2.msra.mxu0 0.0
  %365 = vmatprep.subr.mxu0 0.0
  %366 = vmatpush2.msra.mxu0 0.0
  %367 = vmatprep.subr.mxu0 0.0
  %368 = vmatpush2.msra.mxu0 0.0
  %369 = vmatprep.mubr.f32.mxu0 0.0
  %370 = vmatmul.mubr.f32.gmra.mxu0 %v303
  %v371 = vpop.f32.mrf.mxu0
  %v372 = vadd.f32 0.0, %v371
  %v373 = vpop.f32.mrf.mxu0
  %374 = vdwg.mxu0
  %v375 = vadd.f32 %v298, %v372
  %v376 = vxor.u32 %v375, 2147483648
  %v377 = vmul.f32 %v376, 1.442695
  %v378 = vpow.pop %v377
  %v379 = vadd.f32 %v378, 1.0
  %v380 = vrcp.pop %v379
  %v381 = vmul.f32 1.0, %v380
  %v382 = vtanh.pop %v375
  %384 = vrot.lane.b32.xlu0 %v297, 16
  %v385 = vpop.permute.xlu0 %384
  %v387 = vmul.f32 %v381, %v385
  %389 = vrot.lane.b32.xlu0 %v382, 96
  %v390 = vpop.permute.xlu0 %389
  %v392 = vmul.f32 %v381, %v390
  %394 = vrot.lane.b32.xlu0 %v392, 16
  %v395 = vpop.permute.xlu0 %394
  %v397 = vadd.f32 %v387, %v395
  %v398 = vtanh.pop %v397
  %400 = vrot.lane.b32.xlu0 %v398, 32
  %v401 = vpop.permute.xlu0 %400
  %v403 = vmul.f32 %v381, %v401
  %vm404 = vcmp.gt.s32.totalorder %v295, 0
  %v405 = vsel %vm404, 1, 0
  %406 = vset.pattern.permute.xlu0 0
  %407 = vperm.xlu0 %406, %v405
  %v408 = vpop.permute.xlu0 %407
  %vm409 = vcmp.eq.s32.totalorder %v408, 1
  %410 = vrot.lane.b32.xlu0 %v296, 48
  %v411 = vpop.permute.xlu0 %410
  %v413 = vsel %vm409, %v403, %v411
  %415 = vrot.lane.b32.xlu0 %v413, 80
  %v416 = vpop.permute.xlu0 %415
  %418 = vst.msk [vmem:[#allocation6] sm:$0x3] %vm290, %v416
  %v419 = vsel %vm409, %v397, %v385
  %421 = vrot.lane.b32.xlu0 %v419, 112
  %v422 = vpop.permute.xlu0 %421
  %424 = vst.msk [vmem:[#allocation7] sm:$0x3] %vm290, %v422
  %v425 = vsel %vm409, %v403, 0.0
  %427 = vrot.lane.b32.xlu0 %v425, 80
  %v428 = vpop.permute.xlu0 %427
  %430 = vst.msk [vmem:[#allocation4] sm:$0x3] %vm290, %v428
  %v431 = vld [vmem:[#allocation8] sm:$0x3]
  %v432 = vld [vmem:[#allocation9] sm:$0x3]
  %s433 = scalar_lea.vmem [#allocation3], 6
  %v434 = vld [vmem:[%s433] sm:$0x3]
  %v435 = vld [vmem:[%s7] sm:$0xff]
  %v436 = vld [vmem:[%s7 + $0x8] sm:$0xff]
  %v438 = vsel %vm301, %v431, 0
  %440 = vmatprep.subr.mxu0 0.0
  %441 = vmatpush1.msra.mxu0 0.0
  %442 = vmatprep.subr.mxu0 0.0
  %443 = vmatpush1.msra.mxu0 0.0
  %444 = vmatprep.subr.mxu0 0.0
  %445 = vmatpush1.msra.mxu0 0.0
  %446 = vmatprep.subr.mxu0 0.0
  %447 = vmatpush1.msra.mxu0 0.0
  %448 = vmatprep.subr.mxu0 0.0
  %449 = vmatpush1.msra.mxu0 0.0
  %450 = vmatprep.subr.mxu0 0.0
  %451 = vmatpush1.msra.mxu0 0.0
  %452 = vmatprep.subr.mxu0 0.0
  %453 = vmatpush1.msra.mxu0 0.0
  %454 = vmatprep.subr.mxu0 0.0
  %455 = vmatpush1.msra.mxu0 0.0
  %456 = vmatprep.subr.mxu0 0.0
  %457 = vmatpush1.msra.mxu0 0.0
  %458 = vmatprep.subr.mxu0 0.0
  %459 = vmatpush1.msra.mxu0 0.0
  %460 = vmatprep.subr.mxu0 0.0
  %461 = vmatpush1.msra.mxu0 0.0
  %462 = vmatprep.subr.mxu0 0.0
  %463 = vmatpush1.msra.mxu0 0.0
  %464 = vmatprep.subr.mxu0 0.0
  %465 = vmatpush1.msra.mxu0 0.0
  %466 = vmatprep.subr.mxu0 0.0
  %467 = vmatpush1.msra.mxu0 0.0
  %468 = vmatprep.subr.mxu0 0.0
  %469 = vmatpush1.msra.mxu0 %v436
  %470 = vmatprep.subr.mxu0 0.0
  %471 = vmatpush1.msra.mxu0 %v435
  %472 = vmatprep.subr.mxu0 0.0
  %473 = vmatpush2.msra.mxu0 0.0
  %474 = vmatprep.subr.mxu0 0.0
  %475 = vmatpush2.msra.mxu0 0.0
  %476 = vmatprep.subr.mxu0 0.0
  %477 = vmatpush2.msra.mxu0 0.0
  %478 = vmatprep.subr.mxu0 0.0
  %479 = vmatpush2.msra.mxu0 0.0
  %480 = vmatprep.subr.mxu0 0.0
  %481 = vmatpush2.msra.mxu0 0.0
  %482 = vmatprep.subr.mxu0 0.0
  %483 = vmatpush2.msra.mxu0 0.0
  %484 = vmatprep.subr.mxu0 0.0
  %485 = vmatpush2.msra.mxu0 0.0
  %486 = vmatprep.subr.mxu0 0.0
  %487 = vmatpush2.msra.mxu0 0.0
  %488 = vmatprep.subr.mxu0 0.0
  %489 = vmatpush2.msra.mxu0 0.0
  %490 = vmatprep.subr.mxu0 0.0
  %491 = vmatpush2.msra.mxu0 0.0
  %492 = vmatprep.subr.mxu0 0.0
  %493 = vmatpush2.msra.mxu0 0.0
  %494 = vmatprep.subr.mxu0 0.0
  %495 = vmatpush2.msra.mxu0 0.0
  %496 = vmatprep.subr.mxu0 0.0
  %497 = vmatpush2.msra.mxu0 0.0
  %498 = vmatprep.subr.mxu0 0.0
  %499 = vmatpush2.msra.mxu0 0.0
  %500 = vmatprep.subr.mxu0 0.0
  %501 = vmatpush2.msra.mxu0 0.0
  %502 = vmatprep.subr.mxu0 0.0
  %503 = vmatpush2.msra.mxu0 0.0
  %504 = vmatprep.mubr.f32.mxu0 0.0
  %505 = vmatmul.mubr.f32.gmra.mxu0 %v438
  %v506 = vpop.f32.mrf.mxu0
  %v507 = vadd.f32 0.0, %v506
  %v508 = vpop.f32.mrf.mxu0
  %509 = vdwg.mxu0
  %v510 = vadd.f32 %v434, %v507
  %v511 = vxor.u32 %v510, 2147483648
  %v512 = vmul.f32 %v511, 1.442695
  %v513 = vpow.pop %v512
  %v514 = vadd.f32 %v513, 1.0
  %v515 = vrcp.pop %v514
  %v516 = vmul.f32 1.0, %v515
  %v517 = vtanh.pop %v510
  %519 = vrot.lane.b32.xlu0 %v432, 16
  %v520 = vpop.permute.xlu0 %519
  %v522 = vmul.f32 %v516, %v520
  %524 = vrot.lane.b32.xlu0 %v517, 96
  %v525 = vpop.permute.xlu0 %524
  %v527 = vmul.f32 %v516, %v525
  %529 = vrot.lane.b32.xlu0 %v527, 16
  %v530 = vpop.permute.xlu0 %529
  %v532 = vadd.f32 %v522, %v530
  %v533 = vtanh.pop %v532
  %535 = vrot.lane.b32.xlu0 %v533, 32
  %v536 = vpop.permute.xlu0 %535
  %v538 = vmul.f32 %v516, %v536
  %vm539 = vcmp.gt.s32.totalorder %v295, 3
  %v540 = vsel %vm539, 1, 0
  %541 = vset.pattern.permute.xlu0 0
  %542 = vperm.xlu0 %541, %v540
  %v543 = vpop.permute.xlu0 %542
  %vm544 = vcmp.eq.s32.totalorder %v543, 1
  %545 = vrot.lane.b32.xlu0 %v431, 48
  %v546 = vpop.permute.xlu0 %545
  %v548 = vsel %vm544, %v538, %v546
  %550 = vrot.lane.b32.xlu0 %v548, 80
  %v551 = vpop.permute.xlu0 %550
  %553 = vst.msk [vmem:[#allocation8] sm:$0x3] %vm290, %v551
  %v554 = vsel %vm544, %v532, %v520
  %556 = vrot.lane.b32.xlu0 %v554, 112
  %v557 = vpop.permute.xlu0 %556
  %559 = vst.msk [vmem:[#allocation9] sm:$0x3] %vm290, %v557
  %v560 = vsel %vm544, %v538, 0.0
  %562 = vrot.lane.b32.xlu0 %v560, 80
  %v563 = vpop.permute.xlu0 %562
  %s565 = scalar_lea.vmem [#allocation5], 6
  %566 = vst.msk [vmem:[%s565] sm:$0x3] %vm290, %v563
  %v567 = vld [vmem:[#allocation6] sm:$0x3]
  %v568 = vld [vmem:[#allocation7] sm:$0x3]
  %s569 = scalar_lea.vmem [#allocation2], 2
  %v570 = vld [vmem:[%s569] sm:$0x3]
  %v571 = vld [vmem:[%s4] sm:$0xff]
  %v572 = vld [vmem:[%s4 + $0x8] sm:$0xff]
  %v574 = vsel %vm301, %v567, 0
  %576 = vmatprep.subr.mxu0 0.0
  %577 = vmatpush1.msra.mxu0 0.0
  %578 = vmatprep.subr.mxu0 0.0
  %579 = vmatpush1.msra.mxu0 0.0
  %580 = vmatprep.subr.mxu0 0.0
  %581 = vmatpush1.msra.mxu0 0.0
  %582 = vmatprep.subr.mxu0 0.0
  %583 = vmatpush1.msra.mxu0 0.0
  %584 = vmatprep.subr.mxu0 0.0
  %585 = vmatpush1.msra.mxu0 0.0
  %586 = vmatprep.subr.mxu0 0.0
  %587 = vmatpush1.msra.mxu0 0.0
  %588 = vmatprep.subr.mxu0 0.0
  %589 = vmatpush1.msra.mxu0 0.0
  %590 = vmatprep.subr.mxu0 0.0
  %591 = vmatpush1.msra.mxu0 0.0
  %592 = vmatprep.subr.mxu0 0.0
  %593 = vmatpush1.msra.mxu0 0.0
  %594 = vmatprep.subr.mxu0 0.0
  %595 = vmatpush1.msra.mxu0 0.0
  %596 = vmatprep.subr.mxu0 0.0
  %597 = vmatpush1.msra.mxu0 0.0
  %598 = vmatprep.subr.mxu0 0.0
  %599 = vmatpush1.msra.mxu0 0.0
  %600 = vmatprep.subr.mxu0 0.0
  %601 = vmatpush1.msra.mxu0 0.0
  %602 = vmatprep.subr.mxu0 0.0
  %603 = vmatpush1.msra.mxu0 0.0
  %604 = vmatprep.subr.mxu0 0.0
  %605 = vmatpush1.msra.mxu0 %v572
  %606 = vmatprep.subr.mxu0 0.0
  %607 = vmatpush1.msra.mxu0 %v571
  %608 = vmatprep.subr.mxu0 0.0
  %609 = vmatpush2.msra.mxu0 0.0
  %610 = vmatprep.subr.mxu0 0.0
  %611 = vmatpush2.msra.mxu0 0.0
  %612 = vmatprep.subr.mxu0 0.0
  %613 = vmatpush2.msra.mxu0 0.0
  %614 = vmatprep.subr.mxu0 0.0
  %615 = vmatpush2.msra.mxu0 0.0
  %616 = vmatprep.subr.mxu0 0.0
  %617 = vmatpush2.msra.mxu0 0.0
  %618 = vmatprep.subr.mxu0 0.0
  %619 = vmatpush2.msra.mxu0 0.0
  %620 = vmatprep.subr.mxu0 0.0
  %621 = vmatpush2.msra.mxu0 0.0
  %622 = vmatprep.subr.mxu0 0.0
  %623 = vmatpush2.msra.mxu0 0.0
  %624 = vmatprep.subr.mxu0 0.0
  %625 = vmatpush2.msra.mxu0 0.0
  %626 = vmatprep.subr.mxu0 0.0
  %627 = vmatpush2.msra.mxu0 0.0
  %628 = vmatprep.subr.mxu0 0.0
  %629 = vmatpush2.msra.mxu0 0.0
  %630 = vmatprep.subr.mxu0 0.0
  %631 = vmatpush2.msra.mxu0 0.0
  %632 = vmatprep.subr.mxu0 0.0
  %633 = vmatpush2.msra.mxu0 0.0
  %634 = vmatprep.subr.mxu0 0.0
  %635 = vmatpush2.msra.mxu0 0.0
  %636 = vmatprep.subr.mxu0 0.0
  %637 = vmatpush2.msra.mxu0 0.0
  %638 = vmatprep.subr.mxu0 0.0
  %639 = vmatpush2.msra.mxu0 0.0
  %640 = vmatprep.mubr.f32.mxu0 0.0
  %641 = vmatmul.mubr.f32.gmra.mxu0 %v574
  %v642 = vpop.f32.mrf.mxu0
  %v643 = vadd.f32 0.0, %v642
  %v644 = vpop.f32.mrf.mxu0
  %645 = vdwg.mxu0
  %v646 = vadd.f32 %v570, %v643
  %v647 = vxor.u32 %v646, 2147483648
  %v648 = vmul.f32 %v647, 1.442695
  %v649 = vpow.pop %v648
  %v650 = vadd.f32 %v649, 1.0
  %v651 = vrcp.pop %v650
  %v652 = vmul.f32 1.0, %v651
  %v653 = vtanh.pop %v646
  %655 = vrot.lane.b32.xlu0 %v568, 16
  %v656 = vpop.permute.xlu0 %655
  %v658 = vmul.f32 %v652, %v656
  %660 = vrot.lane.b32.xlu0 %v653, 96
  %v661 = vpop.permute.xlu0 %660
  %v663 = vmul.f32 %v652, %v661
  %665 = vrot.lane.b32.xlu0 %v663, 16
  %v666 = vpop.permute.xlu0 %665
  %v668 = vadd.f32 %v658, %v666
  %v669 = vtanh.pop %v668
  %671 = vrot.lane.b32.xlu0 %v669, 32
  %v672 = vpop.permute.xlu0 %671
  %v674 = vmul.f32 %v652, %v672
  %vm675 = vcmp.gt.s32.totalorder %v295, 1
  %v676 = vsel %vm675, 1, 0
  %677 = vset.pattern.permute.xlu0 0
  %678 = vperm.xlu0 %677, %v676
  %v679 = vpop.permute.xlu0 %678
  %vm680 = vcmp.eq.s32.totalorder %v679, 1
  %681 = vrot.lane.b32.xlu0 %v567, 48
  %v682 = vpop.permute.xlu0 %681
  %v684 = vsel %vm680, %v674, %v682
  %686 = vrot.lane.b32.xlu0 %v684, 80
  %v687 = vpop.permute.xlu0 %686
  %689 = vst.msk [vmem:[#allocation6] sm:$0x3] %vm290, %v687
  %v690 = vsel %vm680, %v668, %v656
  %692 = vrot.lane.b32.xlu0 %v690, 112
  %v693 = vpop.permute.xlu0 %692
  %695 = vst.msk [vmem:[#allocation7] sm:$0x3] %vm290, %v693
  %v696 = vsel %vm680, %v674, 0.0
  %698 = vrot.lane.b32.xlu0 %v696, 80
  %v699 = vpop.permute.xlu0 %698
  %s701 = scalar_lea.vmem [#allocation4], 2
  %702 = vst.msk [vmem:[%s701] sm:$0x3] %vm290, %v699
  %v703 = vld [vmem:[#allocation8] sm:$0x3]
  %v704 = vld [vmem:[#allocation9] sm:$0x3]
  %s705 = scalar_lea.vmem [#allocation3], 4
  %v706 = vld [vmem:[%s705] sm:$0x3]
  %v707 = vld [vmem:[%s7] sm:$0xff]
  %v708 = vld [vmem:[%s7 + $0x8] sm:$0xff]
  %v710 = vsel %vm301, %v703, 0
  %712 = vmatprep.subr.mxu0 0.0
  %713 = vmatpush1.msra.mxu0 0.0
  %714 = vmatprep.subr.mxu0 0.0
  %715 = vmatpush1.msra.mxu0 0.0
  %716 = vmatprep.subr.mxu0 0.0
  %717 = vmatpush1.msra.mxu0 0.0
  %718 = vmatprep.subr.mxu0 0.0
  %719 = vmatpush1.msra.mxu0 0.0
  %720 = vmatprep.subr.mxu0 0.0
  %721 = vmatpush1.msra.mxu0 0.0
  %722 = vmatprep.subr.mxu0 0.0
  %723 = vmatpush1.msra.mxu0 0.0
  %724 = vmatprep.subr.mxu0 0.0
  %725 = vmatpush1.msra.mxu0 0.0
  %726 = vmatprep.subr.mxu0 0.0
  %727 = vmatpush1.msra.mxu0 0.0
  %728 = vmatprep.subr.mxu0 0.0
  %729 = vmatpush1.msra.mxu0 0.0
  %730 = vmatprep.subr.mxu0 0.0
  %731 = vmatpush1.msra.mxu0 0.0
  %732 = vmatprep.subr.mxu0 0.0
  %733 = vmatpush1.msra.mxu0 0.0
  %734 = vmatprep.subr.mxu0 0.0
  %735 = vmatpush1.msra.mxu0 0.0
  %736 = vmatprep.subr.mxu0 0.0
  %737 = vmatpush1.msra.mxu0 0.0
  %738 = vmatprep.subr.mxu0 0.0
  %739 = vmatpush1.msra.mxu0 0.0
  %740 = vmatprep.subr.mxu0 0.0
  %741 = vmatpush1.msra.mxu0 %v708
  %742 = vmatprep.subr.mxu0 0.0
  %743 = vmatpush1.msra.mxu0 %v707
  %744 = vmatprep.subr.mxu0 0.0
  %745 = vmatpush2.msra.mxu0 0.0
  %746 = vmatprep.subr.mxu0 0.0
  %747 = vmatpush2.msra.mxu0 0.0
  %748 = vmatprep.subr.mxu0 0.0
  %749 = vmatpush2.msra.mxu0 0.0
  %750 = vmatprep.subr.mxu0 0.0
  %751 = vmatpush2.msra.mxu0 0.0
  %752 = vmatprep.subr.mxu0 0.0
  %753 = vmatpush2.msra.mxu0 0.0
  %754 = vmatprep.subr.mxu0 0.0
  %755 = vmatpush2.msra.mxu0 0.0
  %756 = vmatprep.subr.mxu0 0.0
  %757 = vmatpush2.msra.mxu0 0.0
  %758 = vmatprep.subr.mxu0 0.0
  %759 = vmatpush2.msra.mxu0 0.0
  %760 = vmatprep.subr.mxu0 0.0
  %761 = vmatpush2.msra.mxu0 0.0
  %762 = vmatprep.subr.mxu0 0.0
  %763 = vmatpush2.msra.mxu0 0.0
  %764 = vmatprep.subr.mxu0 0.0
  %765 = vmatpush2.msra.mxu0 0.0
  %766 = vmatprep.subr.mxu0 0.0
  %767 = vmatpush2.msra.mxu0 0.0
  %768 = vmatprep.subr.mxu0 0.0
  %769 = vmatpush2.msra.mxu0 0.0
  %770 = vmatprep.subr.mxu0 0.0
  %771 = vmatpush2.msra.mxu0 0.0
  %772 = vmatprep.subr.mxu0 0.0
  %773 = vmatpush2.msra.mxu0 0.0
  %774 = vmatprep.subr.mxu0 0.0
  %775 = vmatpush2.msra.mxu0 0.0
  %776 = vmatprep.mubr.f32.mxu0 0.0
  %777 = vmatmul.mubr.f32.gmra.mxu0 %v710
  %v778 = vpop.f32.mrf.mxu0
  %v779 = vadd.f32 0.0, %v778
  %v780 = vpop.f32.mrf.mxu0
  %781 = vdwg.mxu0
  %v782 = vadd.f32 %v706, %v779
  %v783 = vxor.u32 %v782, 2147483648
  %v784 = vmul.f32 %v783, 1.442695
  %v785 = vpow.pop %v784
  %v786 = vadd.f32 %v785, 1.0
  %v787 = vrcp.pop %v786
  %v788 = vmul.f32 1.0, %v787
  %v789 = vtanh.pop %v782
  %791 = vrot.lane.b32.xlu0 %v704, 16
  %v792 = vpop.permute.xlu0 %791
  %v794 = vmul.f32 %v788, %v792
  %796 = vrot.lane.b32.xlu0 %v789, 96
  %v797 = vpop.permute.xlu0 %796
  %v799 = vmul.f32 %v788, %v797
  %801 = vrot.lane.b32.xlu0 %v799, 16
  %v802 = vpop.permute.xlu0 %801
  %v804 = vadd.f32 %v794, %v802
  %v805 = vtanh.pop %v804
  %807 = vrot.lane.b32.xlu0 %v805, 32
  %v808 = vpop.permute.xlu0 %807
  %v810 = vmul.f32 %v788, %v808
  %vm811 = vcmp.gt.s32.totalorder %v295, 2
  %v812 = vsel %vm811, 1, 0
  %813 = vset.pattern.permute.xlu0 0
  %814 = vperm.xlu0 %813, %v812
  %v815 = vpop.permute.xlu0 %814
  %vm816 = vcmp.eq.s32.totalorder %v815, 1
  %817 = vrot.lane.b32.xlu0 %v703, 48
  %v818 = vpop.permute.xlu0 %817
  %v820 = vsel %vm816, %v810, %v818
  %822 = vrot.lane.b32.xlu0 %v820, 80
  %v823 = vpop.permute.xlu0 %822
  %825 = vst.msk [vmem:[#allocation8] sm:$0x3] %vm290, %v823
  %v826 = vsel %vm816, %v804, %v792
  %828 = vrot.lane.b32.xlu0 %v826, 112
  %v829 = vpop.permute.xlu0 %828
  %831 = vst.msk [vmem:[#allocation9] sm:$0x3] %vm290, %v829
  %v832 = vsel %vm816, %v810, 0.0
  %834 = vrot.lane.b32.xlu0 %v832, 80
  %v835 = vpop.permute.xlu0 %834
  %s837 = scalar_lea.vmem [#allocation5], 4
  %838 = vst.msk [vmem:[%s837] sm:$0x3] %vm290, %v835
  %v839 = vld [vmem:[#allocation6] sm:$0x3]
  %v840 = vld [vmem:[#allocation7] sm:$0x3]
  %s841 = scalar_lea.vmem [#allocation2], 4
  %v842 = vld [vmem:[%s841] sm:$0x3]
  %v843 = vld [vmem:[%s4] sm:$0xff]
  %v844 = vld [vmem:[%s4 + $0x8] sm:$0xff]
  %v846 = vsel %vm301, %v839, 0
  %848 = vmatprep.subr.mxu0 0.0
  %849 = vmatpush1.msra.mxu0 0.0
  %850 = vmatprep.subr.mxu0 0.0
  %851 = vmatpush1.msra.mxu0 0.0
  %852 = vmatprep.subr.mxu0 0.0
  %853 = vmatpush1.msra.mxu0 0.0
  %854 = vmatprep.subr.mxu0 0.0
  %855 = vmatpush1.msra.mxu0 0.0
  %856 = vmatprep.subr.mxu0 0.0
  %857 = vmatpush1.msra.mxu0 0.0
  %858 = vmatprep.subr.mxu0 0.0
  %859 = vmatpush1.msra.mxu0 0.0
  %860 = vmatprep.subr.mxu0 0.0
  %861 = vmatpush1.msra.mxu0 0.0
  %862 = vmatprep.subr.mxu0 0.0
  %863 = vmatpush1.msra.mxu0 0.0
  %864 = vmatprep.subr.mxu0 0.0
  %865 = vmatpush1.msra.mxu0 0.0
  %866 = vmatprep.subr.mxu0 0.0
  %867 = vmatpush1.msra.mxu0 0.0
  %868 = vmatprep.subr.mxu0 0.0
  %869 = vmatpush1.msra.mxu0 0.0
  %870 = vmatprep.subr.mxu0 0.0
  %871 = vmatpush1.msra.mxu0 0.0
  %872 = vmatprep.subr.mxu0 0.0
  %873 = vmatpush1.msra.mxu0 0.0
  %874 = vmatprep.subr.mxu0 0.0
  %875 = vmatpush1.msra.mxu0 0.0
  %876 = vmatprep.subr.mxu0 0.0
  %877 = vmatpush1.msra.mxu0 %v844
  %878 = vmatprep.subr.mxu0 0.0
  %879 = vmatpush1.msra.mxu0 %v843
  %880 = vmatprep.subr.mxu0 0.0
  %881 = vmatpush2.msra.mxu0 0.0
  %882 = vmatprep.subr.mxu0 0.0
  %883 = vmatpush2.msra.mxu0 0.0
  %884 = vmatprep.subr.mxu0 0.0
  %885 = vmatpush2.msra.mxu0 0.0
  %886 = vmatprep.subr.mxu0 0.0
  %887 = vmatpush2.msra.mxu0 0.0
  %888 = vmatprep.subr.mxu0 0.0
  %889 = vmatpush2.msra.mxu0 0.0
  %890 = vmatprep.subr.mxu0 0.0
  %891 = vmatpush2.msra.mxu0 0.0
  %892 = vmatprep.subr.mxu0 0.0
  %893 = vmatpush2.msra.mxu0 0.0
  %894 = vmatprep.subr.mxu0 0.0
  %895 = vmatpush2.msra.mxu0 0.0
  %896 = vmatprep.subr.mxu0 0.0
  %897 = vmatpush2.msra.mxu0 0.0
  %898 = vmatprep.subr.mxu0 0.0
  %899 = vmatpush2.msra.mxu0 0.0
  %900 = vmatprep.subr.mxu0 0.0
  %901 = vmatpush2.msra.mxu0 0.0
  %902 = vmatprep.subr.mxu0 0.0
  %903 = vmatpush2.msra.mxu0 0.0
  %904 = vmatprep.subr.mxu0 0.0
  %905 = vmatpush2.msra.mxu0 0.0
  %906 = vmatprep.subr.mxu0 0.0
  %907 = vmatpush2.msra.mxu0 0.0
  %908 = vmatprep.subr.mxu0 0.0
  %909 = vmatpush2.msra.mxu0 0.0
  %910 = vmatprep.subr.mxu0 0.0
  %911 = vmatpush2.msra.mxu0 0.0
  %912 = vmatprep.mubr.f32.mxu0 0.0
  %913 = vmatmul.mubr.f32.gmra.mxu0 %v846
  %v914 = vpop.f32.mrf.mxu0
  %v915 = vadd.f32 0.0, %v914
  %v916 = vpop.f32.mrf.mxu0
  %917 = vdwg.mxu0
  %v918 = vadd.f32 %v842, %v915
  %v919 = vxor.u32 %v918, 2147483648
  %v920 = vmul.f32 %v919, 1.442695
  %v921 = vpow.pop %v920
  %v922 = vadd.f32 %v921, 1.0
  %v923 = vrcp.pop %v922
  %v924 = vmul.f32 1.0, %v923
  %v925 = vtanh.pop %v918
  %927 = vrot.lane.b32.xlu0 %v840, 16
  %v928 = vpop.permute.xlu0 %927
  %v930 = vmul.f32 %v924, %v928
  %932 = vrot.lane.b32.xlu0 %v925, 96
  %v933 = vpop.permute.xlu0 %932
  %v935 = vmul.f32 %v924, %v933
  %937 = vrot.lane.b32.xlu0 %v935, 16
  %v938 = vpop.permute.xlu0 %937
  %v940 = vadd.f32 %v930, %v938
  %v941 = vtanh.pop %v940
  %943 = vrot.lane.b32.xlu0 %v941, 32
  %v944 = vpop.permute.xlu0 %943
  %v946 = vmul.f32 %v924, %v944
  %947 = vrot.lane.b32.xlu0 %v839, 48
  %v948 = vpop.permute.xlu0 %947
  %v950 = vsel %vm816, %v946, %v948
  %952 = vrot.lane.b32.xlu0 %v950, 80
  %v953 = vpop.permute.xlu0 %952
  %955 = vst.msk [vmem:[#allocation6] sm:$0x3] %vm290, %v953
  %v956 = vsel %vm816, %v940, %v928
  %958 = vrot.lane.b32.xlu0 %v956, 112
  %v959 = vpop.permute.xlu0 %958
  %961 = vst.msk [vmem:[#allocation7] sm:$0x3] %vm290, %v959
  %v962 = vsel %vm816, %v946, 0.0
  %964 = vrot.lane.b32.xlu0 %v962, 80
  %v965 = vpop.permute.xlu0 %964
  %s967 = scalar_lea.vmem [#allocation4], 4
  %968 = vst.msk [vmem:[%s967] sm:$0x3] %vm290, %v965
  %v969 = vld [vmem:[#allocation8] sm:$0x3]
  %v970 = vld [vmem:[#allocation9] sm:$0x3]
  %s971 = scalar_lea.vmem [#allocation3], 2
  %v972 = vld [vmem:[%s971] sm:$0x3]
  %v973 = vld [vmem:[%s7] sm:$0xff]
  %v974 = vld [vmem:[%s7 + $0x8] sm:$0xff]
  %v976 = vsel %vm301, %v969, 0
  %978 = vmatprep.subr.mxu0 0.0
  %979 = vmatpush1.msra.mxu0 0.0
  %980 = vmatprep.subr.mxu0 0.0
  %981 = vmatpush1.msra.mxu0 0.0
  %982 = vmatprep.subr.mxu0 0.0
  %983 = vmatpush1.msra.mxu0 0.0
  %984 = vmatprep.subr.mxu0 0.0
  %985 = vmatpush1.msra.mxu0 0.0
  %986 = vmatprep.subr.mxu0 0.0
  %987 = vmatpush1.msra.mxu0 0.0
  %988 = vmatprep.subr.mxu0 0.0
  %989 = vmatpush1.msra.mxu0 0.0
  %990 = vmatprep.subr.mxu0 0.0
  %991 = vmatpush1.msra.mxu0 0.0
  %992 = vmatprep.subr.mxu0 0.0
  %993 = vmatpush1.msra.mxu0 0.0
  %994 = vmatprep.subr.mxu0 0.0
  %995 = vmatpush1.msra.mxu0 0.0
  %996 = vmatprep.subr.mxu0 0.0
  %997 = vmatpush1.msra.mxu0 0.0
  %998 = vmatprep.subr.mxu0 0.0
  %999 = vmatpush1.msra.mxu0 0.0
  %1000 = vmatprep.subr.mxu0 0.0
  %1001 = vmatpush1.msra.mxu0 0.0
  %1002 = vmatprep.subr.mxu0 0.0
  %1003 = vmatpush1.msra.mxu0 0.0
  %1004 = vmatprep.subr.mxu0 0.0
  %1005 = vmatpush1.msra.mxu0 0.0
  %1006 = vmatprep.subr.mxu0 0.0
  %1007 = vmatpush1.msra.mxu0 %v974
  %1008 = vmatprep.subr.mxu0 0.0
  %1009 = vmatpush1.msra.mxu0 %v973
  %1010 = vmatprep.subr.mxu0 0.0
  %1011 = vmatpush2.msra.mxu0 0.0
  %1012 = vmatprep.subr.mxu0 0.0
  %1013 = vmatpush2.msra.mxu0 0.0
  %1014 = vmatprep.subr.mxu0 0.0
  %1015 = vmatpush2.msra.mxu0 0.0
  %1016 = vmatprep.subr.mxu0 0.0
  %1017 = vmatpush2.msra.mxu0 0.0
  %1018 = vmatprep.subr.mxu0 0.0
  %1019 = vmatpush2.msra.mxu0 0.0
  %1020 = vmatprep.subr.mxu0 0.0
  %1021 = vmatpush2.msra.mxu0 0.0
  %1022 = vmatprep.subr.mxu0 0.0
  %1023 = vmatpush2.msra.mxu0 0.0
  %1024 = vmatprep.subr.mxu0 0.0
  %1025 = vmatpush2.msra.mxu0 0.0
  %1026 = vmatprep.subr.mxu0 0.0
  %1027 = vmatpush2.msra.mxu0 0.0
  %1028 = vmatprep.subr.mxu0 0.0
  %1029 = vmatpush2.msra.mxu0 0.0
  %1030 = vmatprep.subr.mxu0 0.0
  %1031 = vmatpush2.msra.mxu0 0.0
  %1032 = vmatprep.subr.mxu0 0.0
  %1033 = vmatpush2.msra.mxu0 0.0
  %1034 = vmatprep.subr.mxu0 0.0
  %1035 = vmatpush2.msra.mxu0 0.0
  %1036 = vmatprep.subr.mxu0 0.0
  %1037 = vmatpush2.msra.mxu0 0.0
  %1038 = vmatprep.subr.mxu0 0.0
  %1039 = vmatpush2.msra.mxu0 0.0
  %1040 = vmatprep.subr.mxu0 0.0
  %1041 = vmatpush2.msra.mxu0 0.0
  %1042 = vmatprep.mubr.f32.mxu0 0.0
  %1043 = vmatmul.mubr.f32.gmra.mxu0 %v976
  %v1044 = vpop.f32.mrf.mxu0
  %v1045 = vadd.f32 0.0, %v1044
  %v1046 = vpop.f32.mrf.mxu0
  %1047 = vdwg.mxu0
  %v1048 = vadd.f32 %v972, %v1045
  %v1049 = vxor.u32 %v1048, 2147483648
  %v1050 = vmul.f32 %v1049, 1.442695
  %v1051 = vpow.pop %v1050
  %v1052 = vadd.f32 %v1051, 1.0
  %v1053 = vrcp.pop %v1052
  %v1054 = vmul.f32 1.0, %v1053
  %v1055 = vtanh.pop %v1048
  %1057 = vrot.lane.b32.xlu0 %v970, 16
  %v1058 = vpop.permute.xlu0 %1057
  %v1060 = vmul.f32 %v1054, %v1058
  %1062 = vrot.lane.b32.xlu0 %v1055, 96
  %v1063 = vpop.permute.xlu0 %1062
  %v1065 = vmul.f32 %v1054, %v1063
  %1067 = vrot.lane.b32.xlu0 %v1065, 16
  %v1068 = vpop.permute.xlu0 %1067
  %v1070 = vadd.f32 %v1060, %v1068
  %v1071 = vtanh.pop %v1070
  %1073 = vrot.lane.b32.xlu0 %v1071, 32
  %v1074 = vpop.permute.xlu0 %1073
  %v1076 = vmul.f32 %v1054, %v1074
  %1077 = vrot.lane.b32.xlu0 %v969, 48
  %v1078 = vpop.permute.xlu0 %1077
  %v1080 = vsel %vm680, %v1076, %v1078
  %1082 = vrot.lane.b32.xlu0 %v1080, 80
  %v1083 = vpop.permute.xlu0 %1082
  %1085 = vst.msk [vmem:[#allocation8] sm:$0x3] %vm290, %v1083
  %v1086 = vsel %vm680, %v1070, %v1058
  %1088 = vrot.lane.b32.xlu0 %v1086, 112
  %v1089 = vpop.permute.xlu0 %1088
  %1091 = vst.msk [vmem:[#allocation9] sm:$0x3] %vm290, %v1089
  %v1092 = vsel %vm680, %v1076, 0.0
  %1094 = vrot.lane.b32.xlu0 %v1092, 80
  %v1095 = vpop.permute.xlu0 %1094
  %s1097 = scalar_lea.vmem [#allocation5], 2
  %1098 = vst.msk [vmem:[%s1097] sm:$0x3] %vm290, %v1095
  %v1099 = vld [vmem:[#allocation6] sm:$0x3]
  %v1100 = vld [vmem:[#allocation7] sm:$0x3]
  %s1101 = scalar_lea.vmem [#allocation2], 6
  %v1102 = vld [vmem:[%s1101] sm:$0x3]
  %v1103 = vld [vmem:[%s4] sm:$0xff]
  %v1104 = vld [vmem:[%s4 + $0x8] sm:$0xff]
  %v1106 = vsel %vm301, %v1099, 0
  %1108 = vmatprep.subr.mxu0 0.0
  %1109 = vmatpush1.msra.mxu0 0.0
  %1110 = vmatprep.subr.mxu0 0.0
  %1111 = vmatpush1.msra.mxu0 0.0
  %1112 = vmatprep.subr.mxu0 0.0
  %1113 = vmatpush1.msra.mxu0 0.0
  %1114 = vmatprep.subr.mxu0 0.0
  %1115 = vmatpush1.msra.mxu0 0.0
  %1116 = vmatprep.subr.mxu0 0.0
  %1117 = vmatpush1.msra.mxu0 0.0
  %1118 = vmatprep.subr.mxu0 0.0
  %1119 = vmatpush1.msra.mxu0 0.0
  %1120 = vmatprep.subr.mxu0 0.0
  %1121 = vmatpush1.msra.mxu0 0.0
  %1122 = vmatprep.subr.mxu0 0.0
  %1123 = vmatpush1.msra.mxu0 0.0
  %1124 = vmatprep.subr.mxu0 0.0
  %1125 = vmatpush1.msra.mxu0 0.0
  %1126 = vmatprep.subr.mxu0 0.0
  %1127 = vmatpush1.msra.mxu0 0.0
  %1128 = vmatprep.subr.mxu0 0.0
  %1129 = vmatpush1.msra.mxu0 0.0
  %1130 = vmatprep.subr.mxu0 0.0
  %1131 = vmatpush1.msra.mxu0 0.0
  %1132 = vmatprep.subr.mxu0 0.0
  %1133 = vmatpush1.msra.mxu0 0.0
  %1134 = vmatprep.subr.mxu0 0.0
  %1135 = vmatpush1.msra.mxu0 0.0
  %1136 = vmatprep.subr.mxu0 0.0
  %1137 = vmatpush1.msra.mxu0 %v1104
  %1138 = vmatprep.subr.mxu0 0.0
  %1139 = vmatpush1.msra.mxu0 %v1103
  %1140 = vmatprep.subr.mxu0 0.0
  %1141 = vmatpush2.msra.mxu0 0.0
  %1142 = vmatprep.subr.mxu0 0.0
  %1143 = vmatpush2.msra.mxu0 0.0
  %1144 = vmatprep.subr.mxu0 0.0
  %1145 = vmatpush2.msra.mxu0 0.0
  %1146 = vmatprep.subr.mxu0 0.0
  %1147 = vmatpush2.msra.mxu0 0.0
  %1148 = vmatprep.subr.mxu0 0.0
  %1149 = vmatpush2.msra.mxu0 0.0
  %1150 = vmatprep.subr.mxu0 0.0
  %1151 = vmatpush2.msra.mxu0 0.0
  %1152 = vmatprep.subr.mxu0 0.0
  %1153 = vmatpush2.msra.mxu0 0.0
  %1154 = vmatprep.subr.mxu0 0.0
  %1155 = vmatpush2.msra.mxu0 0.0
  %1156 = vmatprep.subr.mxu0 0.0
  %1157 = vmatpush2.msra.mxu0 0.0
  %1158 = vmatprep.subr.mxu0 0.0
  %1159 = vmatpush2.msra.mxu0 0.0
  %1160 = vmatprep.subr.mxu0 0.0
  %1161 = vmatpush2.msra.mxu0 0.0
  %1162 = vmatprep.subr.mxu0 0.0
  %1163 = vmatpush2.msra.mxu0 0.0
  %1164 = vmatprep.subr.mxu0 0.0
  %1165 = vmatpush2.msra.mxu0 0.0
  %1166 = vmatprep.subr.mxu0 0.0
  %1167 = vmatpush2.msra.mxu0 0.0
  %1168 = vmatprep.subr.mxu0 0.0
  %1169 = vmatpush2.msra.mxu0 0.0
  %1170 = vmatprep.subr.mxu0 0.0
  %1171 = vmatpush2.msra.mxu0 0.0
  %1172 = vmatprep.mubr.f32.mxu0 0.0
  %1173 = vmatmul.mubr.f32.gmra.mxu0 %v1106
  %v1174 = vpop.f32.mrf.mxu0
  %v1175 = vadd.f32 0.0, %v1174
  %v1176 = vpop.f32.mrf.mxu0
  %1177 = vdwg.mxu0
  %v1178 = vadd.f32 %v1102, %v1175
  %v1179 = vxor.u32 %v1178, 2147483648
  %v1180 = vmul.f32 %v1179, 1.442695
  %v1181 = vpow.pop %v1180
  %v1182 = vadd.f32 %v1181, 1.0
  %v1183 = vrcp.pop %v1182
  %v1184 = vmul.f32 1.0, %v1183
  %v1185 = vtanh.pop %v1178
  %1187 = vrot.lane.b32.xlu0 %v1100, 16
  %v1188 = vpop.permute.xlu0 %1187
  %v1190 = vmul.f32 %v1184, %v1188
  %1192 = vrot.lane.b32.xlu0 %v1185, 96
  %v1193 = vpop.permute.xlu0 %1192
  %v1195 = vmul.f32 %v1184, %v1193
  %1197 = vrot.lane.b32.xlu0 %v1195, 16
  %v1198 = vpop.permute.xlu0 %1197
  %v1200 = vadd.f32 %v1190, %v1198
  %v1201 = vtanh.pop %v1200
  %1203 = vrot.lane.b32.xlu0 %v1201, 32
  %v1204 = vpop.permute.xlu0 %1203
  %v1206 = vmul.f32 %v1184, %v1204
  %1207 = vrot.lane.b32.xlu0 %v1099, 48
  %v1208 = vpop.permute.xlu0 %1207
  %v1210 = vsel %vm544, %v1206, %v1208
  %1212 = vrot.lane.b32.xlu0 %v1210, 80
  %v1213 = vpop.permute.xlu0 %1212
  %1215 = vst.msk [vmem:[#allocation6] sm:$0x3] %vm290, %v1213
  %v1216 = vsel %vm544, %v1200, %v1188
  %1218 = vrot.lane.b32.xlu0 %v1216, 112
  %v1219 = vpop.permute.xlu0 %1218
  %1221 = vst.msk [vmem:[#allocation7] sm:$0x3] %vm290, %v1219
  %v1222 = vsel %vm544, %v1206, 0.0
  %1224 = vrot.lane.b32.xlu0 %v1222, 80
  %v1225 = vpop.permute.xlu0 %1224
  %s1227 = scalar_lea.vmem [#allocation4], 6
  %1228 = vst.msk [vmem:[%s1227] sm:$0x3] %vm290, %v1225
  %v1229 = vld [vmem:[#allocation8] sm:$0x3]
  %v1230 = vld [vmem:[#allocation9] sm:$0x3]
  %v1231 = vld [vmem:[#allocation3] sm:$0x3]
  %v1232 = vld [vmem:[%s7] sm:$0xff]
  %v1233 = vld [vmem:[%s7 + $0x8] sm:$0xff]
  %v1235 = vsel %vm301, %v1229, 0
  %1237 = vmatprep.subr.mxu0 0.0
  %1238 = vmatpush1.msra.mxu0 0.0
  %1239 = vmatprep.subr.mxu0 0.0
  %1240 = vmatpush1.msra.mxu0 0.0
  %1241 = vmatprep.subr.mxu0 0.0
  %1242 = vmatpush1.msra.mxu0 0.0
  %1243 = vmatprep.subr.mxu0 0.0
  %1244 = vmatpush1.msra.mxu0 0.0
  %1245 = vmatprep.subr.mxu0 0.0
  %1246 = vmatpush1.msra.mxu0 0.0
  %1247 = vmatprep.subr.mxu0 0.0
  %1248 = vmatpush1.msra.mxu0 0.0
  %1249 = vmatprep.subr.mxu0 0.0
  %1250 = vmatpush1.msra.mxu0 0.0
  %1251 = vmatprep.subr.mxu0 0.0
  %1252 = vmatpush1.msra.mxu0 0.0
  %1253 = vmatprep.subr.mxu0 0.0
  %1254 = vmatpush1.msra.mxu0 0.0
  %1255 = vmatprep.subr.mxu0 0.0
  %1256 = vmatpush1.msra.mxu0 0.0
  %1257 = vmatprep.subr.mxu0 0.0
  %1258 = vmatpush1.msra.mxu0 0.0
  %1259 = vmatprep.subr.mxu0 0.0
  %1260 = vmatpush1.msra.mxu0 0.0
  %1261 = vmatprep.subr.mxu0 0.0
  %1262 = vmatpush1.msra.mxu0 0.0
  %1263 = vmatprep.subr.mxu0 0.0
  %1264 = vmatpush1.msra.mxu0 0.0
  %1265 = vmatprep.subr.mxu0 0.0
  %1266 = vmatpush1.msra.mxu0 %v1233
  %1267 = vmatprep.subr.mxu0 0.0
  %1268 = vmatpush1.msra.mxu0 %v1232
  %1269 = vmatprep.subr.mxu0 0.0
  %1270 = vmatpush2.msra.mxu0 0.0
  %1271 = vmatprep.subr.mxu0 0.0
  %1272 = vmatpush2.msra.mxu0 0.0
  %1273 = vmatprep.subr.mxu0 0.0
  %1274 = vmatpush2.msra.mxu0 0.0
  %1275 = vmatprep.subr.mxu0 0.0
  %1276 = vmatpush2.msra.mxu0 0.0
  %1277 = vmatprep.subr.mxu0 0.0
  %1278 = vmatpush2.msra.mxu0 0.0
  %1279 = vmatprep.subr.mxu0 0.0
  %1280 = vmatpush2.msra.mxu0 0.0
  %1281 = vmatprep.subr.mxu0 0.0
  %1282 = vmatpush2.msra.mxu0 0.0
  %1283 = vmatprep.subr.mxu0 0.0
  %1284 = vmatpush2.msra.mxu0 0.0
  %1285 = vmatprep.subr.mxu0 0.0
  %1286 = vmatpush2.msra.mxu0 0.0
  %1287 = vmatprep.subr.mxu0 0.0
  %1288 = vmatpush2.msra.mxu0 0.0
  %1289 = vmatprep.subr.mxu0 0.0
  %1290 = vmatpush2.msra.mxu0 0.0
  %1291 = vmatprep.subr.mxu0 0.0
  %1292 = vmatpush2.msra.mxu0 0.0
  %1293 = vmatprep.subr.mxu0 0.0
  %1294 = vmatpush2.msra.mxu0 0.0
  %1295 = vmatprep.subr.mxu0 0.0
  %1296 = vmatpush2.msra.mxu0 0.0
  %1297 = vmatprep.subr.mxu0 0.0
  %1298 = vmatpush2.msra.mxu0 0.0
  %1299 = vmatprep.subr.mxu0 0.0
  %1300 = vmatpush2.msra.mxu0 0.0
  %1301 = vmatprep.mubr.f32.mxu0 0.0
  %1302 = vmatmul.mubr.f32.gmra.mxu0 %v1235
  %v1303 = vpop.f32.mrf.mxu0
  %v1304 = vadd.f32 0.0, %v1303
  %v1305 = vpop.f32.mrf.mxu0
  %1306 = vdwg.mxu0
  %v1307 = vadd.f32 %v1231, %v1304
  %v1308 = vxor.u32 %v1307, 2147483648
  %v1309 = vmul.f32 %v1308, 1.442695
  %v1310 = vpow.pop %v1309
  %v1311 = vadd.f32 %v1310, 1.0
  %v1312 = vrcp.pop %v1311
  %v1313 = vmul.f32 1.0, %v1312
  %v1314 = vtanh.pop %v1307
  %1316 = vrot.lane.b32.xlu0 %v1230, 16
  %v1317 = vpop.permute.xlu0 %1316
  %v1319 = vmul.f32 %v1313, %v1317
  %1321 = vrot.lane.b32.xlu0 %v1314, 96
  %v1322 = vpop.permute.xlu0 %1321
  %v1324 = vmul.f32 %v1313, %v1322
  %1326 = vrot.lane.b32.xlu0 %v1324, 16
  %v1327 = vpop.permute.xlu0 %1326
  %v1329 = vadd.f32 %v1319, %v1327
  %v1330 = vtanh.pop %v1329
  %1332 = vrot.lane.b32.xlu0 %v1330, 32
  %v1333 = vpop.permute.xlu0 %1332
  %v1335 = vmul.f32 %v1313, %v1333
  %1336 = vrot.lane.b32.xlu0 %v1229, 48
  %v1337 = vpop.permute.xlu0 %1336
  %v1339 = vsel %vm409, %v1335, %v1337
  %1341 = vrot.lane.b32.xlu0 %v1339, 80
  %v1342 = vpop.permute.xlu0 %1341
  %1344 = vst.msk [vmem:[#allocation8] sm:$0x3] %vm290, %v1342
  %v1345 = vsel %vm409, %v1329, %v1317
  %1347 = vrot.lane.b32.xlu0 %v1345, 112
  %v1348 = vpop.permute.xlu0 %1347
  %1350 = vst.msk [vmem:[#allocation9] sm:$0x3] %vm290, %v1348
  %v1351 = vsel %vm409, %v1335, 0.0
  %1353 = vrot.lane.b32.xlu0 %v1351, 80
  %v1354 = vpop.permute.xlu0 %1353
  %1356 = vst.msk [vmem:[#allocation5] sm:$0x3] %vm290, %v1354
  %v1357 = vld [vmem:[#allocation4] sm:$0x3]
  %v1358 = vld [vmem:[#allocation4 + $0x2] sm:$0x3]
  %v1359 = vld [vmem:[#allocation4 + $0x4] sm:$0x3]
  %v1360 = vld [vmem:[#allocation4 + $0x6] sm:$0x3]
  %v1361 = vld [vmem:[#allocation5] sm:$0x3]
  %v1362 = vld [vmem:[#allocation5 + $0x2] sm:$0x3]
  %v1363 = vld [vmem:[#allocation5 + $0x4] sm:$0x3]
  %v1364 = vld [vmem:[#allocation5 + $0x6] sm:$0x3]
  %1369 = vrot.lane.b32.xlu0 %v1361, 16
  %v1370 = vpop.permute.xlu0 %1369
  %1371 = vrot.lane.b32.xlu0 %v1362, 16
  %v1372 = vpop.permute.xlu0 %1371
  %1373 = vrot.lane.b32.xlu0 %v1363, 16
  %v1374 = vpop.permute.xlu0 %1373
  %1375 = vrot.lane.b32.xlu0 %v1364, 16
  %v1376 = vpop.permute.xlu0 %1375
  %v1381 = vsel %vm301, %v1357, %v1370
  %v1382 = vsel %vm301, %v1358, %v1372
  %v1383 = vsel %vm301, %v1359, %v1374
  %v1384 = vsel %vm301, %v1360, %v1376
  %v1385 = vld [vmem:[%s9] sm:$0xff]
  %v1386 = vld [vmem:[%s9 + $0x8] sm:$0xff]
  %v1387 = vld [vmem:[%s9 + $0x10] sm:$0xff]
  %v1388 = vld [vmem:[%s9 + $0x18] sm:$0xff]
  %v1389 = vld [vmem:[%s10] sm:$0x1]
  %v1391 = vlaneseq
  %v1392 = vshrl.u32 %v1391, 7
  %v1393 = vsub.s32 0, %v1392
  %v1394 = vrot.slane %v1389, %v1393
  %v1400 = vcombine.low %v1381, %v1382
  %v1401 = vcombine.low %v1383, %v1384
  %v1403 = vunpack.c.l.s4 1983009808
  %v1404 = vunpack.c.0.s8 %v1403
  %v1405 = vlaneseq
  %v1406 = vshrl.u32 %v1405, 7
  %v1407 = vsub.s32 %v1404, %v1406
  %v1408 = vrot.slane %v1400, %v1407
  %v1410 = vunpack.c.l.s4 1983009808
  %v1411 = vunpack.c.0.s8 %v1410
  %v1412 = vlaneseq
  %v1413 = vshrl.u32 %v1412, 7
  %v1414 = vsub.s32 %v1411, %v1413
  %v1415 = vrot.slane %v1401, %v1414
  %v1416 = vcombine.low %v1408, %v1415
  %v1417 = vsel %vm83, %v1416, 0
  %1419 = vmatprep.subr.mxu0 0.0
  %1420 = vmatpush1.msra.mxu0 0.0
  %1421 = vmatprep.subr.mxu0 0.0
  %1422 = vmatpush1.msra.mxu0 0.0
  %1423 = vmatprep.subr.mxu0 0.0
  %1424 = vmatpush1.msra.mxu0 0.0
  %1425 = vmatprep.subr.mxu0 0.0
  %1426 = vmatpush1.msra.mxu0 0.0
  %1427 = vmatprep.subr.mxu0 0.0
  %1428 = vmatpush1.msra.mxu0 0.0
  %1429 = vmatprep.subr.mxu0 0.0
  %1430 = vmatpush1.msra.mxu0 0.0
  %1431 = vmatprep.subr.mxu0 0.0
  %1432 = vmatpush1.msra.mxu0 0.0
  %1433 = vmatprep.subr.mxu0 0.0
  %1434 = vmatpush1.msra.mxu0 0.0
  %1435 = vmatprep.subr.mxu0 0.0
  %1436 = vmatpush1.msra.mxu0 0.0
  %1437 = vmatprep.subr.mxu0 0.0
  %1438 = vmatpush1.msra.mxu0 0.0
  %1439 = vmatprep.subr.mxu0 0.0
  %1440 = vmatpush1.msra.mxu0 0.0
  %1441 = vmatprep.subr.mxu0 0.0
  %1442 = vmatpush1.msra.mxu0 0.0
  %1443 = vmatprep.subr.mxu0 0.0
  %1444 = vmatpush1.msra.mxu0 %v1388
  %1445 = vmatprep.subr.mxu0 0.0
  %1446 = vmatpush1.msra.mxu0 %v1387
  %1447 = vmatprep.subr.mxu0 0.0
  %1448 = vmatpush1.msra.mxu0 %v1386
  %1449 = vmatprep.subr.mxu0 0.0
  %1450 = vmatpush1.msra.mxu0 %v1385
  %1451 = vmatprep.subr.mxu0 0.0
  %1452 = vmatpush2.msra.mxu0 0.0
  %1453 = vmatprep.subr.mxu0 0.0
  %1454 = vmatpush2.msra.mxu0 0.0
  %1455 = vmatprep.subr.mxu0 0.0
  %1456 = vmatpush2.msra.mxu0 0.0
  %1457 = vmatprep.subr.mxu0 0.0
  %1458 = vmatpush2.msra.mxu0 0.0
  %1459 = vmatprep.subr.mxu0 0.0
  %1460 = vmatpush2.msra.mxu0 0.0
  %1461 = vmatprep.subr.mxu0 0.0
  %1462 = vmatpush2.msra.mxu0 0.0
  %1463 = vmatprep.subr.mxu0 0.0
  %1464 = vmatpush2.msra.mxu0 0.0
  %1465 = vmatprep.subr.mxu0 0.0
  %1466 = vmatpush2.msra.mxu0 0.0
  %1467 = vmatprep.subr.mxu0 0.0
  %1468 = vmatpush2.msra.mxu0 0.0
  %1469 = vmatprep.subr.mxu0 0.0
  %1470 = vmatpush2.msra.mxu0 0.0
  %1471 = vmatprep.subr.mxu0 0.0
  %1472 = vmatpush2.msra.mxu0 0.0
  %1473 = vmatprep.subr.mxu0 0.0
  %1474 = vmatpush2.msra.mxu0 0.0
  %1475 = vmatprep.subr.mxu0 0.0
  %1476 = vmatpush2.msra.mxu0 0.0
  %1477 = vmatprep.subr.mxu0 0.0
  %1478 = vmatpush2.msra.mxu0 0.0
  %1479 = vmatprep.subr.mxu0 0.0
  %1480 = vmatpush2.msra.mxu0 0.0
  %1481 = vmatprep.subr.mxu0 0.0
  %1482 = vmatpush2.msra.mxu0 0.0
  %1483 = vmatprep.mubr.f32.mxu0 0.0
  %1484 = vmatmul.mubr.f32.gmra.mxu0 %v1417
  %v1485 = vpop.f32.mrf.mxu0
  %v1486 = vadd.f32 %v1394, %v1485
  %v1487 = vpop.f32.mrf.mxu0
  %1488 = vdwg.mxu0
  %v1489 = vtanh.pop %v1486
  %v1490 = vld [vmem:[%s11] sm:$0x1]
  %v1492 = vlaneseq
  %v1493 = vshrl.u32 %v1492, 7
  %v1494 = vsub.s32 0, %v1493
  %v1495 = vrot.slane %v1490, %v1494
  %v1497 = vmul.f32 %v1489, %v1495
  %v1498 = vsel %vm301, %v1497, 0.0
  %1499 = vadd.xlane.f32.xlu0 %v1498
  %v1500 = vpop.xlane.xlu0 %1499
  %v1503 = vunpack.c.l.s4 269488144
  %v1504 = vunpack.c.0.s8 %v1503
  %v1505 = vlaneseq
  %v1506 = vshrl.u32 %v1505, 7
  %v1507 = vsub.s32 %v1504, %v1506
  %v1508 = vrot.slane %v1500, %v1507
  %v1510 = vunpack.c.l.s4 842150450
  %v1511 = vunpack.c.0.s8 %v1510
  %v1512 = vlaneseq
  %v1513 = vshrl.u32 %v1512, 7
  %v1514 = vsub.s32 %v1511, %v1513
  %v1515 = vrot.slane %v1500, %v1514
  %v1517 = vunpack.c.l.s4 1414812756
  %v1518 = vunpack.c.0.s8 %v1517
  %v1519 = vlaneseq
  %v1520 = vshrl.u32 %v1519, 7
  %v1521 = vsub.s32 %v1518, %v1520
  %v1522 = vrot.slane %v1500, %v1521
  %v1524 = vunpack.c.l.s4 1987475062
  %v1525 = vunpack.c.0.s8 %v1524
  %v1526 = vlaneseq
  %v1527 = vshrl.u32 %v1526, 7
  %v1528 = vsub.s32 %v1525, %v1527
  %v1529 = vrot.slane %v1500, %v1528
  %v1530 = vlaneseq
  %v1531 = vshrl.u32 %v1530, 7
  %v1532 = vld [vmem:[%s2] sm:$0x1]
  %v1533 = vlaneseq
  %v1534 = vshrl.u32 %v1533, 7
  %v1535 = vsub.s32 0, %v1534
  %v1536 = vrot.slane %v1532, %v1535
  %vm1537 = vcmp.lt.s32.totalorder %v1531, %v1536
  %v1539 = vunpack.c.l.s4 1983009808
  %v1540 = vunpack.c.0.s8 %v1539
  %v1541 = vlaneseq
  %v1542 = vshrl.u32 %v1541, 7
  %v1543 = vsub.s32 %v1540, %v1542
  %v1544 = vrot.slane %v1508, %v1543
  %v1546 = vunpack.c.l.s4 1983009808
  %v1547 = vunpack.c.0.s8 %v1546
  %v1548 = vlaneseq
  %v1549 = vshrl.u32 %v1548, 7
  %v1550 = vsub.s32 %v1547, %v1549
  %v1551 = vrot.slane %v1515, %v1550
  %v1553 = vunpack.c.l.s4 1983009808
  %v1554 = vunpack.c.0.s8 %v1553
  %v1555 = vlaneseq
  %v1556 = vshrl.u32 %v1555, 7
  %v1557 = vsub.s32 %v1554, %v1556
  %v1558 = vrot.slane %v1522, %v1557
  %v1560 = vunpack.c.l.s4 1983009808
  %v1561 = vunpack.c.0.s8 %v1560
  %v1562 = vlaneseq
  %v1563 = vshrl.u32 %v1562, 7
  %v1564 = vsub.s32 %v1561, %v1563
  %v1565 = vrot.slane %v1529, %v1564
  %1566 = vset.pattern.permute.xlu0 0
  %1567 = vperm.xlu0 %1566, %v1544
  %v1568 = vpop.permute.xlu0 %1567
  %1569 = vset.pattern.permute.xlu0 0
  %1570 = vperm.xlu0 %1569, %v1551
  %v1571 = vpop.permute.xlu0 %1570
  %1572 = vset.pattern.permute.xlu0 0
  %1573 = vperm.xlu0 %1572, %v1558
  %v1574 = vpop.permute.xlu0 %1573
  %1575 = vset.pattern.permute.xlu0 0
  %1576 = vperm.xlu0 %1575, %v1565
  %v1577 = vpop.permute.xlu0 %1576
  %v1578 = vlaneseq
  %v1579 = vand.u32 %v1578, 127
  %v1580 = vlaneseq
  %v1581 = vshrl.u32 %v1580, 7
  %v1582 = vsub.s32 %v1579, %v1581
  %v1583 = vrot.slane %v1568, %v1582
  %v1584 = vlaneseq
  %v1585 = vshrl.u32 %v1584, 7
  %v1586 = vsub.s32 %v1579, %v1585
  %v1587 = vrot.slane %v1571, %v1586
  %v1588 = vlaneseq
  %v1589 = vshrl.u32 %v1588, 7
  %v1590 = vsub.s32 %v1579, %v1589
  %v1591 = vrot.slane %v1574, %v1590
  %v1592 = vlaneseq
  %v1593 = vshrl.u32 %v1592, 7
  %v1594 = vsub.s32 %v1579, %v1593
  %v1595 = vrot.slane %v1577, %v1594
  %vm1596 = vcmask 1041409
  %v1597 = vsel %vm1596, %v1587, %v1583
  %vm1598 = vcmask 1042434
  %v1599 = vsel %vm1598, %v1591, %v1597
  %vm1600 = vcmask 1043459
  %v1601 = vsel %vm1600, %v1595, %v1599
  %v1603 = vsel %vm1537, %v1601, -1e+30
  %vm1604 = vcmask 11264
  %v1605 = vsel %vm1604, %v1603, -inf
  %v1606 = vrot.slane %v1605, 4
  %v1607 = vmax.f32 %v1605, %v1606
  %v1608 = vrot.slane %v1607, 2
  %v1609 = vmax.f32 %v1607, %v1608
  %v1610 = vrot.slane %v1609, 1
  %v1611 = vmax.f32 %v1609, %v1610
  %v1612 = vsub.f32 %v1603, %v1611
  %v1613 = vmul.f32 %v1612, 1.442695
  %v1614 = vpow.pop %v1613
  %v1615 = vsel %vm1537, %v1614, 0.0
  %v1616 = vsel %vm1604, %v1615, 0.0
  %v1617 = vrot.slane %v1616, 4
  %v1618 = vadd.f32 %v1616, %v1617
  %v1619 = vrot.slane %v1618, 2
  %v1620 = vadd.f32 %v1618, %v1619
  %v1621 = vrot.slane %v1620, 1
  %v1622 = vadd.f32 %v1620, %v1621
  %v1623 = vmax.f32 %v1622, 1e-30
  %v1624 = vrcp.pop %v1623
  %v1625 = vmul.f32 %v1615, %v1624
  %v1626 = vlaneseq
  %v1627 = vshrl.u32 %v1626, 7
  %v1628 = vsub.s32 0, %v1627
  %v1629 = vrot.slane %v1625, %v1628
  %1631 = vbcast.lane.b32.xlu0 %v1629, 256
  %v1632 = vpop.permute.xlu0 %1631
  %v1633 = vlaneseq
  %v1634 = vshrl.u32 %v1633, 7
  %v1635 = vsub.s32 1, %v1634
  %v1636 = vrot.slane %v1625, %v1635
  %1638 = vbcast.lane.b32.xlu0 %v1636, 256
  %v1639 = vpop.permute.xlu0 %1638
  %v1640 = vlaneseq
  %v1641 = vshrl.u32 %v1640, 7
  %v1642 = vsub.s32 2, %v1641
  %v1643 = vrot.slane %v1625, %v1642
  %1645 = vbcast.lane.b32.xlu0 %v1643, 256
  %v1646 = vpop.permute.xlu0 %1645
  %v1647 = vlaneseq
  %v1648 = vshrl.u32 %v1647, 7
  %v1649 = vsub.s32 3, %v1648
  %v1650 = vrot.slane %v1625, %v1649
  %1652 = vbcast.lane.b32.xlu0 %v1650, 256
  %v1653 = vpop.permute.xlu0 %1652
  %v1654 = vmul.f32 %v1381, %v1632
  %v1655 = vmul.f32 %v1382, %v1639
  %v1656 = vmul.f32 %v1383, %v1646
  %v1657 = vmul.f32 %v1384, %v1653
  %v1658 = vld [vmem:[%s12] sm:$0xff]
  %v1659 = vld [vmem:[%s12 + $0x8] sm:$0xff]
  %v1660 = vld [vmem:[%s12 + $0x10] sm:$0xff]
  %v1661 = vld [vmem:[%s12 + $0x18] sm:$0xff]
  %v1662 = vld [vmem:[%s13] sm:$0x1]
  %v1664 = vlaneseq
  %v1665 = vshrl.u32 %v1664, 7
  %v1666 = vsub.s32 0, %v1665
  %v1667 = vrot.slane %v1662, %v1666
  %v1673 = vcombine.low %v1654, %v1655
  %v1674 = vcombine.low %v1656, %v1657
  %v1676 = vunpack.c.l.s4 1983009808
  %v1677 = vunpack.c.0.s8 %v1676
  %v1678 = vlaneseq
  %v1679 = vshrl.u32 %v1678, 7
  %v1680 = vsub.s32 %v1677, %v1679
  %v1681 = vrot.slane %v1673, %v1680
  %v1683 = vunpack.c.l.s4 1983009808
  %v1684 = vunpack.c.0.s8 %v1683
  %v1685 = vlaneseq
  %v1686 = vshrl.u32 %v1685, 7
  %v1687 = vsub.s32 %v1684, %v1686
  %v1688 = vrot.slane %v1674, %v1687
  %v1689 = vcombine.low %v1681, %v1688
  %v1690 = vsel %vm83, %v1689, 0
  %1692 = vmatprep.subr.mxu0 0.0
  %1693 = vmatpush1.msra.mxu0 0.0
  %1694 = vmatprep.subr.mxu0 0.0
  %1695 = vmatpush1.msra.mxu0 0.0
  %1696 = vmatprep.subr.mxu0 0.0
  %1697 = vmatpush1.msra.mxu0 0.0
  %1698 = vmatprep.subr.mxu0 0.0
  %1699 = vmatpush1.msra.mxu0 0.0
  %1700 = vmatprep.subr.mxu0 0.0
  %1701 = vmatpush1.msra.mxu0 0.0
  %1702 = vmatprep.subr.mxu0 0.0
  %1703 = vmatpush1.msra.mxu0 0.0
  %1704 = vmatprep.subr.mxu0 0.0
  %1705 = vmatpush1.msra.mxu0 0.0
  %1706 = vmatprep.subr.mxu0 0.0
  %1707 = vmatpush1.msra.mxu0 0.0
  %1708 = vmatprep.subr.mxu0 0.0
  %1709 = vmatpush1.msra.mxu0 0.0
  %1710 = vmatprep.subr.mxu0 0.0
  %1711 = vmatpush1.msra.mxu0 0.0
  %1712 = vmatprep.subr.mxu0 0.0
  %1713 = vmatpush1.msra.mxu0 0.0
  %1714 = vmatprep.subr.mxu0 0.0
  %1715 = vmatpush1.msra.mxu0 0.0
  %1716 = vmatprep.subr.mxu0 0.0
  %1717 = vmatpush1.msra.mxu0 %v1661
  %1718 = vmatprep.subr.mxu0 0.0
  %1719 = vmatpush1.msra.mxu0 %v1660
  %1720 = vmatprep.subr.mxu0 0.0
  %1721 = vmatpush1.msra.mxu0 %v1659
  %1722 = vmatprep.subr.mxu0 0.0
  %1723 = vmatpush1.msra.mxu0 %v1658
  %1724 = vmatprep.subr.mxu0 0.0
  %1725 = vmatpush2.msra.mxu0 0.0
  %1726 = vmatprep.subr.mxu0 0.0
  %1727 = vmatpush2.msra.mxu0 0.0
  %1728 = vmatprep.subr.mxu0 0.0
  %1729 = vmatpush2.msra.mxu0 0.0
  %1730 = vmatprep.subr.mxu0 0.0
  %1731 = vmatpush2.msra.mxu0 0.0
  %1732 = vmatprep.subr.mxu0 0.0
  %1733 = vmatpush2.msra.mxu0 0.0
  %1734 = vmatprep.subr.mxu0 0.0
  %1735 = vmatpush2.msra.mxu0 0.0
  %1736 = vmatprep.subr.mxu0 0.0
  %1737 = vmatpush2.msra.mxu0 0.0
  %1738 = vmatprep.subr.mxu0 0.0
  %1739 = vmatpush2.msra.mxu0 0.0
  %1740 = vmatprep.subr.mxu0 0.0
  %1741 = vmatpush2.msra.mxu0 0.0
  %1742 = vmatprep.subr.mxu0 0.0
  %1743 = vmatpush2.msra.mxu0 0.0
  %1744 = vmatprep.subr.mxu0 0.0
  %1745 = vmatpush2.msra.mxu0 0.0
  %1746 = vmatprep.subr.mxu0 0.0
  %1747 = vmatpush2.msra.mxu0 0.0
  %1748 = vmatprep.subr.mxu0 0.0
  %1749 = vmatpush2.msra.mxu0 0.0
  %1750 = vmatprep.subr.mxu0 0.0
  %1751 = vmatpush2.msra.mxu0 0.0
  %1752 = vmatprep.subr.mxu0 0.0
  %1753 = vmatpush2.msra.mxu0 0.0
  %1754 = vmatprep.subr.mxu0 0.0
  %1755 = vmatpush2.msra.mxu0 0.0
  %1756 = vmatprep.mubr.f32.mxu0 0.0
  %1757 = vmatmul.mubr.f32.gmra.mxu0 %v1690
  %v1758 = vpop.f32.mrf.mxu0
  %v1759 = vadd.f32 %v1667, %v1758
  %v1760 = vpop.f32.mrf.mxu0
  %1761 = vdwg.mxu0
  %v1762 = vxor.u32 %v1759, 2147483648
  %v1763 = vmul.f32 %v1762, 1.442695
  %v1764 = vpow.pop %v1763
  %v1765 = vadd.f32 %v1764, 1.0
  %v1766 = vrcp.pop %v1765
  %v1767 = vmul.f32 1.0, %v1766
  %v1769 = vcombine.high %v1767, %v1767
  %v1771 = vunpack.c.l.s4 1983009808
  %v1772 = vunpack.c.0.s8 %v1771
  %v1773 = vlaneseq
  %v1774 = vshrl.u32 %v1773, 7
  %v1775 = vsub.s32 %v1772, %v1774
  %v1776 = vrot.slane %v1767, %v1775
  %v1778 = vunpack.c.l.s4 1983009808
  %v1779 = vunpack.c.0.s8 %v1778
  %v1780 = vlaneseq
  %v1781 = vshrl.u32 %v1780, 7
  %v1782 = vsub.s32 %v1779, %v1781
  %v1783 = vrot.slane %v1769, %v1782
  %v1784 = vcombine.high %v1776, %v1776
  %v1785 = vcombine.high %v1783, %v1783
  %vm1790 = vcmask 25600
  %1791 = vst.msk [vmem:[%s14] sm:$0x3] %vm1790, %v1776
  %1792 = vst.msk [vmem:[%s14 + $0x2] sm:$0x3] %vm1790, %v1784
  %1793 = vst.msk [vmem:[%s14 + $0x4] sm:$0x3] %vm1790, %v1783
  %1794 = vst.msk [vmem:[%s14 + $0x6] sm:$0x3] %vm1790, %v1785
  // Predicated region
  $region58: #{han_forward.3} parent=0 // pred_check
    _
  $region59: #{han_forward.3} parent=0 // pred_check_branch
    %1796 = sbr.rel (0) target = $region61
  $region60: #{han_forward.3} parent=0 // pred_region
    _
  $region61: #{han_forward.3} parent=0 // pred_fallthru
    _
  // Predicated region
  $region62: #{han_forward.3} parent=0 // pred_check
    _
  $region63: #{han_forward.3} parent=0 // pred_check_branch
    %1798 = sbr.rel (0) target = $region65
  $region64: #{han_forward.3} parent=0 // pred_region
    _
  $region65: #{han_forward.3} parent=0 // pred_fallthru
    _

// kernel: han_forward.2
$region0: #{han_forward.2}
  #allocation0 [shape = 'u32[]', space=smem, size = 0x4, offset = 0x4, fixed_abs, tag = 'smem constant byte address 0x4 - core index']
  #allocation1 [shape = 'u32[144,128]{1,0:T(1,128)}', space=vmem, size = 0x12000, scoped, tag = 'internal scratch']
  #allocation2 [shape = 'f32[8,8,64]{2,1,0:T(8,128)}', space=vmem, size = 0x8000, scoped, tag = 'scratch operand']
  #allocation3 [shape = 'f32[8,8,64]{2,1,0:T(8,128)}', space=vmem, size = 0x8000, scoped, tag = 'scratch operand']
  #allocation4 [shape = 'f32[8,8,16]{2,1,0:T(8,128)}', space=vmem, size = 0x8000, scoped, tag = 'scratch operand']
  #allocation5 [shape = 'f32[8,8,16]{2,1,0:T(8,128)}', space=vmem, size = 0x8000, scoped, tag = 'scratch operand']
  #allocation6 [shape = 'f32[8,16]{1,0:T(8,128)}', space=vmem, size = 0x1000, scoped, tag = 'scratch operand']
  #allocation7 [shape = 'f32[8,16]{1,0:T(8,128)}', space=vmem, size = 0x1000, scoped, tag = 'scratch operand']
  #allocation8 [shape = 'f32[8,16]{1,0:T(8,128)}', space=vmem, size = 0x1000, scoped, tag = 'scratch operand']
  #allocation9 [shape = 'f32[8,16]{1,0:T(8,128)}', space=vmem, size = 0x1000, scoped, tag = 'scratch operand']
  %s0 = inlined_call_operand.vmem [shape: f32[8,8,16], index: 0, kind: input, shape index: {}]
  %s1 = inlined_call_operand.vmem [shape: s32[8,1], index: 1, kind: input, shape index: {}]
  %s2 = inlined_call_operand.vmem [shape: s32[1,8], index: 2, kind: input, shape index: {}]
  %s3 = inlined_call_operand.vmem [shape: f32[16,64], index: 3, kind: input, shape index: {}]
  %s4 = inlined_call_operand.vmem [shape: f32[16,64], index: 4, kind: input, shape index: {}]
  %s5 = inlined_call_operand.vmem [shape: f32[1,64], index: 5, kind: input, shape index: {}]
  %s6 = inlined_call_operand.vmem [shape: f32[16,64], index: 6, kind: input, shape index: {}]
  %s7 = inlined_call_operand.vmem [shape: f32[16,64], index: 7, kind: input, shape index: {}]
  %s8 = inlined_call_operand.vmem [shape: f32[1,64], index: 8, kind: input, shape index: {}]
  %s9 = inlined_call_operand.vmem [shape: f32[32,16], index: 9, kind: input, shape index: {}]
  %s10 = inlined_call_operand.vmem [shape: f32[1,16], index: 10, kind: input, shape index: {}]
  %s11 = inlined_call_operand.vmem [shape: f32[1,16], index: 11, kind: input, shape index: {}]
  %s12 = inlined_call_operand.vmem [shape: f32[8,32], index: 12, kind: output, shape index: {}]
  %s13 = sld [smem:[#allocation0]]
  $region58: #{han_forward.2} parent=0
    _
  %s15 = ssub.s32 1, %s13
  %s16 = scalar_select 0, %s15, %s13
  // Predicated region
  $region2: #{han_forward.2} parent=0 // pred_check
    _
  $region3: #{han_forward.2} parent=0 // pred_check_branch
    %18 = sbr.rel (0) target = $region5
  $region4: #{han_forward.2} parent=0 // pred_region
    _
  $region5: #{han_forward.2} parent=0 // pred_fallthru
    _
  // Predicated region
  $region6: #{han_forward.2} parent=0 // pred_check
    _
  $region7: #{han_forward.2} parent=0 // pred_check_branch
    %20 = sbr.rel (0) target = $region9
  $region8: #{han_forward.2} parent=0 // pred_region
    _
  $region9: #{han_forward.2} parent=0 // pred_fallthru
    _
  // Predicated region
  $region10: #{han_forward.2} parent=0 // pred_check
    _
  $region11: #{han_forward.2} parent=0 // pred_check_branch
    %22 = sbr.rel (0) target = $region13
  $region12: #{han_forward.2} parent=0 // pred_region
    _
  $region13: #{han_forward.2} parent=0 // pred_fallthru
    _
  // Predicated region
  $region14: #{han_forward.2} parent=0 // pred_check
    _
  $region15: #{han_forward.2} parent=0 // pred_check_branch
    %24 = sbr.rel (0) target = $region17
  $region16: #{han_forward.2} parent=0 // pred_region
    _
  $region17: #{han_forward.2} parent=0 // pred_fallthru
    _
  // Predicated region
  $region18: #{han_forward.2} parent=0 // pred_check
    _
  $region19: #{han_forward.2} parent=0 // pred_check_branch
    %26 = sbr.rel (0) target = $region21
  $region20: #{han_forward.2} parent=0 // pred_region
    _
  $region21: #{han_forward.2} parent=0 // pred_fallthru
    _
  // Predicated region
  $region22: #{han_forward.2} parent=0 // pred_check
    _
  $region23: #{han_forward.2} parent=0 // pred_check_branch
    %28 = sbr.rel (0) target = $region25
  $region24: #{han_forward.2} parent=0 // pred_region
    _
  $region25: #{han_forward.2} parent=0 // pred_fallthru
    _
  // Predicated region
  $region26: #{han_forward.2} parent=0 // pred_check
    _
  $region27: #{han_forward.2} parent=0 // pred_check_branch
    %30 = sbr.rel (0) target = $region29
  $region28: #{han_forward.2} parent=0 // pred_region
    _
  $region29: #{han_forward.2} parent=0 // pred_fallthru
    _
  // Predicated region
  $region30: #{han_forward.2} parent=0 // pred_check
    _
  $region31: #{han_forward.2} parent=0 // pred_check_branch
    %32 = sbr.rel (0) target = $region33
  $region32: #{han_forward.2} parent=0 // pred_region
    _
  $region33: #{han_forward.2} parent=0 // pred_fallthru
    _
  // Predicated region
  $region34: #{han_forward.2} parent=0 // pred_check
    _
  $region35: #{han_forward.2} parent=0 // pred_check_branch
    %34 = sbr.rel (0) target = $region37
  $region36: #{han_forward.2} parent=0 // pred_region
    _
  $region37: #{han_forward.2} parent=0 // pred_fallthru
    _
  // Predicated region
  $region38: #{han_forward.2} parent=0 // pred_check
    _
  $region39: #{han_forward.2} parent=0 // pred_check_branch
    %36 = sbr.rel (0) target = $region41
  $region40: #{han_forward.2} parent=0 // pred_region
    _
  $region41: #{han_forward.2} parent=0 // pred_fallthru
    _
  // Predicated region
  $region42: #{han_forward.2} parent=0 // pred_check
    _
  $region43: #{han_forward.2} parent=0 // pred_check_branch
    %38 = sbr.rel (0) target = $region45
  $region44: #{han_forward.2} parent=0 // pred_region
    _
  $region45: #{han_forward.2} parent=0 // pred_fallthru
    _
  // Predicated region
  $region46: #{han_forward.2} parent=0 // pred_check
    _
  $region47: #{han_forward.2} parent=0 // pred_check_branch
    %40 = sbr.rel (0) target = $region49
  $region48: #{han_forward.2} parent=0 // pred_region
    _
  $region49: #{han_forward.2} parent=0 // pred_fallthru
    _
  %v41 = vld [vmem:[%s0] sm:$0xff]
  %v42 = vld [vmem:[%s0 + $0x8] sm:$0xff]
  %v43 = vld [vmem:[%s0 + $0x10] sm:$0xff]
  %v44 = vld [vmem:[%s0 + $0x18] sm:$0xff]
  %v45 = vld [vmem:[%s0 + $0x20] sm:$0xff]
  %v46 = vld [vmem:[%s0 + $0x28] sm:$0xff]
  %v47 = vld [vmem:[%s0 + $0x30] sm:$0xff]
  %v48 = vld [vmem:[%s0 + $0x38] sm:$0xff]
  %v49 = vld [vmem:[%s3] sm:$0xff]
  %v50 = vld [vmem:[%s3 + $0x8] sm:$0xff]
  %v51 = vld [vmem:[%s5] sm:$0x1]
  %v53 = vlaneseq
  %v54 = vshrl.u32 %v53, 7
  %v55 = vsub.s32 0, %v54
  %v56 = vrot.slane %v51, %v55
  %vm58 = vcmask 130048
  %v60 = vsel %vm58, %v41, 0
  %v63 = vsel %vm58, %v42, 0
  %v66 = vsel %vm58, %v43, 0
  %v69 = vsel %vm58, %v44, 0
  %v72 = vsel %vm58, %v45, 0
  %v75 = vsel %vm58, %v46, 0
  %v78 = vsel %vm58, %v47, 0
  %v81 = vsel %vm58, %v48, 0
  %83 = vmatprep.subr.mxu0 0.0
  %84 = vmatpush1.msra.mxu0 0.0
  %85 = vmatprep.subr.mxu0 0.0
  %86 = vmatpush1.msra.mxu0 0.0
  %87 = vmatprep.subr.mxu0 0.0
  %88 = vmatpush1.msra.mxu0 0.0
  %89 = vmatprep.subr.mxu0 0.0
  %90 = vmatpush1.msra.mxu0 0.0
  %91 = vmatprep.subr.mxu0 0.0
  %92 = vmatpush1.msra.mxu0 0.0
  %93 = vmatprep.subr.mxu0 0.0
  %94 = vmatpush1.msra.mxu0 0.0
  %95 = vmatprep.subr.mxu0 0.0
  %96 = vmatpush1.msra.mxu0 0.0
  %97 = vmatprep.subr.mxu0 0.0
  %98 = vmatpush1.msra.mxu0 0.0
  %99 = vmatprep.subr.mxu0 0.0
  %100 = vmatpush1.msra.mxu0 0.0
  %101 = vmatprep.subr.mxu0 0.0
  %102 = vmatpush1.msra.mxu0 0.0
  %103 = vmatprep.subr.mxu0 0.0
  %104 = vmatpush1.msra.mxu0 0.0
  %105 = vmatprep.subr.mxu0 0.0
  %106 = vmatpush1.msra.mxu0 0.0
  %107 = vmatprep.subr.mxu0 0.0
  %108 = vmatpush1.msra.mxu0 0.0
  %109 = vmatprep.subr.mxu0 0.0
  %110 = vmatpush1.msra.mxu0 0.0
  %111 = vmatprep.subr.mxu0 0.0
  %112 = vmatpush1.msra.mxu0 %v50
  %113 = vmatprep.subr.mxu0 0.0
  %114 = vmatpush1.msra.mxu0 %v49
  %115 = vmatprep.subr.mxu0 0.0
  %116 = vmatpush2.msra.mxu0 0.0
  %117 = vmatprep.subr.mxu0 0.0
  %118 = vmatpush2.msra.mxu0 0.0
  %119 = vmatprep.subr.mxu0 0.0
  %120 = vmatpush2.msra.mxu0 0.0
  %121 = vmatprep.subr.mxu0 0.0
  %122 = vmatpush2.msra.mxu0 0.0
  %123 = vmatprep.subr.mxu0 0.0
  %124 = vmatpush2.msra.mxu0 0.0
  %125 = vmatprep.subr.mxu0 0.0
  %126 = vmatpush2.msra.mxu0 0.0
  %127 = vmatprep.subr.mxu0 0.0
  %128 = vmatpush2.msra.mxu0 0.0
  %129 = vmatprep.subr.mxu0 0.0
  %130 = vmatpush2.msra.mxu0 0.0
  %131 = vmatprep.subr.mxu0 0.0
  %132 = vmatpush2.msra.mxu0 0.0
  %133 = vmatprep.subr.mxu0 0.0
  %134 = vmatpush2.msra.mxu0 0.0
  %135 = vmatprep.subr.mxu0 0.0
  %136 = vmatpush2.msra.mxu0 0.0
  %137 = vmatprep.subr.mxu0 0.0
  %138 = vmatpush2.msra.mxu0 0.0
  %139 = vmatprep.subr.mxu0 0.0
  %140 = vmatpush2.msra.mxu0 0.0
  %141 = vmatprep.subr.mxu0 0.0
  %142 = vmatpush2.msra.mxu0 0.0
  %143 = vmatprep.subr.mxu0 0.0
  %144 = vmatpush2.msra.mxu0 0.0
  %145 = vmatprep.subr.mxu0 0.0
  %146 = vmatpush2.msra.mxu0 0.0
  %147 = vmatprep.mubr.f32.mxu0 0.0
  %148 = vmatmul.mubr.f32.gmra.mxu0 %v60
  %v149 = vpop.f32.mrf.mxu0
  %v150 = vadd.f32 %v56, %v149
  %v151 = vpop.f32.mrf.mxu0
  %152 = vmatprep.mubr.f32.mxu0 0.0
  %153 = vmatmul.mubr.f32.gmra.mxu0 %v63
  %v154 = vpop.f32.mrf.mxu0
  %v155 = vadd.f32 %v56, %v154
  %v156 = vpop.f32.mrf.mxu0
  %157 = vmatprep.mubr.f32.mxu0 0.0
  %158 = vmatmul.mubr.f32.gmra.mxu0 %v66
  %v159 = vpop.f32.mrf.mxu0
  %v160 = vadd.f32 %v56, %v159
  %v161 = vpop.f32.mrf.mxu0
  %162 = vmatprep.mubr.f32.mxu0 0.0
  %163 = vmatmul.mubr.f32.gmra.mxu0 %v69
  %v164 = vpop.f32.mrf.mxu0
  %v165 = vadd.f32 %v56, %v164
  %v166 = vpop.f32.mrf.mxu0
  %167 = vmatprep.mubr.f32.mxu0 0.0
  %168 = vmatmul.mubr.f32.gmra.mxu0 %v72
  %v169 = vpop.f32.mrf.mxu0
  %v170 = vadd.f32 %v56, %v169
  %v171 = vpop.f32.mrf.mxu0
  %172 = vmatprep.mubr.f32.mxu0 0.0
  %173 = vmatmul.mubr.f32.gmra.mxu0 %v75
  %v174 = vpop.f32.mrf.mxu0
  %v175 = vadd.f32 %v56, %v174
  %v176 = vpop.f32.mrf.mxu0
  %177 = vmatprep.mubr.f32.mxu0 0.0
  %178 = vmatmul.mubr.f32.gmra.mxu0 %v78
  %v179 = vpop.f32.mrf.mxu0
  %v180 = vadd.f32 %v56, %v179
  %v181 = vpop.f32.mrf.mxu0
  %182 = vmatprep.mubr.f32.mxu0 0.0
  %183 = vmatmul.mubr.f32.gmra.mxu0 %v81
  %v184 = vpop.f32.mrf.mxu0
  %v185 = vadd.f32 %v56, %v184
  %v186 = vpop.f32.mrf.mxu0
  %187 = vdwg.mxu0
  %vm188 = vcmask 523264
  %189 = vst.msk [vmem:[#allocation2] sm:$0xff] %vm188, %v150
  %190 = vst.msk [vmem:[#allocation2 + $0x8] sm:$0xff] %vm188, %v155
  %191 = vst.msk [vmem:[#allocation2 + $0x10] sm:$0xff] %vm188, %v160
  %192 = vst.msk [vmem:[#allocation2 + $0x18] sm:$0xff] %vm188, %v165
  %193 = vst.msk [vmem:[#allocation2 + $0x20] sm:$0xff] %vm188, %v170
  %194 = vst.msk [vmem:[#allocation2 + $0x28] sm:$0xff] %vm188, %v175
  %195 = vst.msk [vmem:[#allocation2 + $0x30] sm:$0xff] %vm188, %v180
  %196 = vst.msk [vmem:[#allocation2 + $0x38] sm:$0xff] %vm188, %v185
  %v197 = vld [vmem:[%s6] sm:$0xff]
  %v198 = vld [vmem:[%s6 + $0x8] sm:$0xff]
  %v199 = vld [vmem:[%s8] sm:$0x1]
  %v201 = vlaneseq
  %v202 = vshrl.u32 %v201, 7
  %v203 = vsub.s32 0, %v202
  %v204 = vrot.slane %v199, %v203
  %206 = vmatprep.subr.mxu0 0.0
  %207 = vmatpush1.msra.mxu0 0.0
  %208 = vmatprep.subr.mxu0 0.0
  %209 = vmatpush1.msra.mxu0 0.0
  %210 = vmatprep.subr.mxu0 0.0
  %211 = vmatpush1.msra.mxu0 0.0
  %212 = vmatprep.subr.mxu0 0.0
  %213 = vmatpush1.msra.mxu0 0.0
  %214 = vmatprep.subr.mxu0 0.0
  %215 = vmatpush1.msra.mxu0 0.0
  %216 = vmatprep.subr.mxu0 0.0
  %217 = vmatpush1.msra.mxu0 0.0
  %218 = vmatprep.subr.mxu0 0.0
  %219 = vmatpush1.msra.mxu0 0.0
  %220 = vmatprep.subr.mxu0 0.0
  %221 = vmatpush1.msra.mxu0 0.0
  %222 = vmatprep.subr.mxu0 0.0
  %223 = vmatpush1.msra.mxu0 0.0
  %224 = vmatprep.subr.mxu0 0.0
  %225 = vmatpush1.msra.mxu0 0.0
  %226 = vmatprep.subr.mxu0 0.0
  %227 = vmatpush1.msra.mxu0 0.0
  %228 = vmatprep.subr.mxu0 0.0
  %229 = vmatpush1.msra.mxu0 0.0
  %230 = vmatprep.subr.mxu0 0.0
  %231 = vmatpush1.msra.mxu0 0.0
  %232 = vmatprep.subr.mxu0 0.0
  %233 = vmatpush1.msra.mxu0 0.0
  %234 = vmatprep.subr.mxu0 0.0
  %235 = vmatpush1.msra.mxu0 %v198
  %236 = vmatprep.subr.mxu0 0.0
  %237 = vmatpush1.msra.mxu0 %v197
  %238 = vmatprep.subr.mxu0 0.0
  %239 = vmatpush2.msra.mxu0 0.0
  %240 = vmatprep.subr.mxu0 0.0
  %241 = vmatpush2.msra.mxu0 0.0
  %242 = vmatprep.subr.mxu0 0.0
  %243 = vmatpush2.msra.mxu0 0.0
  %244 = vmatprep.subr.mxu0 0.0
  %245 = vmatpush2.msra.mxu0 0.0
  %246 = vmatprep.subr.mxu0 0.0
  %247 = vmatpush2.msra.mxu0 0.0
  %248 = vmatprep.subr.mxu0 0.0
  %249 = vmatpush2.msra.mxu0 0.0
  %250 = vmatprep.subr.mxu0 0.0
  %251 = vmatpush2.msra.mxu0 0.0
  %252 = vmatprep.subr.mxu0 0.0
  %253 = vmatpush2.msra.mxu0 0.0
  %254 = vmatprep.subr.mxu0 0.0
  %255 = vmatpush2.msra.mxu0 0.0
  %256 = vmatprep.subr.mxu0 0.0
  %257 = vmatpush2.msra.mxu0 0.0
  %258 = vmatprep.subr.mxu0 0.0
  %259 = vmatpush2.msra.mxu0 0.0
  %260 = vmatprep.subr.mxu0 0.0
  %261 = vmatpush2.msra.mxu0 0.0
  %262 = vmatprep.subr.mxu0 0.0
  %263 = vmatpush2.msra.mxu0 0.0
  %264 = vmatprep.subr.mxu0 0.0
  %265 = vmatpush2.msra.mxu0 0.0
  %266 = vmatprep.subr.mxu0 0.0
  %267 = vmatpush2.msra.mxu0 0.0
  %268 = vmatprep.subr.mxu0 0.0
  %269 = vmatpush2.msra.mxu0 0.0
  %270 = vmatprep.mubr.f32.mxu0 0.0
  %271 = vmatmul.mubr.f32.gmra.mxu0 %v60
  %v272 = vpop.f32.mrf.mxu0
  %v273 = vadd.f32 %v204, %v272
  %v274 = vpop.f32.mrf.mxu0
  %275 = vmatprep.mubr.f32.mxu0 0.0
  %276 = vmatmul.mubr.f32.gmra.mxu0 %v63
  %v277 = vpop.f32.mrf.mxu0
  %v278 = vadd.f32 %v204, %v277
  %v279 = vpop.f32.mrf.mxu0
  %280 = vmatprep.mubr.f32.mxu0 0.0
  %281 = vmatmul.mubr.f32.gmra.mxu0 %v66
  %v282 = vpop.f32.mrf.mxu0
  %v283 = vadd.f32 %v204, %v282
  %v284 = vpop.f32.mrf.mxu0
  %285 = vmatprep.mubr.f32.mxu0 0.0
  %286 = vmatmul.mubr.f32.gmra.mxu0 %v69
  %v287 = vpop.f32.mrf.mxu0
  %v288 = vadd.f32 %v204, %v287
  %v289 = vpop.f32.mrf.mxu0
  %290 = vmatprep.mubr.f32.mxu0 0.0
  %291 = vmatmul.mubr.f32.gmra.mxu0 %v72
  %v292 = vpop.f32.mrf.mxu0
  %v293 = vadd.f32 %v204, %v292
  %v294 = vpop.f32.mrf.mxu0
  %295 = vmatprep.mubr.f32.mxu0 0.0
  %296 = vmatmul.mubr.f32.gmra.mxu0 %v75
  %v297 = vpop.f32.mrf.mxu0
  %v298 = vadd.f32 %v204, %v297
  %v299 = vpop.f32.mrf.mxu0
  %300 = vmatprep.mubr.f32.mxu0 0.0
  %301 = vmatmul.mubr.f32.gmra.mxu0 %v78
  %v302 = vpop.f32.mrf.mxu0
  %v303 = vadd.f32 %v204, %v302
  %v304 = vpop.f32.mrf.mxu0
  %305 = vmatprep.mubr.f32.mxu0 0.0
  %306 = vmatmul.mubr.f32.gmra.mxu0 %v81
  %v307 = vpop.f32.mrf.mxu0
  %v308 = vadd.f32 %v204, %v307
  %v309 = vpop.f32.mrf.mxu0
  %310 = vdwg.mxu0
  %311 = vst.msk [vmem:[#allocation3] sm:$0xff] %vm188, %v273
  %312 = vst.msk [vmem:[#allocation3 + $0x8] sm:$0xff] %vm188, %v278
  %313 = vst.msk [vmem:[#allocation3 + $0x10] sm:$0xff] %vm188, %v283
  %314 = vst.msk [vmem:[#allocation3 + $0x18] sm:$0xff] %vm188, %v288
  %315 = vst.msk [vmem:[#allocation3 + $0x20] sm:$0xff] %vm188, %v293
  %316 = vst.msk [vmem:[#allocation3 + $0x28] sm:$0xff] %vm188, %v298
  %317 = vst.msk [vmem:[#allocation3 + $0x30] sm:$0xff] %vm188, %v303
  %318 = vst.msk [vmem:[#allocation3 + $0x38] sm:$0xff] %vm188, %v308
  %319 = vst.msk [vmem:[#allocation6] sm:$0xff] %vm58, 0.0
  %320 = vst.msk [vmem:[#allocation7] sm:$0xff] %vm58, 0.0
  %321 = vst.msk [vmem:[#allocation8] sm:$0xff] %vm58, 0.0
  %322 = vst.msk [vmem:[#allocation9] sm:$0xff] %vm58, 0.0
  %v323 = vld [vmem:[%s1] sm:$0xff]
  %v324 = vld [vmem:[#allocation6] sm:$0xff]
  %v325 = vld [vmem:[#allocation7] sm:$0xff]
  %v326 = vld [vmem:[#allocation2] sm:$0xff]
  %v327 = vld [vmem:[%s4] sm:$0xff]
  %v328 = vld [vmem:[%s4 + $0x8] sm:$0xff]
  %v330 = vsel %vm58, %v324, 0
  %332 = vmatprep.subr.mxu0 0.0
  %333 = vmatpush1.msra.mxu0 0.0
  %334 = vmatprep.subr.mxu0 0.0
  %335 = vmatpush1.msra.mxu0 0.0
  %336 = vmatprep.subr.mxu0 0.0
  %337 = vmatpush1.msra.mxu0 0.0
  %338 = vmatprep.subr.mxu0 0.0
  %339 = vmatpush1.msra.mxu0 0.0
  %340 = vmatprep.subr.mxu0 0.0
  %341 = vmatpush1.msra.mxu0 0.0
  %342 = vmatprep.subr.mxu0 0.0
  %343 = vmatpush1.msra.mxu0 0.0
  %344 = vmatprep.subr.mxu0 0.0
  %345 = vmatpush1.msra.mxu0 0.0
  %346 = vmatprep.subr.mxu0 0.0
  %347 = vmatpush1.msra.mxu0 0.0
  %348 = vmatprep.subr.mxu0 0.0
  %349 = vmatpush1.msra.mxu0 0.0
  %350 = vmatprep.subr.mxu0 0.0
  %351 = vmatpush1.msra.mxu0 0.0
  %352 = vmatprep.subr.mxu0 0.0
  %353 = vmatpush1.msra.mxu0 0.0
  %354 = vmatprep.subr.mxu0 0.0
  %355 = vmatpush1.msra.mxu0 0.0
  %356 = vmatprep.subr.mxu0 0.0
  %357 = vmatpush1.msra.mxu0 0.0
  %358 = vmatprep.subr.mxu0 0.0
  %359 = vmatpush1.msra.mxu0 0.0
  %360 = vmatprep.subr.mxu0 0.0
  %361 = vmatpush1.msra.mxu0 %v328
  %362 = vmatprep.subr.mxu0 0.0
  %363 = vmatpush1.msra.mxu0 %v327
  %364 = vmatprep.subr.mxu0 0.0
  %365 = vmatpush2.msra.mxu0 0.0
  %366 = vmatprep.subr.mxu0 0.0
  %367 = vmatpush2.msra.mxu0 0.0
  %368 = vmatprep.subr.mxu0 0.0
  %369 = vmatpush2.msra.mxu0 0.0
  %370 = vmatprep.subr.mxu0 0.0
  %371 = vmatpush2.msra.mxu0 0.0
  %372 = vmatprep.subr.mxu0 0.0
  %373 = vmatpush2.msra.mxu0 0.0
  %374 = vmatprep.subr.mxu0 0.0
  %375 = vmatpush2.msra.mxu0 0.0
  %376 = vmatprep.subr.mxu0 0.0
  %377 = vmatpush2.msra.mxu0 0.0
  %378 = vmatprep.subr.mxu0 0.0
  %379 = vmatpush2.msra.mxu0 0.0
  %380 = vmatprep.subr.mxu0 0.0
  %381 = vmatpush2.msra.mxu0 0.0
  %382 = vmatprep.subr.mxu0 0.0
  %383 = vmatpush2.msra.mxu0 0.0
  %384 = vmatprep.subr.mxu0 0.0
  %385 = vmatpush2.msra.mxu0 0.0
  %386 = vmatprep.subr.mxu0 0.0
  %387 = vmatpush2.msra.mxu0 0.0
  %388 = vmatprep.subr.mxu0 0.0
  %389 = vmatpush2.msra.mxu0 0.0
  %390 = vmatprep.subr.mxu0 0.0
  %391 = vmatpush2.msra.mxu0 0.0
  %392 = vmatprep.subr.mxu0 0.0
  %393 = vmatpush2.msra.mxu0 0.0
  %394 = vmatprep.subr.mxu0 0.0
  %395 = vmatpush2.msra.mxu0 0.0
  %396 = vmatprep.mubr.f32.mxu0 0.0
  %397 = vmatmul.mubr.f32.gmra.mxu0 %v330
  %v398 = vpop.f32.mrf.mxu0
  %v399 = vadd.f32 0.0, %v398
  %v400 = vpop.f32.mrf.mxu0
  %401 = vdwg.mxu0
  %v402 = vadd.f32 %v326, %v399
  %v403 = vxor.u32 %v402, 2147483648
  %v404 = vmul.f32 %v403, 1.442695
  %v405 = vpow.pop %v404
  %v406 = vadd.f32 %v405, 1.0
  %v407 = vrcp.pop %v406
  %v408 = vmul.f32 1.0, %v407
  %v409 = vtanh.pop %v402
  %411 = vrot.lane.b32.xlu0 %v325, 16
  %v412 = vpop.permute.xlu0 %411
  %v414 = vmul.f32 %v408, %v412
  %416 = vrot.lane.b32.xlu0 %v409, 96
  %v417 = vpop.permute.xlu0 %416
  %v419 = vmul.f32 %v408, %v417
  %421 = vrot.lane.b32.xlu0 %v419, 16
  %v422 = vpop.permute.xlu0 %421
  %v424 = vadd.f32 %v414, %v422
  %v425 = vtanh.pop %v424
  %427 = vrot.lane.b32.xlu0 %v425, 32
  %v428 = vpop.permute.xlu0 %427
  %v430 = vmul.f32 %v408, %v428
  %vm431 = vcmp.gt.s32.totalorder %v323, 0
  %v432 = vsel %vm431, 1, 0
  %433 = vset.pattern.permute.xlu0 0
  %434 = vperm.xlu0 %433, %v432
  %v435 = vpop.permute.xlu0 %434
  %vm436 = vcmp.eq.s32.totalorder %v435, 1
  %437 = vrot.lane.b32.xlu0 %v324, 48
  %v438 = vpop.permute.xlu0 %437
  %v440 = vsel %vm436, %v430, %v438
  %442 = vrot.lane.b32.xlu0 %v440, 80
  %v443 = vpop.permute.xlu0 %442
  %445 = vst.msk [vmem:[#allocation6] sm:$0xff] %vm58, %v443
  %v446 = vsel %vm436, %v424, %v412
  %448 = vrot.lane.b32.xlu0 %v446, 112
  %v449 = vpop.permute.xlu0 %448
  %451 = vst.msk [vmem:[#allocation7] sm:$0xff] %vm58, %v449
  %v452 = vsel %vm436, %v430, 0.0
  %454 = vrot.lane.b32.xlu0 %v452, 80
  %v455 = vpop.permute.xlu0 %454
  %457 = vst.msk [vmem:[#allocation4] sm:$0xff] %vm58, %v455
  %v458 = vld [vmem:[#allocation8] sm:$0xff]
  %v459 = vld [vmem:[#allocation9] sm:$0xff]
  %s460 = scalar_lea.vmem [#allocation3], 56
  %v461 = vld [vmem:[%s460] sm:$0xff]
  %v462 = vld [vmem:[%s7] sm:$0xff]
  %v463 = vld [vmem:[%s7 + $0x8] sm:$0xff]
  %v465 = vsel %vm58, %v458, 0
  %467 = vmatprep.subr.mxu0 0.0
  %468 = vmatpush1.msra.mxu0 0.0
  %469 = vmatprep.subr.mxu0 0.0
  %470 = vmatpush1.msra.mxu0 0.0
  %471 = vmatprep.subr.mxu0 0.0
  %472 = vmatpush1.msra.mxu0 0.0
  %473 = vmatprep.subr.mxu0 0.0
  %474 = vmatpush1.msra.mxu0 0.0
  %475 = vmatprep.subr.mxu0 0.0
  %476 = vmatpush1.msra.mxu0 0.0
  %477 = vmatprep.subr.mxu0 0.0
  %478 = vmatpush1.msra.mxu0 0.0
  %479 = vmatprep.subr.mxu0 0.0
  %480 = vmatpush1.msra.mxu0 0.0
  %481 = vmatprep.subr.mxu0 0.0
  %482 = vmatpush1.msra.mxu0 0.0
  %483 = vmatprep.subr.mxu0 0.0
  %484 = vmatpush1.msra.mxu0 0.0
  %485 = vmatprep.subr.mxu0 0.0
  %486 = vmatpush1.msra.mxu0 0.0
  %487 = vmatprep.subr.mxu0 0.0
  %488 = vmatpush1.msra.mxu0 0.0
  %489 = vmatprep.subr.mxu0 0.0
  %490 = vmatpush1.msra.mxu0 0.0
  %491 = vmatprep.subr.mxu0 0.0
  %492 = vmatpush1.msra.mxu0 0.0
  %493 = vmatprep.subr.mxu0 0.0
  %494 = vmatpush1.msra.mxu0 0.0
  %495 = vmatprep.subr.mxu0 0.0
  %496 = vmatpush1.msra.mxu0 %v463
  %497 = vmatprep.subr.mxu0 0.0
  %498 = vmatpush1.msra.mxu0 %v462
  %499 = vmatprep.subr.mxu0 0.0
  %500 = vmatpush2.msra.mxu0 0.0
  %501 = vmatprep.subr.mxu0 0.0
  %502 = vmatpush2.msra.mxu0 0.0
  %503 = vmatprep.subr.mxu0 0.0
  %504 = vmatpush2.msra.mxu0 0.0
  %505 = vmatprep.subr.mxu0 0.0
  %506 = vmatpush2.msra.mxu0 0.0
  %507 = vmatprep.subr.mxu0 0.0
  %508 = vmatpush2.msra.mxu0 0.0
  %509 = vmatprep.subr.mxu0 0.0
  %510 = vmatpush2.msra.mxu0 0.0
  %511 = vmatprep.subr.mxu0 0.0
  %512 = vmatpush2.msra.mxu0 0.0
  %513 = vmatprep.subr.mxu0 0.0
  %514 = vmatpush2.msra.mxu0 0.0
  %515 = vmatprep.subr.mxu0 0.0
  %516 = vmatpush2.msra.mxu0 0.0
  %517 = vmatprep.subr.mxu0 0.0
  %518 = vmatpush2.msra.mxu0 0.0
  %519 = vmatprep.subr.mxu0 0.0
  %520 = vmatpush2.msra.mxu0 0.0
  %521 = vmatprep.subr.mxu0 0.0
  %522 = vmatpush2.msra.mxu0 0.0
  %523 = vmatprep.subr.mxu0 0.0
  %524 = vmatpush2.msra.mxu0 0.0
  %525 = vmatprep.subr.mxu0 0.0
  %526 = vmatpush2.msra.mxu0 0.0
  %527 = vmatprep.subr.mxu0 0.0
  %528 = vmatpush2.msra.mxu0 0.0
  %529 = vmatprep.subr.mxu0 0.0
  %530 = vmatpush2.msra.mxu0 0.0
  %531 = vmatprep.mubr.f32.mxu0 0.0
  %532 = vmatmul.mubr.f32.gmra.mxu0 %v465
  %v533 = vpop.f32.mrf.mxu0
  %v534 = vadd.f32 0.0, %v533
  %v535 = vpop.f32.mrf.mxu0
  %536 = vdwg.mxu0
  %v537 = vadd.f32 %v461, %v534
  %v538 = vxor.u32 %v537, 2147483648
  %v539 = vmul.f32 %v538, 1.442695
  %v540 = vpow.pop %v539
  %v541 = vadd.f32 %v540, 1.0
  %v542 = vrcp.pop %v541
  %v543 = vmul.f32 1.0, %v542
  %v544 = vtanh.pop %v537
  %546 = vrot.lane.b32.xlu0 %v459, 16
  %v547 = vpop.permute.xlu0 %546
  %v549 = vmul.f32 %v543, %v547
  %551 = vrot.lane.b32.xlu0 %v544, 96
  %v552 = vpop.permute.xlu0 %551
  %v554 = vmul.f32 %v543, %v552
  %556 = vrot.lane.b32.xlu0 %v554, 16
  %v557 = vpop.permute.xlu0 %556
  %v559 = vadd.f32 %v549, %v557
  %v560 = vtanh.pop %v559
  %562 = vrot.lane.b32.xlu0 %v560, 32
  %v563 = vpop.permute.xlu0 %562
  %v565 = vmul.f32 %v543, %v563
  %vm566 = vcmp.gt.s32.totalorder %v323, 7
  %v567 = vsel %vm566, 1, 0
  %568 = vset.pattern.permute.xlu0 0
  %569 = vperm.xlu0 %568, %v567
  %v570 = vpop.permute.xlu0 %569
  %vm571 = vcmp.eq.s32.totalorder %v570, 1
  %572 = vrot.lane.b32.xlu0 %v458, 48
  %v573 = vpop.permute.xlu0 %572
  %v575 = vsel %vm571, %v565, %v573
  %577 = vrot.lane.b32.xlu0 %v575, 80
  %v578 = vpop.permute.xlu0 %577
  %580 = vst.msk [vmem:[#allocation8] sm:$0xff] %vm58, %v578
  %v581 = vsel %vm571, %v559, %v547
  %583 = vrot.lane.b32.xlu0 %v581, 112
  %v584 = vpop.permute.xlu0 %583
  %586 = vst.msk [vmem:[#allocation9] sm:$0xff] %vm58, %v584
  %v587 = vsel %vm571, %v565, 0.0
  %589 = vrot.lane.b32.xlu0 %v587, 80
  %v590 = vpop.permute.xlu0 %589
  %s592 = scalar_lea.vmem [#allocation5], 56
  %593 = vst.msk [vmem:[%s592] sm:$0xff] %vm58, %v590
  %v594 = vld [vmem:[#allocation6] sm:$0xff]
  %v595 = vld [vmem:[#allocation7] sm:$0xff]
  %s596 = scalar_lea.vmem [#allocation2], 8
  %v597 = vld [vmem:[%s596] sm:$0xff]
  %v598 = vld [vmem:[%s4] sm:$0xff]
  %v599 = vld [vmem:[%s4 + $0x8] sm:$0xff]
  %v601 = vsel %vm58, %v594, 0
  %603 = vmatprep.subr.mxu0 0.0
  %604 = vmatpush1.msra.mxu0 0.0
  %605 = vmatprep.subr.mxu0 0.0
  %606 = vmatpush1.msra.mxu0 0.0
  %607 = vmatprep.subr.mxu0 0.0
  %608 = vmatpush1.msra.mxu0 0.0
  %609 = vmatprep.subr.mxu0 0.0
  %610 = vmatpush1.msra.mxu0 0.0
  %611 = vmatprep.subr.mxu0 0.0
  %612 = vmatpush1.msra.mxu0 0.0
  %613 = vmatprep.subr.mxu0 0.0
  %614 = vmatpush1.msra.mxu0 0.0
  %615 = vmatprep.subr.mxu0 0.0
  %616 = vmatpush1.msra.mxu0 0.0
  %617 = vmatprep.subr.mxu0 0.0
  %618 = vmatpush1.msra.mxu0 0.0
  %619 = vmatprep.subr.mxu0 0.0
  %620 = vmatpush1.msra.mxu0 0.0
  %621 = vmatprep.subr.mxu0 0.0
  %622 = vmatpush1.msra.mxu0 0.0
  %623 = vmatprep.subr.mxu0 0.0
  %624 = vmatpush1.msra.mxu0 0.0
  %625 = vmatprep.subr.mxu0 0.0
  %626 = vmatpush1.msra.mxu0 0.0
  %627 = vmatprep.subr.mxu0 0.0
  %628 = vmatpush1.msra.mxu0 0.0
  %629 = vmatprep.subr.mxu0 0.0
  %630 = vmatpush1.msra.mxu0 0.0
  %631 = vmatprep.subr.mxu0 0.0
  %632 = vmatpush1.msra.mxu0 %v599
  %633 = vmatprep.subr.mxu0 0.0
  %634 = vmatpush1.msra.mxu0 %v598
  %635 = vmatprep.subr.mxu0 0.0
  %636 = vmatpush2.msra.mxu0 0.0
  %637 = vmatprep.subr.mxu0 0.0
  %638 = vmatpush2.msra.mxu0 0.0
  %639 = vmatprep.subr.mxu0 0.0
  %640 = vmatpush2.msra.mxu0 0.0
  %641 = vmatprep.subr.mxu0 0.0
  %642 = vmatpush2.msra.mxu0 0.0
  %643 = vmatprep.subr.mxu0 0.0
  %644 = vmatpush2.msra.mxu0 0.0
  %645 = vmatprep.subr.mxu0 0.0
  %646 = vmatpush2.msra.mxu0 0.0
  %647 = vmatprep.subr.mxu0 0.0
  %648 = vmatpush2.msra.mxu0 0.0
  %649 = vmatprep.subr.mxu0 0.0
  %650 = vmatpush2.msra.mxu0 0.0
  %651 = vmatprep.subr.mxu0 0.0
  %652 = vmatpush2.msra.mxu0 0.0
  %653 = vmatprep.subr.mxu0 0.0
  %654 = vmatpush2.msra.mxu0 0.0
  %655 = vmatprep.subr.mxu0 0.0
  %656 = vmatpush2.msra.mxu0 0.0
  %657 = vmatprep.subr.mxu0 0.0
  %658 = vmatpush2.msra.mxu0 0.0
  %659 = vmatprep.subr.mxu0 0.0
  %660 = vmatpush2.msra.mxu0 0.0
  %661 = vmatprep.subr.mxu0 0.0
  %662 = vmatpush2.msra.mxu0 0.0
  %663 = vmatprep.subr.mxu0 0.0
  %664 = vmatpush2.msra.mxu0 0.0
  %665 = vmatprep.subr.mxu0 0.0
  %666 = vmatpush2.msra.mxu0 0.0
  %667 = vmatprep.mubr.f32.mxu0 0.0
  %668 = vmatmul.mubr.f32.gmra.mxu0 %v601
  %v669 = vpop.f32.mrf.mxu0
  %v670 = vadd.f32 0.0, %v669
  %v671 = vpop.f32.mrf.mxu0
  %672 = vdwg.mxu0
  %v673 = vadd.f32 %v597, %v670
  %v674 = vxor.u32 %v673, 2147483648
  %v675 = vmul.f32 %v674, 1.442695
  %v676 = vpow.pop %v675
  %v677 = vadd.f32 %v676, 1.0
  %v678 = vrcp.pop %v677
  %v679 = vmul.f32 1.0, %v678
  %v680 = vtanh.pop %v673
  %682 = vrot.lane.b32.xlu0 %v595, 16
  %v683 = vpop.permute.xlu0 %682
  %v685 = vmul.f32 %v679, %v683
  %687 = vrot.lane.b32.xlu0 %v680, 96
  %v688 = vpop.permute.xlu0 %687
  %v690 = vmul.f32 %v679, %v688
  %692 = vrot.lane.b32.xlu0 %v690, 16
  %v693 = vpop.permute.xlu0 %692
  %v695 = vadd.f32 %v685, %v693
  %v696 = vtanh.pop %v695
  %698 = vrot.lane.b32.xlu0 %v696, 32
  %v699 = vpop.permute.xlu0 %698
  %v701 = vmul.f32 %v679, %v699
  %vm702 = vcmp.gt.s32.totalorder %v323, 1
  %v703 = vsel %vm702, 1, 0
  %704 = vset.pattern.permute.xlu0 0
  %705 = vperm.xlu0 %704, %v703
  %v706 = vpop.permute.xlu0 %705
  %vm707 = vcmp.eq.s32.totalorder %v706, 1
  %708 = vrot.lane.b32.xlu0 %v594, 48
  %v709 = vpop.permute.xlu0 %708
  %v711 = vsel %vm707, %v701, %v709
  %713 = vrot.lane.b32.xlu0 %v711, 80
  %v714 = vpop.permute.xlu0 %713
  %716 = vst.msk [vmem:[#allocation6] sm:$0xff] %vm58, %v714
  %v717 = vsel %vm707, %v695, %v683
  %719 = vrot.lane.b32.xlu0 %v717, 112
  %v720 = vpop.permute.xlu0 %719
  %722 = vst.msk [vmem:[#allocation7] sm:$0xff] %vm58, %v720
  %v723 = vsel %vm707, %v701, 0.0
  %725 = vrot.lane.b32.xlu0 %v723, 80
  %v726 = vpop.permute.xlu0 %725
  %s728 = scalar_lea.vmem [#allocation4], 8
  %729 = vst.msk [vmem:[%s728] sm:$0xff] %vm58, %v726
  %v730 = vld [vmem:[#allocation8] sm:$0xff]
  %v731 = vld [vmem:[#allocation9] sm:$0xff]
  %s732 = scalar_lea.vmem [#allocation3], 48
  %v733 = vld [vmem:[%s732] sm:$0xff]
  %v734 = vld [vmem:[%s7] sm:$0xff]
  %v735 = vld [vmem:[%s7 + $0x8] sm:$0xff]
  %v737 = vsel %vm58, %v730, 0
  %739 = vmatprep.subr.mxu0 0.0
  %740 = vmatpush1.msra.mxu0 0.0
  %741 = vmatprep.subr.mxu0 0.0
  %742 = vmatpush1.msra.mxu0 0.0
  %743 = vmatprep.subr.mxu0 0.0
  %744 = vmatpush1.msra.mxu0 0.0
  %745 = vmatprep.subr.mxu0 0.0
  %746 = vmatpush1.msra.mxu0 0.0
  %747 = vmatprep.subr.mxu0 0.0
  %748 = vmatpush1.msra.mxu0 0.0
  %749 = vmatprep.subr.mxu0 0.0
  %750 = vmatpush1.msra.mxu0 0.0
  %751 = vmatprep.subr.mxu0 0.0
  %752 = vmatpush1.msra.mxu0 0.0
  %753 = vmatprep.subr.mxu0 0.0
  %754 = vmatpush1.msra.mxu0 0.0
  %755 = vmatprep.subr.mxu0 0.0
  %756 = vmatpush1.msra.mxu0 0.0
  %757 = vmatprep.subr.mxu0 0.0
  %758 = vmatpush1.msra.mxu0 0.0
  %759 = vmatprep.subr.mxu0 0.0
  %760 = vmatpush1.msra.mxu0 0.0
  %761 = vmatprep.subr.mxu0 0.0
  %762 = vmatpush1.msra.mxu0 0.0
  %763 = vmatprep.subr.mxu0 0.0
  %764 = vmatpush1.msra.mxu0 0.0
  %765 = vmatprep.subr.mxu0 0.0
  %766 = vmatpush1.msra.mxu0 0.0
  %767 = vmatprep.subr.mxu0 0.0
  %768 = vmatpush1.msra.mxu0 %v735
  %769 = vmatprep.subr.mxu0 0.0
  %770 = vmatpush1.msra.mxu0 %v734
  %771 = vmatprep.subr.mxu0 0.0
  %772 = vmatpush2.msra.mxu0 0.0
  %773 = vmatprep.subr.mxu0 0.0
  %774 = vmatpush2.msra.mxu0 0.0
  %775 = vmatprep.subr.mxu0 0.0
  %776 = vmatpush2.msra.mxu0 0.0
  %777 = vmatprep.subr.mxu0 0.0
  %778 = vmatpush2.msra.mxu0 0.0
  %779 = vmatprep.subr.mxu0 0.0
  %780 = vmatpush2.msra.mxu0 0.0
  %781 = vmatprep.subr.mxu0 0.0
  %782 = vmatpush2.msra.mxu0 0.0
  %783 = vmatprep.subr.mxu0 0.0
  %784 = vmatpush2.msra.mxu0 0.0
  %785 = vmatprep.subr.mxu0 0.0
  %786 = vmatpush2.msra.mxu0 0.0
  %787 = vmatprep.subr.mxu0 0.0
  %788 = vmatpush2.msra.mxu0 0.0
  %789 = vmatprep.subr.mxu0 0.0
  %790 = vmatpush2.msra.mxu0 0.0
  %791 = vmatprep.subr.mxu0 0.0
  %792 = vmatpush2.msra.mxu0 0.0
  %793 = vmatprep.subr.mxu0 0.0
  %794 = vmatpush2.msra.mxu0 0.0
  %795 = vmatprep.subr.mxu0 0.0
  %796 = vmatpush2.msra.mxu0 0.0
  %797 = vmatprep.subr.mxu0 0.0
  %798 = vmatpush2.msra.mxu0 0.0
  %799 = vmatprep.subr.mxu0 0.0
  %800 = vmatpush2.msra.mxu0 0.0
  %801 = vmatprep.subr.mxu0 0.0
  %802 = vmatpush2.msra.mxu0 0.0
  %803 = vmatprep.mubr.f32.mxu0 0.0
  %804 = vmatmul.mubr.f32.gmra.mxu0 %v737
  %v805 = vpop.f32.mrf.mxu0
  %v806 = vadd.f32 0.0, %v805
  %v807 = vpop.f32.mrf.mxu0
  %808 = vdwg.mxu0
  %v809 = vadd.f32 %v733, %v806
  %v810 = vxor.u32 %v809, 2147483648
  %v811 = vmul.f32 %v810, 1.442695
  %v812 = vpow.pop %v811
  %v813 = vadd.f32 %v812, 1.0
  %v814 = vrcp.pop %v813
  %v815 = vmul.f32 1.0, %v814
  %v816 = vtanh.pop %v809
  %818 = vrot.lane.b32.xlu0 %v731, 16
  %v819 = vpop.permute.xlu0 %818
  %v821 = vmul.f32 %v815, %v819
  %823 = vrot.lane.b32.xlu0 %v816, 96
  %v824 = vpop.permute.xlu0 %823
  %v826 = vmul.f32 %v815, %v824
  %828 = vrot.lane.b32.xlu0 %v826, 16
  %v829 = vpop.permute.xlu0 %828
  %v831 = vadd.f32 %v821, %v829
  %v832 = vtanh.pop %v831
  %834 = vrot.lane.b32.xlu0 %v832, 32
  %v835 = vpop.permute.xlu0 %834
  %v837 = vmul.f32 %v815, %v835
  %vm838 = vcmp.gt.s32.totalorder %v323, 6
  %v839 = vsel %vm838, 1, 0
  %840 = vset.pattern.permute.xlu0 0
  %841 = vperm.xlu0 %840, %v839
  %v842 = vpop.permute.xlu0 %841
  %vm843 = vcmp.eq.s32.totalorder %v842, 1
  %844 = vrot.lane.b32.xlu0 %v730, 48
  %v845 = vpop.permute.xlu0 %844
  %v847 = vsel %vm843, %v837, %v845
  %849 = vrot.lane.b32.xlu0 %v847, 80
  %v850 = vpop.permute.xlu0 %849
  %852 = vst.msk [vmem:[#allocation8] sm:$0xff] %vm58, %v850
  %v853 = vsel %vm843, %v831, %v819
  %855 = vrot.lane.b32.xlu0 %v853, 112
  %v856 = vpop.permute.xlu0 %855
  %858 = vst.msk [vmem:[#allocation9] sm:$0xff] %vm58, %v856
  %v859 = vsel %vm843, %v837, 0.0
  %861 = vrot.lane.b32.xlu0 %v859, 80
  %v862 = vpop.permute.xlu0 %861
  %s864 = scalar_lea.vmem [#allocation5], 48
  %865 = vst.msk [vmem:[%s864] sm:$0xff] %vm58, %v862
  %v866 = vld [vmem:[#allocation6] sm:$0xff]
  %v867 = vld [vmem:[#allocation7] sm:$0xff]
  %s868 = scalar_lea.vmem [#allocation2], 16
  %v869 = vld [vmem:[%s868] sm:$0xff]
  %v870 = vld [vmem:[%s4] sm:$0xff]
  %v871 = vld [vmem:[%s4 + $0x8] sm:$0xff]
  %v873 = vsel %vm58, %v866, 0
  %875 = vmatprep.subr.mxu0 0.0
  %876 = vmatpush1.msra.mxu0 0.0
  %877 = vmatprep.subr.mxu0 0.0
  %878 = vmatpush1.msra.mxu0 0.0
  %879 = vmatprep.subr.mxu0 0.0
  %880 = vmatpush1.msra.mxu0 0.0
  %881 = vmatprep.subr.mxu0 0.0
  %882 = vmatpush1.msra.mxu0 0.0
  %883 = vmatprep.subr.mxu0 0.0
  %884 = vmatpush1.msra.mxu0 0.0
  %885 = vmatprep.subr.mxu0 0.0
  %886 = vmatpush1.msra.mxu0 0.0
  %887 = vmatprep.subr.mxu0 0.0
  %888 = vmatpush1.msra.mxu0 0.0
  %889 = vmatprep.subr.mxu0 0.0
  %890 = vmatpush1.msra.mxu0 0.0
  %891 = vmatprep.subr.mxu0 0.0
  %892 = vmatpush1.msra.mxu0 0.0
  %893 = vmatprep.subr.mxu0 0.0
  %894 = vmatpush1.msra.mxu0 0.0
  %895 = vmatprep.subr.mxu0 0.0
  %896 = vmatpush1.msra.mxu0 0.0
  %897 = vmatprep.subr.mxu0 0.0
  %898 = vmatpush1.msra.mxu0 0.0
  %899 = vmatprep.subr.mxu0 0.0
  %900 = vmatpush1.msra.mxu0 0.0
  %901 = vmatprep.subr.mxu0 0.0
  %902 = vmatpush1.msra.mxu0 0.0
  %903 = vmatprep.subr.mxu0 0.0
  %904 = vmatpush1.msra.mxu0 %v871
  %905 = vmatprep.subr.mxu0 0.0
  %906 = vmatpush1.msra.mxu0 %v870
  %907 = vmatprep.subr.mxu0 0.0
  %908 = vmatpush2.msra.mxu0 0.0
  %909 = vmatprep.subr.mxu0 0.0
  %910 = vmatpush2.msra.mxu0 0.0
  %911 = vmatprep.subr.mxu0 0.0
  %912 = vmatpush2.msra.mxu0 0.0
  %913 = vmatprep.subr.mxu0 0.0
  %914 = vmatpush2.msra.mxu0 0.0
  %915 = vmatprep.subr.mxu0 0.0
  %916 = vmatpush2.msra.mxu0 0.0
  %917 = vmatprep.subr.mxu0 0.0
  %918 = vmatpush2.msra.mxu0 0.0
  %919 = vmatprep.subr.mxu0 0.0
  %920 = vmatpush2.msra.mxu0 0.0
  %921 = vmatprep.subr.mxu0 0.0
  %922 = vmatpush2.msra.mxu0 0.0
  %923 = vmatprep.subr.mxu0 0.0
  %924 = vmatpush2.msra.mxu0 0.0
  %925 = vmatprep.subr.mxu0 0.0
  %926 = vmatpush2.msra.mxu0 0.0
  %927 = vmatprep.subr.mxu0 0.0
  %928 = vmatpush2.msra.mxu0 0.0
  %929 = vmatprep.subr.mxu0 0.0
  %930 = vmatpush2.msra.mxu0 0.0
  %931 = vmatprep.subr.mxu0 0.0
  %932 = vmatpush2.msra.mxu0 0.0
  %933 = vmatprep.subr.mxu0 0.0
  %934 = vmatpush2.msra.mxu0 0.0
  %935 = vmatprep.subr.mxu0 0.0
  %936 = vmatpush2.msra.mxu0 0.0
  %937 = vmatprep.subr.mxu0 0.0
  %938 = vmatpush2.msra.mxu0 0.0
  %939 = vmatprep.mubr.f32.mxu0 0.0
  %940 = vmatmul.mubr.f32.gmra.mxu0 %v873
  %v941 = vpop.f32.mrf.mxu0
  %v942 = vadd.f32 0.0, %v941
  %v943 = vpop.f32.mrf.mxu0
  %944 = vdwg.mxu0
  %v945 = vadd.f32 %v869, %v942
  %v946 = vxor.u32 %v945, 2147483648
  %v947 = vmul.f32 %v946, 1.442695
  %v948 = vpow.pop %v947
  %v949 = vadd.f32 %v948, 1.0
  %v950 = vrcp.pop %v949
  %v951 = vmul.f32 1.0, %v950
  %v952 = vtanh.pop %v945
  %954 = vrot.lane.b32.xlu0 %v867, 16
  %v955 = vpop.permute.xlu0 %954
  %v957 = vmul.f32 %v951, %v955
  %959 = vrot.lane.b32.xlu0 %v952, 96
  %v960 = vpop.permute.xlu0 %959
  %v962 = vmul.f32 %v951, %v960
  %964 = vrot.lane.b32.xlu0 %v962, 16
  %v965 = vpop.permute.xlu0 %964
  %v967 = vadd.f32 %v957, %v965
  %v968 = vtanh.pop %v967
  %970 = vrot.lane.b32.xlu0 %v968, 32
  %v971 = vpop.permute.xlu0 %970
  %v973 = vmul.f32 %v951, %v971
  %vm974 = vcmp.gt.s32.totalorder %v323, 2
  %v975 = vsel %vm974, 1, 0
  %976 = vset.pattern.permute.xlu0 0
  %977 = vperm.xlu0 %976, %v975
  %v978 = vpop.permute.xlu0 %977
  %vm979 = vcmp.eq.s32.totalorder %v978, 1
  %980 = vrot.lane.b32.xlu0 %v866, 48
  %v981 = vpop.permute.xlu0 %980
  %v983 = vsel %vm979, %v973, %v981
  %985 = vrot.lane.b32.xlu0 %v983, 80
  %v986 = vpop.permute.xlu0 %985
  %988 = vst.msk [vmem:[#allocation6] sm:$0xff] %vm58, %v986
  %v989 = vsel %vm979, %v967, %v955
  %991 = vrot.lane.b32.xlu0 %v989, 112
  %v992 = vpop.permute.xlu0 %991
  %994 = vst.msk [vmem:[#allocation7] sm:$0xff] %vm58, %v992
  %v995 = vsel %vm979, %v973, 0.0
  %997 = vrot.lane.b32.xlu0 %v995, 80
  %v998 = vpop.permute.xlu0 %997
  %s1000 = scalar_lea.vmem [#allocation4], 16
  %1001 = vst.msk [vmem:[%s1000] sm:$0xff] %vm58, %v998
  %v1002 = vld [vmem:[#allocation8] sm:$0xff]
  %v1003 = vld [vmem:[#allocation9] sm:$0xff]
  %s1004 = scalar_lea.vmem [#allocation3], 40
  %v1005 = vld [vmem:[%s1004] sm:$0xff]
  %v1006 = vld [vmem:[%s7] sm:$0xff]
  %v1007 = vld [vmem:[%s7 + $0x8] sm:$0xff]
  %v1009 = vsel %vm58, %v1002, 0
  %1011 = vmatprep.subr.mxu0 0.0
  %1012 = vmatpush1.msra.mxu0 0.0
  %1013 = vmatprep.subr.mxu0 0.0
  %1014 = vmatpush1.msra.mxu0 0.0
  %1015 = vmatprep.subr.mxu0 0.0
  %1016 = vmatpush1.msra.mxu0 0.0
  %1017 = vmatprep.subr.mxu0 0.0
  %1018 = vmatpush1.msra.mxu0 0.0
  %1019 = vmatprep.subr.mxu0 0.0
  %1020 = vmatpush1.msra.mxu0 0.0
  %1021 = vmatprep.subr.mxu0 0.0
  %1022 = vmatpush1.msra.mxu0 0.0
  %1023 = vmatprep.subr.mxu0 0.0
  %1024 = vmatpush1.msra.mxu0 0.0
  %1025 = vmatprep.subr.mxu0 0.0
  %1026 = vmatpush1.msra.mxu0 0.0
  %1027 = vmatprep.subr.mxu0 0.0
  %1028 = vmatpush1.msra.mxu0 0.0
  %1029 = vmatprep.subr.mxu0 0.0
  %1030 = vmatpush1.msra.mxu0 0.0
  %1031 = vmatprep.subr.mxu0 0.0
  %1032 = vmatpush1.msra.mxu0 0.0
  %1033 = vmatprep.subr.mxu0 0.0
  %1034 = vmatpush1.msra.mxu0 0.0
  %1035 = vmatprep.subr.mxu0 0.0
  %1036 = vmatpush1.msra.mxu0 0.0
  %1037 = vmatprep.subr.mxu0 0.0
  %1038 = vmatpush1.msra.mxu0 0.0
  %1039 = vmatprep.subr.mxu0 0.0
  %1040 = vmatpush1.msra.mxu0 %v1007
  %1041 = vmatprep.subr.mxu0 0.0
  %1042 = vmatpush1.msra.mxu0 %v1006
  %1043 = vmatprep.subr.mxu0 0.0
  %1044 = vmatpush2.msra.mxu0 0.0
  %1045 = vmatprep.subr.mxu0 0.0
  %1046 = vmatpush2.msra.mxu0 0.0
  %1047 = vmatprep.subr.mxu0 0.0
  %1048 = vmatpush2.msra.mxu0 0.0
  %1049 = vmatprep.subr.mxu0 0.0
  %1050 = vmatpush2.msra.mxu0 0.0
  %1051 = vmatprep.subr.mxu0 0.0
  %1052 = vmatpush2.msra.mxu0 0.0
  %1053 = vmatprep.subr.mxu0 0.0
  %1054 = vmatpush2.msra.mxu0 0.0
  %1055 = vmatprep.subr.mxu0 0.0
  %1056 = vmatpush2.msra.mxu0 0.0
  %1057 = vmatprep.subr.mxu0 0.0
  %1058 = vmatpush2.msra.mxu0 0.0
  %1059 = vmatprep.subr.mxu0 0.0
  %1060 = vmatpush2.msra.mxu0 0.0
  %1061 = vmatprep.subr.mxu0 0.0
  %1062 = vmatpush2.msra.mxu0 0.0
  %1063 = vmatprep.subr.mxu0 0.0
  %1064 = vmatpush2.msra.mxu0 0.0
  %1065 = vmatprep.subr.mxu0 0.0
  %1066 = vmatpush2.msra.mxu0 0.0
  %1067 = vmatprep.subr.mxu0 0.0
  %1068 = vmatpush2.msra.mxu0 0.0
  %1069 = vmatprep.subr.mxu0 0.0
  %1070 = vmatpush2.msra.mxu0 0.0
  %1071 = vmatprep.subr.mxu0 0.0
  %1072 = vmatpush2.msra.mxu0 0.0
  %1073 = vmatprep.subr.mxu0 0.0
  %1074 = vmatpush2.msra.mxu0 0.0
  %1075 = vmatprep.mubr.f32.mxu0 0.0
  %1076 = vmatmul.mubr.f32.gmra.mxu0 %v1009
  %v1077 = vpop.f32.mrf.mxu0
  %v1078 = vadd.f32 0.0, %v1077
  %v1079 = vpop.f32.mrf.mxu0
  %1080 = vdwg.mxu0
  %v1081 = vadd.f32 %v1005, %v1078
  %v1082 = vxor.u32 %v1081, 2147483648
  %v1083 = vmul.f32 %v1082, 1.442695
  %v1084 = vpow.pop %v1083
  %v1085 = vadd.f32 %v1084, 1.0
  %v1086 = vrcp.pop %v1085
  %v1087 = vmul.f32 1.0, %v1086
  %v1088 = vtanh.pop %v1081
  %1090 = vrot.lane.b32.xlu0 %v1003, 16
  %v1091 = vpop.permute.xlu0 %1090
  %v1093 = vmul.f32 %v1087, %v1091
  %1095 = vrot.lane.b32.xlu0 %v1088, 96
  %v1096 = vpop.permute.xlu0 %1095
  %v1098 = vmul.f32 %v1087, %v1096
  %1100 = vrot.lane.b32.xlu0 %v1098, 16
  %v1101 = vpop.permute.xlu0 %1100
  %v1103 = vadd.f32 %v1093, %v1101
  %v1104 = vtanh.pop %v1103
  %1106 = vrot.lane.b32.xlu0 %v1104, 32
  %v1107 = vpop.permute.xlu0 %1106
  %v1109 = vmul.f32 %v1087, %v1107
  %vm1110 = vcmp.gt.s32.totalorder %v323, 5
  %v1111 = vsel %vm1110, 1, 0
  %1112 = vset.pattern.permute.xlu0 0
  %1113 = vperm.xlu0 %1112, %v1111
  %v1114 = vpop.permute.xlu0 %1113
  %vm1115 = vcmp.eq.s32.totalorder %v1114, 1
  %1116 = vrot.lane.b32.xlu0 %v1002, 48
  %v1117 = vpop.permute.xlu0 %1116
  %v1119 = vsel %vm1115, %v1109, %v1117
  %1121 = vrot.lane.b32.xlu0 %v1119, 80
  %v1122 = vpop.permute.xlu0 %1121
  %1124 = vst.msk [vmem:[#allocation8] sm:$0xff] %vm58, %v1122
  %v1125 = vsel %vm1115, %v1103, %v1091
  %1127 = vrot.lane.b32.xlu0 %v1125, 112
  %v1128 = vpop.permute.xlu0 %1127
  %1130 = vst.msk [vmem:[#allocation9] sm:$0xff] %vm58, %v1128
  %v1131 = vsel %vm1115, %v1109, 0.0
  %1133 = vrot.lane.b32.xlu0 %v1131, 80
  %v1134 = vpop.permute.xlu0 %1133
  %s1136 = scalar_lea.vmem [#allocation5], 40
  %1137 = vst.msk [vmem:[%s1136] sm:$0xff] %vm58, %v1134
  %v1138 = vld [vmem:[#allocation6] sm:$0xff]
  %v1139 = vld [vmem:[#allocation7] sm:$0xff]
  %s1140 = scalar_lea.vmem [#allocation2], 24
  %v1141 = vld [vmem:[%s1140] sm:$0xff]
  %v1142 = vld [vmem:[%s4] sm:$0xff]
  %v1143 = vld [vmem:[%s4 + $0x8] sm:$0xff]
  %v1145 = vsel %vm58, %v1138, 0
  %1147 = vmatprep.subr.mxu0 0.0
  %1148 = vmatpush1.msra.mxu0 0.0
  %1149 = vmatprep.subr.mxu0 0.0
  %1150 = vmatpush1.msra.mxu0 0.0
  %1151 = vmatprep.subr.mxu0 0.0
  %1152 = vmatpush1.msra.mxu0 0.0
  %1153 = vmatprep.subr.mxu0 0.0
  %1154 = vmatpush1.msra.mxu0 0.0
  %1155 = vmatprep.subr.mxu0 0.0
  %1156 = vmatpush1.msra.mxu0 0.0
  %1157 = vmatprep.subr.mxu0 0.0
  %1158 = vmatpush1.msra.mxu0 0.0
  %1159 = vmatprep.subr.mxu0 0.0
  %1160 = vmatpush1.msra.mxu0 0.0
  %1161 = vmatprep.subr.mxu0 0.0
  %1162 = vmatpush1.msra.mxu0 0.0
  %1163 = vmatprep.subr.mxu0 0.0
  %1164 = vmatpush1.msra.mxu0 0.0
  %1165 = vmatprep.subr.mxu0 0.0
  %1166 = vmatpush1.msra.mxu0 0.0
  %1167 = vmatprep.subr.mxu0 0.0
  %1168 = vmatpush1.msra.mxu0 0.0
  %1169 = vmatprep.subr.mxu0 0.0
  %1170 = vmatpush1.msra.mxu0 0.0
  %1171 = vmatprep.subr.mxu0 0.0
  %1172 = vmatpush1.msra.mxu0 0.0
  %1173 = vmatprep.subr.mxu0 0.0
  %1174 = vmatpush1.msra.mxu0 0.0
  %1175 = vmatprep.subr.mxu0 0.0
  %1176 = vmatpush1.msra.mxu0 %v1143
  %1177 = vmatprep.subr.mxu0 0.0
  %1178 = vmatpush1.msra.mxu0 %v1142
  %1179 = vmatprep.subr.mxu0 0.0
  %1180 = vmatpush2.msra.mxu0 0.0
  %1181 = vmatprep.subr.mxu0 0.0
  %1182 = vmatpush2.msra.mxu0 0.0
  %1183 = vmatprep.subr.mxu0 0.0
  %1184 = vmatpush2.msra.mxu0 0.0
  %1185 = vmatprep.subr.mxu0 0.0
  %1186 = vmatpush2.msra.mxu0 0.0
  %1187 = vmatprep.subr.mxu0 0.0
  %1188 = vmatpush2.msra.mxu0 0.0
  %1189 = vmatprep.subr.mxu0 0.0
  %1190 = vmatpush2.msra.mxu0 0.0
  %1191 = vmatprep.subr.mxu0 0.0
  %1192 = vmatpush2.msra.mxu0 0.0
  %1193 = vmatprep.subr.mxu0 0.0
  %1194 = vmatpush2.msra.mxu0 0.0
  %1195 = vmatprep.subr.mxu0 0.0
  %1196 = vmatpush2.msra.mxu0 0.0
  %1197 = vmatprep.subr.mxu0 0.0
  %1198 = vmatpush2.msra.mxu0 0.0
  %1199 = vmatprep.subr.mxu0 0.0
  %1200 = vmatpush2.msra.mxu0 0.0
  %1201 = vmatprep.subr.mxu0 0.0
  %1202 = vmatpush2.msra.mxu0 0.0
  %1203 = vmatprep.subr.mxu0 0.0
  %1204 = vmatpush2.msra.mxu0 0.0
  %1205 = vmatprep.subr.mxu0 0.0
  %1206 = vmatpush2.msra.mxu0 0.0
  %1207 = vmatprep.subr.mxu0 0.0
  %1208 = vmatpush2.msra.mxu0 0.0
  %1209 = vmatprep.subr.mxu0 0.0
  %1210 = vmatpush2.msra.mxu0 0.0
  %1211 = vmatprep.mubr.f32.mxu0 0.0
  %1212 = vmatmul.mubr.f32.gmra.mxu0 %v1145
  %v1213 = vpop.f32.mrf.mxu0
  %v1214 = vadd.f32 0.0, %v1213
  %v1215 = vpop.f32.mrf.mxu0
  %1216 = vdwg.mxu0
  %v1217 = vadd.f32 %v1141, %v1214
  %v1218 = vxor.u32 %v1217, 2147483648
  %v1219 = vmul.f32 %v1218, 1.442695
  %v1220 = vpow.pop %v1219
  %v1221 = vadd.f32 %v1220, 1.0
  %v1222 = vrcp.pop %v1221
  %v1223 = vmul.f32 1.0, %v1222
  %v1224 = vtanh.pop %v1217
  %1226 = vrot.lane.b32.xlu0 %v1139, 16
  %v1227 = vpop.permute.xlu0 %1226
  %v1229 = vmul.f32 %v1223, %v1227
  %1231 = vrot.lane.b32.xlu0 %v1224, 96
  %v1232 = vpop.permute.xlu0 %1231
  %v1234 = vmul.f32 %v1223, %v1232
  %1236 = vrot.lane.b32.xlu0 %v1234, 16
  %v1237 = vpop.permute.xlu0 %1236
  %v1239 = vadd.f32 %v1229, %v1237
  %v1240 = vtanh.pop %v1239
  %1242 = vrot.lane.b32.xlu0 %v1240, 32
  %v1243 = vpop.permute.xlu0 %1242
  %v1245 = vmul.f32 %v1223, %v1243
  %vm1246 = vcmp.gt.s32.totalorder %v323, 3
  %v1247 = vsel %vm1246, 1, 0
  %1248 = vset.pattern.permute.xlu0 0
  %1249 = vperm.xlu0 %1248, %v1247
  %v1250 = vpop.permute.xlu0 %1249
  %vm1251 = vcmp.eq.s32.totalorder %v1250, 1
  %1252 = vrot.lane.b32.xlu0 %v1138, 48
  %v1253 = vpop.permute.xlu0 %1252
  %v1255 = vsel %vm1251, %v1245, %v1253
  %1257 = vrot.lane.b32.xlu0 %v1255, 80
  %v1258 = vpop.permute.xlu0 %1257
  %1260 = vst.msk [vmem:[#allocation6] sm:$0xff] %vm58, %v1258
  %v1261 = vsel %vm1251, %v1239, %v1227
  %1263 = vrot.lane.b32.xlu0 %v1261, 112
  %v1264 = vpop.permute.xlu0 %1263
  %1266 = vst.msk [vmem:[#allocation7] sm:$0xff] %vm58, %v1264
  %v1267 = vsel %vm1251, %v1245, 0.0
  %1269 = vrot.lane.b32.xlu0 %v1267, 80
  %v1270 = vpop.permute.xlu0 %1269
  %s1272 = scalar_lea.vmem [#allocation4], 24
  %1273 = vst.msk [vmem:[%s1272] sm:$0xff] %vm58, %v1270
  %v1274 = vld [vmem:[#allocation8] sm:$0xff]
  %v1275 = vld [vmem:[#allocation9] sm:$0xff]
  %s1276 = scalar_lea.vmem [#allocation3], 32
  %v1277 = vld [vmem:[%s1276] sm:$0xff]
  %v1278 = vld [vmem:[%s7] sm:$0xff]
  %v1279 = vld [vmem:[%s7 + $0x8] sm:$0xff]
  %v1281 = vsel %vm58, %v1274, 0
  %1283 = vmatprep.subr.mxu0 0.0
  %1284 = vmatpush1.msra.mxu0 0.0
  %1285 = vmatprep.subr.mxu0 0.0
  %1286 = vmatpush1.msra.mxu0 0.0
  %1287 = vmatprep.subr.mxu0 0.0
  %1288 = vmatpush1.msra.mxu0 0.0
  %1289 = vmatprep.subr.mxu0 0.0
  %1290 = vmatpush1.msra.mxu0 0.0
  %1291 = vmatprep.subr.mxu0 0.0
  %1292 = vmatpush1.msra.mxu0 0.0
  %1293 = vmatprep.subr.mxu0 0.0
  %1294 = vmatpush1.msra.mxu0 0.0
  %1295 = vmatprep.subr.mxu0 0.0
  %1296 = vmatpush1.msra.mxu0 0.0
  %1297 = vmatprep.subr.mxu0 0.0
  %1298 = vmatpush1.msra.mxu0 0.0
  %1299 = vmatprep.subr.mxu0 0.0
  %1300 = vmatpush1.msra.mxu0 0.0
  %1301 = vmatprep.subr.mxu0 0.0
  %1302 = vmatpush1.msra.mxu0 0.0
  %1303 = vmatprep.subr.mxu0 0.0
  %1304 = vmatpush1.msra.mxu0 0.0
  %1305 = vmatprep.subr.mxu0 0.0
  %1306 = vmatpush1.msra.mxu0 0.0
  %1307 = vmatprep.subr.mxu0 0.0
  %1308 = vmatpush1.msra.mxu0 0.0
  %1309 = vmatprep.subr.mxu0 0.0
  %1310 = vmatpush1.msra.mxu0 0.0
  %1311 = vmatprep.subr.mxu0 0.0
  %1312 = vmatpush1.msra.mxu0 %v1279
  %1313 = vmatprep.subr.mxu0 0.0
  %1314 = vmatpush1.msra.mxu0 %v1278
  %1315 = vmatprep.subr.mxu0 0.0
  %1316 = vmatpush2.msra.mxu0 0.0
  %1317 = vmatprep.subr.mxu0 0.0
  %1318 = vmatpush2.msra.mxu0 0.0
  %1319 = vmatprep.subr.mxu0 0.0
  %1320 = vmatpush2.msra.mxu0 0.0
  %1321 = vmatprep.subr.mxu0 0.0
  %1322 = vmatpush2.msra.mxu0 0.0
  %1323 = vmatprep.subr.mxu0 0.0
  %1324 = vmatpush2.msra.mxu0 0.0
  %1325 = vmatprep.subr.mxu0 0.0
  %1326 = vmatpush2.msra.mxu0 0.0
  %1327 = vmatprep.subr.mxu0 0.0
  %1328 = vmatpush2.msra.mxu0 0.0
  %1329 = vmatprep.subr.mxu0 0.0
  %1330 = vmatpush2.msra.mxu0 0.0
  %1331 = vmatprep.subr.mxu0 0.0
  %1332 = vmatpush2.msra.mxu0 0.0
  %1333 = vmatprep.subr.mxu0 0.0
  %1334 = vmatpush2.msra.mxu0 0.0
  %1335 = vmatprep.subr.mxu0 0.0
  %1336 = vmatpush2.msra.mxu0 0.0
  %1337 = vmatprep.subr.mxu0 0.0
  %1338 = vmatpush2.msra.mxu0 0.0
  %1339 = vmatprep.subr.mxu0 0.0
  %1340 = vmatpush2.msra.mxu0 0.0
  %1341 = vmatprep.subr.mxu0 0.0
  %1342 = vmatpush2.msra.mxu0 0.0
  %1343 = vmatprep.subr.mxu0 0.0
  %1344 = vmatpush2.msra.mxu0 0.0
  %1345 = vmatprep.subr.mxu0 0.0
  %1346 = vmatpush2.msra.mxu0 0.0
  %1347 = vmatprep.mubr.f32.mxu0 0.0
  %1348 = vmatmul.mubr.f32.gmra.mxu0 %v1281
  %v1349 = vpop.f32.mrf.mxu0
  %v1350 = vadd.f32 0.0, %v1349
  %v1351 = vpop.f32.mrf.mxu0
  %1352 = vdwg.mxu0
  %v1353 = vadd.f32 %v1277, %v1350
  %v1354 = vxor.u32 %v1353, 2147483648
  %v1355 = vmul.f32 %v1354, 1.442695
  %v1356 = vpow.pop %v1355
  %v1357 = vadd.f32 %v1356, 1.0
  %v1358 = vrcp.pop %v1357
  %v1359 = vmul.f32 1.0, %v1358
  %v1360 = vtanh.pop %v1353
  %1362 = vrot.lane.b32.xlu0 %v1275, 16
  %v1363 = vpop.permute.xlu0 %1362
  %v1365 = vmul.f32 %v1359, %v1363
  %1367 = vrot.lane.b32.xlu0 %v1360, 96
  %v1368 = vpop.permute.xlu0 %1367
  %v1370 = vmul.f32 %v1359, %v1368
  %1372 = vrot.lane.b32.xlu0 %v1370, 16
  %v1373 = vpop.permute.xlu0 %1372
  %v1375 = vadd.f32 %v1365, %v1373
  %v1376 = vtanh.pop %v1375
  %1378 = vrot.lane.b32.xlu0 %v1376, 32
  %v1379 = vpop.permute.xlu0 %1378
  %v1381 = vmul.f32 %v1359, %v1379
  %vm1382 = vcmp.gt.s32.totalorder %v323, 4
  %v1383 = vsel %vm1382, 1, 0
  %1384 = vset.pattern.permute.xlu0 0
  %1385 = vperm.xlu0 %1384, %v1383
  %v1386 = vpop.permute.xlu0 %1385
  %vm1387 = vcmp.eq.s32.totalorder %v1386, 1
  %1388 = vrot.lane.b32.xlu0 %v1274, 48
  %v1389 = vpop.permute.xlu0 %1388
  %v1391 = vsel %vm1387, %v1381, %v1389
  %1393 = vrot.lane.b32.xlu0 %v1391, 80
  %v1394 = vpop.permute.xlu0 %1393
  %1396 = vst.msk [vmem:[#allocation8] sm:$0xff] %vm58, %v1394
  %v1397 = vsel %vm1387, %v1375, %v1363
  %1399 = vrot.lane.b32.xlu0 %v1397, 112
  %v1400 = vpop.permute.xlu0 %1399
  %1402 = vst.msk [vmem:[#allocation9] sm:$0xff] %vm58, %v1400
  %v1403 = vsel %vm1387, %v1381, 0.0
  %1405 = vrot.lane.b32.xlu0 %v1403, 80
  %v1406 = vpop.permute.xlu0 %1405
  %s1408 = scalar_lea.vmem [#allocation5], 32
  %1409 = vst.msk [vmem:[%s1408] sm:$0xff] %vm58, %v1406
  %v1410 = vld [vmem:[#allocation6] sm:$0xff]
  %v1411 = vld [vmem:[#allocation7] sm:$0xff]
  %s1412 = scalar_lea.vmem [#allocation2], 32
  %v1413 = vld [vmem:[%s1412] sm:$0xff]
  %v1414 = vld [vmem:[%s4] sm:$0xff]
  %v1415 = vld [vmem:[%s4 + $0x8] sm:$0xff]
  %v1417 = vsel %vm58, %v1410, 0
  %1419 = vmatprep.subr.mxu0 0.0
  %1420 = vmatpush1.msra.mxu0 0.0
  %1421 = vmatprep.subr.mxu0 0.0
  %1422 = vmatpush1.msra.mxu0 0.0
  %1423 = vmatprep.subr.mxu0 0.0
  %1424 = vmatpush1.msra.mxu0 0.0
  %1425 = vmatprep.subr.mxu0 0.0
  %1426 = vmatpush1.msra.mxu0 0.0
  %1427 = vmatprep.subr.mxu0 0.0
  %1428 = vmatpush1.msra.mxu0 0.0
  %1429 = vmatprep.subr.mxu0 0.0
  %1430 = vmatpush1.msra.mxu0 0.0
  %1431 = vmatprep.subr.mxu0 0.0
  %1432 = vmatpush1.msra.mxu0 0.0
  %1433 = vmatprep.subr.mxu0 0.0
  %1434 = vmatpush1.msra.mxu0 0.0
  %1435 = vmatprep.subr.mxu0 0.0
  %1436 = vmatpush1.msra.mxu0 0.0
  %1437 = vmatprep.subr.mxu0 0.0
  %1438 = vmatpush1.msra.mxu0 0.0
  %1439 = vmatprep.subr.mxu0 0.0
  %1440 = vmatpush1.msra.mxu0 0.0
  %1441 = vmatprep.subr.mxu0 0.0
  %1442 = vmatpush1.msra.mxu0 0.0
  %1443 = vmatprep.subr.mxu0 0.0
  %1444 = vmatpush1.msra.mxu0 0.0
  %1445 = vmatprep.subr.mxu0 0.0
  %1446 = vmatpush1.msra.mxu0 0.0
  %1447 = vmatprep.subr.mxu0 0.0
  %1448 = vmatpush1.msra.mxu0 %v1415
  %1449 = vmatprep.subr.mxu0 0.0
  %1450 = vmatpush1.msra.mxu0 %v1414
  %1451 = vmatprep.subr.mxu0 0.0
  %1452 = vmatpush2.msra.mxu0 0.0
  %1453 = vmatprep.subr.mxu0 0.0
  %1454 = vmatpush2.msra.mxu0 0.0
  %1455 = vmatprep.subr.mxu0 0.0
  %1456 = vmatpush2.msra.mxu0 0.0
  %1457 = vmatprep.subr.mxu0 0.0
  %1458 = vmatpush2.msra.mxu0 0.0
  %1459 = vmatprep.subr.mxu0 0.0
  %1460 = vmatpush2.msra.mxu0 0.0
  %1461 = vmatprep.subr.mxu0 0.0
  %1462 = vmatpush2.msra.mxu0 0.0
  %1463 = vmatprep.subr.mxu0 0.0
  %1464 = vmatpush2.msra.mxu0 0.0
  %1465 = vmatprep.subr.mxu0 0.0
  %1466 = vmatpush2.msra.mxu0 0.0
  %1467 = vmatprep.subr.mxu0 0.0
  %1468 = vmatpush2.msra.mxu0 0.0
  %1469 = vmatprep.subr.mxu0 0.0
  %1470 = vmatpush2.msra.mxu0 0.0
  %1471 = vmatprep.subr.mxu0 0.0
  %1472 = vmatpush2.msra.mxu0 0.0
  %1473 = vmatprep.subr.mxu0 0.0
  %1474 = vmatpush2.msra.mxu0 0.0
  %1475 = vmatprep.subr.mxu0 0.0
  %1476 = vmatpush2.msra.mxu0 0.0
  %1477 = vmatprep.subr.mxu0 0.0
  %1478 = vmatpush2.msra.mxu0 0.0
  %1479 = vmatprep.subr.mxu0 0.0
  %1480 = vmatpush2.msra.mxu0 0.0
  %1481 = vmatprep.subr.mxu0 0.0
  %1482 = vmatpush2.msra.mxu0 0.0
  %1483 = vmatprep.mubr.f32.mxu0 0.0
  %1484 = vmatmul.mubr.f32.gmra.mxu0 %v1417
  %v1485 = vpop.f32.mrf.mxu0
  %v1486 = vadd.f32 0.0, %v1485
  %v1487 = vpop.f32.mrf.mxu0
  %1488 = vdwg.mxu0
  %v1489 = vadd.f32 %v1413, %v1486
  %v1490 = vxor.u32 %v1489, 2147483648
  %v1491 = vmul.f32 %v1490, 1.442695
  %v1492 = vpow.pop %v1491
  %v1493 = vadd.f32 %v1492, 1.0
  %v1494 = vrcp.pop %v1493
  %v1495 = vmul.f32 1.0, %v1494
  %v1496 = vtanh.pop %v1489
  %1498 = vrot.lane.b32.xlu0 %v1411, 16
  %v1499 = vpop.permute.xlu0 %1498
  %v1501 = vmul.f32 %v1495, %v1499
  %1503 = vrot.lane.b32.xlu0 %v1496, 96
  %v1504 = vpop.permute.xlu0 %1503
  %v1506 = vmul.f32 %v1495, %v1504
  %1508 = vrot.lane.b32.xlu0 %v1506, 16
  %v1509 = vpop.permute.xlu0 %1508
  %v1511 = vadd.f32 %v1501, %v1509
  %v1512 = vtanh.pop %v1511
  %1514 = vrot.lane.b32.xlu0 %v1512, 32
  %v1515 = vpop.permute.xlu0 %1514
  %v1517 = vmul.f32 %v1495, %v1515
  %1518 = vrot.lane.b32.xlu0 %v1410, 48
  %v1519 = vpop.permute.xlu0 %1518
  %v1521 = vsel %vm1387, %v1517, %v1519
  %1523 = vrot.lane.b32.xlu0 %v1521, 80
  %v1524 = vpop.permute.xlu0 %1523
  %1526 = vst.msk [vmem:[#allocation6] sm:$0xff] %vm58, %v1524
  %v1527 = vsel %vm1387, %v1511, %v1499
  %1529 = vrot.lane.b32.xlu0 %v1527, 112
  %v1530 = vpop.permute.xlu0 %1529
  %1532 = vst.msk [vmem:[#allocation7] sm:$0xff] %vm58, %v1530
  %v1533 = vsel %vm1387, %v1517, 0.0
  %1535 = vrot.lane.b32.xlu0 %v1533, 80
  %v1536 = vpop.permute.xlu0 %1535
  %s1538 = scalar_lea.vmem [#allocation4], 32
  %1539 = vst.msk [vmem:[%s1538] sm:$0xff] %vm58, %v1536
  %v1540 = vld [vmem:[#allocation8] sm:$0xff]
  %v1541 = vld [vmem:[#allocation9] sm:$0xff]
  %s1542 = scalar_lea.vmem [#allocation3], 24
  %v1543 = vld [vmem:[%s1542] sm:$0xff]
  %v1544 = vld [vmem:[%s7] sm:$0xff]
  %v1545 = vld [vmem:[%s7 + $0x8] sm:$0xff]
  %v1547 = vsel %vm58, %v1540, 0
  %1549 = vmatprep.subr.mxu0 0.0
  %1550 = vmatpush1.msra.mxu0 0.0
  %1551 = vmatprep.subr.mxu0 0.0
  %1552 = vmatpush1.msra.mxu0 0.0
  %1553 = vmatprep.subr.mxu0 0.0
  %1554 = vmatpush1.msra.mxu0 0.0
  %1555 = vmatprep.subr.mxu0 0.0
  %1556 = vmatpush1.msra.mxu0 0.0
  %1557 = vmatprep.subr.mxu0 0.0
  %1558 = vmatpush1.msra.mxu0 0.0
  %1559 = vmatprep.subr.mxu0 0.0
  %1560 = vmatpush1.msra.mxu0 0.0
  %1561 = vmatprep.subr.mxu0 0.0
  %1562 = vmatpush1.msra.mxu0 0.0
  %1563 = vmatprep.subr.mxu0 0.0
  %1564 = vmatpush1.msra.mxu0 0.0
  %1565 = vmatprep.subr.mxu0 0.0
  %1566 = vmatpush1.msra.mxu0 0.0
  %1567 = vmatprep.subr.mxu0 0.0
  %1568 = vmatpush1.msra.mxu0 0.0
  %1569 = vmatprep.subr.mxu0 0.0
  %1570 = vmatpush1.msra.mxu0 0.0
  %1571 = vmatprep.subr.mxu0 0.0
  %1572 = vmatpush1.msra.mxu0 0.0
  %1573 = vmatprep.subr.mxu0 0.0
  %1574 = vmatpush1.msra.mxu0 0.0
  %1575 = vmatprep.subr.mxu0 0.0
  %1576 = vmatpush1.msra.mxu0 0.0
  %1577 = vmatprep.subr.mxu0 0.0
  %1578 = vmatpush1.msra.mxu0 %v1545
  %1579 = vmatprep.subr.mxu0 0.0
  %1580 = vmatpush1.msra.mxu0 %v1544
  %1581 = vmatprep.subr.mxu0 0.0
  %1582 = vmatpush2.msra.mxu0 0.0
  %1583 = vmatprep.subr.mxu0 0.0
  %1584 = vmatpush2.msra.mxu0 0.0
  %1585 = vmatprep.subr.mxu0 0.0
  %1586 = vmatpush2.msra.mxu0 0.0
  %1587 = vmatprep.subr.mxu0 0.0
  %1588 = vmatpush2.msra.mxu0 0.0
  %1589 = vmatprep.subr.mxu0 0.0
  %1590 = vmatpush2.msra.mxu0 0.0
  %1591 = vmatprep.subr.mxu0 0.0
  %1592 = vmatpush2.msra.mxu0 0.0
  %1593 = vmatprep.subr.mxu0 0.0
  %1594 = vmatpush2.msra.mxu0 0.0
  %1595 = vmatprep.subr.mxu0 0.0
  %1596 = vmatpush2.msra.mxu0 0.0
  %1597 = vmatprep.subr.mxu0 0.0
  %1598 = vmatpush2.msra.mxu0 0.0
  %1599 = vmatprep.subr.mxu0 0.0
  %1600 = vmatpush2.msra.mxu0 0.0
  %1601 = vmatprep.subr.mxu0 0.0
  %1602 = vmatpush2.msra.mxu0 0.0
  %1603 = vmatprep.subr.mxu0 0.0
  %1604 = vmatpush2.msra.mxu0 0.0
  %1605 = vmatprep.subr.mxu0 0.0
  %1606 = vmatpush2.msra.mxu0 0.0
  %1607 = vmatprep.subr.mxu0 0.0
  %1608 = vmatpush2.msra.mxu0 0.0
  %1609 = vmatprep.subr.mxu0 0.0
  %1610 = vmatpush2.msra.mxu0 0.0
  %1611 = vmatprep.subr.mxu0 0.0
  %1612 = vmatpush2.msra.mxu0 0.0
  %1613 = vmatprep.mubr.f32.mxu0 0.0
  %1614 = vmatmul.mubr.f32.gmra.mxu0 %v1547
  %v1615 = vpop.f32.mrf.mxu0
  %v1616 = vadd.f32 0.0, %v1615
  %v1617 = vpop.f32.mrf.mxu0
  %1618 = vdwg.mxu0
  %v1619 = vadd.f32 %v1543, %v1616
  %v1620 = vxor.u32 %v1619, 2147483648
  %v1621 = vmul.f32 %v1620, 1.442695
  %v1622 = vpow.pop %v1621
  %v1623 = vadd.f32 %v1622, 1.0
  %v1624 = vrcp.pop %v1623
  %v1625 = vmul.f32 1.0, %v1624
  %v1626 = vtanh.pop %v1619
  %1628 = vrot.lane.b32.xlu0 %v1541, 16
  %v1629 = vpop.permute.xlu0 %1628
  %v1631 = vmul.f32 %v1625, %v1629
  %1633 = vrot.lane.b32.xlu0 %v1626, 96
  %v1634 = vpop.permute.xlu0 %1633
  %v1636 = vmul.f32 %v1625, %v1634
  %1638 = vrot.lane.b32.xlu0 %v1636, 16
  %v1639 = vpop.permute.xlu0 %1638
  %v1641 = vadd.f32 %v1631, %v1639
  %v1642 = vtanh.pop %v1641
  %1644 = vrot.lane.b32.xlu0 %v1642, 32
  %v1645 = vpop.permute.xlu0 %1644
  %v1647 = vmul.f32 %v1625, %v1645
  %1648 = vrot.lane.b32.xlu0 %v1540, 48
  %v1649 = vpop.permute.xlu0 %1648
  %v1651 = vsel %vm1251, %v1647, %v1649
  %1653 = vrot.lane.b32.xlu0 %v1651, 80
  %v1654 = vpop.permute.xlu0 %1653
  %1656 = vst.msk [vmem:[#allocation8] sm:$0xff] %vm58, %v1654
  %v1657 = vsel %vm1251, %v1641, %v1629
  %1659 = vrot.lane.b32.xlu0 %v1657, 112
  %v1660 = vpop.permute.xlu0 %1659
  %1662 = vst.msk [vmem:[#allocation9] sm:$0xff] %vm58, %v1660
  %v1663 = vsel %vm1251, %v1647, 0.0
  %1665 = vrot.lane.b32.xlu0 %v1663, 80
  %v1666 = vpop.permute.xlu0 %1665
  %s1668 = scalar_lea.vmem [#allocation5], 24
  %1669 = vst.msk [vmem:[%s1668] sm:$0xff] %vm58, %v1666
  %v1670 = vld [vmem:[#allocation6] sm:$0xff]
  %v1671 = vld [vmem:[#allocation7] sm:$0xff]
  %s1672 = scalar_lea.vmem [#allocation2], 40
  %v1673 = vld [vmem:[%s1672] sm:$0xff]
  %v1674 = vld [vmem:[%s4] sm:$0xff]
  %v1675 = vld [vmem:[%s4 + $0x8] sm:$0xff]
  %v1677 = vsel %vm58, %v1670, 0
  %1679 = vmatprep.subr.mxu0 0.0
  %1680 = vmatpush1.msra.mxu0 0.0
  %1681 = vmatprep.subr.mxu0 0.0
  %1682 = vmatpush1.msra.mxu0 0.0
  %1683 = vmatprep.subr.mxu0 0.0
  %1684 = vmatpush1.msra.mxu0 0.0
  %1685 = vmatprep.subr.mxu0 0.0
  %1686 = vmatpush1.msra.mxu0 0.0
  %1687 = vmatprep.subr.mxu0 0.0
  %1688 = vmatpush1.msra.mxu0 0.0
  %1689 = vmatprep.subr.mxu0 0.0
  %1690 = vmatpush1.msra.mxu0 0.0
  %1691 = vmatprep.subr.mxu0 0.0
  %1692 = vmatpush1.msra.mxu0 0.0
  %1693 = vmatprep.subr.mxu0 0.0
  %1694 = vmatpush1.msra.mxu0 0.0
  %1695 = vmatprep.subr.mxu0 0.0
  %1696 = vmatpush1.msra.mxu0 0.0
  %1697 = vmatprep.subr.mxu0 0.0
  %1698 = vmatpush1.msra.mxu0 0.0
  %1699 = vmatprep.subr.mxu0 0.0
  %1700 = vmatpush1.msra.mxu0 0.0
  %1701 = vmatprep.subr.mxu0 0.0
  %1702 = vmatpush1.msra.mxu0 0.0
  %1703 = vmatprep.subr.mxu0 0.0
  %1704 = vmatpush1.msra.mxu0 0.0
  %1705 = vmatprep.subr.mxu0 0.0
  %1706 = vmatpush1.msra.mxu0 0.0
  %1707 = vmatprep.subr.mxu0 0.0
  %1708 = vmatpush1.msra.mxu0 %v1675
  %1709 = vmatprep.subr.mxu0 0.0
  %1710 = vmatpush1.msra.mxu0 %v1674
  %1711 = vmatprep.subr.mxu0 0.0
  %1712 = vmatpush2.msra.mxu0 0.0
  %1713 = vmatprep.subr.mxu0 0.0
  %1714 = vmatpush2.msra.mxu0 0.0
  %1715 = vmatprep.subr.mxu0 0.0
  %1716 = vmatpush2.msra.mxu0 0.0
  %1717 = vmatprep.subr.mxu0 0.0
  %1718 = vmatpush2.msra.mxu0 0.0
  %1719 = vmatprep.subr.mxu0 0.0
  %1720 = vmatpush2.msra.mxu0 0.0
  %1721 = vmatprep.subr.mxu0 0.0
  %1722 = vmatpush2.msra.mxu0 0.0
  %1723 = vmatprep.subr.mxu0 0.0
  %1724 = vmatpush2.msra.mxu0 0.0
  %1725 = vmatprep.subr.mxu0 0.0
  %1726 = vmatpush2.msra.mxu0 0.0
  %1727 = vmatprep.subr.mxu0 0.0
  %1728 = vmatpush2.msra.mxu0 0.0
  %1729 = vmatprep.subr.mxu0 0.0
  %1730 = vmatpush2.msra.mxu0 0.0
  %1731 = vmatprep.subr.mxu0 0.0
  %1732 = vmatpush2.msra.mxu0 0.0
  %1733 = vmatprep.subr.mxu0 0.0
  %1734 = vmatpush2.msra.mxu0 0.0
  %1735 = vmatprep.subr.mxu0 0.0
  %1736 = vmatpush2.msra.mxu0 0.0
  %1737 = vmatprep.subr.mxu0 0.0
  %1738 = vmatpush2.msra.mxu0 0.0
  %1739 = vmatprep.subr.mxu0 0.0
  %1740 = vmatpush2.msra.mxu0 0.0
  %1741 = vmatprep.subr.mxu0 0.0
  %1742 = vmatpush2.msra.mxu0 0.0
  %1743 = vmatprep.mubr.f32.mxu0 0.0
  %1744 = vmatmul.mubr.f32.gmra.mxu0 %v1677
  %v1745 = vpop.f32.mrf.mxu0
  %v1746 = vadd.f32 0.0, %v1745
  %v1747 = vpop.f32.mrf.mxu0
  %1748 = vdwg.mxu0
  %v1749 = vadd.f32 %v1673, %v1746
  %v1750 = vxor.u32 %v1749, 2147483648
  %v1751 = vmul.f32 %v1750, 1.442695
  %v1752 = vpow.pop %v1751
  %v1753 = vadd.f32 %v1752, 1.0
  %v1754 = vrcp.pop %v1753
  %v1755 = vmul.f32 1.0, %v1754
  %v1756 = vtanh.pop %v1749
  %1758 = vrot.lane.b32.xlu0 %v1671, 16
  %v1759 = vpop.permute.xlu0 %1758
  %v1761 = vmul.f32 %v1755, %v1759
  %1763 = vrot.lane.b32.xlu0 %v1756, 96
  %v1764 = vpop.permute.xlu0 %1763
  %v1766 = vmul.f32 %v1755, %v1764
  %1768 = vrot.lane.b32.xlu0 %v1766, 16
  %v1769 = vpop.permute.xlu0 %1768
  %v1771 = vadd.f32 %v1761, %v1769
  %v1772 = vtanh.pop %v1771
  %1774 = vrot.lane.b32.xlu0 %v1772, 32
  %v1775 = vpop.permute.xlu0 %1774
  %v1777 = vmul.f32 %v1755, %v1775
  %1778 = vrot.lane.b32.xlu0 %v1670, 48
  %v1779 = vpop.permute.xlu0 %1778
  %v1781 = vsel %vm1115, %v1777, %v1779
  %1783 = vrot.lane.b32.xlu0 %v1781, 80
  %v1784 = vpop.permute.xlu0 %1783
  %1786 = vst.msk [vmem:[#allocation6] sm:$0xff] %vm58, %v1784
  %v1787 = vsel %vm1115, %v1771, %v1759
  %1789 = vrot.lane.b32.xlu0 %v1787, 112
  %v1790 = vpop.permute.xlu0 %1789
  %1792 = vst.msk [vmem:[#allocation7] sm:$0xff] %vm58, %v1790
  %v1793 = vsel %vm1115, %v1777, 0.0
  %1795 = vrot.lane.b32.xlu0 %v1793, 80
  %v1796 = vpop.permute.xlu0 %1795
  %s1798 = scalar_lea.vmem [#allocation4], 40
  %1799 = vst.msk [vmem:[%s1798] sm:$0xff] %vm58, %v1796
  %v1800 = vld [vmem:[#allocation8] sm:$0xff]
  %v1801 = vld [vmem:[#allocation9] sm:$0xff]
  %s1802 = scalar_lea.vmem [#allocation3], 16
  %v1803 = vld [vmem:[%s1802] sm:$0xff]
  %v1804 = vld [vmem:[%s7] sm:$0xff]
  %v1805 = vld [vmem:[%s7 + $0x8] sm:$0xff]
  %v1807 = vsel %vm58, %v1800, 0
  %1809 = vmatprep.subr.mxu0 0.0
  %1810 = vmatpush1.msra.mxu0 0.0
  %1811 = vmatprep.subr.mxu0 0.0
  %1812 = vmatpush1.msra.mxu0 0.0
  %1813 = vmatprep.subr.mxu0 0.0
  %1814 = vmatpush1.msra.mxu0 0.0
  %1815 = vmatprep.subr.mxu0 0.0
  %1816 = vmatpush1.msra.mxu0 0.0
  %1817 = vmatprep.subr.mxu0 0.0
  %1818 = vmatpush1.msra.mxu0 0.0
  %1819 = vmatprep.subr.mxu0 0.0
  %1820 = vmatpush1.msra.mxu0 0.0
  %1821 = vmatprep.subr.mxu0 0.0
  %1822 = vmatpush1.msra.mxu0 0.0
  %1823 = vmatprep.subr.mxu0 0.0
  %1824 = vmatpush1.msra.mxu0 0.0
  %1825 = vmatprep.subr.mxu0 0.0
  %1826 = vmatpush1.msra.mxu0 0.0
  %1827 = vmatprep.subr.mxu0 0.0
  %1828 = vmatpush1.msra.mxu0 0.0
  %1829 = vmatprep.subr.mxu0 0.0
  %1830 = vmatpush1.msra.mxu0 0.0
  %1831 = vmatprep.subr.mxu0 0.0
  %1832 = vmatpush1.msra.mxu0 0.0
  %1833 = vmatprep.subr.mxu0 0.0
  %1834 = vmatpush1.msra.mxu0 0.0
  %1835 = vmatprep.subr.mxu0 0.0
  %1836 = vmatpush1.msra.mxu0 0.0
  %1837 = vmatprep.subr.mxu0 0.0
  %1838 = vmatpush1.msra.mxu0 %v1805
  %1839 = vmatprep.subr.mxu0 0.0
  %1840 = vmatpush1.msra.mxu0 %v1804
  %1841 = vmatprep.subr.mxu0 0.0
  %1842 = vmatpush2.msra.mxu0 0.0
  %1843 = vmatprep.subr.mxu0 0.0
  %1844 = vmatpush2.msra.mxu0 0.0
  %1845 = vmatprep.subr.mxu0 0.0
  %1846 = vmatpush2.msra.mxu0 0.0
  %1847 = vmatprep.subr.mxu0 0.0
  %1848 = vmatpush2.msra.mxu0 0.0
  %1849 = vmatprep.subr.mxu0 0.0
  %1850 = vmatpush2.msra.mxu0 0.0
  %1851 = vmatprep.subr.mxu0 0.0
  %1852 = vmatpush2.msra.mxu0 0.0
  %1853 = vmatprep.subr.mxu0 0.0
  %1854 = vmatpush2.msra.mxu0 0.0
  %1855 = vmatprep.subr.mxu0 0.0
  %1856 = vmatpush2.msra.mxu0 0.0
  %1857 = vmatprep.subr.mxu0 0.0
  %1858 = vmatpush2.msra.mxu0 0.0
  %1859 = vmatprep.subr.mxu0 0.0
  %1860 = vmatpush2.msra.mxu0 0.0
  %1861 = vmatprep.subr.mxu0 0.0
  %1862 = vmatpush2.msra.mxu0 0.0
  %1863 = vmatprep.subr.mxu0 0.0
  %1864 = vmatpush2.msra.mxu0 0.0
  %1865 = vmatprep.subr.mxu0 0.0
  %1866 = vmatpush2.msra.mxu0 0.0
  %1867 = vmatprep.subr.mxu0 0.0
  %1868 = vmatpush2.msra.mxu0 0.0
  %1869 = vmatprep.subr.mxu0 0.0
  %1870 = vmatpush2.msra.mxu0 0.0
  %1871 = vmatprep.subr.mxu0 0.0
  %1872 = vmatpush2.msra.mxu0 0.0
  %1873 = vmatprep.mubr.f32.mxu0 0.0
  %1874 = vmatmul.mubr.f32.gmra.mxu0 %v1807
  %v1875 = vpop.f32.mrf.mxu0
  %v1876 = vadd.f32 0.0, %v1875
  %v1877 = vpop.f32.mrf.mxu0
  %1878 = vdwg.mxu0
  %v1879 = vadd.f32 %v1803, %v1876
  %v1880 = vxor.u32 %v1879, 2147483648
  %v1881 = vmul.f32 %v1880, 1.442695
  %v1882 = vpow.pop %v1881
  %v1883 = vadd.f32 %v1882, 1.0
  %v1884 = vrcp.pop %v1883
  %v1885 = vmul.f32 1.0, %v1884
  %v1886 = vtanh.pop %v1879
  %1888 = vrot.lane.b32.xlu0 %v1801, 16
  %v1889 = vpop.permute.xlu0 %1888
  %v1891 = vmul.f32 %v1885, %v1889
  %1893 = vrot.lane.b32.xlu0 %v1886, 96
  %v1894 = vpop.permute.xlu0 %1893
  %v1896 = vmul.f32 %v1885, %v1894
  %1898 = vrot.lane.b32.xlu0 %v1896, 16
  %v1899 = vpop.permute.xlu0 %1898
  %v1901 = vadd.f32 %v1891, %v1899
  %v1902 = vtanh.pop %v1901
  %1904 = vrot.lane.b32.xlu0 %v1902, 32
  %v1905 = vpop.permute.xlu0 %1904
  %v1907 = vmul.f32 %v1885, %v1905
  %1908 = vrot.lane.b32.xlu0 %v1800, 48
  %v1909 = vpop.permute.xlu0 %1908
  %v1911 = vsel %vm979, %v1907, %v1909
  %1913 = vrot.lane.b32.xlu0 %v1911, 80
  %v1914 = vpop.permute.xlu0 %1913
  %1916 = vst.msk [vmem:[#allocation8] sm:$0xff] %vm58, %v1914
  %v1917 = vsel %vm979, %v1901, %v1889
  %1919 = vrot.lane.b32.xlu0 %v1917, 112
  %v1920 = vpop.permute.xlu0 %1919
  %1922 = vst.msk [vmem:[#allocation9] sm:$0xff] %vm58, %v1920
  %v1923 = vsel %vm979, %v1907, 0.0
  %1925 = vrot.lane.b32.xlu0 %v1923, 80
  %v1926 = vpop.permute.xlu0 %1925
  %s1928 = scalar_lea.vmem [#allocation5], 16
  %1929 = vst.msk [vmem:[%s1928] sm:$0xff] %vm58, %v1926
  %v1930 = vld [vmem:[#allocation6] sm:$0xff]
  %v1931 = vld [vmem:[#allocation7] sm:$0xff]
  %s1932 = scalar_lea.vmem [#allocation2], 48
  %v1933 = vld [vmem:[%s1932] sm:$0xff]
  %v1934 = vld [vmem:[%s4] sm:$0xff]
  %v1935 = vld [vmem:[%s4 + $0x8] sm:$0xff]
  %v1937 = vsel %vm58, %v1930, 0
  %1939 = vmatprep.subr.mxu0 0.0
  %1940 = vmatpush1.msra.mxu0 0.0
  %1941 = vmatprep.subr.mxu0 0.0
  %1942 = vmatpush1.msra.mxu0 0.0
  %1943 = vmatprep.subr.mxu0 0.0
  %1944 = vmatpush1.msra.mxu0 0.0
  %1945 = vmatprep.subr.mxu0 0.0
  %1946 = vmatpush1.msra.mxu0 0.0
  %1947 = vmatprep.subr.mxu0 0.0
  %1948 = vmatpush1.msra.mxu0 0.0
  %1949 = vmatprep.subr.mxu0 0.0
  %1950 = vmatpush1.msra.mxu0 0.0
  %1951 = vmatprep.subr.mxu0 0.0
  %1952 = vmatpush1.msra.mxu0 0.0
  %1953 = vmatprep.subr.mxu0 0.0
  %1954 = vmatpush1.msra.mxu0 0.0
  %1955 = vmatprep.subr.mxu0 0.0
  %1956 = vmatpush1.msra.mxu0 0.0
  %1957 = vmatprep.subr.mxu0 0.0
  %1958 = vmatpush1.msra.mxu0 0.0
  %1959 = vmatprep.subr.mxu0 0.0
  %1960 = vmatpush1.msra.mxu0 0.0
  %1961 = vmatprep.subr.mxu0 0.0
  %1962 = vmatpush1.msra.mxu0 0.0
  %1963 = vmatprep.subr.mxu0 0.0
  %1964 = vmatpush1.msra.mxu0 0.0
  %1965 = vmatprep.subr.mxu0 0.0
  %1966 = vmatpush1.msra.mxu0 0.0
  %1967 = vmatprep.subr.mxu0 0.0
  %1968 = vmatpush1.msra.mxu0 %v1935
  %1969 = vmatprep.subr.mxu0 0.0
  %1970 = vmatpush1.msra.mxu0 %v1934
  %1971 = vmatprep.subr.mxu0 0.0
  %1972 = vmatpush2.msra.mxu0 0.0
  %1973 = vmatprep.subr.mxu0 0.0
  %1974 = vmatpush2.msra.mxu0 0.0
  %1975 = vmatprep.subr.mxu0 0.0
  %1976 = vmatpush2.msra.mxu0 0.0
  %1977 = vmatprep.subr.mxu0 0.0
  %1978 = vmatpush2.msra.mxu0 0.0
  %1979 = vmatprep.subr.mxu0 0.0
  %1980 = vmatpush2.msra.mxu0 0.0
  %1981 = vmatprep.subr.mxu0 0.0
  %1982 = vmatpush2.msra.mxu0 0.0
  %1983 = vmatprep.subr.mxu0 0.0
  %1984 = vmatpush2.msra.mxu0 0.0
  %1985 = vmatprep.subr.mxu0 0.0
  %1986 = vmatpush2.msra.mxu0 0.0
  %1987 = vmatprep.subr.mxu0 0.0
  %1988 = vmatpush2.msra.mxu0 0.0
  %1989 = vmatprep.subr.mxu0 0.0
  %1990 = vmatpush2.msra.mxu0 0.0
  %1991 = vmatprep.subr.mxu0 0.0
  %1992 = vmatpush2.msra.mxu0 0.0
  %1993 = vmatprep.subr.mxu0 0.0
  %1994 = vmatpush2.msra.mxu0 0.0
  %1995 = vmatprep.subr.mxu0 0.0
  %1996 = vmatpush2.msra.mxu0 0.0
  %1997 = vmatprep.subr.mxu0 0.0
  %1998 = vmatpush2.msra.mxu0 0.0
  %1999 = vmatprep.subr.mxu0 0.0
  %2000 = vmatpush2.msra.mxu0 0.0
  %2001 = vmatprep.subr.mxu0 0.0
  %2002 = vmatpush2.msra.mxu0 0.0
  %2003 = vmatprep.mubr.f32.mxu0 0.0
  %2004 = vmatmul.mubr.f32.gmra.mxu0 %v1937
  %v2005 = vpop.f32.mrf.mxu0
  %v2006 = vadd.f32 0.0, %v2005
  %v2007 = vpop.f32.mrf.mxu0
  %2008 = vdwg.mxu0
  %v2009 = vadd.f32 %v1933, %v2006
  %v2010 = vxor.u32 %v2009, 2147483648
  %v2011 = vmul.f32 %v2010, 1.442695
  %v2012 = vpow.pop %v2011
  %v2013 = vadd.f32 %v2012, 1.0
  %v2014 = vrcp.pop %v2013
  %v2015 = vmul.f32 1.0, %v2014
  %v2016 = vtanh.pop %v2009
  %2018 = vrot.lane.b32.xlu0 %v1931, 16
  %v2019 = vpop.permute.xlu0 %2018
  %v2021 = vmul.f32 %v2015, %v2019
  %2023 = vrot.lane.b32.xlu0 %v2016, 96
  %v2024 = vpop.permute.xlu0 %2023
  %v2026 = vmul.f32 %v2015, %v2024
  %2028 = vrot.lane.b32.xlu0 %v2026, 16
  %v2029 = vpop.permute.xlu0 %2028
  %v2031 = vadd.f32 %v2021, %v2029
  %v2032 = vtanh.pop %v2031
  %2034 = vrot.lane.b32.xlu0 %v2032, 32
  %v2035 = vpop.permute.xlu0 %2034
  %v2037 = vmul.f32 %v2015, %v2035
  %2038 = vrot.lane.b32.xlu0 %v1930, 48
  %v2039 = vpop.permute.xlu0 %2038
  %v2041 = vsel %vm843, %v2037, %v2039
  %2043 = vrot.lane.b32.xlu0 %v2041, 80
  %v2044 = vpop.permute.xlu0 %2043
  %2046 = vst.msk [vmem:[#allocation6] sm:$0xff] %vm58, %v2044
  %v2047 = vsel %vm843, %v2031, %v2019
  %2049 = vrot.lane.b32.xlu0 %v2047, 112
  %v2050 = vpop.permute.xlu0 %2049
  %2052 = vst.msk [vmem:[#allocation7] sm:$0xff] %vm58, %v2050
  %v2053 = vsel %vm843, %v2037, 0.0
  %2055 = vrot.lane.b32.xlu0 %v2053, 80
  %v2056 = vpop.permute.xlu0 %2055
  %s2058 = scalar_lea.vmem [#allocation4], 48
  %2059 = vst.msk [vmem:[%s2058] sm:$0xff] %vm58, %v2056
  %v2060 = vld [vmem:[#allocation8] sm:$0xff]
  %v2061 = vld [vmem:[#allocation9] sm:$0xff]
  %s2062 = scalar_lea.vmem [#allocation3], 8
  %v2063 = vld [vmem:[%s2062] sm:$0xff]
  %v2064 = vld [vmem:[%s7] sm:$0xff]
  %v2065 = vld [vmem:[%s7 + $0x8] sm:$0xff]
  %v2067 = vsel %vm58, %v2060, 0
  %2069 = vmatprep.subr.mxu0 0.0
  %2070 = vmatpush1.msra.mxu0 0.0
  %2071 = vmatprep.subr.mxu0 0.0
  %2072 = vmatpush1.msra.mxu0 0.0
  %2073 = vmatprep.subr.mxu0 0.0
  %2074 = vmatpush1.msra.mxu0 0.0
  %2075 = vmatprep.subr.mxu0 0.0
  %2076 = vmatpush1.msra.mxu0 0.0
  %2077 = vmatprep.subr.mxu0 0.0
  %2078 = vmatpush1.msra.mxu0 0.0
  %2079 = vmatprep.subr.mxu0 0.0
  %2080 = vmatpush1.msra.mxu0 0.0
  %2081 = vmatprep.subr.mxu0 0.0
  %2082 = vmatpush1.msra.mxu0 0.0
  %2083 = vmatprep.subr.mxu0 0.0
  %2084 = vmatpush1.msra.mxu0 0.0
  %2085 = vmatprep.subr.mxu0 0.0
  %2086 = vmatpush1.msra.mxu0 0.0
  %2087 = vmatprep.subr.mxu0 0.0
  %2088 = vmatpush1.msra.mxu0 0.0
  %2089 = vmatprep.subr.mxu0 0.0
  %2090 = vmatpush1.msra.mxu0 0.0
  %2091 = vmatprep.subr.mxu0 0.0
  %2092 = vmatpush1.msra.mxu0 0.0
  %2093 = vmatprep.subr.mxu0 0.0
  %2094 = vmatpush1.msra.mxu0 0.0
  %2095 = vmatprep.subr.mxu0 0.0
  %2096 = vmatpush1.msra.mxu0 0.0
  %2097 = vmatprep.subr.mxu0 0.0
  %2098 = vmatpush1.msra.mxu0 %v2065
  %2099 = vmatprep.subr.mxu0 0.0
  %2100 = vmatpush1.msra.mxu0 %v2064
  %2101 = vmatprep.subr.mxu0 0.0
  %2102 = vmatpush2.msra.mxu0 0.0
  %2103 = vmatprep.subr.mxu0 0.0
  %2104 = vmatpush2.msra.mxu0 0.0
  %2105 = vmatprep.subr.mxu0 0.0
  %2106 = vmatpush2.msra.mxu0 0.0
  %2107 = vmatprep.subr.mxu0 0.0
  %2108 = vmatpush2.msra.mxu0 0.0
  %2109 = vmatprep.subr.mxu0 0.0
  %2110 = vmatpush2.msra.mxu0 0.0
  %2111 = vmatprep.subr.mxu0 0.0
  %2112 = vmatpush2.msra.mxu0 0.0
  %2113 = vmatprep.subr.mxu0 0.0
  %2114 = vmatpush2.msra.mxu0 0.0
  %2115 = vmatprep.subr.mxu0 0.0
  %2116 = vmatpush2.msra.mxu0 0.0
  %2117 = vmatprep.subr.mxu0 0.0
  %2118 = vmatpush2.msra.mxu0 0.0
  %2119 = vmatprep.subr.mxu0 0.0
  %2120 = vmatpush2.msra.mxu0 0.0
  %2121 = vmatprep.subr.mxu0 0.0
  %2122 = vmatpush2.msra.mxu0 0.0
  %2123 = vmatprep.subr.mxu0 0.0
  %2124 = vmatpush2.msra.mxu0 0.0
  %2125 = vmatprep.subr.mxu0 0.0
  %2126 = vmatpush2.msra.mxu0 0.0
  %2127 = vmatprep.subr.mxu0 0.0
  %2128 = vmatpush2.msra.mxu0 0.0
  %2129 = vmatprep.subr.mxu0 0.0
  %2130 = vmatpush2.msra.mxu0 0.0
  %2131 = vmatprep.subr.mxu0 0.0
  %2132 = vmatpush2.msra.mxu0 0.0
  %2133 = vmatprep.mubr.f32.mxu0 0.0
  %2134 = vmatmul.mubr.f32.gmra.mxu0 %v2067
  %v2135 = vpop.f32.mrf.mxu0
  %v2136 = vadd.f32 0.0, %v2135
  %v2137 = vpop.f32.mrf.mxu0
  %2138 = vdwg.mxu0
  %v2139 = vadd.f32 %v2063, %v2136
  %v2140 = vxor.u32 %v2139, 2147483648
  %v2141 = vmul.f32 %v2140, 1.442695
  %v2142 = vpow.pop %v2141
  %v2143 = vadd.f32 %v2142, 1.0
  %v2144 = vrcp.pop %v2143
  %v2145 = vmul.f32 1.0, %v2144
  %v2146 = vtanh.pop %v2139
  %2148 = vrot.lane.b32.xlu0 %v2061, 16
  %v2149 = vpop.permute.xlu0 %2148
  %v2151 = vmul.f32 %v2145, %v2149
  %2153 = vrot.lane.b32.xlu0 %v2146, 96
  %v2154 = vpop.permute.xlu0 %2153
  %v2156 = vmul.f32 %v2145, %v2154
  %2158 = vrot.lane.b32.xlu0 %v2156, 16
  %v2159 = vpop.permute.xlu0 %2158
  %v2161 = vadd.f32 %v2151, %v2159
  %v2162 = vtanh.pop %v2161
  %2164 = vrot.lane.b32.xlu0 %v2162, 32
  %v2165 = vpop.permute.xlu0 %2164
  %v2167 = vmul.f32 %v2145, %v2165
  %2168 = vrot.lane.b32.xlu0 %v2060, 48
  %v2169 = vpop.permute.xlu0 %2168
  %v2171 = vsel %vm707, %v2167, %v2169
  %2173 = vrot.lane.b32.xlu0 %v2171, 80
  %v2174 = vpop.permute.xlu0 %2173
  %2176 = vst.msk [vmem:[#allocation8] sm:$0xff] %vm58, %v2174
  %v2177 = vsel %vm707, %v2161, %v2149
  %2179 = vrot.lane.b32.xlu0 %v2177, 112
  %v2180 = vpop.permute.xlu0 %2179
  %2182 = vst.msk [vmem:[#allocation9] sm:$0xff] %vm58, %v2180
  %v2183 = vsel %vm707, %v2167, 0.0
  %2185 = vrot.lane.b32.xlu0 %v2183, 80
  %v2186 = vpop.permute.xlu0 %2185
  %s2188 = scalar_lea.vmem [#allocation5], 8
  %2189 = vst.msk [vmem:[%s2188] sm:$0xff] %vm58, %v2186
  %v2190 = vld [vmem:[#allocation6] sm:$0xff]
  %v2191 = vld [vmem:[#allocation7] sm:$0xff]
  %s2192 = scalar_lea.vmem [#allocation2], 56
  %v2193 = vld [vmem:[%s2192] sm:$0xff]
  %v2194 = vld [vmem:[%s4] sm:$0xff]
  %v2195 = vld [vmem:[%s4 + $0x8] sm:$0xff]
  %v2197 = vsel %vm58, %v2190, 0
  %2199 = vmatprep.subr.mxu0 0.0
  %2200 = vmatpush1.msra.mxu0 0.0
  %2201 = vmatprep.subr.mxu0 0.0
  %2202 = vmatpush1.msra.mxu0 0.0
  %2203 = vmatprep.subr.mxu0 0.0
  %2204 = vmatpush1.msra.mxu0 0.0
  %2205 = vmatprep.subr.mxu0 0.0
  %2206 = vmatpush1.msra.mxu0 0.0
  %2207 = vmatprep.subr.mxu0 0.0
  %2208 = vmatpush1.msra.mxu0 0.0
  %2209 = vmatprep.subr.mxu0 0.0
  %2210 = vmatpush1.msra.mxu0 0.0
  %2211 = vmatprep.subr.mxu0 0.0
  %2212 = vmatpush1.msra.mxu0 0.0
  %2213 = vmatprep.subr.mxu0 0.0
  %2214 = vmatpush1.msra.mxu0 0.0
  %2215 = vmatprep.subr.mxu0 0.0
  %2216 = vmatpush1.msra.mxu0 0.0
  %2217 = vmatprep.subr.mxu0 0.0
  %2218 = vmatpush1.msra.mxu0 0.0
  %2219 = vmatprep.subr.mxu0 0.0
  %2220 = vmatpush1.msra.mxu0 0.0
  %2221 = vmatprep.subr.mxu0 0.0
  %2222 = vmatpush1.msra.mxu0 0.0
  %2223 = vmatprep.subr.mxu0 0.0
  %2224 = vmatpush1.msra.mxu0 0.0
  %2225 = vmatprep.subr.mxu0 0.0
  %2226 = vmatpush1.msra.mxu0 0.0
  %2227 = vmatprep.subr.mxu0 0.0
  %2228 = vmatpush1.msra.mxu0 %v2195
  %2229 = vmatprep.subr.mxu0 0.0
  %2230 = vmatpush1.msra.mxu0 %v2194
  %2231 = vmatprep.subr.mxu0 0.0
  %2232 = vmatpush2.msra.mxu0 0.0
  %2233 = vmatprep.subr.mxu0 0.0
  %2234 = vmatpush2.msra.mxu0 0.0
  %2235 = vmatprep.subr.mxu0 0.0
  %2236 = vmatpush2.msra.mxu0 0.0
  %2237 = vmatprep.subr.mxu0 0.0
  %2238 = vmatpush2.msra.mxu0 0.0
  %2239 = vmatprep.subr.mxu0 0.0
  %2240 = vmatpush2.msra.mxu0 0.0
  %2241 = vmatprep.subr.mxu0 0.0
  %2242 = vmatpush2.msra.mxu0 0.0
  %2243 = vmatprep.subr.mxu0 0.0
  %2244 = vmatpush2.msra.mxu0 0.0
  %2245 = vmatprep.subr.mxu0 0.0
  %2246 = vmatpush2.msra.mxu0 0.0
  %2247 = vmatprep.subr.mxu0 0.0
  %2248 = vmatpush2.msra.mxu0 0.0
  %2249 = vmatprep.subr.mxu0 0.0
  %2250 = vmatpush2.msra.mxu0 0.0
  %2251 = vmatprep.subr.mxu0 0.0
  %2252 = vmatpush2.msra.mxu0 0.0
  %2253 = vmatprep.subr.mxu0 0.0
  %2254 = vmatpush2.msra.mxu0 0.0
  %2255 = vmatprep.subr.mxu0 0.0
  %2256 = vmatpush2.msra.mxu0 0.0
  %2257 = vmatprep.subr.mxu0 0.0
  %2258 = vmatpush2.msra.mxu0 0.0
  %2259 = vmatprep.subr.mxu0 0.0
  %2260 = vmatpush2.msra.mxu0 0.0
  %2261 = vmatprep.subr.mxu0 0.0
  %2262 = vmatpush2.msra.mxu0 0.0
  %2263 = vmatprep.mubr.f32.mxu0 0.0
  %2264 = vmatmul.mubr.f32.gmra.mxu0 %v2197
  %v2265 = vpop.f32.mrf.mxu0
  %v2266 = vadd.f32 0.0, %v2265
  %v2267 = vpop.f32.mrf.mxu0
  %2268 = vdwg.mxu0
  %v2269 = vadd.f32 %v2193, %v2266
  %v2270 = vxor.u32 %v2269, 2147483648
  %v2271 = vmul.f32 %v2270, 1.442695
  %v2272 = vpow.pop %v2271
  %v2273 = vadd.f32 %v2272, 1.0
  %v2274 = vrcp.pop %v2273
  %v2275 = vmul.f32 1.0, %v2274
  %v2276 = vtanh.pop %v2269
  %2278 = vrot.lane.b32.xlu0 %v2191, 16
  %v2279 = vpop.permute.xlu0 %2278
  %v2281 = vmul.f32 %v2275, %v2279
  %2283 = vrot.lane.b32.xlu0 %v2276, 96
  %v2284 = vpop.permute.xlu0 %2283
  %v2286 = vmul.f32 %v2275, %v2284
  %2288 = vrot.lane.b32.xlu0 %v2286, 16
  %v2289 = vpop.permute.xlu0 %2288
  %v2291 = vadd.f32 %v2281, %v2289
  %v2292 = vtanh.pop %v2291
  %2294 = vrot.lane.b32.xlu0 %v2292, 32
  %v2295 = vpop.permute.xlu0 %2294
  %v2297 = vmul.f32 %v2275, %v2295
  %2298 = vrot.lane.b32.xlu0 %v2190, 48
  %v2299 = vpop.permute.xlu0 %2298
  %v2301 = vsel %vm571, %v2297, %v2299
  %2303 = vrot.lane.b32.xlu0 %v2301, 80
  %v2304 = vpop.permute.xlu0 %2303
  %2306 = vst.msk [vmem:[#allocation6] sm:$0xff] %vm58, %v2304
  %v2307 = vsel %vm571, %v2291, %v2279
  %2309 = vrot.lane.b32.xlu0 %v2307, 112
  %v2310 = vpop.permute.xlu0 %2309
  %2312 = vst.msk [vmem:[#allocation7] sm:$0xff] %vm58, %v2310
  %v2313 = vsel %vm571, %v2297, 0.0
  %2315 = vrot.lane.b32.xlu0 %v2313, 80
  %v2316 = vpop.permute.xlu0 %2315
  %s2318 = scalar_lea.vmem [#allocation4], 56
  %2319 = vst.msk [vmem:[%s2318] sm:$0xff] %vm58, %v2316
  %v2320 = vld [vmem:[#allocation8] sm:$0xff]
  %v2321 = vld [vmem:[#allocation9] sm:$0xff]
  %v2322 = vld [vmem:[#allocation3] sm:$0xff]
  %v2323 = vld [vmem:[%s7] sm:$0xff]
  %v2324 = vld [vmem:[%s7 + $0x8] sm:$0xff]
  %v2326 = vsel %vm58, %v2320, 0
  %2328 = vmatprep.subr.mxu0 0.0
  %2329 = vmatpush1.msra.mxu0 0.0
  %2330 = vmatprep.subr.mxu0 0.0
  %2331 = vmatpush1.msra.mxu0 0.0
  %2332 = vmatprep.subr.mxu0 0.0
  %2333 = vmatpush1.msra.mxu0 0.0
  %2334 = vmatprep.subr.mxu0 0.0
  %2335 = vmatpush1.msra.mxu0 0.0
  %2336 = vmatprep.subr.mxu0 0.0
  %2337 = vmatpush1.msra.mxu0 0.0
  %2338 = vmatprep.subr.mxu0 0.0
  %2339 = vmatpush1.msra.mxu0 0.0
  %2340 = vmatprep.subr.mxu0 0.0
  %2341 = vmatpush1.msra.mxu0 0.0
  %2342 = vmatprep.subr.mxu0 0.0
  %2343 = vmatpush1.msra.mxu0 0.0
  %2344 = vmatprep.subr.mxu0 0.0
  %2345 = vmatpush1.msra.mxu0 0.0
  %2346 = vmatprep.subr.mxu0 0.0
  %2347 = vmatpush1.msra.mxu0 0.0
  %2348 = vmatprep.subr.mxu0 0.0
  %2349 = vmatpush1.msra.mxu0 0.0
  %2350 = vmatprep.subr.mxu0 0.0
  %2351 = vmatpush1.msra.mxu0 0.0
  %2352 = vmatprep.subr.mxu0 0.0
  %2353 = vmatpush1.msra.mxu0 0.0
  %2354 = vmatprep.subr.mxu0 0.0
  %2355 = vmatpush1.msra.mxu0 0.0
  %2356 = vmatprep.subr.mxu0 0.0
  %2357 = vmatpush1.msra.mxu0 %v2324
  %2358 = vmatprep.subr.mxu0 0.0
  %2359 = vmatpush1.msra.mxu0 %v2323
  %2360 = vmatprep.subr.mxu0 0.0
  %2361 = vmatpush2.msra.mxu0 0.0
  %2362 = vmatprep.subr.mxu0 0.0
  %2363 = vmatpush2.msra.mxu0 0.0
  %2364 = vmatprep.subr.mxu0 0.0
  %2365 = vmatpush2.msra.mxu0 0.0
  %2366 = vmatprep.subr.mxu0 0.0
  %2367 = vmatpush2.msra.mxu0 0.0
  %2368 = vmatprep.subr.mxu0 0.0
  %2369 = vmatpush2.msra.mxu0 0.0
  %2370 = vmatprep.subr.mxu0 0.0
  %2371 = vmatpush2.msra.mxu0 0.0
  %2372 = vmatprep.subr.mxu0 0.0
  %2373 = vmatpush2.msra.mxu0 0.0
  %2374 = vmatprep.subr.mxu0 0.0
  %2375 = vmatpush2.msra.mxu0 0.0
  %2376 = vmatprep.subr.mxu0 0.0
  %2377 = vmatpush2.msra.mxu0 0.0
  %2378 = vmatprep.subr.mxu0 0.0
  %2379 = vmatpush2.msra.mxu0 0.0
  %2380 = vmatprep.subr.mxu0 0.0
  %2381 = vmatpush2.msra.mxu0 0.0
  %2382 = vmatprep.subr.mxu0 0.0
  %2383 = vmatpush2.msra.mxu0 0.0
  %2384 = vmatprep.subr.mxu0 0.0
  %2385 = vmatpush2.msra.mxu0 0.0
  %2386 = vmatprep.subr.mxu0 0.0
  %2387 = vmatpush2.msra.mxu0 0.0
  %2388 = vmatprep.subr.mxu0 0.0
  %2389 = vmatpush2.msra.mxu0 0.0
  %2390 = vmatprep.subr.mxu0 0.0
  %2391 = vmatpush2.msra.mxu0 0.0
  %2392 = vmatprep.mubr.f32.mxu0 0.0
  %2393 = vmatmul.mubr.f32.gmra.mxu0 %v2326
  %v2394 = vpop.f32.mrf.mxu0
  %v2395 = vadd.f32 0.0, %v2394
  %v2396 = vpop.f32.mrf.mxu0
  %2397 = vdwg.mxu0
  %v2398 = vadd.f32 %v2322, %v2395
  %v2399 = vxor.u32 %v2398, 2147483648
  %v2400 = vmul.f32 %v2399, 1.442695
  %v2401 = vpow.pop %v2400
  %v2402 = vadd.f32 %v2401, 1.0
  %v2403 = vrcp.pop %v2402
  %v2404 = vmul.f32 1.0, %v2403
  %v2405 = vtanh.pop %v2398
  %2407 = vrot.lane.b32.xlu0 %v2321, 16
  %v2408 = vpop.permute.xlu0 %2407
  %v2410 = vmul.f32 %v2404, %v2408
  %2412 = vrot.lane.b32.xlu0 %v2405, 96
  %v2413 = vpop.permute.xlu0 %2412
  %v2415 = vmul.f32 %v2404, %v2413
  %2417 = vrot.lane.b32.xlu0 %v2415, 16
  %v2418 = vpop.permute.xlu0 %2417
  %v2420 = vadd.f32 %v2410, %v2418
  %v2421 = vtanh.pop %v2420
  %2423 = vrot.lane.b32.xlu0 %v2421, 32
  %v2424 = vpop.permute.xlu0 %2423
  %v2426 = vmul.f32 %v2404, %v2424
  %2427 = vrot.lane.b32.xlu0 %v2320, 48
  %v2428 = vpop.permute.xlu0 %2427
  %v2430 = vsel %vm436, %v2426, %v2428
  %2432 = vrot.lane.b32.xlu0 %v2430, 80
  %v2433 = vpop.permute.xlu0 %2432
  %2435 = vst.msk [vmem:[#allocation8] sm:$0xff] %vm58, %v2433
  %v2436 = vsel %vm436, %v2420, %v2408
  %2438 = vrot.lane.b32.xlu0 %v2436, 112
  %v2439 = vpop.permute.xlu0 %2438
  %2441 = vst.msk [vmem:[#allocation9] sm:$0xff] %vm58, %v2439
  %v2442 = vsel %vm436, %v2426, 0.0
  %2444 = vrot.lane.b32.xlu0 %v2442, 80
  %v2445 = vpop.permute.xlu0 %2444
  %2447 = vst.msk [vmem:[#allocation5] sm:$0xff] %vm58, %v2445
  %v2448 = vld [vmem:[#allocation4] sm:$0xff]
  %v2449 = vld [vmem:[#allocation4 + $0x8] sm:$0xff]
  %v2450 = vld [vmem:[#allocation4 + $0x10] sm:$0xff]
  %v2451 = vld [vmem:[#allocation4 + $0x18] sm:$0xff]
  %v2452 = vld [vmem:[#allocation4 + $0x20] sm:$0xff]
  %v2453 = vld [vmem:[#allocation4 + $0x28] sm:$0xff]
  %v2454 = vld [vmem:[#allocation4 + $0x30] sm:$0xff]
  %v2455 = vld [vmem:[#allocation4 + $0x38] sm:$0xff]
  %v2456 = vld [vmem:[#allocation5] sm:$0xff]
  %v2457 = vld [vmem:[#allocation5 + $0x8] sm:$0xff]
  %v2458 = vld [vmem:[#allocation5 + $0x10] sm:$0xff]
  %v2459 = vld [vmem:[#allocation5 + $0x18] sm:$0xff]
  %v2460 = vld [vmem:[#allocation5 + $0x20] sm:$0xff]
  %v2461 = vld [vmem:[#allocation5 + $0x28] sm:$0xff]
  %v2462 = vld [vmem:[#allocation5 + $0x30] sm:$0xff]
  %v2463 = vld [vmem:[#allocation5 + $0x38] sm:$0xff]
  %2472 = vrot.lane.b32.xlu0 %v2456, 16
  %v2473 = vpop.permute.xlu0 %2472
  %2474 = vrot.lane.b32.xlu0 %v2457, 16
  %v2475 = vpop.permute.xlu0 %2474
  %2476 = vrot.lane.b32.xlu0 %v2458, 16
  %v2477 = vpop.permute.xlu0 %2476
  %2478 = vrot.lane.b32.xlu0 %v2459, 16
  %v2479 = vpop.permute.xlu0 %2478
  %2480 = vrot.lane.b32.xlu0 %v2460, 16
  %v2481 = vpop.permute.xlu0 %2480
  %2482 = vrot.lane.b32.xlu0 %v2461, 16
  %v2483 = vpop.permute.xlu0 %2482
  %2484 = vrot.lane.b32.xlu0 %v2462, 16
  %v2485 = vpop.permute.xlu0 %2484
  %2486 = vrot.lane.b32.xlu0 %v2463, 16
  %v2487 = vpop.permute.xlu0 %2486
  %v2496 = vsel %vm58, %v2448, %v2473
  %v2497 = vsel %vm58, %v2449, %v2475
  %v2498 = vsel %vm58, %v2450, %v2477
  %v2499 = vsel %vm58, %v2451, %v2479
  %v2500 = vsel %vm58, %v2452, %v2481
  %v2501 = vsel %vm58, %v2453, %v2483
  %v2502 = vsel %vm58, %v2454, %v2485
  %v2503 = vsel %vm58, %v2455, %v2487
  %v2504 = vld [vmem:[%s9] sm:$0xff]
  %v2505 = vld [vmem:[%s9 + $0x8] sm:$0xff]
  %v2506 = vld [vmem:[%s9 + $0x10] sm:$0xff]
  %v2507 = vld [vmem:[%s9 + $0x18] sm:$0xff]
  %v2508 = vld [vmem:[%s10] sm:$0x1]
  %v2510 = vlaneseq
  %v2511 = vshrl.u32 %v2510, 7
  %v2512 = vsub.s32 0, %v2511
  %v2513 = vrot.slane %v2508, %v2512
  %vm2515 = vcmask 261120
  %v2517 = vsel %vm2515, %v2496, 0
  %v2520 = vsel %vm2515, %v2497, 0
  %v2523 = vsel %vm2515, %v2498, 0
  %v2526 = vsel %vm2515, %v2499, 0
  %v2529 = vsel %vm2515, %v2500, 0
  %v2532 = vsel %vm2515, %v2501, 0
  %v2535 = vsel %vm2515, %v2502, 0
  %v2538 = vsel %vm2515, %v2503, 0
  %2540 = vmatprep.subr.mxu0 0.0
  %2541 = vmatpush1.msra.mxu0 0.0
  %2542 = vmatprep.subr.mxu0 0.0
  %2543 = vmatpush1.msra.mxu0 0.0
  %2544 = vmatprep.subr.mxu0 0.0
  %2545 = vmatpush1.msra.mxu0 0.0
  %2546 = vmatprep.subr.mxu0 0.0
  %2547 = vmatpush1.msra.mxu0 0.0
  %2548 = vmatprep.subr.mxu0 0.0
  %2549 = vmatpush1.msra.mxu0 0.0
  %2550 = vmatprep.subr.mxu0 0.0
  %2551 = vmatpush1.msra.mxu0 0.0
  %2552 = vmatprep.subr.mxu0 0.0
  %2553 = vmatpush1.msra.mxu0 0.0
  %2554 = vmatprep.subr.mxu0 0.0
  %2555 = vmatpush1.msra.mxu0 0.0
  %2556 = vmatprep.subr.mxu0 0.0
  %2557 = vmatpush1.msra.mxu0 0.0
  %2558 = vmatprep.subr.mxu0 0.0
  %2559 = vmatpush1.msra.mxu0 0.0
  %2560 = vmatprep.subr.mxu0 0.0
  %2561 = vmatpush1.msra.mxu0 0.0
  %2562 = vmatprep.subr.mxu0 0.0
  %2563 = vmatpush1.msra.mxu0 0.0
  %2564 = vmatprep.subr.mxu0 0.0
  %2565 = vmatpush1.msra.mxu0 %v2507
  %2566 = vmatprep.subr.mxu0 0.0
  %2567 = vmatpush1.msra.mxu0 %v2506
  %2568 = vmatprep.subr.mxu0 0.0
  %2569 = vmatpush1.msra.mxu0 %v2505
  %2570 = vmatprep.subr.mxu0 0.0
  %2571 = vmatpush1.msra.mxu0 %v2504
  %2572 = vmatprep.subr.mxu0 0.0
  %2573 = vmatpush2.msra.mxu0 0.0
  %2574 = vmatprep.subr.mxu0 0.0
  %2575 = vmatpush2.msra.mxu0 0.0
  %2576 = vmatprep.subr.mxu0 0.0
  %2577 = vmatpush2.msra.mxu0 0.0
  %2578 = vmatprep.subr.mxu0 0.0
  %2579 = vmatpush2.msra.mxu0 0.0
  %2580 = vmatprep.subr.mxu0 0.0
  %2581 = vmatpush2.msra.mxu0 0.0
  %2582 = vmatprep.subr.mxu0 0.0
  %2583 = vmatpush2.msra.mxu0 0.0
  %2584 = vmatprep.subr.mxu0 0.0
  %2585 = vmatpush2.msra.mxu0 0.0
  %2586 = vmatprep.subr.mxu0 0.0
  %2587 = vmatpush2.msra.mxu0 0.0
  %2588 = vmatprep.subr.mxu0 0.0
  %2589 = vmatpush2.msra.mxu0 0.0
  %2590 = vmatprep.subr.mxu0 0.0
  %2591 = vmatpush2.msra.mxu0 0.0
  %2592 = vmatprep.subr.mxu0 0.0
  %2593 = vmatpush2.msra.mxu0 0.0
  %2594 = vmatprep.subr.mxu0 0.0
  %2595 = vmatpush2.msra.mxu0 0.0
  %2596 = vmatprep.subr.mxu0 0.0
  %2597 = vmatpush2.msra.mxu0 0.0
  %2598 = vmatprep.subr.mxu0 0.0
  %2599 = vmatpush2.msra.mxu0 0.0
  %2600 = vmatprep.subr.mxu0 0.0
  %2601 = vmatpush2.msra.mxu0 0.0
  %2602 = vmatprep.subr.mxu0 0.0
  %2603 = vmatpush2.msra.mxu0 0.0
  %2604 = vmatprep.mubr.f32.mxu0 0.0
  %2605 = vmatmul.mubr.f32.gmra.mxu0 %v2517
  %v2606 = vpop.f32.mrf.mxu0
  %v2607 = vadd.f32 %v2513, %v2606
  %v2608 = vpop.f32.mrf.mxu0
  %2609 = vmatprep.mubr.f32.mxu0 0.0
  %2610 = vmatmul.mubr.f32.gmra.mxu0 %v2520
  %v2611 = vpop.f32.mrf.mxu0
  %v2612 = vadd.f32 %v2513, %v2611
  %v2613 = vpop.f32.mrf.mxu0
  %2614 = vmatprep.mubr.f32.mxu0 0.0
  %2615 = vmatmul.mubr.f32.gmra.mxu0 %v2523
  %v2616 = vpop.f32.mrf.mxu0
  %v2617 = vadd.f32 %v2513, %v2616
  %v2618 = vpop.f32.mrf.mxu0
  %2619 = vmatprep.mubr.f32.mxu0 0.0
  %2620 = vmatmul.mubr.f32.gmra.mxu0 %v2526
  %v2621 = vpop.f32.mrf.mxu0
  %v2622 = vadd.f32 %v2513, %v2621
  %v2623 = vpop.f32.mrf.mxu0
  %2624 = vmatprep.mubr.f32.mxu0 0.0
  %2625 = vmatmul.mubr.f32.gmra.mxu0 %v2529
  %v2626 = vpop.f32.mrf.mxu0
  %v2627 = vadd.f32 %v2513, %v2626
  %v2628 = vpop.f32.mrf.mxu0
  %2629 = vmatprep.mubr.f32.mxu0 0.0
  %2630 = vmatmul.mubr.f32.gmra.mxu0 %v2532
  %v2631 = vpop.f32.mrf.mxu0
  %v2632 = vadd.f32 %v2513, %v2631
  %v2633 = vpop.f32.mrf.mxu0
  %2634 = vmatprep.mubr.f32.mxu0 0.0
  %2635 = vmatmul.mubr.f32.gmra.mxu0 %v2535
  %v2636 = vpop.f32.mrf.mxu0
  %v2637 = vadd.f32 %v2513, %v2636
  %v2638 = vpop.f32.mrf.mxu0
  %2639 = vmatprep.mubr.f32.mxu0 0.0
  %2640 = vmatmul.mubr.f32.gmra.mxu0 %v2538
  %v2641 = vpop.f32.mrf.mxu0
  %v2642 = vadd.f32 %v2513, %v2641
  %v2643 = vpop.f32.mrf.mxu0
  %2644 = vdwg.mxu0
  %v2645 = vtanh.pop %v2607
  %v2646 = vtanh.pop %v2612
  %v2647 = vtanh.pop %v2617
  %v2648 = vtanh.pop %v2622
  %v2649 = vtanh.pop %v2627
  %v2650 = vtanh.pop %v2632
  %v2651 = vtanh.pop %v2637
  %v2652 = vtanh.pop %v2642
  %v2653 = vld [vmem:[%s11] sm:$0x1]
  %v2655 = vlaneseq
  %v2656 = vshrl.u32 %v2655, 7
  %v2657 = vsub.s32 0, %v2656
  %v2658 = vrot.slane %v2653, %v2657
  %v2660 = vmul.f32 %v2645, %v2658
  %v2661 = vmul.f32 %v2646, %v2658
  %v2662 = vmul.f32 %v2647, %v2658
  %v2663 = vmul.f32 %v2648, %v2658
  %v2664 = vmul.f32 %v2649, %v2658
  %v2665 = vmul.f32 %v2650, %v2658
  %v2666 = vmul.f32 %v2651, %v2658
  %v2667 = vmul.f32 %v2652, %v2658
  %v2668 = vsel %vm58, %v2660, 0.0
  %2669 = vadd.xlane.f32.xlu0 %v2668
  %v2670 = vpop.xlane.xlu0 %2669
  %v2671 = vsel %vm58, %v2661, 0.0
  %2672 = vadd.xlane.f32.xlu0 %v2671
  %v2673 = vpop.xlane.xlu0 %2672
  %v2674 = vsel %vm58, %v2662, 0.0
  %2675 = vadd.xlane.f32.xlu0 %v2674
  %v2676 = vpop.xlane.xlu0 %2675
  %v2677 = vsel %vm58, %v2663, 0.0
  %2678 = vadd.xlane.f32.xlu0 %v2677
  %v2679 = vpop.xlane.xlu0 %2678
  %v2680 = vsel %vm58, %v2664, 0.0
  %2681 = vadd.xlane.f32.xlu0 %v2680
  %v2682 = vpop.xlane.xlu0 %2681
  %v2683 = vsel %vm58, %v2665, 0.0
  %2684 = vadd.xlane.f32.xlu0 %v2683
  %v2685 = vpop.xlane.xlu0 %2684
  %v2686 = vsel %vm58, %v2666, 0.0
  %2687 = vadd.xlane.f32.xlu0 %v2686
  %v2688 = vpop.xlane.xlu0 %2687
  %v2689 = vsel %vm58, %v2667, 0.0
  %2690 = vadd.xlane.f32.xlu0 %v2689
  %v2691 = vpop.xlane.xlu0 %2690
  %v2692 = vlaneseq
  %v2693 = vshrl.u32 %v2692, 7
  %v2694 = vld [vmem:[%s2] sm:$0x1]
  %v2695 = vlaneseq
  %v2696 = vshrl.u32 %v2695, 7
  %v2697 = vsub.s32 0, %v2696
  %v2698 = vrot.slane %v2694, %v2697
  %vm2699 = vcmp.lt.s32.totalorder %v2693, %v2698
  %v2708 = vlaneseq
  %v2709 = vand.u32 %v2708, 127
  %v2710 = vlaneseq
  %v2711 = vshrl.u32 %v2710, 7
  %v2712 = vsub.s32 %v2709, %v2711
  %v2713 = vrot.slane %v2670, %v2712
  %v2714 = vlaneseq
  %v2715 = vshrl.u32 %v2714, 7
  %v2716 = vsub.s32 %v2709, %v2715
  %v2717 = vrot.slane %v2673, %v2716
  %v2718 = vlaneseq
  %v2719 = vshrl.u32 %v2718, 7
  %v2720 = vsub.s32 %v2709, %v2719
  %v2721 = vrot.slane %v2676, %v2720
  %v2722 = vlaneseq
  %v2723 = vshrl.u32 %v2722, 7
  %v2724 = vsub.s32 %v2709, %v2723
  %v2725 = vrot.slane %v2679, %v2724
  %v2726 = vlaneseq
  %v2727 = vshrl.u32 %v2726, 7
  %v2728 = vsub.s32 %v2709, %v2727
  %v2729 = vrot.slane %v2682, %v2728
  %v2730 = vlaneseq
  %v2731 = vshrl.u32 %v2730, 7
  %v2732 = vsub.s32 %v2709, %v2731
  %v2733 = vrot.slane %v2685, %v2732
  %v2734 = vlaneseq
  %v2735 = vshrl.u32 %v2734, 7
  %v2736 = vsub.s32 %v2709, %v2735
  %v2737 = vrot.slane %v2688, %v2736
  %v2738 = vlaneseq
  %v2739 = vshrl.u32 %v2738, 7
  %v2740 = vsub.s32 %v2709, %v2739
  %v2741 = vrot.slane %v2691, %v2740
  %vm2742 = vcmask 1041409
  %v2743 = vsel %vm2742, %v2717, %v2713
  %vm2744 = vcmask 1042434
  %v2745 = vsel %vm2744, %v2721, %v2743
  %vm2746 = vcmask 1043459
  %v2747 = vsel %vm2746, %v2725, %v2745
  %vm2748 = vcmask 1044484
  %v2749 = vsel %vm2748, %v2729, %v2747
  %vm2750 = vcmask 1045509
  %v2751 = vsel %vm2750, %v2733, %v2749
  %vm2752 = vcmask 1046534
  %v2753 = vsel %vm2752, %v2737, %v2751
  %vm2754 = vcmask 1047559
  %v2755 = vsel %vm2754, %v2741, %v2753
  %v2757 = vsel %vm2699, %v2755, -1e+30
  %vm2758 = vcmask 64512
  %v2759 = vsel %vm2758, %v2757, -inf
  %v2760 = vrot.slane %v2759, 4
  %v2761 = vmax.f32 %v2759, %v2760
  %v2762 = vrot.slane %v2761, 2
  %v2763 = vmax.f32 %v2761, %v2762
  %v2764 = vrot.slane %v2763, 1
  %v2765 = vmax.f32 %v2763, %v2764
  %v2766 = vsub.f32 %v2757, %v2765
  %v2767 = vmul.f32 %v2766, 1.442695
  %v2768 = vpow.pop %v2767
  %v2769 = vsel %vm2699, %v2768, 0.0
  %v2770 = vsel %vm2758, %v2769, 0.0
  %v2771 = vrot.slane %v2770, 4
  %v2772 = vadd.f32 %v2770, %v2771
  %v2773 = vrot.slane %v2772, 2
  %v2774 = vadd.f32 %v2772, %v2773
  %v2775 = vrot.slane %v2774, 1
  %v2776 = vadd.f32 %v2774, %v2775
  %v2777 = vmax.f32 %v2776, 1e-30
  %v2778 = vrcp.pop %v2777
  %v2779 = vmul.f32 %v2769, %v2778
  %v2780 = vlaneseq
  %v2781 = vshrl.u32 %v2780, 7
  %v2782 = vsub.s32 0, %v2781
  %v2783 = vrot.slane %v2779, %v2782
  %2785 = vbcast.lane.b32.xlu0 %v2783, 256
  %v2786 = vpop.permute.xlu0 %2785
  %v2787 = vlaneseq
  %v2788 = vshrl.u32 %v2787, 7
  %v2789 = vsub.s32 1, %v2788
  %v2790 = vrot.slane %v2779, %v2789
  %2792 = vbcast.lane.b32.xlu0 %v2790, 256
  %v2793 = vpop.permute.xlu0 %2792
  %v2794 = vlaneseq
  %v2795 = vshrl.u32 %v2794, 7
  %v2796 = vsub.s32 2, %v2795
  %v2797 = vrot.slane %v2779, %v2796
  %2799 = vbcast.lane.b32.xlu0 %v2797, 256
  %v2800 = vpop.permute.xlu0 %2799
  %v2801 = vlaneseq
  %v2802 = vshrl.u32 %v2801, 7
  %v2803 = vsub.s32 3, %v2802
  %v2804 = vrot.slane %v2779, %v2803
  %2806 = vbcast.lane.b32.xlu0 %v2804, 256
  %v2807 = vpop.permute.xlu0 %2806
  %v2808 = vlaneseq
  %v2809 = vshrl.u32 %v2808, 7
  %v2810 = vsub.s32 4, %v2809
  %v2811 = vrot.slane %v2779, %v2810
  %2813 = vbcast.lane.b32.xlu0 %v2811, 256
  %v2814 = vpop.permute.xlu0 %2813
  %v2815 = vlaneseq
  %v2816 = vshrl.u32 %v2815, 7
  %v2817 = vsub.s32 5, %v2816
  %v2818 = vrot.slane %v2779, %v2817
  %2820 = vbcast.lane.b32.xlu0 %v2818, 256
  %v2821 = vpop.permute.xlu0 %2820
  %v2822 = vlaneseq
  %v2823 = vshrl.u32 %v2822, 7
  %v2824 = vsub.s32 6, %v2823
  %v2825 = vrot.slane %v2779, %v2824
  %2827 = vbcast.lane.b32.xlu0 %v2825, 256
  %v2828 = vpop.permute.xlu0 %2827
  %v2829 = vlaneseq
  %v2830 = vshrl.u32 %v2829, 7
  %v2831 = vsub.s32 7, %v2830
  %v2832 = vrot.slane %v2779, %v2831
  %2834 = vbcast.lane.b32.xlu0 %v2832, 256
  %v2835 = vpop.permute.xlu0 %2834
  %v2836 = vmul.f32 %v2496, %v2786
  %v2837 = vmul.f32 %v2497, %v2793
  %v2838 = vmul.f32 %v2498, %v2800
  %v2839 = vmul.f32 %v2499, %v2807
  %v2840 = vmul.f32 %v2500, %v2814
  %v2841 = vmul.f32 %v2501, %v2821
  %v2842 = vmul.f32 %v2502, %v2828
  %v2843 = vmul.f32 %v2503, %v2835
  %v2844 = vsel %vm2515, %v2836, 0.0
  %v2845 = vsel %vm2515, %v2837, 0.0
  %v2846 = vadd.f32 %v2844, %v2845
  %v2847 = vsel %vm2515, %v2838, 0.0
  %v2848 = vadd.f32 %v2846, %v2847
  %v2849 = vsel %vm2515, %v2839, 0.0
  %v2850 = vadd.f32 %v2848, %v2849
  %v2851 = vsel %vm2515, %v2840, 0.0
  %v2852 = vadd.f32 %v2850, %v2851
  %v2853 = vsel %vm2515, %v2841, 0.0
  %v2854 = vadd.f32 %v2852, %v2853
  %v2855 = vsel %vm2515, %v2842, 0.0
  %v2856 = vadd.f32 %v2854, %v2855
  %v2857 = vsel %vm2515, %v2843, 0.0
  %v2858 = vadd.f32 %v2856, %v2857
  %2859 = vst.msk [vmem:[%s12] sm:$0xff] %vm2515, %v2858
  // Predicated region
  $region50: #{han_forward.2} parent=0 // pred_check
    _
  $region51: #{han_forward.2} parent=0 // pred_check_branch
    %2861 = sbr.rel (0) target = $region53
  $region52: #{han_forward.2} parent=0 // pred_region
    _
  $region53: #{han_forward.2} parent=0 // pred_fallthru
    _
  // Predicated region
  $region54: #{han_forward.2} parent=0 // pred_check
    _
  $region55: #{han_forward.2} parent=0 // pred_check_branch
    %2863 = sbr.rel (0) target = $region57
  $region56: #{han_forward.2} parent=0 // pred_region
    _
  $region57: #{han_forward.2} parent=0 // pred_fallthru
    _

</llo_original>
